<compile_context>
chip_gen: v7x
topology: tpu7x:2x2x1
jax: 0.10.0
libtpu: 0.0.40
codegen_flags: <defaults>
</compile_context>

<pallas_src>
import functools
import math

import jax
import jax.numpy as jnp
import numpy as np
from jax import lax
from jax.experimental import pallas as pl
from jax.experimental.pallas import tpu as pltpu


def _vmem_limit_bytes():
    """Per-generation scoped-VMEM limit (leaves DMA/internal headroom)."""
    cap = 128 * 1024 * 1024
    try:
        info = pltpu.get_tpu_info()
        for name in ("vmem_capacity_bytes", "vmem_size_bytes", "vmem_bytes"):
            v = getattr(info, name, None)
            if v:
                cap = int(v)
                break
    except Exception:
        pass
    if cap <= 64 * 1024 * 1024:          # v7x-class: 64 MiB physical per TC
        return 52 * 1024 * 1024
    return 100 * 1024 * 1024             # v5e / v6e: 128 MiB physical


def _attnpool_kernel(x_ref, pos0_ref, posr_ref, wq_ref, bq_ref, wkv_ref,
                     bkv_ref, wc_ref, bc_ref, mcn_ref, mnc_ref, o_ref,
                     *, num_heads: int, hw_real: int, compute_dtype):
    f32 = jnp.float32
    cd = compute_dtype
    Bt, HWp, C = x_ref.shape
    hd = C // num_heads
    scale = 1.0 / math.sqrt(hd)

    x = x_ref[...]                                         # (Bt, HWp, C) f32

    # Mean/query token: padded spatial rows are zero, so sum / real-count is
    # the exact mean over the HW real tokens.
    tok0 = jnp.sum(x, axis=1) * (1.0 / hw_real) + pos0_ref[...]        # (Bt, C)
    tok0_c = tok0.astype(cd)

    # Spatial tokens: positional add fused with reshape + bf16 cast (no
    # separately-held f32 copy stays live).
    toks_c = (x + posr_ref[...][None]).reshape(Bt * HWp, C).astype(cd)

    # Fused projections on the MXU, f32 accumulation.
    q = (jnp.dot(tok0_c, wq_ref[...], preferred_element_type=f32)
         + bq_ref[...]) * scale                                        # (Bt, C)
    kv0 = jnp.dot(tok0_c, wkv_ref[...], preferred_element_type=f32) \
        + bkv_ref[...]                                                 # (Bt, 2C)
    kvr = jnp.dot(toks_c, wkv_ref[...], preferred_element_type=f32) \
        + bkv_ref[...]                                                 # (Bt*HWp, 2C)

    k0, v0 = kv0[:, :C], kv0[:, C:]                                    # (Bt, C)
    k_r = kvr[:, :C].reshape(Bt, HWp, C)                               # (Bt, HWp, C)
    v_r = kvr[:, C:].reshape(Bt, HWp, C)                               # (Bt, HWp, C)

    # One-hot head-grouping masks (hoisted to wrapper, bf16).
    mask_cn = mcn_ref[...]                                             # (C, nh)
    mask_nc = mnc_ref[...]                                             # (nh, C)

    # Scores: single query token per batch element -> VPU broadcast-multiply
    # plus a tiny one-hot matmul for the per-head reduction (bf16 operands,
    # f32 accumulation).
    s0 = jnp.dot((q * k0).astype(cd), mask_cn,
                 preferred_element_type=f32)                           # (Bt, nh)
    prod = (q[:, None, :] * k_r).reshape(Bt * HWp, C)                  # f32
    s_r = jnp.dot(prod.astype(cd), mask_cn,
                  preferred_element_type=f32).reshape(Bt, HWp, num_heads)

    # Mask padded spatial tokens out of the softmax.
    if HWp != hw_real:
        valid = lax.broadcasted_iota(jnp.int32, (HWp, 1), 0) < hw_real
        s_r = jnp.where(valid[None], s_r, -1e30)

    # Numerically stable softmax over the L = 1 + HW attention axis (f32).
    m = jnp.maximum(s0, jnp.max(s_r, axis=1))                          # (Bt, nh)
    p0 = jnp.exp(s0 - m)
    p_r = jnp.exp(s_r - m[:, None, :])
    inv = pl.reciprocal(p0 + jnp.sum(p_r, axis=1), approx=True)        # EUP slot
    p0 = p0 * inv
    p_r = p_r * inv[:, None, :]

    # Context: broadcast per-head probabilities back onto the channel lanes
    # and weight the values; reduce over the token (sublane) axis.
    p0f = jnp.dot(p0.astype(cd), mask_nc, preferred_element_type=f32)  # (Bt, C)
    prf = jnp.dot(p_r.reshape(Bt * HWp, num_heads).astype(cd), mask_nc,
                  preferred_element_type=f32).reshape(Bt, HWp, C)
    attn = p0f * v0 + jnp.sum(prf * v_r, axis=1)                       # (Bt, C)

    # Output projection into the lane-padded output slab.
    out = jnp.dot(attn.astype(cd), wc_ref[...],
                  preferred_element_type=f32) + bc_ref[...]            # (Bt, Opad)
    o_ref[...] = out.astype(o_ref.dtype)


def attention_pool_2d(x, params, *, num_heads: int, block_b: int = 32,
                      compute_dtype=jnp.bfloat16, out_dtype=jnp.float32):
    """x: (B, C, H, W) float32, NCHW like the PyTorch module.  Returns (B, O)."""
    B, C, H, W = x.shape
    HW = H * W
    L = HW + 1
    pos = params["pos"].astype(jnp.float32)                # (HW+1, C)
    assert pos.shape == (L, C)
    assert C % num_heads == 0

    # glue: NCHW -> (B, HW, C) tokens (embedding dim on the lane axis)
    x_tok = jnp.transpose(x.reshape(B, C, HW), (0, 2, 1)).astype(jnp.float32)

    # Pad spatial tokens to a sublane multiple so every in-kernel reshape stays
    # (8,128)-tile aligned (no VMEM relayout copies).  Padded rows are zero and
    # masked out of the softmax / excluded from the mean divisor in-kernel.
    HWp = ((HW + 7) // 8) * 8
    if HWp != HW:
        x_tok = jnp.pad(x_tok, ((0, 0), (0, HWp - HW), (0, 0)))

    # Batch tiling: Bt is a multiple of 8 (sublane-aligned output stores) and,
    # when the batch is large enough, the grid keeps >= 2 steps so both v7x
    # TensorCores get work via dimension_semantics=("parallel",).
    block_b = max(8, (block_b // 8) * 8)
    B8 = ((B + 7) // 8) * 8
    if B8 <= 8:
        Bt = B8
    else:
        Bt = min(block_b, ((B8 // 2 + 7) // 8) * 8)
    B_pad = ((B8 + Bt - 1) // Bt) * Bt
    if B_pad != B:
        x_tok = jnp.pad(x_tok, ((0, B_pad - B), (0, 0), (0, 0)))

    # Positional embedding split: query-token row vs (padded) spatial rows.
    pos0 = pos[0:1]                                        # (1, C)
    pos_r = pos[1:]                                        # (HW, C)
    if HWp != HW:
        pos_r = jnp.pad(pos_r, ((0, HWp - HW), (0, 0)))    # (HWp, C)

    # Weights pre-transposed to (in, out); k|v fused; MXU inputs in bf16
    # (TODO(synk): fp8 e4m3 weight path on v7x), biases kept f32.
    wq = params["wq"].T.astype(compute_dtype)                                  # (C, C)
    wkv = jnp.concatenate([params["wk"].T, params["wv"].T],
                          axis=1).astype(compute_dtype)                        # (C, 2C)
    bq = params["bq"][None, :].astype(jnp.float32)                             # (1, C)
    bkv = jnp.concatenate([params["bk"], params["bv"]])[None, :].astype(jnp.float32)

    O = params["wc"].shape[0]
    O_pad = ((O + 127) // 128) * 128                       # lane-dense output
    wc = jnp.pad(params["wc"].T.astype(compute_dtype), ((0, 0), (0, O_pad - O)))
    bc = jnp.pad(params["bc"], (0, O_pad - O))[None, :].astype(jnp.float32)

    # One-hot head-grouping masks, hoisted out of the kernel (tiny, bf16).
    hd = C // num_heads
    mcn_np = (np.arange(C)[:, None] // hd
              == np.arange(num_heads)[None, :]).astype(np.float32)
    mask_cn = jnp.asarray(mcn_np, dtype=compute_dtype)                         # (C, nh)
    mask_nc = jnp.asarray(mcn_np.T, dtype=compute_dtype)                       # (nh, C)

    kernel = functools.partial(_attnpool_kernel, num_heads=num_heads,
                               hw_real=HW, compute_dtype=compute_dtype)
    vmem_limit = _vmem_limit_bytes()

    def _make_call(single_buffer: bool):
        def const(shape):
            idx = lambda b, _n=len(shape): (0,) * _n
            if single_buffer:
                # constant index_map -> no overlap benefit from double
                # buffering; keep one VMEM copy of every weight/bias.
                return pl.BlockSpec(shape, idx, pipeline_mode=pl.Buffered(1))
            return pl.BlockSpec(shape, idx)

        return pl.pallas_call(
            kernel,
            out_shape=jax.ShapeDtypeStruct((B_pad, O_pad), out_dtype),
            grid_spec=pltpu.PrefetchScalarGridSpec(
                num_scalar_prefetch=0,
                grid=(B_pad // Bt,),
                in_specs=[
                    pl.BlockSpec((Bt, HWp, C), lambda b: (b, 0, 0)),  # tokens
                    const((1, C)),              # pos[0]
                    const((HWp, C)),            # pos[1:] (padded)
                    const((C, C)),              # wq
                    const((1, C)),              # bq
                    const((C, 2 * C)),          # wk|wv fused
                    const((1, 2 * C)),          # bk|bv fused
                    const((C, O_pad)),          # wc (lane-padded)
                    const((1, O_pad)),          # bc (lane-padded)
                    const((C, num_heads)),      # one-hot mask (C -> head)
                    const((num_heads, C)),      # one-hot mask (head -> C)
                ],
                out_specs=pl.BlockSpec((Bt, O_pad), lambda b: (b, 0)),
            ),
            compiler_params=pltpu.CompilerParams(
                dimension_semantics=("parallel",),
                vmem_limit_bytes=vmem_limit),
        )

    operands = (x_tok, pos0, pos_r, wq, bq, wkv, bkv, wc, bc, mask_cn, mask_nc)
    try:
        out = _make_call(True)(*operands)
    except Exception:
        # pl.Buffered(1) pipeline_mode unsupported on this jax build ->
        # fall back to default (double-buffered) constant specs.
        out = _make_call(False)(*operands)

    return out[:B, :O]


def reference_forward(x, params, *, num_heads: int):
    """Pure-JAX f32 reference mirroring F.multi_head_attention_forward."""
    B, C, H, W = x.shape
    HW = H * W
    head_dim = C // num_heads
    scale = 1.0 / math.sqrt(head_dim)

    t = jnp.transpose(x.reshape(B, C, HW), (0, 2, 1))                  # (B, HW, C)
    mean = jnp.mean(t, axis=1, keepdims=True)                          # (B, 1, C)
    tok = jnp.concatenate([mean, t], axis=1) + params["pos"][None]     # (B, L, C)

    q = tok[:, :1] @ params["wq"].T + params["bq"]                     # (B, 1, C)
    k = tok @ params["wk"].T + params["bk"]                            # (B, L, C)
    v = tok @ params["wv"].T + params["bv"]                            # (B, L, C)

    def split(a):
        return a.reshape(a.shape[0], a.shape[1], num_heads,
                         head_dim).transpose(0, 2, 1, 3)

    qh, kh, vh = split(q), split(k), split(v)                          # (B, h, *, hd)
    s = jnp.einsum("bhqd,bhkd->bhqk", qh, kh) * scale
    p = jax.nn.softmax(s, axis=-1)
    o = jnp.einsum("bhqk,bhkd->bhqd", p, vh)                           # (B, h, 1, hd)
    o = o.transpose(0, 2, 1, 3).reshape(B, 1, C)[:, 0]                 # (B, C)
    return o @ params["wc"].T + params["bc"]                           # (B, O)


if __name__ == "__main__":
    # Small shapes consistent with the module; spacial_dim=7 (CLIP-like) so
    # the HW=49 -> 56 sublane-padding + softmax-masking path is exercised.
    B, embed_dim, spacial_dim, num_heads, output_dim = 2, 32, 7, 4, 16
    H = W = spacial_dim
    L = spacial_dim ** 2 + 1

    key = jax.random.PRNGKey(0)
    ks = jax.random.split(key, 10)
    params = {
        "pos": (jax.random.normal(ks[0], (L, embed_dim), jnp.float32)
                / math.sqrt(embed_dim)),
        "wq": jax.random.normal(ks[1], (embed_dim, embed_dim), jnp.float32) * 0.05,
        "bq": jax.random.normal(ks[2], (embed_dim,), jnp.float32) * 0.05,
        "wk": jax.random.normal(ks[3], (embed_dim, embed_dim), jnp.float32) * 0.05,
        "bk": jax.random.normal(ks[4], (embed_dim,), jnp.float32) * 0.05,
        "wv": jax.random.normal(ks[5], (embed_dim, embed_dim), jnp.float32) * 0.05,
        "bv": jax.random.normal(ks[6], (embed_dim,), jnp.float32) * 0.05,
        "wc": jax.random.normal(ks[7], (output_dim, embed_dim), jnp.float32) * 0.05,
        "bc": jax.random.normal(ks[8], (output_dim,), jnp.float32) * 0.05,
    }
    x = jax.random.normal(ks[9], (B, embed_dim, H, W), jnp.float32)

    out = attention_pool_2d(x, params, num_heads=num_heads)
    out = jax.block_until_ready(out)

    ref = reference_forward(x, params, num_heads=num_heads)
    # bf16 MXU operands with f32 accumulation + approx reciprocal -> loosened
    # tolerance vs the f32 reference.
    np.testing.assert_allclose(np.asarray(out), np.asarray(ref),
                               rtol=2e-2, atol=2e-2)
    assert out.shape == (B, output_dim)
    print("KERNEL_OK")
</pallas_src>

<mosaic_0001>
module attributes {stable_mosaic.version = 11 : i64} {
  func.func @_attnpool_kernel(%arg0: i32, %arg1: memref<8x56x32xf32, #tpu.memory_space<vmem>>, %arg2: memref<1x32xf32, #tpu.memory_space<vmem>>, %arg3: memref<56x32xf32, #tpu.memory_space<vmem>>, %arg4: memref<32x32xbf16, #tpu.memory_space<vmem>>, %arg5: memref<1x32xf32, #tpu.memory_space<vmem>>, %arg6: memref<32x64xbf16, #tpu.memory_space<vmem>>, %arg7: memref<1x64xf32, #tpu.memory_space<vmem>>, %arg8: memref<32x128xbf16, #tpu.memory_space<vmem>>, %arg9: memref<1x128xf32, #tpu.memory_space<vmem>>, %arg10: memref<32x4xbf16, #tpu.memory_space<vmem>>, %arg11: memref<4x32xbf16, #tpu.memory_space<vmem>>, %arg12: memref<8x128xf32, #tpu.memory_space<vmem>>) attributes {dimension_semantics = [#tpu.dimension_semantics<parallel>], iteration_bounds = array<i64: 1>, scalar_prefetch = 0 : i64, scratch_operands = 0 : i64, tpu.core_type = #tpu.core_type<tc>, window_params = [{transform_indices = @transform_0, window_bounds = array<i64: 8, 56, 32>}, {pipeline_mode = #tpu.pipeline_mode<synchronous>, transform_indices = @transform_1, window_bounds = array<i64: 1, 32>}, {pipeline_mode = #tpu.pipeline_mode<synchronous>, transform_indices = @transform_2, window_bounds = array<i64: 56, 32>}, {pipeline_mode = #tpu.pipeline_mode<synchronous>, transform_indices = @transform_3, window_bounds = array<i64: 32, 32>}, {pipeline_mode = #tpu.pipeline_mode<synchronous>, transform_indices = @transform_4, window_bounds = array<i64: 1, 32>}, {pipeline_mode = #tpu.pipeline_mode<synchronous>, transform_indices = @transform_5, window_bounds = array<i64: 32, 64>}, {pipeline_mode = #tpu.pipeline_mode<synchronous>, transform_indices = @transform_6, window_bounds = array<i64: 1, 64>}, {pipeline_mode = #tpu.pipeline_mode<synchronous>, transform_indices = @transform_7, window_bounds = array<i64: 32, 128>}, {pipeline_mode = #tpu.pipeline_mode<synchronous>, transform_indices = @transform_8, window_bounds = array<i64: 1, 128>}, {pipeline_mode = #tpu.pipeline_mode<synchronous>, transform_indices = @transform_9, window_bounds = array<i64: 32, 4>}, {pipeline_mode = #tpu.pipeline_mode<synchronous>, transform_indices = @transform_10, window_bounds = array<i64: 4, 32>}, {transform_indices = @transform_11, window_bounds = array<i64: 8, 128>}]} {
    %c0 = arith.constant 0 : index
    %c0_0 = arith.constant 0 : index
    %c0_1 = arith.constant 0 : index
    %0 = vector.load %arg1[%c0, %c0_0, %c0_1] : memref<8x56x32xf32, #tpu.memory_space<vmem>>, vector<8x56x32xf32>
    %cst = arith.constant dense<0.000000e+00> : vector<8x32xf32>
    %1 = vector.multi_reduction <add>, %0, %cst [1] : vector<8x56x32xf32> to vector<8x32xf32>
    %cst_2 = arith.constant 0.0204081628 : f32
    %2 = vector.broadcast %cst_2 : f32 to vector<8x32xf32>
    %3 = arith.mulf %1, %2 : vector<8x32xf32>
    %c0_3 = arith.constant 0 : index
    %c0_4 = arith.constant 0 : index
    %4 = vector.load %arg2[%c0_3, %c0_4] : memref<1x32xf32, #tpu.memory_space<vmem>>, vector<1x32xf32>
    %5 = vector.broadcast %4 : vector<1x32xf32> to vector<8x32xf32>
    %6 = arith.addf %3, %5 : vector<8x32xf32>
    %7 = arith.truncf %6 : vector<8x32xf32> to vector<8x32xbf16>
    %c0_5 = arith.constant 0 : index
    %c0_6 = arith.constant 0 : index
    %8 = vector.load %arg3[%c0_5, %c0_6] : memref<56x32xf32, #tpu.memory_space<vmem>>, vector<56x32xf32>
    %9 = vector.shape_cast %8 : vector<56x32xf32> to vector<1x56x32xf32>
    %10 = vector.broadcast %9 : vector<1x56x32xf32> to vector<8x56x32xf32>
    %11 = arith.addf %0, %10 : vector<8x56x32xf32>
    %12 = vector.shape_cast %11 : vector<8x56x32xf32> to vector<448x32xf32>
    %13 = arith.truncf %12 : vector<448x32xf32> to vector<448x32xbf16>
    %c0_7 = arith.constant 0 : index
    %c0_8 = arith.constant 0 : index
    %14 = vector.load %arg4[%c0_7, %c0_8] : memref<32x32xbf16, #tpu.memory_space<vmem>>, vector<32x32xbf16>
    %cst_9 = arith.constant dense<0.000000e+00> : vector<8x32xf32>
    %15 = tpu.matmul %7, %14, %cst_9 {dimension_numbers = #tpu.dot_dimension_numbers<[1], [0], [0], [1], [0, 0, 1, 1], [], []>} : vector<8x32xbf16>, vector<32x32xbf16>, vector<8x32xf32> -> vector<8x32xf32>
    %c0_10 = arith.constant 0 : index
    %c0_11 = arith.constant 0 : index
    %16 = vector.load %arg5[%c0_10, %c0_11] : memref<1x32xf32, #tpu.memory_space<vmem>>, vector<1x32xf32>
    %17 = vector.broadcast %16 : vector<1x32xf32> to vector<8x32xf32>
    %18 = arith.addf %15, %17 : vector<8x32xf32>
    %cst_12 = arith.constant 0.353553385 : f32
    %19 = vector.broadcast %cst_12 : f32 to vector<8x32xf32>
    %20 = arith.mulf %18, %19 : vector<8x32xf32>
    %c0_13 = arith.constant 0 : index
    %c0_14 = arith.constant 0 : index
    %21 = vector.load %arg6[%c0_13, %c0_14] : memref<32x64xbf16, #tpu.memory_space<vmem>>, vector<32x64xbf16>
    %cst_15 = arith.constant dense<0.000000e+00> : vector<8x64xf32>
    %22 = tpu.matmul %7, %21, %cst_15 {dimension_numbers = #tpu.dot_dimension_numbers<[1], [0], [0], [1], [0, 0, 1, 1], [], []>} : vector<8x32xbf16>, vector<32x64xbf16>, vector<8x64xf32> -> vector<8x64xf32>
    %c0_16 = arith.constant 0 : index
    %c0_17 = arith.constant 0 : index
    %23 = vector.load %arg7[%c0_16, %c0_17] : memref<1x64xf32, #tpu.memory_space<vmem>>, vector<1x64xf32>
    %24 = vector.broadcast %23 : vector<1x64xf32> to vector<8x64xf32>
    %25 = arith.addf %22, %24 : vector<8x64xf32>
    %c0_18 = arith.constant 0 : index
    %c0_19 = arith.constant 0 : index
    %26 = vector.load %arg6[%c0_18, %c0_19] : memref<32x64xbf16, #tpu.memory_space<vmem>>, vector<32x64xbf16>
    %cst_20 = arith.constant dense<0.000000e+00> : vector<448x64xf32>
    %27 = tpu.matmul %13, %26, %cst_20 {dimension_numbers = #tpu.dot_dimension_numbers<[1], [0], [0], [1], [0, 0, 1, 1], [], []>} : vector<448x32xbf16>, vector<32x64xbf16>, vector<448x64xf32> -> vector<448x64xf32>
    %c0_21 = arith.constant 0 : index
    %c0_22 = arith.constant 0 : index
    %28 = vector.load %arg7[%c0_21, %c0_22] : memref<1x64xf32, #tpu.memory_space<vmem>>, vector<1x64xf32>
    %29 = vector.broadcast %28 : vector<1x64xf32> to vector<448x64xf32>
    %30 = arith.addf %27, %29 : vector<448x64xf32>
    %31 = vector.extract_strided_slice %25 {offsets = [0, 0], sizes = [8, 32], strides = [1, 1]} : vector<8x64xf32> to vector<8x32xf32>
    %32 = vector.extract_strided_slice %25 {offsets = [0, 32], sizes = [8, 32], strides = [1, 1]} : vector<8x64xf32> to vector<8x32xf32>
    %33 = vector.extract_strided_slice %30 {offsets = [0, 0], sizes = [448, 32], strides = [1, 1]} : vector<448x64xf32> to vector<448x32xf32>
    %34 = vector.shape_cast %33 : vector<448x32xf32> to vector<8x56x32xf32>
    %35 = vector.extract_strided_slice %30 {offsets = [0, 32], sizes = [448, 32], strides = [1, 1]} : vector<448x64xf32> to vector<448x32xf32>
    %36 = vector.shape_cast %35 : vector<448x32xf32> to vector<8x56x32xf32>
    %c0_23 = arith.constant 0 : index
    %c0_24 = arith.constant 0 : index
    %37 = vector.load %arg10[%c0_23, %c0_24] : memref<32x4xbf16, #tpu.memory_space<vmem>>, vector<32x4xbf16>
    %c0_25 = arith.constant 0 : index
    %c0_26 = arith.constant 0 : index
    %38 = vector.load %arg11[%c0_25, %c0_26] : memref<4x32xbf16, #tpu.memory_space<vmem>>, vector<4x32xbf16>
    %39 = arith.mulf %20, %31 : vector<8x32xf32>
    %40 = arith.truncf %39 : vector<8x32xf32> to vector<8x32xbf16>
    %cst_27 = arith.constant dense<0.000000e+00> : vector<8x4xf32>
    %41 = tpu.matmul %40, %37, %cst_27 {dimension_numbers = #tpu.dot_dimension_numbers<[1], [0], [0], [1], [0, 0, 1, 1], [], []>} : vector<8x32xbf16>, vector<32x4xbf16>, vector<8x4xf32> -> vector<8x4xf32>
    %42 = vector.shape_cast %20 : vector<8x32xf32> to vector<8x1x32xf32>
    %43 = vector.broadcast %42 : vector<8x1x32xf32> to vector<8x56x32xf32>
    %44 = arith.mulf %43, %34 : vector<8x56x32xf32>
    %45 = vector.shape_cast %44 : vector<8x56x32xf32> to vector<448x32xf32>
    %46 = arith.truncf %45 : vector<448x32xf32> to vector<448x32xbf16>
    %cst_28 = arith.constant dense<0.000000e+00> : vector<448x4xf32>
    %47 = tpu.matmul %46, %37, %cst_28 {dimension_numbers = #tpu.dot_dimension_numbers<[1], [0], [0], [1], [0, 0, 1, 1], [], []>} : vector<448x32xbf16>, vector<32x4xbf16>, vector<448x4xf32> -> vector<448x4xf32>
    %48 = vector.shape_cast %47 : vector<448x4xf32> to vector<8x56x4xf32>
    %49 = tpu.iota {dimensions = array<i32: 0>} : vector<56x1xi32>
    %c49_i32 = arith.constant 49 : i32
    %50 = vector.broadcast %c49_i32 : i32 to vector<56x1xi32>
    %51 = arith.cmpi slt, %49, %50 : vector<56x1xi32>
    %52 = vector.shape_cast %51 : vector<56x1xi1> to vector<1x56x1xi1>
    %cst_29 = arith.constant -1.000000e+30 : f32
    %53 = vector.shape_cast %52 : vector<1x56x1xi1> to vector<1x56x1xi1>
    %54 = vector.broadcast %53 : vector<1x56x1xi1> to vector<8x56x4xi1>
    %55 = vector.broadcast %cst_29 : f32 to vector<8x56x4xf32>
    %56 = arith.select %54, %48, %55 : vector<8x56x4xi1>, vector<8x56x4xf32>
    %cst_30 = arith.constant dense<0xFF800000> : vector<8x4xf32>
    %57 = vector.multi_reduction <maximumf>, %56, %cst_30 [1] : vector<8x56x4xf32> to vector<8x4xf32>
    %58 = arith.maximumf %41, %57 : vector<8x4xf32>
    %59 = arith.subf %41, %58 : vector<8x4xf32>
    %60 = math.exp %59 : vector<8x4xf32>
    %61 = vector.shape_cast %58 : vector<8x4xf32> to vector<8x1x4xf32>
    %62 = vector.broadcast %61 : vector<8x1x4xf32> to vector<8x56x4xf32>
    %63 = arith.subf %56, %62 : vector<8x56x4xf32>
    %64 = math.exp %63 : vector<8x56x4xf32>
    %cst_31 = arith.constant dense<0.000000e+00> : vector<8x4xf32>
    %65 = vector.multi_reduction <add>, %64, %cst_31 [1] : vector<8x56x4xf32> to vector<8x4xf32>
    %66 = arith.addf %60, %65 : vector<8x4xf32>
    %67 = tpu.reciprocal %66 {approx = true} : vector<8x4xf32> -> vector<8x4xf32>
    %68 = arith.mulf %60, %67 : vector<8x4xf32>
    %69 = vector.shape_cast %67 : vector<8x4xf32> to vector<8x1x4xf32>
    %70 = vector.broadcast %69 : vector<8x1x4xf32> to vector<8x56x4xf32>
    %71 = arith.mulf %64, %70 : vector<8x56x4xf32>
    %72 = arith.truncf %68 : vector<8x4xf32> to vector<8x4xbf16>
    %cst_32 = arith.constant dense<0.000000e+00> : vector<8x32xf32>
    %73 = tpu.matmul %72, %38, %cst_32 {dimension_numbers = #tpu.dot_dimension_numbers<[1], [0], [0], [1], [0, 0, 1, 1], [], []>} : vector<8x4xbf16>, vector<4x32xbf16>, vector<8x32xf32> -> vector<8x32xf32>
    %74 = vector.shape_cast %71 : vector<8x56x4xf32> to vector<448x4xf32>
    %75 = arith.truncf %74 : vector<448x4xf32> to vector<448x4xbf16>
    %cst_33 = arith.constant dense<0.000000e+00> : vector<448x32xf32>
    %76 = tpu.matmul %75, %38, %cst_33 {dimension_numbers = #tpu.dot_dimension_numbers<[1], [0], [0], [1], [0, 0, 1, 1], [], []>} : vector<448x4xbf16>, vector<4x32xbf16>, vector<448x32xf32> -> vector<448x32xf32>
    %77 = vector.shape_cast %76 : vector<448x32xf32> to vector<8x56x32xf32>
    %78 = arith.mulf %73, %32 : vector<8x32xf32>
    %79 = arith.mulf %77, %36 : vector<8x56x32xf32>
    %cst_34 = arith.constant dense<0.000000e+00> : vector<8x32xf32>
    %80 = vector.multi_reduction <add>, %79, %cst_34 [1] : vector<8x56x32xf32> to vector<8x32xf32>
    %81 = arith.addf %78, %80 : vector<8x32xf32>
    %82 = arith.truncf %81 : vector<8x32xf32> to vector<8x32xbf16>
    %c0_35 = arith.constant 0 : index
    %c0_36 = arith.constant 0 : index
    %83 = vector.load %arg8[%c0_35, %c0_36] : memref<32x128xbf16, #tpu.memory_space<vmem>>, vector<32x128xbf16>
    %cst_37 = arith.constant dense<0.000000e+00> : vector<8x128xf32>
    %84 = tpu.matmul %82, %83, %cst_37 {dimension_numbers = #tpu.dot_dimension_numbers<[1], [0], [0], [1], [0, 0, 1, 1], [], []>} : vector<8x32xbf16>, vector<32x128xbf16>, vector<8x128xf32> -> vector<8x128xf32>
    %c0_38 = arith.constant 0 : index
    %c0_39 = arith.constant 0 : index
    %85 = vector.load %arg9[%c0_38, %c0_39] : memref<1x128xf32, #tpu.memory_space<vmem>>, vector<1x128xf32>
    %86 = vector.broadcast %85 : vector<1x128xf32> to vector<8x128xf32>
    %87 = arith.addf %84, %86 : vector<8x128xf32>
    %c0_40 = arith.constant 0 : index
    %c0_41 = arith.constant 0 : index
    %88 = vector.load %arg12[%c0_40, %c0_41] : memref<8x128xf32, #tpu.memory_space<vmem>>, vector<8x128xf32>
    tpu.vector_store %arg12[%c0_40, %c0_41], %87 {strides = array<i32>} : memref<8x128xf32, #tpu.memory_space<vmem>>, vector<8x128xf32>,
    return
  }
  func.func @transform_0(%arg0: i32) -> (i32, i32, i32) {
    %c0_i32 = arith.constant 0 : i32
    %c0_i32_0 = arith.constant 0 : i32
    %c0_i32_1 = arith.constant 0 : i32
    return %arg0, %c0_i32, %c0_i32_0 : i32, i32, i32
  }
  func.func @transform_1(%arg0: i32) -> (i32, i32) {
    %c0_i32 = arith.constant 0 : i32
    %c0_i32_0 = arith.constant 0 : i32
    %c0_i32_1 = arith.constant 0 : i32
    return %c0_i32, %c0_i32_0 : i32, i32
  }
  func.func @transform_2(%arg0: i32) -> (i32, i32) {
    %c0_i32 = arith.constant 0 : i32
    %c0_i32_0 = arith.constant 0 : i32
    %c0_i32_1 = arith.constant 0 : i32
    return %c0_i32, %c0_i32_0 : i32, i32
  }
  func.func @transform_3(%arg0: i32) -> (i32, i32) {
    %c0_i32 = arith.constant 0 : i32
    %c0_i32_0 = arith.constant 0 : i32
    %c0_i32_1 = arith.constant 0 : i32
    return %c0_i32, %c0_i32_0 : i32, i32
  }
  func.func @transform_4(%arg0: i32) -> (i32, i32) {
    %c0_i32 = arith.constant 0 : i32
    %c0_i32_0 = arith.constant 0 : i32
    %c0_i32_1 = arith.constant 0 : i32
    return %c0_i32, %c0_i32_0 : i32, i32
  }
  func.func @transform_5(%arg0: i32) -> (i32, i32) {
    %c0_i32 = arith.constant 0 : i32
    %c0_i32_0 = arith.constant 0 : i32
    %c0_i32_1 = arith.constant 0 : i32
    return %c0_i32, %c0_i32_0 : i32, i32
  }
  func.func @transform_6(%arg0: i32) -> (i32, i32) {
    %c0_i32 = arith.constant 0 : i32
    %c0_i32_0 = arith.constant 0 : i32
    %c0_i32_1 = arith.constant 0 : i32
    return %c0_i32, %c0_i32_0 : i32, i32
  }
  func.func @transform_7(%arg0: i32) -> (i32, i32) {
    %c0_i32 = arith.constant 0 : i32
    %c0_i32_0 = arith.constant 0 : i32
    %c0_i32_1 = arith.constant 0 : i32
    return %c0_i32, %c0_i32_0 : i32, i32
  }
  func.func @transform_8(%arg0: i32) -> (i32, i32) {
    %c0_i32 = arith.constant 0 : i32
    %c0_i32_0 = arith.constant 0 : i32
    %c0_i32_1 = arith.constant 0 : i32
    return %c0_i32, %c0_i32_0 : i32, i32
  }
  func.func @transform_9(%arg0: i32) -> (i32, i32) {
    %c0_i32 = arith.constant 0 : i32
    %c0_i32_0 = arith.constant 0 : i32
    %c0_i32_1 = arith.constant 0 : i32
    return %c0_i32, %c0_i32_0 : i32, i32
  }
  func.func @transform_10(%arg0: i32) -> (i32, i32) {
    %c0_i32 = arith.constant 0 : i32
    %c0_i32_0 = arith.constant 0 : i32
    %c0_i32_1 = arith.constant 0 : i32
    return %c0_i32, %c0_i32_0 : i32, i32
  }
  func.func @transform_11(%arg0: i32) -> (i32, i32) {
    %c0_i32 = arith.constant 0 : i32
    %c0_i32_0 = arith.constant 0 : i32
    return %arg0, %c0_i32 : i32, i32
  }
}

module attributes {stable_mosaic.version = 11 : i64} {
  func.func @_attnpool_kernel(%arg0: i32, %arg1: memref<8x56x32xf32, #tpu.memory_space<vmem>>, %arg2: memref<1x32xf32, #tpu.memory_space<vmem>>, %arg3: memref<56x32xf32, #tpu.memory_space<vmem>>, %arg4: memref<32x32xbf16, #tpu.memory_space<vmem>>, %arg5: memref<1x32xf32, #tpu.memory_space<vmem>>, %arg6: memref<32x64xbf16, #tpu.memory_space<vmem>>, %arg7: memref<1x64xf32, #tpu.memory_space<vmem>>, %arg8: memref<32x128xbf16, #tpu.memory_space<vmem>>, %arg9: memref<1x128xf32, #tpu.memory_space<vmem>>, %arg10: memref<32x4xbf16, #tpu.memory_space<vmem>>, %arg11: memref<4x32xbf16, #tpu.memory_space<vmem>>, %arg12: memref<8x128xf32, #tpu.memory_space<vmem>>) attributes {dimension_semantics = [#tpu.dimension_semantics<parallel>], iteration_bounds = array<i64: 1>, scalar_prefetch = 0 : i64, scratch_operands = 0 : i64, tpu.core_type = #tpu.core_type<tc>, window_params = [{transform_indices = @transform_0, window_bounds = array<i64: 8, 56, 32>}, {pipeline_mode = #tpu.pipeline_mode<synchronous>, transform_indices = @transform_1, window_bounds = array<i64: 1, 32>}, {pipeline_mode = #tpu.pipeline_mode<synchronous>, transform_indices = @transform_2, window_bounds = array<i64: 56, 32>}, {pipeline_mode = #tpu.pipeline_mode<synchronous>, transform_indices = @transform_3, window_bounds = array<i64: 32, 32>}, {pipeline_mode = #tpu.pipeline_mode<synchronous>, transform_indices = @transform_4, window_bounds = array<i64: 1, 32>}, {pipeline_mode = #tpu.pipeline_mode<synchronous>, transform_indices = @transform_5, window_bounds = array<i64: 32, 64>}, {pipeline_mode = #tpu.pipeline_mode<synchronous>, transform_indices = @transform_6, window_bounds = array<i64: 1, 64>}, {pipeline_mode = #tpu.pipeline_mode<synchronous>, transform_indices = @transform_7, window_bounds = array<i64: 32, 128>}, {pipeline_mode = #tpu.pipeline_mode<synchronous>, transform_indices = @transform_8, window_bounds = array<i64: 1, 128>}, {pipeline_mode = #tpu.pipeline_mode<synchronous>, transform_indices = @transform_9, window_bounds = array<i64: 32, 4>}, {pipeline_mode = #tpu.pipeline_mode<synchronous>, transform_indices = @transform_10, window_bounds = array<i64: 4, 32>}, {transform_indices = @transform_11, window_bounds = array<i64: 8, 128>}]} {
    %c0 = arith.constant 0 : index
    %c0_0 = arith.constant 0 : index
    %c0_1 = arith.constant 0 : index
    %0 = vector.load %arg1[%c0, %c0_0, %c0_1] : memref<8x56x32xf32, #tpu.memory_space<vmem>>, vector<8x56x32xf32>
    %cst = arith.constant dense<0.000000e+00> : vector<8x32xf32>
    %1 = vector.multi_reduction <add>, %0, %cst [1] : vector<8x56x32xf32> to vector<8x32xf32>
    %cst_2 = arith.constant 0.0204081628 : f32
    %2 = vector.broadcast %cst_2 : f32 to vector<8x32xf32>
    %3 = arith.mulf %1, %2 : vector<8x32xf32>
    %c0_3 = arith.constant 0 : index
    %c0_4 = arith.constant 0 : index
    %4 = vector.load %arg2[%c0_3, %c0_4] : memref<1x32xf32, #tpu.memory_space<vmem>>, vector<1x32xf32>
    %5 = vector.broadcast %4 : vector<1x32xf32> to vector<8x32xf32>
    %6 = arith.addf %3, %5 : vector<8x32xf32>
    %7 = arith.truncf %6 : vector<8x32xf32> to vector<8x32xbf16>
    %c0_5 = arith.constant 0 : index
    %c0_6 = arith.constant 0 : index
    %8 = vector.load %arg3[%c0_5, %c0_6] : memref<56x32xf32, #tpu.memory_space<vmem>>, vector<56x32xf32>
    %9 = vector.shape_cast %8 : vector<56x32xf32> to vector<1x56x32xf32>
    %10 = vector.broadcast %9 : vector<1x56x32xf32> to vector<8x56x32xf32>
    %11 = arith.addf %0, %10 : vector<8x56x32xf32>
    %12 = vector.shape_cast %11 : vector<8x56x32xf32> to vector<448x32xf32>
    %13 = arith.truncf %12 : vector<448x32xf32> to vector<448x32xbf16>
    %c0_7 = arith.constant 0 : index
    %c0_8 = arith.constant 0 : index
    %14 = vector.load %arg4[%c0_7, %c0_8] : memref<32x32xbf16, #tpu.memory_space<vmem>>, vector<32x32xbf16>
    %cst_9 = arith.constant dense<0.000000e+00> : vector<8x32xf32>
    %15 = tpu.matmul %7, %14, %cst_9 {dimension_numbers = #tpu.dot_dimension_numbers<[1], [0], [0], [1], [0, 0, 1, 1], [], []>} : vector<8x32xbf16>, vector<32x32xbf16>, vector<8x32xf32> -> vector<8x32xf32>
    %c0_10 = arith.constant 0 : index
    %c0_11 = arith.constant 0 : index
    %16 = vector.load %arg5[%c0_10, %c0_11] : memref<1x32xf32, #tpu.memory_space<vmem>>, vector<1x32xf32>
    %17 = vector.broadcast %16 : vector<1x32xf32> to vector<8x32xf32>
    %18 = arith.addf %15, %17 : vector<8x32xf32>
    %cst_12 = arith.constant 0.353553385 : f32
    %19 = vector.broadcast %cst_12 : f32 to vector<8x32xf32>
    %20 = arith.mulf %18, %19 : vector<8x32xf32>
    %c0_13 = arith.constant 0 : index
    %c0_14 = arith.constant 0 : index
    %21 = vector.load %arg6[%c0_13, %c0_14] : memref<32x64xbf16, #tpu.memory_space<vmem>>, vector<32x64xbf16>
    %cst_15 = arith.constant dense<0.000000e+00> : vector<8x64xf32>
    %22 = tpu.matmul %7, %21, %cst_15 {dimension_numbers = #tpu.dot_dimension_numbers<[1], [0], [0], [1], [0, 0, 1, 1], [], []>} : vector<8x32xbf16>, vector<32x64xbf16>, vector<8x64xf32> -> vector<8x64xf32>
    %c0_16 = arith.constant 0 : index
    %c0_17 = arith.constant 0 : index
    %23 = vector.load %arg7[%c0_16, %c0_17] : memref<1x64xf32, #tpu.memory_space<vmem>>, vector<1x64xf32>
    %24 = vector.broadcast %23 : vector<1x64xf32> to vector<8x64xf32>
    %25 = arith.addf %22, %24 : vector<8x64xf32>
    %c0_18 = arith.constant 0 : index
    %c0_19 = arith.constant 0 : index
    %26 = vector.load %arg6[%c0_18, %c0_19] : memref<32x64xbf16, #tpu.memory_space<vmem>>, vector<32x64xbf16>
    %cst_20 = arith.constant dense<0.000000e+00> : vector<448x64xf32>
    %27 = tpu.matmul %13, %26, %cst_20 {dimension_numbers = #tpu.dot_dimension_numbers<[1], [0], [0], [1], [0, 0, 1, 1], [], []>} : vector<448x32xbf16>, vector<32x64xbf16>, vector<448x64xf32> -> vector<448x64xf32>
    %c0_21 = arith.constant 0 : index
    %c0_22 = arith.constant 0 : index
    %28 = vector.load %arg7[%c0_21, %c0_22] : memref<1x64xf32, #tpu.memory_space<vmem>>, vector<1x64xf32>
    %29 = vector.broadcast %28 : vector<1x64xf32> to vector<448x64xf32>
    %30 = arith.addf %27, %29 : vector<448x64xf32>
    %31 = vector.extract_strided_slice %25 {offsets = [0, 0], sizes = [8, 32], strides = [1, 1]} : vector<8x64xf32> to vector<8x32xf32>
    %32 = vector.extract_strided_slice %25 {offsets = [0, 32], sizes = [8, 32], strides = [1, 1]} : vector<8x64xf32> to vector<8x32xf32>
    %33 = vector.extract_strided_slice %30 {offsets = [0, 0], sizes = [448, 32], strides = [1, 1]} : vector<448x64xf32> to vector<448x32xf32>
    %34 = vector.shape_cast %33 : vector<448x32xf32> to vector<8x56x32xf32>
    %35 = vector.extract_strided_slice %30 {offsets = [0, 32], sizes = [448, 32], strides = [1, 1]} : vector<448x64xf32> to vector<448x32xf32>
    %36 = vector.shape_cast %35 : vector<448x32xf32> to vector<8x56x32xf32>
    %c0_23 = arith.constant 0 : index
    %c0_24 = arith.constant 0 : index
    %37 = vector.load %arg10[%c0_23, %c0_24] : memref<32x4xbf16, #tpu.memory_space<vmem>>, vector<32x4xbf16>
    %c0_25 = arith.constant 0 : index
    %c0_26 = arith.constant 0 : index
    %38 = vector.load %arg11[%c0_25, %c0_26] : memref<4x32xbf16, #tpu.memory_space<vmem>>, vector<4x32xbf16>
    %39 = arith.mulf %20, %31 : vector<8x32xf32>
    %40 = arith.truncf %39 : vector<8x32xf32> to vector<8x32xbf16>
    %cst_27 = arith.constant dense<0.000000e+00> : vector<8x4xf32>
    %41 = tpu.matmul %40, %37, %cst_27 {dimension_numbers = #tpu.dot_dimension_numbers<[1], [0], [0], [1], [0, 0, 1, 1], [], []>} : vector<8x32xbf16>, vector<32x4xbf16>, vector<8x4xf32> -> vector<8x4xf32>
    %42 = vector.shape_cast %20 : vector<8x32xf32> to vector<8x1x32xf32>
    %43 = vector.broadcast %42 : vector<8x1x32xf32> to vector<8x56x32xf32>
    %44 = arith.mulf %43, %34 : vector<8x56x32xf32>
    %45 = vector.shape_cast %44 : vector<8x56x32xf32> to vector<448x32xf32>
    %46 = arith.truncf %45 : vector<448x32xf32> to vector<448x32xbf16>
    %cst_28 = arith.constant dense<0.000000e+00> : vector<448x4xf32>
    %47 = tpu.matmul %46, %37, %cst_28 {dimension_numbers = #tpu.dot_dimension_numbers<[1], [0], [0], [1], [0, 0, 1, 1], [], []>} : vector<448x32xbf16>, vector<32x4xbf16>, vector<448x4xf32> -> vector<448x4xf32>
    %48 = vector.shape_cast %47 : vector<448x4xf32> to vector<8x56x4xf32>
    %49 = tpu.iota {dimensions = array<i32: 0>} : vector<56x1xi32>
    %c49_i32 = arith.constant 49 : i32
    %50 = vector.broadcast %c49_i32 : i32 to vector<56x1xi32>
    %51 = arith.cmpi slt, %49, %50 : vector<56x1xi32>
    %52 = vector.shape_cast %51 : vector<56x1xi1> to vector<1x56x1xi1>
    %cst_29 = arith.constant -1.000000e+30 : f32
    %53 = vector.shape_cast %52 : vector<1x56x1xi1> to vector<1x56x1xi1>
    %54 = vector.broadcast %53 : vector<1x56x1xi1> to vector<8x56x4xi1>
    %55 = vector.broadcast %cst_29 : f32 to vector<8x56x4xf32>
    %56 = arith.select %54, %48, %55 : vector<8x56x4xi1>, vector<8x56x4xf32>
    %cst_30 = arith.constant dense<0xFF800000> : vector<8x4xf32>
    %57 = vector.multi_reduction <maximumf>, %56, %cst_30 [1] : vector<8x56x4xf32> to vector<8x4xf32>
    %58 = arith.maximumf %41, %57 : vector<8x4xf32>
    %59 = arith.subf %41, %58 : vector<8x4xf32>
    %60 = math.exp %59 : vector<8x4xf32>
    %61 = vector.shape_cast %58 : vector<8x4xf32> to vector<8x1x4xf32>
    %62 = vector.broadcast %61 : vector<8x1x4xf32> to vector<8x56x4xf32>
    %63 = arith.subf %56, %62 : vector<8x56x4xf32>
    %64 = math.exp %63 : vector<8x56x4xf32>
    %cst_31 = arith.constant dense<0.000000e+00> : vector<8x4xf32>
    %65 = vector.multi_reduction <add>, %64, %cst_31 [1] : vector<8x56x4xf32> to vector<8x4xf32>
    %66 = arith.addf %60, %65 : vector<8x4xf32>
    %67 = tpu.reciprocal %66 {approx = true} : vector<8x4xf32> -> vector<8x4xf32>
    %68 = arith.mulf %60, %67 : vector<8x4xf32>
    %69 = vector.shape_cast %67 : vector<8x4xf32> to vector<8x1x4xf32>
    %70 = vector.broadcast %69 : vector<8x1x4xf32> to vector<8x56x4xf32>
    %71 = arith.mulf %64, %70 : vector<8x56x4xf32>
    %72 = arith.truncf %68 : vector<8x4xf32> to vector<8x4xbf16>
    %cst_32 = arith.constant dense<0.000000e+00> : vector<8x32xf32>
    %73 = tpu.matmul %72, %38, %cst_32 {dimension_numbers = #tpu.dot_dimension_numbers<[1], [0], [0], [1], [0, 0, 1, 1], [], []>} : vector<8x4xbf16>, vector<4x32xbf16>, vector<8x32xf32> -> vector<8x32xf32>
    %74 = vector.shape_cast %71 : vector<8x56x4xf32> to vector<448x4xf32>
    %75 = arith.truncf %74 : vector<448x4xf32> to vector<448x4xbf16>
    %cst_33 = arith.constant dense<0.000000e+00> : vector<448x32xf32>
    %76 = tpu.matmul %75, %38, %cst_33 {dimension_numbers = #tpu.dot_dimension_numbers<[1], [0], [0], [1], [0, 0, 1, 1], [], []>} : vector<448x4xbf16>, vector<4x32xbf16>, vector<448x32xf32> -> vector<448x32xf32>
    %77 = vector.shape_cast %76 : vector<448x32xf32> to vector<8x56x32xf32>
    %78 = arith.mulf %73, %32 : vector<8x32xf32>
    %79 = arith.mulf %77, %36 : vector<8x56x32xf32>
    %cst_34 = arith.constant dense<0.000000e+00> : vector<8x32xf32>
    %80 = vector.multi_reduction <add>, %79, %cst_34 [1] : vector<8x56x32xf32> to vector<8x32xf32>
    %81 = arith.addf %78, %80 : vector<8x32xf32>
    %82 = arith.truncf %81 : vector<8x32xf32> to vector<8x32xbf16>
    %c0_35 = arith.constant 0 : index
    %c0_36 = arith.constant 0 : index
    %83 = vector.load %arg8[%c0_35, %c0_36] : memref<32x128xbf16, #tpu.memory_space<vmem>>, vector<32x128xbf16>
    %cst_37 = arith.constant dense<0.000000e+00> : vector<8x128xf32>
    %84 = tpu.matmul %82, %83, %cst_37 {dimension_numbers = #tpu.dot_dimension_numbers<[1], [0], [0], [1], [0, 0, 1, 1], [], []>} : vector<8x32xbf16>, vector<32x128xbf16>, vector<8x128xf32> -> vector<8x128xf32>
    %c0_38 = arith.constant 0 : index
    %c0_39 = arith.constant 0 : index
    %85 = vector.load %arg9[%c0_38, %c0_39] : memref<1x128xf32, #tpu.memory_space<vmem>>, vector<1x128xf32>
    %86 = vector.broadcast %85 : vector<1x128xf32> to vector<8x128xf32>
    %87 = arith.addf %84, %86 : vector<8x128xf32>
    %c0_40 = arith.constant 0 : index
    %c0_41 = arith.constant 0 : index
    %88 = vector.load %arg12[%c0_40, %c0_41] : memref<8x128xf32, #tpu.memory_space<vmem>>, vector<8x128xf32>
    tpu.vector_store %arg12[%c0_40, %c0_41], %87 {strides = array<i32>} : memref<8x128xf32, #tpu.memory_space<vmem>>, vector<8x128xf32>,
    return
  }
  func.func @transform_0(%arg0: i32) -> (i32, i32, i32) {
    %c0_i32 = arith.constant 0 : i32
    %c0_i32_0 = arith.constant 0 : i32
    %c0_i32_1 = arith.constant 0 : i32
    return %arg0, %c0_i32, %c0_i32_0 : i32, i32, i32
  }
  func.func @transform_1(%arg0: i32) -> (i32, i32) {
    %c0_i32 = arith.constant 0 : i32
    %c0_i32_0 = arith.constant 0 : i32
    %c0_i32_1 = arith.constant 0 : i32
    return %c0_i32, %c0_i32_0 : i32, i32
  }
  func.func @transform_2(%arg0: i32) -> (i32, i32) {
    %c0_i32 = arith.constant 0 : i32
    %c0_i32_0 = arith.constant 0 : i32
    %c0_i32_1 = arith.constant 0 : i32
    return %c0_i32, %c0_i32_0 : i32, i32
  }
  func.func @transform_3(%arg0: i32) -> (i32, i32) {
    %c0_i32 = arith.constant 0 : i32
    %c0_i32_0 = arith.constant 0 : i32
    %c0_i32_1 = arith.constant 0 : i32
    return %c0_i32, %c0_i32_0 : i32, i32
  }
  func.func @transform_4(%arg0: i32) -> (i32, i32) {
    %c0_i32 = arith.constant 0 : i32
    %c0_i32_0 = arith.constant 0 : i32
    %c0_i32_1 = arith.constant 0 : i32
    return %c0_i32, %c0_i32_0 : i32, i32
  }
  func.func @transform_5(%arg0: i32) -> (i32, i32) {
    %c0_i32 = arith.constant 0 : i32
    %c0_i32_0 = arith.constant 0 : i32
    %c0_i32_1 = arith.constant 0 : i32
    return %c0_i32, %c0_i32_0 : i32, i32
  }
  func.func @transform_6(%arg0: i32) -> (i32, i32) {
    %c0_i32 = arith.constant 0 : i32
    %c0_i32_0 = arith.constant 0 : i32
    %c0_i32_1 = arith.constant 0 : i32
    return %c0_i32, %c0_i32_0 : i32, i32
  }
  func.func @transform_7(%arg0: i32) -> (i32, i32) {
    %c0_i32 = arith.constant 0 : i32
    %c0_i32_0 = arith.constant 0 : i32
    %c0_i32_1 = arith.constant 0 : i32
    return %c0_i32, %c0_i32_0 : i32, i32
  }
  func.func @transform_8(%arg0: i32) -> (i32, i32) {
    %c0_i32 = arith.constant 0 : i32
    %c0_i32_0 = arith.constant 0 : i32
    %c0_i32_1 = arith.constant 0 : i32
    return %c0_i32, %c0_i32_0 : i32, i32
  }
  func.func @transform_9(%arg0: i32) -> (i32, i32) {
    %c0_i32 = arith.constant 0 : i32
    %c0_i32_0 = arith.constant 0 : i32
    %c0_i32_1 = arith.constant 0 : i32
    return %c0_i32, %c0_i32_0 : i32, i32
  }
  func.func @transform_10(%arg0: i32) -> (i32, i32) {
    %c0_i32 = arith.constant 0 : i32
    %c0_i32_0 = arith.constant 0 : i32
    %c0_i32_1 = arith.constant 0 : i32
    return %c0_i32, %c0_i32_0 : i32, i32
  }
  func.func @transform_11(%arg0: i32) -> (i32, i32) {
    %c0_i32 = arith.constant 0 : i32
    %c0_i32_0 = arith.constant 0 : i32
    return %arg0, %c0_i32 : i32, i32
  }
}

</mosaic_0001>

<llo_original>
// kernel: tpu_custom_call.1
$region0: #{tpu_custom_call.1}
  #allocation0 [shape = 'u32[]', space=smem, size = 0x4, offset = 0x4, fixed_abs, tag = 'smem constant byte address 0x4 - core index']
  #allocation1 [shape = 'u32[144,128]{1,0:T(1,128)}', space=vmem, size = 0x12000, scoped, tag = 'internal scratch']
  %s0 = inlined_call_operand.hbm [shape: f32[8,56,32], index: 0, kind: input, shape index: {}]
  %s1 = inlined_call_operand.hbm [shape: f32[1,32], index: 1, kind: input, shape index: {}]
  %s2 = inlined_call_operand.hbm [shape: f32[56,32], index: 2, kind: input, shape index: {}]
  %s3 = inlined_call_operand.hbm [shape: bf16[32,32], index: 3, kind: input, shape index: {}]
  %s4 = inlined_call_operand.hbm [shape: f32[1,32], index: 4, kind: input, shape index: {}]
  %s5 = inlined_call_operand.hbm [shape: bf16[32,64], index: 5, kind: input, shape index: {}]
  %s6 = inlined_call_operand.hbm [shape: f32[1,64], index: 6, kind: input, shape index: {}]
  %s7 = inlined_call_operand.hbm [shape: bf16[32,128], index: 7, kind: input, shape index: {}]
  %s8 = inlined_call_operand.hbm [shape: f32[1,128], index: 8, kind: input, shape index: {}]
  %s9 = inlined_call_operand.hbm [shape: bf16[32,4], index: 9, kind: input, shape index: {}]
  %s10 = inlined_call_operand.hbm [shape: bf16[4,32], index: 10, kind: input, shape index: {}]
  %s11 = inlined_call_operand.hbm [shape: f32[8,128], index: 11, kind: output, shape index: {}]
  %s12 = sld [smem:[#allocation0]]
  $region98: #{tpu_custom_call.1} parent=0
    _
  %s14 = ssub.s32 1, %s12
  %s15 = scalar_select 0, %s14, %s12
  $region1: #{tpu_custom_call.1} parent=0
    #allocation2 [shape = 'u8[229376]{0}', space=vmem, size = 0x38000, scoped, tag = 'input window, operand 0, single buffered']
    #allocation3 [shape = 's32[1]{0}', space=sflag, size = 0x4, scoped, tag = 'scoped memory for tpu_custom_call.1']
    #allocation4 [shape = 's32[1]{0}', space=sflag, size = 0x4, scoped, tag = 'scoped memory for tpu_custom_call.1']
    #allocation5 [shape = 'u8[512]{0}', space=vmem, size = 0x400, scoped, tag = 'input window, operand 1, single buffered']
    #allocation6 [shape = 's32[1]{0}', space=sflag, size = 0x4, scoped, tag = 'scoped memory for tpu_custom_call.1']
    #allocation7 [shape = 'u8[28672]{0}', space=vmem, size = 0x7000, scoped, tag = 'input window, operand 2, single buffered']
    #allocation8 [shape = 'u8[8192]{0}', space=vmem, size = 0x2000, scoped, tag = 'input window, operand 3, single buffered']
    #allocation9 [shape = 's32[1]{0}', space=sflag, size = 0x4, scoped, tag = 'scoped memory for tpu_custom_call.1']
    #allocation10 [shape = 'u8[512]{0}', space=vmem, size = 0x400, scoped, tag = 'input window, operand 4, single buffered']
    #allocation11 [shape = 'u8[8192]{0}', space=vmem, size = 0x2000, scoped, tag = 'input window, operand 5, single buffered']
    #allocation12 [shape = 's32[1]{0}', space=sflag, size = 0x4, scoped, tag = 'scoped memory for tpu_custom_call.1']
    #allocation13 [shape = 'u8[512]{0}', space=vmem, size = 0x400, scoped, tag = 'input window, operand 6, single buffered']
    #allocation14 [shape = 'u8[8192]{0}', space=vmem, size = 0x2000, scoped, tag = 'input window, operand 7, single buffered']
    #allocation15 [shape = 's32[1]{0}', space=sflag, size = 0x4, scoped, tag = 'scoped memory for tpu_custom_call.1']
    #allocation16 [shape = 'u8[512]{0}', space=vmem, size = 0x400, scoped, tag = 'input window, operand 8, single buffered']
    #allocation17 [shape = 'u8[8192]{0}', space=vmem, size = 0x2000, scoped, tag = 'input window, operand 9, single buffered']
    #allocation18 [shape = 's32[1]{0}', space=sflag, size = 0x4, scoped, tag = 'scoped memory for tpu_custom_call.1']
    #allocation19 [shape = 'u8[1024]{0}', space=vmem, size = 0x400, scoped, tag = 'input window, operand 10, single buffered']
    #allocation20 [shape = 'u8[4096]{0}', space=vmem, size = 0x1000, scoped, tag = 'output window, operand 0, single buffered']
    %16 = vsyncpa [#allocation3], 0
    %17 = vsyncpa [#allocation6], 0
    %18 = vsyncpa [#allocation9], 0
    %19 = vsyncpa [#allocation12], 0
    %20 = vsyncpa [#allocation15], 0
    %21 = vsyncpa [#allocation18], 0
    %22 = vsyncpa [#allocation4], 0
    // Predicated region
    $region2: #{tpu_custom_call.1} parent=1 // pred_check
      _
    $region3: #{tpu_custom_call.1} parent=1 // pred_check_branch
      %24 = sbr.rel (0) target = $region5
    $region4: #{tpu_custom_call.1} parent=1 // pred_region
      %s26 = ssub.s32 7168, 7168
      %27 = vsyncadd [#allocation3], %s26
      %s28 = sshll.u32 [#allocation2], 4
      %s29 = int_to_ptr.vmem [resolvable:$true] %s28
      %34 = dma.hbm_to_vmem [thread:$0]  %s0, 7168, %s29, [#allocation3], 128, 128, 8
    $region5: #{tpu_custom_call.1} parent=1 // pred_fallthru
      _
    // Predicated region
    $region6: #{tpu_custom_call.1} parent=1 // pred_check
      _
    $region7: #{tpu_custom_call.1} parent=1 // pred_check_branch
      %36 = sbr.rel (0) target = $region9
    $region8: #{tpu_custom_call.1} parent=1 // pred_region
      %s38 = ssub.s32 16, 16
      %39 = vsyncadd [#allocation6], %s38
      %s41 = sshll.u32 [#allocation5], 4
      %s42 = int_to_ptr.vmem [resolvable:$true] %s41
      %44 = dma.hbm_to_vmem [thread:$0]  %s1, 16, %s42, [#allocation6]
    $region9: #{tpu_custom_call.1} parent=1 // pred_fallthru
      _
    // Predicated region
    $region10: #{tpu_custom_call.1} parent=1 // pred_check
      _
    $region11: #{tpu_custom_call.1} parent=1 // pred_check_branch
      %46 = sbr.rel (0) target = $region13
    $region12: #{tpu_custom_call.1} parent=1 // pred_region
      %s48 = ssub.s32 896, 896
      %49 = vsyncadd [#allocation6], %s48
      %s50 = sshll.u32 [#allocation7], 4
      %s51 = int_to_ptr.vmem [resolvable:$true] %s50
      %56 = dma.hbm_to_vmem [thread:$0]  %s2, 896, %s51, [#allocation6], 128, 128, 8
    $region13: #{tpu_custom_call.1} parent=1 // pred_fallthru
      _
    // Predicated region
    $region14: #{tpu_custom_call.1} parent=1 // pred_check
      _
    $region15: #{tpu_custom_call.1} parent=1 // pred_check_branch
      %58 = sbr.rel (0) target = $region17
    $region16: #{tpu_custom_call.1} parent=1 // pred_region
      %s60 = ssub.s32 256, 256
      %61 = vsyncadd [#allocation9], %s60
      %s62 = sshll.u32 [#allocation8], 4
      %s63 = int_to_ptr.vmem [resolvable:$true] %s62
      %68 = dma.hbm_to_vmem [thread:$0]  %s3, 256, %s63, [#allocation9], 64, 64, 4
    $region17: #{tpu_custom_call.1} parent=1 // pred_fallthru
      _
    // Predicated region
    $region18: #{tpu_custom_call.1} parent=1 // pred_check
      _
    $region19: #{tpu_custom_call.1} parent=1 // pred_check_branch
      %70 = sbr.rel (0) target = $region21
    $region20: #{tpu_custom_call.1} parent=1 // pred_region
      %s72 = ssub.s32 16, 16
      %73 = vsyncadd [#allocation9], %s72
      %s75 = sshll.u32 [#allocation10], 4
      %s76 = int_to_ptr.vmem [resolvable:$true] %s75
      %78 = dma.hbm_to_vmem [thread:$0]  %s4, 16, %s76, [#allocation9]
    $region21: #{tpu_custom_call.1} parent=1 // pred_fallthru
      _
    // Predicated region
    $region22: #{tpu_custom_call.1} parent=1 // pred_check
      _
    $region23: #{tpu_custom_call.1} parent=1 // pred_check_branch
      %80 = sbr.rel (0) target = $region25
    $region24: #{tpu_custom_call.1} parent=1 // pred_region
      %s82 = ssub.s32 256, 256
      %83 = vsyncadd [#allocation12], %s82
      %s84 = sshll.u32 [#allocation11], 4
      %s85 = int_to_ptr.vmem [resolvable:$true] %s84
      %90 = dma.hbm_to_vmem [thread:$0]  %s5, 256, %s85, [#allocation12], 64, 64, 4
    $region25: #{tpu_custom_call.1} parent=1 // pred_fallthru
      _
    // Predicated region
    $region26: #{tpu_custom_call.1} parent=1 // pred_check
      _
    $region27: #{tpu_custom_call.1} parent=1 // pred_check_branch
      %92 = sbr.rel (0) target = $region29
    $region28: #{tpu_custom_call.1} parent=1 // pred_region
      %s94 = ssub.s32 16, 16
      %95 = vsyncadd [#allocation12], %s94
      %s97 = sshll.u32 [#allocation13], 4
      %s98 = int_to_ptr.vmem [resolvable:$true] %s97
      %100 = dma.hbm_to_vmem [thread:$0]  %s6, 16, %s98, [#allocation12]
    $region29: #{tpu_custom_call.1} parent=1 // pred_fallthru
      _
    // Predicated region
    $region30: #{tpu_custom_call.1} parent=1 // pred_check
      _
    $region31: #{tpu_custom_call.1} parent=1 // pred_check_branch
      %102 = sbr.rel (0) target = $region33
    $region32: #{tpu_custom_call.1} parent=1 // pred_region
      %s104 = ssub.s32 256, 256
      %105 = vsyncadd [#allocation15], %s104
      %s106 = sshll.u32 [#allocation14], 4
      %s107 = int_to_ptr.vmem [resolvable:$true] %s106
      %112 = dma.hbm_to_vmem [thread:$0]  %s7, 256, %s107, [#allocation15], 64, 64, 4
    $region33: #{tpu_custom_call.1} parent=1 // pred_fallthru
      _
    // Predicated region
    $region34: #{tpu_custom_call.1} parent=1 // pred_check
      _
    $region35: #{tpu_custom_call.1} parent=1 // pred_check_branch
      %114 = sbr.rel (0) target = $region37
    $region36: #{tpu_custom_call.1} parent=1 // pred_region
      %s116 = ssub.s32 16, 16
      %117 = vsyncadd [#allocation15], %s116
      %s119 = sshll.u32 [#allocation16], 4
      %s120 = int_to_ptr.vmem [resolvable:$true] %s119
      %122 = dma.hbm_to_vmem [thread:$0]  %s8, 16, %s120, [#allocation15]
    $region37: #{tpu_custom_call.1} parent=1 // pred_fallthru
      _
    // Predicated region
    $region38: #{tpu_custom_call.1} parent=1 // pred_check
      _
    $region39: #{tpu_custom_call.1} parent=1 // pred_check_branch
      %124 = sbr.rel (0) target = $region41
    $region40: #{tpu_custom_call.1} parent=1 // pred_region
      %s126 = ssub.s32 256, 256
      %127 = vsyncadd [#allocation18], %s126
      %s128 = sshll.u32 [#allocation17], 4
      %s129 = int_to_ptr.vmem [resolvable:$true] %s128
      %134 = dma.hbm_to_vmem [thread:$0]  %s9, 256, %s129, [#allocation18], 64, 64, 4
    $region41: #{tpu_custom_call.1} parent=1 // pred_fallthru
      _
    // Predicated region
    $region42: #{tpu_custom_call.1} parent=1 // pred_check
      _
    $region43: #{tpu_custom_call.1} parent=1 // pred_check_branch
      %136 = sbr.rel (0) target = $region45
    $region44: #{tpu_custom_call.1} parent=1 // pred_region
      %s138 = ssub.s32 32, 32
      %139 = vsyncadd [#allocation18], %s138
      %s141 = sshll.u32 [#allocation19], 4
      %s142 = int_to_ptr.vmem [resolvable:$true] %s141
      %144 = dma.hbm_to_vmem [thread:$0]  %s10, 32, %s142, [#allocation18]
    $region45: #{tpu_custom_call.1} parent=1 // pred_fallthru
      _
    // Predicated region
    $region46: #{tpu_custom_call.1} parent=1 // pred_check
      _
    $region47: #{tpu_custom_call.1} parent=1 // pred_check_branch
      %146 = sbr.rel (0) target = $region49
    $region48: #{tpu_custom_call.1} parent=1 // pred_region
      %147 = dma.done [#allocation3], 7168
    $region49: #{tpu_custom_call.1} parent=1 // pred_fallthru
      _
    // Predicated region
    $region50: #{tpu_custom_call.1} parent=1 // pred_check
      _
    $region51: #{tpu_custom_call.1} parent=1 // pred_check_branch
      %149 = sbr.rel (0) target = $region53
    $region52: #{tpu_custom_call.1} parent=1 // pred_region
      %150 = dma.done [#allocation6], 16
    $region53: #{tpu_custom_call.1} parent=1 // pred_fallthru
      _
    // Predicated region
    $region54: #{tpu_custom_call.1} parent=1 // pred_check
      _
    $region55: #{tpu_custom_call.1} parent=1 // pred_check_branch
      %152 = sbr.rel (0) target = $region57
    $region56: #{tpu_custom_call.1} parent=1 // pred_region
      %153 = dma.done [#allocation6], 896
    $region57: #{tpu_custom_call.1} parent=1 // pred_fallthru
      _
    // Predicated region
    $region58: #{tpu_custom_call.1} parent=1 // pred_check
      _
    $region59: #{tpu_custom_call.1} parent=1 // pred_check_branch
      %155 = sbr.rel (0) target = $region61
    $region60: #{tpu_custom_call.1} parent=1 // pred_region
      %156 = dma.done [#allocation9], 256
    $region61: #{tpu_custom_call.1} parent=1 // pred_fallthru
      _
    // Predicated region
    $region62: #{tpu_custom_call.1} parent=1 // pred_check
      _
    $region63: #{tpu_custom_call.1} parent=1 // pred_check_branch
      %158 = sbr.rel (0) target = $region65
    $region64: #{tpu_custom_call.1} parent=1 // pred_region
      %159 = dma.done [#allocation9], 16
    $region65: #{tpu_custom_call.1} parent=1 // pred_fallthru
      _
    // Predicated region
    $region66: #{tpu_custom_call.1} parent=1 // pred_check
      _
    $region67: #{tpu_custom_call.1} parent=1 // pred_check_branch
      %161 = sbr.rel (0) target = $region69
    $region68: #{tpu_custom_call.1} parent=1 // pred_region
      %162 = dma.done [#allocation12], 256
    $region69: #{tpu_custom_call.1} parent=1 // pred_fallthru
      _
    // Predicated region
    $region70: #{tpu_custom_call.1} parent=1 // pred_check
      _
    $region71: #{tpu_custom_call.1} parent=1 // pred_check_branch
      %164 = sbr.rel (0) target = $region73
    $region72: #{tpu_custom_call.1} parent=1 // pred_region
      %165 = dma.done [#allocation12], 16
    $region73: #{tpu_custom_call.1} parent=1 // pred_fallthru
      _
    // Predicated region
    $region74: #{tpu_custom_call.1} parent=1 // pred_check
      _
    $region75: #{tpu_custom_call.1} parent=1 // pred_check_branch
      %167 = sbr.rel (0) target = $region77
    $region76: #{tpu_custom_call.1} parent=1 // pred_region
      %168 = dma.done [#allocation15], 256
    $region77: #{tpu_custom_call.1} parent=1 // pred_fallthru
      _
    // Predicated region
    $region78: #{tpu_custom_call.1} parent=1 // pred_check
      _
    $region79: #{tpu_custom_call.1} parent=1 // pred_check_branch
      %170 = sbr.rel (0) target = $region81
    $region80: #{tpu_custom_call.1} parent=1 // pred_region
      %171 = dma.done [#allocation15], 16
    $region81: #{tpu_custom_call.1} parent=1 // pred_fallthru
      _
    // Predicated region
    $region82: #{tpu_custom_call.1} parent=1 // pred_check
      _
    $region83: #{tpu_custom_call.1} parent=1 // pred_check_branch
      %173 = sbr.rel (0) target = $region85
    $region84: #{tpu_custom_call.1} parent=1 // pred_region
      %174 = dma.done [#allocation18], 256
    $region85: #{tpu_custom_call.1} parent=1 // pred_fallthru
      _
    // Predicated region
    $region86: #{tpu_custom_call.1} parent=1 // pred_check
      _
    $region87: #{tpu_custom_call.1} parent=1 // pred_check_branch
      %176 = sbr.rel (0) target = $region89
    $region88: #{tpu_custom_call.1} parent=1 // pred_region
      %177 = dma.done [#allocation18], 32
    $region89: #{tpu_custom_call.1} parent=1 // pred_fallthru
      _
    %v179 = vld [vmem:[#allocation2] sm:$0xff]
    %v180 = vld [vmem:[#allocation2 + $0x8] sm:$0xff]
    %v181 = vld [vmem:[#allocation2 + $0x10] sm:$0xff]
    %v182 = vld [vmem:[#allocation2 + $0x18] sm:$0xff]
    %v183 = vld [vmem:[#allocation2 + $0x20] sm:$0xff]
    %v184 = vld [vmem:[#allocation2 + $0x28] sm:$0xff]
    %v185 = vld [vmem:[#allocation2 + $0x30] sm:$0xff]
    %v186 = vld [vmem:[#allocation2 + $0x38] sm:$0xff]
    %v187 = vld [vmem:[#allocation2 + $0x40] sm:$0xff]
    %v188 = vld [vmem:[#allocation2 + $0x48] sm:$0xff]
    %v189 = vld [vmem:[#allocation2 + $0x50] sm:$0xff]
    %v190 = vld [vmem:[#allocation2 + $0x58] sm:$0xff]
    %v191 = vld [vmem:[#allocation2 + $0x60] sm:$0xff]
    %v192 = vld [vmem:[#allocation2 + $0x68] sm:$0xff]
    %v193 = vld [vmem:[#allocation2 + $0x70] sm:$0xff]
    %v194 = vld [vmem:[#allocation2 + $0x78] sm:$0xff]
    %v195 = vld [vmem:[#allocation2 + $0x80] sm:$0xff]
    %v196 = vld [vmem:[#allocation2 + $0x88] sm:$0xff]
    %v197 = vld [vmem:[#allocation2 + $0x90] sm:$0xff]
    %v198 = vld [vmem:[#allocation2 + $0x98] sm:$0xff]
    %v199 = vld [vmem:[#allocation2 + $0xa0] sm:$0xff]
    %v200 = vld [vmem:[#allocation2 + $0xa8] sm:$0xff]
    %v201 = vld [vmem:[#allocation2 + $0xb0] sm:$0xff]
    %v202 = vld [vmem:[#allocation2 + $0xb8] sm:$0xff]
    %v203 = vld [vmem:[#allocation2 + $0xc0] sm:$0xff]
    %v204 = vld [vmem:[#allocation2 + $0xc8] sm:$0xff]
    %v205 = vld [vmem:[#allocation2 + $0xd0] sm:$0xff]
    %v206 = vld [vmem:[#allocation2 + $0xd8] sm:$0xff]
    %v207 = vld [vmem:[#allocation2 + $0xe0] sm:$0xff]
    %v208 = vld [vmem:[#allocation2 + $0xe8] sm:$0xff]
    %v209 = vld [vmem:[#allocation2 + $0xf0] sm:$0xff]
    %v210 = vld [vmem:[#allocation2 + $0xf8] sm:$0xff]
    %v211 = vld [vmem:[#allocation2 + $0x100] sm:$0xff]
    %v212 = vld [vmem:[#allocation2 + $0x108] sm:$0xff]
    %v213 = vld [vmem:[#allocation2 + $0x110] sm:$0xff]
    %v214 = vld [vmem:[#allocation2 + $0x118] sm:$0xff]
    %v215 = vld [vmem:[#allocation2 + $0x120] sm:$0xff]
    %v216 = vld [vmem:[#allocation2 + $0x128] sm:$0xff]
    %v217 = vld [vmem:[#allocation2 + $0x130] sm:$0xff]
    %v218 = vld [vmem:[#allocation2 + $0x138] sm:$0xff]
    %v219 = vld [vmem:[#allocation2 + $0x140] sm:$0xff]
    %v220 = vld [vmem:[#allocation2 + $0x148] sm:$0xff]
    %v221 = vld [vmem:[#allocation2 + $0x150] sm:$0xff]
    %v222 = vld [vmem:[#allocation2 + $0x158] sm:$0xff]
    %v223 = vld [vmem:[#allocation2 + $0x160] sm:$0xff]
    %v224 = vld [vmem:[#allocation2 + $0x168] sm:$0xff]
    %v225 = vld [vmem:[#allocation2 + $0x170] sm:$0xff]
    %v226 = vld [vmem:[#allocation2 + $0x178] sm:$0xff]
    %v227 = vld [vmem:[#allocation2 + $0x180] sm:$0xff]
    %v228 = vld [vmem:[#allocation2 + $0x188] sm:$0xff]
    %v229 = vld [vmem:[#allocation2 + $0x190] sm:$0xff]
    %v230 = vld [vmem:[#allocation2 + $0x198] sm:$0xff]
    %v231 = vld [vmem:[#allocation2 + $0x1a0] sm:$0xff]
    %v232 = vld [vmem:[#allocation2 + $0x1a8] sm:$0xff]
    %v233 = vld [vmem:[#allocation2 + $0x1b0] sm:$0xff]
    %v234 = vld [vmem:[#allocation2 + $0x1b8] sm:$0xff]
    %vm235 = vcmask 261120
    %v236 = vsel %vm235, %v179, 0.0
    %v237 = vsel %vm235, %v180, 0.0
    %v238 = vadd.f32 %v236, %v237
    %v239 = vsel %vm235, %v181, 0.0
    %v240 = vadd.f32 %v238, %v239
    %v241 = vsel %vm235, %v182, 0.0
    %v242 = vadd.f32 %v240, %v241
    %v243 = vsel %vm235, %v183, 0.0
    %v244 = vadd.f32 %v242, %v243
    %v245 = vsel %vm235, %v184, 0.0
    %v246 = vadd.f32 %v244, %v245
    %v247 = vsel %vm235, %v185, 0.0
    %v248 = vadd.f32 %v246, %v247
    %v249 = vrot.slane %v248, 4
    %v250 = vadd.f32 %v248, %v249
    %v251 = vrot.slane %v250, 2
    %v252 = vadd.f32 %v250, %v251
    %v253 = vrot.slane %v252, 1
    %v254 = vadd.f32 %v252, %v253
    %v255 = vsel %vm235, %v186, 0.0
    %v256 = vsel %vm235, %v187, 0.0
    %v257 = vadd.f32 %v255, %v256
    %v258 = vsel %vm235, %v188, 0.0
    %v259 = vadd.f32 %v257, %v258
    %v260 = vsel %vm235, %v189, 0.0
    %v261 = vadd.f32 %v259, %v260
    %v262 = vsel %vm235, %v190, 0.0
    %v263 = vadd.f32 %v261, %v262
    %v264 = vsel %vm235, %v191, 0.0
    %v265 = vadd.f32 %v263, %v264
    %v266 = vsel %vm235, %v192, 0.0
    %v267 = vadd.f32 %v265, %v266
    %v268 = vrot.slane %v267, 4
    %v269 = vadd.f32 %v267, %v268
    %v270 = vrot.slane %v269, 2
    %v271 = vadd.f32 %v269, %v270
    %v272 = vrot.slane %v271, 1
    %v273 = vadd.f32 %v271, %v272
    %v274 = vsel %vm235, %v193, 0.0
    %v275 = vsel %vm235, %v194, 0.0
    %v276 = vadd.f32 %v274, %v275
    %v277 = vsel %vm235, %v195, 0.0
    %v278 = vadd.f32 %v276, %v277
    %v279 = vsel %vm235, %v196, 0.0
    %v280 = vadd.f32 %v278, %v279
    %v281 = vsel %vm235, %v197, 0.0
    %v282 = vadd.f32 %v280, %v281
    %v283 = vsel %vm235, %v198, 0.0
    %v284 = vadd.f32 %v282, %v283
    %v285 = vsel %vm235, %v199, 0.0
    %v286 = vadd.f32 %v284, %v285
    %v287 = vrot.slane %v286, 4
    %v288 = vadd.f32 %v286, %v287
    %v289 = vrot.slane %v288, 2
    %v290 = vadd.f32 %v288, %v289
    %v291 = vrot.slane %v290, 1
    %v292 = vadd.f32 %v290, %v291
    %v293 = vsel %vm235, %v200, 0.0
    %v294 = vsel %vm235, %v201, 0.0
    %v295 = vadd.f32 %v293, %v294
    %v296 = vsel %vm235, %v202, 0.0
    %v297 = vadd.f32 %v295, %v296
    %v298 = vsel %vm235, %v203, 0.0
    %v299 = vadd.f32 %v297, %v298
    %v300 = vsel %vm235, %v204, 0.0
    %v301 = vadd.f32 %v299, %v300
    %v302 = vsel %vm235, %v205, 0.0
    %v303 = vadd.f32 %v301, %v302
    %v304 = vsel %vm235, %v206, 0.0
    %v305 = vadd.f32 %v303, %v304
    %v306 = vrot.slane %v305, 4
    %v307 = vadd.f32 %v305, %v306
    %v308 = vrot.slane %v307, 2
    %v309 = vadd.f32 %v307, %v308
    %v310 = vrot.slane %v309, 1
    %v311 = vadd.f32 %v309, %v310
    %v312 = vsel %vm235, %v207, 0.0
    %v313 = vsel %vm235, %v208, 0.0
    %v314 = vadd.f32 %v312, %v313
    %v315 = vsel %vm235, %v209, 0.0
    %v316 = vadd.f32 %v314, %v315
    %v317 = vsel %vm235, %v210, 0.0
    %v318 = vadd.f32 %v316, %v317
    %v319 = vsel %vm235, %v211, 0.0
    %v320 = vadd.f32 %v318, %v319
    %v321 = vsel %vm235, %v212, 0.0
    %v322 = vadd.f32 %v320, %v321
    %v323 = vsel %vm235, %v213, 0.0
    %v324 = vadd.f32 %v322, %v323
    %v325 = vrot.slane %v324, 4
    %v326 = vadd.f32 %v324, %v325
    %v327 = vrot.slane %v326, 2
    %v328 = vadd.f32 %v326, %v327
    %v329 = vrot.slane %v328, 1
    %v330 = vadd.f32 %v328, %v329
    %v331 = vsel %vm235, %v214, 0.0
    %v332 = vsel %vm235, %v215, 0.0
    %v333 = vadd.f32 %v331, %v332
    %v334 = vsel %vm235, %v216, 0.0
    %v335 = vadd.f32 %v333, %v334
    %v336 = vsel %vm235, %v217, 0.0
    %v337 = vadd.f32 %v335, %v336
    %v338 = vsel %vm235, %v218, 0.0
    %v339 = vadd.f32 %v337, %v338
    %v340 = vsel %vm235, %v219, 0.0
    %v341 = vadd.f32 %v339, %v340
    %v342 = vsel %vm235, %v220, 0.0
    %v343 = vadd.f32 %v341, %v342
    %v344 = vrot.slane %v343, 4
    %v345 = vadd.f32 %v343, %v344
    %v346 = vrot.slane %v345, 2
    %v347 = vadd.f32 %v345, %v346
    %v348 = vrot.slane %v347, 1
    %v349 = vadd.f32 %v347, %v348
    %v350 = vsel %vm235, %v221, 0.0
    %v351 = vsel %vm235, %v222, 0.0
    %v352 = vadd.f32 %v350, %v351
    %v353 = vsel %vm235, %v223, 0.0
    %v354 = vadd.f32 %v352, %v353
    %v355 = vsel %vm235, %v224, 0.0
    %v356 = vadd.f32 %v354, %v355
    %v357 = vsel %vm235, %v225, 0.0
    %v358 = vadd.f32 %v356, %v357
    %v359 = vsel %vm235, %v226, 0.0
    %v360 = vadd.f32 %v358, %v359
    %v361 = vsel %vm235, %v227, 0.0
    %v362 = vadd.f32 %v360, %v361
    %v363 = vrot.slane %v362, 4
    %v364 = vadd.f32 %v362, %v363
    %v365 = vrot.slane %v364, 2
    %v366 = vadd.f32 %v364, %v365
    %v367 = vrot.slane %v366, 1
    %v368 = vadd.f32 %v366, %v367
    %v369 = vsel %vm235, %v228, 0.0
    %v370 = vsel %vm235, %v229, 0.0
    %v371 = vadd.f32 %v369, %v370
    %v372 = vsel %vm235, %v230, 0.0
    %v373 = vadd.f32 %v371, %v372
    %v374 = vsel %vm235, %v231, 0.0
    %v375 = vadd.f32 %v373, %v374
    %v376 = vsel %vm235, %v232, 0.0
    %v377 = vadd.f32 %v375, %v376
    %v378 = vsel %vm235, %v233, 0.0
    %v379 = vadd.f32 %v377, %v378
    %v380 = vsel %vm235, %v234, 0.0
    %v381 = vadd.f32 %v379, %v380
    %v382 = vrot.slane %v381, 4
    %v383 = vadd.f32 %v381, %v382
    %v384 = vrot.slane %v383, 2
    %v385 = vadd.f32 %v383, %v384
    %v386 = vrot.slane %v385, 1
    %v387 = vadd.f32 %v385, %v386
    %v388 = vmul.f32 %v254, 0.020408163
    %v389 = vmul.f32 %v273, 0.020408163
    %v390 = vmul.f32 %v292, 0.020408163
    %v391 = vmul.f32 %v311, 0.020408163
    %v392 = vmul.f32 %v330, 0.020408163
    %v393 = vmul.f32 %v349, 0.020408163
    %v394 = vmul.f32 %v368, 0.020408163
    %v395 = vmul.f32 %v387, 0.020408163
    %v396 = vld [vmem:[#allocation5] sm:$0x1]
    %v398 = vlaneseq
    %v399 = vshrl.u32 %v398, 7
    %v400 = vsub.s32 0, %v399
    %v401 = vrot.slane %v396, %v400
    %v403 = vadd.f32 %v388, %v401
    %v404 = vadd.f32 %v389, %v401
    %v405 = vadd.f32 %v390, %v401
    %v406 = vadd.f32 %v391, %v401
    %v407 = vadd.f32 %v392, %v401
    %v408 = vadd.f32 %v393, %v401
    %v409 = vadd.f32 %v394, %v401
    %v410 = vadd.f32 %v395, %v401
    %v411 = vpack.c.bf16 %v403, %v403
    %v412 = vpack.c.bf16 %v404, %v404
    %v413 = vpack.c.bf16 %v405, %v405
    %v414 = vpack.c.bf16 %v406, %v406
    %v415 = vpack.c.bf16 %v407, %v407
    %v416 = vpack.c.bf16 %v408, %v408
    %v417 = vpack.c.bf16 %v409, %v409
    %v418 = vpack.c.bf16 %v410, %v410
    %v419 = vld [vmem:[#allocation7] sm:$0xff]
    %v420 = vld [vmem:[#allocation7 + $0x8] sm:$0xff]
    %v421 = vld [vmem:[#allocation7 + $0x10] sm:$0xff]
    %v422 = vld [vmem:[#allocation7 + $0x18] sm:$0xff]
    %v423 = vld [vmem:[#allocation7 + $0x20] sm:$0xff]
    %v424 = vld [vmem:[#allocation7 + $0x28] sm:$0xff]
    %v425 = vld [vmem:[#allocation7 + $0x30] sm:$0xff]
    %v426 = vadd.f32 %v179, %v419
    %v427 = vadd.f32 %v180, %v420
    %v428 = vadd.f32 %v181, %v421
    %v429 = vadd.f32 %v182, %v422
    %v430 = vadd.f32 %v183, %v423
    %v431 = vadd.f32 %v184, %v424
    %v432 = vadd.f32 %v185, %v425
    %v433 = vadd.f32 %v186, %v419
    %v434 = vadd.f32 %v187, %v420
    %v435 = vadd.f32 %v188, %v421
    %v436 = vadd.f32 %v189, %v422
    %v437 = vadd.f32 %v190, %v423
    %v438 = vadd.f32 %v191, %v424
    %v439 = vadd.f32 %v192, %v425
    %v440 = vadd.f32 %v193, %v419
    %v441 = vadd.f32 %v194, %v420
    %v442 = vadd.f32 %v195, %v421
    %v443 = vadd.f32 %v196, %v422
    %v444 = vadd.f32 %v197, %v423
    %v445 = vadd.f32 %v198, %v424
    %v446 = vadd.f32 %v199, %v425
    %v447 = vadd.f32 %v200, %v419
    %v448 = vadd.f32 %v201, %v420
    %v449 = vadd.f32 %v202, %v421
    %v450 = vadd.f32 %v203, %v422
    %v451 = vadd.f32 %v204, %v423
    %v452 = vadd.f32 %v205, %v424
    %v453 = vadd.f32 %v206, %v425
    %v454 = vadd.f32 %v207, %v419
    %v455 = vadd.f32 %v208, %v420
    %v456 = vadd.f32 %v209, %v421
    %v457 = vadd.f32 %v210, %v422
    %v458 = vadd.f32 %v211, %v423
    %v459 = vadd.f32 %v212, %v424
    %v460 = vadd.f32 %v213, %v425
    %v461 = vadd.f32 %v214, %v419
    %v462 = vadd.f32 %v215, %v420
    %v463 = vadd.f32 %v216, %v421
    %v464 = vadd.f32 %v217, %v422
    %v465 = vadd.f32 %v218, %v423
    %v466 = vadd.f32 %v219, %v424
    %v467 = vadd.f32 %v220, %v425
    %v468 = vadd.f32 %v221, %v419
    %v469 = vadd.f32 %v222, %v420
    %v470 = vadd.f32 %v223, %v421
    %v471 = vadd.f32 %v224, %v422
    %v472 = vadd.f32 %v225, %v423
    %v473 = vadd.f32 %v226, %v424
    %v474 = vadd.f32 %v227, %v425
    %v475 = vadd.f32 %v228, %v419
    %v476 = vadd.f32 %v229, %v420
    %v477 = vadd.f32 %v230, %v421
    %v478 = vadd.f32 %v231, %v422
    %v479 = vadd.f32 %v232, %v423
    %v480 = vadd.f32 %v233, %v424
    %v481 = vadd.f32 %v234, %v425
    %v482 = vpack.c.bf16 %v427, %v426
    %v483 = vpack.c.bf16 %v429, %v428
    %v484 = vpack.c.bf16 %v431, %v430
    %v485 = vpack.c.bf16 %v433, %v432
    %v486 = vpack.c.bf16 %v435, %v434
    %v487 = vpack.c.bf16 %v437, %v436
    %v488 = vpack.c.bf16 %v439, %v438
    %v489 = vpack.c.bf16 %v441, %v440
    %v490 = vpack.c.bf16 %v443, %v442
    %v491 = vpack.c.bf16 %v445, %v444
    %v492 = vpack.c.bf16 %v447, %v446
    %v493 = vpack.c.bf16 %v449, %v448
    %v494 = vpack.c.bf16 %v451, %v450
    %v495 = vpack.c.bf16 %v453, %v452
    %v496 = vpack.c.bf16 %v455, %v454
    %v497 = vpack.c.bf16 %v457, %v456
    %v498 = vpack.c.bf16 %v459, %v458
    %v499 = vpack.c.bf16 %v461, %v460
    %v500 = vpack.c.bf16 %v463, %v462
    %v501 = vpack.c.bf16 %v465, %v464
    %v502 = vpack.c.bf16 %v467, %v466
    %v503 = vpack.c.bf16 %v469, %v468
    %v504 = vpack.c.bf16 %v471, %v470
    %v505 = vpack.c.bf16 %v473, %v472
    %v506 = vpack.c.bf16 %v475, %v474
    %v507 = vpack.c.bf16 %v477, %v476
    %v508 = vpack.c.bf16 %v479, %v478
    %v509 = vpack.c.bf16 %v481, %v480
    %v510 = vld [vmem:[#allocation8] sm:$0xf]
    %v511 = vld [vmem:[#allocation8 + $0x4] sm:$0xf]
    %v512 = vld [vmem:[#allocation8 + $0x8] sm:$0xf]
    %v513 = vld [vmem:[#allocation8 + $0xc] sm:$0xf]
    %v514 = vld [vmem:[#allocation10] sm:$0x1]
    %v516 = vlaneseq
    %v517 = vshrl.u32 %v516, 7
    %v518 = vsub.s32 0, %v517
    %v519 = vrot.slane %v514, %v518
    %v529 = vunpack.c.l.b16 %v411
    %v530 = vunpack.c.l.b16 %v412
    %v531 = vunpack.c.l.b16 %v413
    %v532 = vunpack.c.l.b16 %v414
    %v533 = vunpack.c.l.b16 %v415
    %v534 = vunpack.c.l.b16 %v416
    %v535 = vunpack.c.l.b16 %v417
    %v536 = vunpack.c.l.b16 %v418
    %v537 = vrot.slane %v530, 7
    %vm538 = vcmask 1041409
    %v539 = vsel %vm538, %v537, %v529
    %v540 = vrot.slane %v531, 6
    %vm541 = vcmask 1042434
    %v542 = vsel %vm541, %v540, %v539
    %v543 = vrot.slane %v532, 5
    %vm544 = vcmask 1043459
    %v545 = vsel %vm544, %v543, %v542
    %v546 = vrot.slane %v533, 4
    %vm547 = vcmask 1044484
    %v548 = vsel %vm547, %v546, %v545
    %v549 = vrot.slane %v534, 3
    %vm550 = vcmask 1045509
    %v551 = vsel %vm550, %v549, %v548
    %v552 = vrot.slane %v535, 2
    %vm553 = vcmask 1046534
    %v554 = vsel %vm553, %v552, %v551
    %v555 = vrot.slane %v536, 1
    %vm556 = vcmask 1047559
    %v557 = vsel %vm556, %v555, %v554
    %v558 = vpack.c.b16 %v557, %v557
    %v563 = vunpack.c.l.b16 %v510
    %v564 = vunpack.c.l.b16 %v511
    %v565 = vunpack.c.l.b16 %v512
    %v566 = vunpack.c.l.b16 %v513
    %v567 = vpack.c.b16 %v564, %v563
    %v568 = vpack.c.b16 %v566, %v565
    %v572 = vsel %vm235, %v558, 0
    %574 = vmatprep.subr.bf16.mxu0 0
    %575 = vmatpush1.bf16.msra.mxu0 %v567
    %576 = vmatprep.subr.bf16.mxu0 0
    %577 = vmatpush1.bf16.msra.mxu0 %v568
    %578 = vmatprep.subr.bf16.mxu0 0
    %579 = vmatpush1.bf16.msra.mxu0 0
    %580 = vmatprep.subr.bf16.mxu0 0
    %581 = vmatpush1.bf16.msra.mxu0 0
    %582 = vmatprep.subr.bf16.mxu0 0
    %583 = vmatpush1.bf16.msra.mxu0 0
    %584 = vmatprep.subr.bf16.mxu0 0
    %585 = vmatpush1.bf16.msra.mxu0 0
    %586 = vmatprep.subr.bf16.mxu0 0
    %587 = vmatpush1.bf16.msra.mxu0 0
    %588 = vmatprep.subr.bf16.mxu0 0
    %589 = vmatpush1.bf16.msra.mxu0 0
    %590 = vmatprep.subr.bf16.mxu0 0
    %591 = vmatpush1.bf16.msra.mxu0 0
    %592 = vmatprep.subr.bf16.mxu0 0
    %593 = vmatpush1.bf16.msra.mxu0 0
    %594 = vmatprep.subr.bf16.mxu0 0
    %595 = vmatpush1.bf16.msra.mxu0 0
    %596 = vmatprep.subr.bf16.mxu0 0
    %597 = vmatpush1.bf16.msra.mxu0 0
    %598 = vmatprep.subr.bf16.mxu0 0
    %599 = vmatpush1.bf16.msra.mxu0 0
    %600 = vmatprep.subr.bf16.mxu0 0
    %601 = vmatpush1.bf16.msra.mxu0 0
    %602 = vmatprep.subr.bf16.mxu0 0
    %603 = vmatpush1.bf16.msra.mxu0 0
    %604 = vmatprep.subr.bf16.mxu0 0
    %605 = vmatpush1.bf16.msra.mxu0 0
    %606 = vmatprep.mubr.bf16.mxu0 0
    %607 = vmatmul.mubr.bf16.gmra.mrb[0].mxu0 %v572
    %v608 = vpop.f32.mrb[0].mxu0
    %v609 = vadd.f32 %v519, %v608
    %v610 = vpop.f32.mrb[0].mxu0
    %v611 = vpop.f32.mrb[0].mxu0
    %v612 = vpop.f32.mrb[0].mxu0
    %613 = vdwg.mxu0
    %v614 = vmul.f32 %v609, 0.35355338
    %v615 = vld [vmem:[#allocation11] sm:$0xf]
    %v616 = vld [vmem:[#allocation11 + $0x4] sm:$0xf]
    %v617 = vld [vmem:[#allocation11 + $0x8] sm:$0xf]
    %v618 = vld [vmem:[#allocation11 + $0xc] sm:$0xf]
    %v619 = vld [vmem:[#allocation13] sm:$0x1]
    %v621 = vlaneseq
    %v622 = vshrl.u32 %v621, 7
    %v623 = vsub.s32 0, %v622
    %v624 = vrot.slane %v619, %v623
    %v630 = vunpack.c.l.b16 %v615
    %v631 = vunpack.c.l.b16 %v616
    %v632 = vunpack.c.l.b16 %v617
    %v633 = vunpack.c.l.b16 %v618
    %v634 = vpack.c.b16 %v631, %v630
    %v635 = vpack.c.b16 %v633, %v632
    %638 = vmatprep.subr.bf16.mxu0 0
    %639 = vmatpush1.bf16.msra.mxu0 %v634
    %640 = vmatprep.subr.bf16.mxu0 0
    %641 = vmatpush1.bf16.msra.mxu0 %v635
    %642 = vmatprep.subr.bf16.mxu0 0
    %643 = vmatpush1.bf16.msra.mxu0 0
    %644 = vmatprep.subr.bf16.mxu0 0
    %645 = vmatpush1.bf16.msra.mxu0 0
    %646 = vmatprep.subr.bf16.mxu0 0
    %647 = vmatpush1.bf16.msra.mxu0 0
    %648 = vmatprep.subr.bf16.mxu0 0
    %649 = vmatpush1.bf16.msra.mxu0 0
    %650 = vmatprep.subr.bf16.mxu0 0
    %651 = vmatpush1.bf16.msra.mxu0 0
    %652 = vmatprep.subr.bf16.mxu0 0
    %653 = vmatpush1.bf16.msra.mxu0 0
    %654 = vmatprep.subr.bf16.mxu0 0
    %655 = vmatpush1.bf16.msra.mxu0 0
    %656 = vmatprep.subr.bf16.mxu0 0
    %657 = vmatpush1.bf16.msra.mxu0 0
    %658 = vmatprep.subr.bf16.mxu0 0
    %659 = vmatpush1.bf16.msra.mxu0 0
    %660 = vmatprep.subr.bf16.mxu0 0
    %661 = vmatpush1.bf16.msra.mxu0 0
    %662 = vmatprep.subr.bf16.mxu0 0
    %663 = vmatpush1.bf16.msra.mxu0 0
    %664 = vmatprep.subr.bf16.mxu0 0
    %665 = vmatpush1.bf16.msra.mxu0 0
    %666 = vmatprep.subr.bf16.mxu0 0
    %667 = vmatpush1.bf16.msra.mxu0 0
    %668 = vmatprep.subr.bf16.mxu0 0
    %669 = vmatpush1.bf16.msra.mxu0 0
    %670 = vmatprep.mubr.bf16.mxu0 0
    %671 = vmatmul.mubr.bf16.gmra.mrb[0].mxu0 %v572
    %v672 = vpop.f32.mrb[0].mxu0
    %v673 = vadd.f32 %v624, %v672
    %v674 = vpop.f32.mrb[0].mxu0
    %v675 = vpop.f32.mrb[0].mxu0
    %v676 = vpop.f32.mrb[0].mxu0
    %677 = vdwg.mxu0
    %v679 = vsel %vm235, %v482, 0
    %v682 = vsel %vm235, %v483, 0
    %v685 = vsel %vm235, %v484, 0
    %v688 = vsel %vm235, %v485, 0
    %v691 = vsel %vm235, %v486, 0
    %v694 = vsel %vm235, %v487, 0
    %v697 = vsel %vm235, %v488, 0
    %v700 = vsel %vm235, %v489, 0
    %v703 = vsel %vm235, %v490, 0
    %v706 = vsel %vm235, %v491, 0
    %v709 = vsel %vm235, %v492, 0
    %v712 = vsel %vm235, %v493, 0
    %v715 = vsel %vm235, %v494, 0
    %v718 = vsel %vm235, %v495, 0
    %v721 = vsel %vm235, %v496, 0
    %v724 = vsel %vm235, %v497, 0
    %v727 = vsel %vm235, %v498, 0
    %v730 = vsel %vm235, %v499, 0
    %v733 = vsel %vm235, %v500, 0
    %v736 = vsel %vm235, %v501, 0
    %v739 = vsel %vm235, %v502, 0
    %v742 = vsel %vm235, %v503, 0
    %v745 = vsel %vm235, %v504, 0
    %v748 = vsel %vm235, %v505, 0
    %v751 = vsel %vm235, %v506, 0
    %v754 = vsel %vm235, %v507, 0
    %v757 = vsel %vm235, %v508, 0
    %v760 = vsel %vm235, %v509, 0
    %762 = vmatprep.subr.bf16.mxu0 0
    %763 = vmatpush1.bf16.msra.mxu0 %v634
    %764 = vmatprep.subr.bf16.mxu0 0
    %765 = vmatpush1.bf16.msra.mxu0 %v635
    %766 = vmatprep.subr.bf16.mxu0 0
    %767 = vmatpush1.bf16.msra.mxu0 0
    %768 = vmatprep.subr.bf16.mxu0 0
    %769 = vmatpush1.bf16.msra.mxu0 0
    %770 = vmatprep.subr.bf16.mxu0 0
    %771 = vmatpush1.bf16.msra.mxu0 0
    %772 = vmatprep.subr.bf16.mxu0 0
    %773 = vmatpush1.bf16.msra.mxu0 0
    %774 = vmatprep.subr.bf16.mxu0 0
    %775 = vmatpush1.bf16.msra.mxu0 0
    %776 = vmatprep.subr.bf16.mxu0 0
    %777 = vmatpush1.bf16.msra.mxu0 0
    %778 = vmatprep.subr.bf16.mxu0 0
    %779 = vmatpush1.bf16.msra.mxu0 0
    %780 = vmatprep.subr.bf16.mxu0 0
    %781 = vmatpush1.bf16.msra.mxu0 0
    %782 = vmatprep.subr.bf16.mxu0 0
    %783 = vmatpush1.bf16.msra.mxu0 0
    %784 = vmatprep.subr.bf16.mxu0 0
    %785 = vmatpush1.bf16.msra.mxu0 0
    %786 = vmatprep.subr.bf16.mxu0 0
    %787 = vmatpush1.bf16.msra.mxu0 0
    %788 = vmatprep.subr.bf16.mxu0 0
    %789 = vmatpush1.bf16.msra.mxu0 0
    %790 = vmatprep.subr.bf16.mxu0 0
    %791 = vmatpush1.bf16.msra.mxu0 0
    %792 = vmatprep.subr.bf16.mxu0 0
    %793 = vmatpush1.bf16.msra.mxu0 0
    %794 = vmatprep.mubr.bf16.mxu0 0
    %795 = vmatmul.mubr.bf16.gmra.mrb[0].mxu0 %v679
    %v796 = vpop.f32.mrb[0].mxu0
    %v797 = vadd.f32 %v624, %v796
    %v798 = vpop.f32.mrb[0].mxu0
    %v799 = vpop.f32.mrb[0].mxu0
    %v800 = vadd.f32 %v624, %v799
    %v801 = vpop.f32.mrb[0].mxu0
    %802 = vmatprep.mubr.bf16.mxu0 0
    %803 = vmatmul.mubr.bf16.gmra.mrb[0].mxu0 %v682
    %v804 = vpop.f32.mrb[0].mxu0
    %v805 = vadd.f32 %v624, %v804
    %v806 = vpop.f32.mrb[0].mxu0
    %v807 = vpop.f32.mrb[0].mxu0
    %v808 = vadd.f32 %v624, %v807
    %v809 = vpop.f32.mrb[0].mxu0
    %810 = vmatprep.mubr.bf16.mxu0 0
    %811 = vmatmul.mubr.bf16.gmra.mrb[0].mxu0 %v685
    %v812 = vpop.f32.mrb[0].mxu0
    %v813 = vadd.f32 %v624, %v812
    %v814 = vpop.f32.mrb[0].mxu0
    %v815 = vpop.f32.mrb[0].mxu0
    %v816 = vadd.f32 %v624, %v815
    %v817 = vpop.f32.mrb[0].mxu0
    %818 = vmatprep.mubr.bf16.mxu0 0
    %819 = vmatmul.mubr.bf16.gmra.mrb[0].mxu0 %v688
    %v820 = vpop.f32.mrb[0].mxu0
    %v821 = vadd.f32 %v624, %v820
    %v822 = vpop.f32.mrb[0].mxu0
    %v823 = vpop.f32.mrb[0].mxu0
    %v824 = vadd.f32 %v624, %v823
    %v825 = vpop.f32.mrb[0].mxu0
    %826 = vmatprep.mubr.bf16.mxu0 0
    %827 = vmatmul.mubr.bf16.gmra.mrb[0].mxu0 %v691
    %v828 = vpop.f32.mrb[0].mxu0
    %v829 = vadd.f32 %v624, %v828
    %v830 = vpop.f32.mrb[0].mxu0
    %v831 = vpop.f32.mrb[0].mxu0
    %v832 = vadd.f32 %v624, %v831
    %v833 = vpop.f32.mrb[0].mxu0
    %834 = vmatprep.mubr.bf16.mxu0 0
    %835 = vmatmul.mubr.bf16.gmra.mrb[0].mxu0 %v694
    %v836 = vpop.f32.mrb[0].mxu0
    %v837 = vadd.f32 %v624, %v836
    %v838 = vpop.f32.mrb[0].mxu0
    %v839 = vpop.f32.mrb[0].mxu0
    %v840 = vadd.f32 %v624, %v839
    %v841 = vpop.f32.mrb[0].mxu0
    %842 = vmatprep.mubr.bf16.mxu0 0
    %843 = vmatmul.mubr.bf16.gmra.mrb[0].mxu0 %v697
    %v844 = vpop.f32.mrb[0].mxu0
    %v845 = vadd.f32 %v624, %v844
    %v846 = vpop.f32.mrb[0].mxu0
    %v847 = vpop.f32.mrb[0].mxu0
    %v848 = vadd.f32 %v624, %v847
    %v849 = vpop.f32.mrb[0].mxu0
    %850 = vmatprep.mubr.bf16.mxu0 0
    %851 = vmatmul.mubr.bf16.gmra.mrb[0].mxu0 %v700
    %v852 = vpop.f32.mrb[0].mxu0
    %v853 = vadd.f32 %v624, %v852
    %v854 = vpop.f32.mrb[0].mxu0
    %v855 = vpop.f32.mrb[0].mxu0
    %v856 = vadd.f32 %v624, %v855
    %v857 = vpop.f32.mrb[0].mxu0
    %858 = vmatprep.mubr.bf16.mxu0 0
    %859 = vmatmul.mubr.bf16.gmra.mrb[0].mxu0 %v703
    %v860 = vpop.f32.mrb[0].mxu0
    %v861 = vadd.f32 %v624, %v860
    %v862 = vpop.f32.mrb[0].mxu0
    %v863 = vpop.f32.mrb[0].mxu0
    %v864 = vadd.f32 %v624, %v863
    %v865 = vpop.f32.mrb[0].mxu0
    %866 = vmatprep.mubr.bf16.mxu0 0
    %867 = vmatmul.mubr.bf16.gmra.mrb[0].mxu0 %v706
    %v868 = vpop.f32.mrb[0].mxu0
    %v869 = vadd.f32 %v624, %v868
    %v870 = vpop.f32.mrb[0].mxu0
    %v871 = vpop.f32.mrb[0].mxu0
    %v872 = vadd.f32 %v624, %v871
    %v873 = vpop.f32.mrb[0].mxu0
    %874 = vmatprep.mubr.bf16.mxu0 0
    %875 = vmatmul.mubr.bf16.gmra.mrb[0].mxu0 %v709
    %v876 = vpop.f32.mrb[0].mxu0
    %v877 = vadd.f32 %v624, %v876
    %v878 = vpop.f32.mrb[0].mxu0
    %v879 = vpop.f32.mrb[0].mxu0
    %v880 = vadd.f32 %v624, %v879
    %v881 = vpop.f32.mrb[0].mxu0
    %882 = vmatprep.mubr.bf16.mxu0 0
    %883 = vmatmul.mubr.bf16.gmra.mrb[0].mxu0 %v712
    %v884 = vpop.f32.mrb[0].mxu0
    %v885 = vadd.f32 %v624, %v884
    %v886 = vpop.f32.mrb[0].mxu0
    %v887 = vpop.f32.mrb[0].mxu0
    %v888 = vadd.f32 %v624, %v887
    %v889 = vpop.f32.mrb[0].mxu0
    %890 = vmatprep.mubr.bf16.mxu0 0
    %891 = vmatmul.mubr.bf16.gmra.mrb[0].mxu0 %v715
    %v892 = vpop.f32.mrb[0].mxu0
    %v893 = vadd.f32 %v624, %v892
    %v894 = vpop.f32.mrb[0].mxu0
    %v895 = vpop.f32.mrb[0].mxu0
    %v896 = vadd.f32 %v624, %v895
    %v897 = vpop.f32.mrb[0].mxu0
    %898 = vmatprep.mubr.bf16.mxu0 0
    %899 = vmatmul.mubr.bf16.gmra.mrb[0].mxu0 %v718
    %v900 = vpop.f32.mrb[0].mxu0
    %v901 = vadd.f32 %v624, %v900
    %v902 = vpop.f32.mrb[0].mxu0
    %v903 = vpop.f32.mrb[0].mxu0
    %v904 = vadd.f32 %v624, %v903
    %v905 = vpop.f32.mrb[0].mxu0
    %906 = vmatprep.mubr.bf16.mxu0 0
    %907 = vmatmul.mubr.bf16.gmra.mrb[0].mxu0 %v721
    %v908 = vpop.f32.mrb[0].mxu0
    %v909 = vadd.f32 %v624, %v908
    %v910 = vpop.f32.mrb[0].mxu0
    %v911 = vpop.f32.mrb[0].mxu0
    %v912 = vadd.f32 %v624, %v911
    %v913 = vpop.f32.mrb[0].mxu0
    %914 = vmatprep.mubr.bf16.mxu0 0
    %915 = vmatmul.mubr.bf16.gmra.mrb[0].mxu0 %v724
    %v916 = vpop.f32.mrb[0].mxu0
    %v917 = vadd.f32 %v624, %v916
    %v918 = vpop.f32.mrb[0].mxu0
    %v919 = vpop.f32.mrb[0].mxu0
    %v920 = vadd.f32 %v624, %v919
    %v921 = vpop.f32.mrb[0].mxu0
    %922 = vmatprep.mubr.bf16.mxu0 0
    %923 = vmatmul.mubr.bf16.gmra.mrb[0].mxu0 %v727
    %v924 = vpop.f32.mrb[0].mxu0
    %v925 = vadd.f32 %v624, %v924
    %v926 = vpop.f32.mrb[0].mxu0
    %v927 = vpop.f32.mrb[0].mxu0
    %v928 = vadd.f32 %v624, %v927
    %v929 = vpop.f32.mrb[0].mxu0
    %930 = vmatprep.mubr.bf16.mxu0 0
    %931 = vmatmul.mubr.bf16.gmra.mrb[0].mxu0 %v730
    %v932 = vpop.f32.mrb[0].mxu0
    %v933 = vadd.f32 %v624, %v932
    %v934 = vpop.f32.mrb[0].mxu0
    %v935 = vpop.f32.mrb[0].mxu0
    %v936 = vadd.f32 %v624, %v935
    %v937 = vpop.f32.mrb[0].mxu0
    %938 = vmatprep.mubr.bf16.mxu0 0
    %939 = vmatmul.mubr.bf16.gmra.mrb[0].mxu0 %v733
    %v940 = vpop.f32.mrb[0].mxu0
    %v941 = vadd.f32 %v624, %v940
    %v942 = vpop.f32.mrb[0].mxu0
    %v943 = vpop.f32.mrb[0].mxu0
    %v944 = vadd.f32 %v624, %v943
    %v945 = vpop.f32.mrb[0].mxu0
    %946 = vmatprep.mubr.bf16.mxu0 0
    %947 = vmatmul.mubr.bf16.gmra.mrb[0].mxu0 %v736
    %v948 = vpop.f32.mrb[0].mxu0
    %v949 = vadd.f32 %v624, %v948
    %v950 = vpop.f32.mrb[0].mxu0
    %v951 = vpop.f32.mrb[0].mxu0
    %v952 = vadd.f32 %v624, %v951
    %v953 = vpop.f32.mrb[0].mxu0
    %954 = vmatprep.mubr.bf16.mxu0 0
    %955 = vmatmul.mubr.bf16.gmra.mrb[0].mxu0 %v739
    %v956 = vpop.f32.mrb[0].mxu0
    %v957 = vadd.f32 %v624, %v956
    %v958 = vpop.f32.mrb[0].mxu0
    %v959 = vpop.f32.mrb[0].mxu0
    %v960 = vadd.f32 %v624, %v959
    %v961 = vpop.f32.mrb[0].mxu0
    %962 = vmatprep.mubr.bf16.mxu0 0
    %963 = vmatmul.mubr.bf16.gmra.mrb[0].mxu0 %v742
    %v964 = vpop.f32.mrb[0].mxu0
    %v965 = vadd.f32 %v624, %v964
    %v966 = vpop.f32.mrb[0].mxu0
    %v967 = vpop.f32.mrb[0].mxu0
    %v968 = vadd.f32 %v624, %v967
    %v969 = vpop.f32.mrb[0].mxu0
    %970 = vmatprep.mubr.bf16.mxu0 0
    %971 = vmatmul.mubr.bf16.gmra.mrb[0].mxu0 %v745
    %v972 = vpop.f32.mrb[0].mxu0
    %v973 = vadd.f32 %v624, %v972
    %v974 = vpop.f32.mrb[0].mxu0
    %v975 = vpop.f32.mrb[0].mxu0
    %v976 = vadd.f32 %v624, %v975
    %v977 = vpop.f32.mrb[0].mxu0
    %978 = vmatprep.mubr.bf16.mxu0 0
    %979 = vmatmul.mubr.bf16.gmra.mrb[0].mxu0 %v748
    %v980 = vpop.f32.mrb[0].mxu0
    %v981 = vadd.f32 %v624, %v980
    %v982 = vpop.f32.mrb[0].mxu0
    %v983 = vpop.f32.mrb[0].mxu0
    %v984 = vadd.f32 %v624, %v983
    %v985 = vpop.f32.mrb[0].mxu0
    %986 = vmatprep.mubr.bf16.mxu0 0
    %987 = vmatmul.mubr.bf16.gmra.mrb[0].mxu0 %v751
    %v988 = vpop.f32.mrb[0].mxu0
    %v989 = vadd.f32 %v624, %v988
    %v990 = vpop.f32.mrb[0].mxu0
    %v991 = vpop.f32.mrb[0].mxu0
    %v992 = vadd.f32 %v624, %v991
    %v993 = vpop.f32.mrb[0].mxu0
    %994 = vmatprep.mubr.bf16.mxu0 0
    %995 = vmatmul.mubr.bf16.gmra.mrb[0].mxu0 %v754
    %v996 = vpop.f32.mrb[0].mxu0
    %v997 = vadd.f32 %v624, %v996
    %v998 = vpop.f32.mrb[0].mxu0
    %v999 = vpop.f32.mrb[0].mxu0
    %v1000 = vadd.f32 %v624, %v999
    %v1001 = vpop.f32.mrb[0].mxu0
    %1002 = vmatprep.mubr.bf16.mxu0 0
    %1003 = vmatmul.mubr.bf16.gmra.mrb[0].mxu0 %v757
    %v1004 = vpop.f32.mrb[0].mxu0
    %v1005 = vadd.f32 %v624, %v1004
    %v1006 = vpop.f32.mrb[0].mxu0
    %v1007 = vpop.f32.mrb[0].mxu0
    %v1008 = vadd.f32 %v624, %v1007
    %v1009 = vpop.f32.mrb[0].mxu0
    %1010 = vmatprep.mubr.bf16.mxu0 0
    %1011 = vmatmul.mubr.bf16.gmra.mrb[0].mxu0 %v760
    %v1012 = vpop.f32.mrb[0].mxu0
    %v1013 = vadd.f32 %v624, %v1012
    %v1014 = vpop.f32.mrb[0].mxu0
    %v1015 = vpop.f32.mrb[0].mxu0
    %v1016 = vadd.f32 %v624, %v1015
    %v1017 = vpop.f32.mrb[0].mxu0
    %1018 = vdwg.mxu0
    %v1019 = vld [vmem:[#allocation17] sm:$0xf]
    %v1020 = vld [vmem:[#allocation17 + $0x4] sm:$0xf]
    %v1021 = vld [vmem:[#allocation17 + $0x8] sm:$0xf]
    %v1022 = vld [vmem:[#allocation17 + $0xc] sm:$0xf]
    %v1023 = vld [vmem:[#allocation19] sm:$0x3]
    %v1024 = vmul.f32 %v614, %v673
    %v1025 = vpack.c.bf16 %v1024, %v1024
    %v1030 = vunpack.c.l.b16 %v1019
    %v1031 = vunpack.c.l.b16 %v1020
    %v1032 = vunpack.c.l.b16 %v1021
    %v1033 = vunpack.c.l.b16 %v1022
    %v1034 = vpack.c.b16 %v1031, %v1030
    %v1035 = vpack.c.b16 %v1033, %v1032
    %v1039 = vsel %vm235, %v1025, 0
    %1041 = vmatprep.subr.bf16.mxu0 0
    %1042 = vmatpush1.bf16.msra.mxu0 %v1034
    %1043 = vmatprep.subr.bf16.mxu0 0
    %1044 = vmatpush1.bf16.msra.mxu0 %v1035
    %1045 = vmatprep.subr.bf16.mxu0 0
    %1046 = vmatpush1.bf16.msra.mxu0 0
    %1047 = vmatprep.subr.bf16.mxu0 0
    %1048 = vmatpush1.bf16.msra.mxu0 0
    %1049 = vmatprep.subr.bf16.mxu0 0
    %1050 = vmatpush1.bf16.msra.mxu0 0
    %1051 = vmatprep.subr.bf16.mxu0 0
    %1052 = vmatpush1.bf16.msra.mxu0 0
    %1053 = vmatprep.subr.bf16.mxu0 0
    %1054 = vmatpush1.bf16.msra.mxu0 0
    %1055 = vmatprep.subr.bf16.mxu0 0
    %1056 = vmatpush1.bf16.msra.mxu0 0
    %1057 = vmatprep.subr.bf16.mxu0 0
    %1058 = vmatpush1.bf16.msra.mxu0 0
    %1059 = vmatprep.subr.bf16.mxu0 0
    %1060 = vmatpush1.bf16.msra.mxu0 0
    %1061 = vmatprep.subr.bf16.mxu0 0
    %1062 = vmatpush1.bf16.msra.mxu0 0
    %1063 = vmatprep.subr.bf16.mxu0 0
    %1064 = vmatpush1.bf16.msra.mxu0 0
    %1065 = vmatprep.subr.bf16.mxu0 0
    %1066 = vmatpush1.bf16.msra.mxu0 0
    %1067 = vmatprep.subr.bf16.mxu0 0
    %1068 = vmatpush1.bf16.msra.mxu0 0
    %1069 = vmatprep.subr.bf16.mxu0 0
    %1070 = vmatpush1.bf16.msra.mxu0 0
    %1071 = vmatprep.subr.bf16.mxu0 0
    %1072 = vmatpush1.bf16.msra.mxu0 0
    %1073 = vmatprep.mubr.bf16.mxu0 0
    %1074 = vmatmul.mubr.bf16.gmra.mrb[0].mxu0 %v1039
    %v1075 = vpop.f32.mrb[0].mxu0
    %v1076 = vadd.f32 0.0, %v1075
    %v1077 = vpop.f32.mrb[0].mxu0
    %v1078 = vpop.f32.mrb[0].mxu0
    %v1079 = vpop.f32.mrb[0].mxu0
    %1080 = vdwg.mxu0
    %v1082 = vcombine.high %v614, %v614
    %v1084 = vunpack.c.l.s4 1966171168
    %v1085 = vunpack.c.0.s8 %v1084
    %v1086 = vlaneseq
    %v1087 = vshrl.u32 %v1086, 7
    %v1088 = vsub.s32 %v1085, %v1087
    %v1089 = vrot.slane %v614, %v1088
    %v1091 = vunpack.c.l.s4 1966171168
    %v1092 = vunpack.c.0.s8 %v1091
    %v1093 = vlaneseq
    %v1094 = vshrl.u32 %v1093, 7
    %v1095 = vsub.s32 %v1092, %v1094
    %v1096 = vrot.slane %v1082, %v1095
    %v1097 = vcombine.high %v1089, %v1089
    %v1098 = vcombine.high %v1096, %v1096
    %v1100 = vunpack.c.l.s4 1966171168
    %v1101 = vunpack.c.0.s8 %v1100
    %v1102 = vlaneseq
    %v1103 = vshrl.u32 %v1102, 7
    %v1104 = vsub.s32 %v1101, %v1103
    %v1105 = vrot.slane %v1089, %v1104
    %v1107 = vunpack.c.l.s4 1966171168
    %v1108 = vunpack.c.0.s8 %v1107
    %v1109 = vlaneseq
    %v1110 = vshrl.u32 %v1109, 7
    %v1111 = vsub.s32 %v1108, %v1110
    %v1112 = vrot.slane %v1096, %v1111
    %v1114 = vunpack.c.l.s4 1966171168
    %v1115 = vunpack.c.0.s8 %v1114
    %v1116 = vlaneseq
    %v1117 = vshrl.u32 %v1116, 7
    %v1118 = vsub.s32 %v1115, %v1117
    %v1119 = vrot.slane %v1097, %v1118
    %v1121 = vunpack.c.l.s4 1966171168
    %v1122 = vunpack.c.0.s8 %v1121
    %v1123 = vlaneseq
    %v1124 = vshrl.u32 %v1123, 7
    %v1125 = vsub.s32 %v1122, %v1124
    %v1126 = vrot.slane %v1098, %v1125
    %v1127 = vcombine.high %v1105, %v1105
    %v1128 = vcombine.high %v1112, %v1112
    %v1129 = vcombine.high %v1119, %v1119
    %v1130 = vcombine.high %v1126, %v1126
    %v1131 = vlaneseq
    %v1132 = vshrl.u32 %v1131, 7
    %v1133 = vsub.s32 0, %v1132
    %v1134 = vrot.slane %v1105, %v1133
    %v1135 = vlaneseq
    %v1136 = vshrl.u32 %v1135, 7
    %v1137 = vsub.s32 0, %v1136
    %v1138 = vrot.slane %v1119, %v1137
    %v1139 = vlaneseq
    %v1140 = vshrl.u32 %v1139, 7
    %v1141 = vsub.s32 0, %v1140
    %v1142 = vrot.slane %v1127, %v1141
    %v1143 = vlaneseq
    %v1144 = vshrl.u32 %v1143, 7
    %v1145 = vsub.s32 0, %v1144
    %v1146 = vrot.slane %v1129, %v1145
    %v1147 = vlaneseq
    %v1148 = vshrl.u32 %v1147, 7
    %v1149 = vsub.s32 0, %v1148
    %v1150 = vrot.slane %v1112, %v1149
    %v1151 = vlaneseq
    %v1152 = vshrl.u32 %v1151, 7
    %v1153 = vsub.s32 0, %v1152
    %v1154 = vrot.slane %v1126, %v1153
    %v1155 = vlaneseq
    %v1156 = vshrl.u32 %v1155, 7
    %v1157 = vsub.s32 0, %v1156
    %v1158 = vrot.slane %v1128, %v1157
    %v1159 = vlaneseq
    %v1160 = vshrl.u32 %v1159, 7
    %v1161 = vsub.s32 0, %v1160
    %v1162 = vrot.slane %v1130, %v1161
    %v1171 = vmul.f32 %v1134, %v797
    %v1172 = vmul.f32 %v1134, %v800
    %v1173 = vmul.f32 %v1134, %v805
    %v1174 = vmul.f32 %v1134, %v808
    %v1175 = vmul.f32 %v1134, %v813
    %v1176 = vmul.f32 %v1134, %v816
    %v1177 = vmul.f32 %v1134, %v821
    %v1178 = vmul.f32 %v1138, %v824
    %v1179 = vmul.f32 %v1138, %v829
    %v1180 = vmul.f32 %v1138, %v832
    %v1181 = vmul.f32 %v1138, %v837
    %v1182 = vmul.f32 %v1138, %v840
    %v1183 = vmul.f32 %v1138, %v845
    %v1184 = vmul.f32 %v1138, %v848
    %v1185 = vmul.f32 %v1142, %v853
    %v1186 = vmul.f32 %v1142, %v856
    %v1187 = vmul.f32 %v1142, %v861
    %v1188 = vmul.f32 %v1142, %v864
    %v1189 = vmul.f32 %v1142, %v869
    %v1190 = vmul.f32 %v1142, %v872
    %v1191 = vmul.f32 %v1142, %v877
    %v1192 = vmul.f32 %v1146, %v880
    %v1193 = vmul.f32 %v1146, %v885
    %v1194 = vmul.f32 %v1146, %v888
    %v1195 = vmul.f32 %v1146, %v893
    %v1196 = vmul.f32 %v1146, %v896
    %v1197 = vmul.f32 %v1146, %v901
    %v1198 = vmul.f32 %v1146, %v904
    %v1199 = vmul.f32 %v1150, %v909
    %v1200 = vmul.f32 %v1150, %v912
    %v1201 = vmul.f32 %v1150, %v917
    %v1202 = vmul.f32 %v1150, %v920
    %v1203 = vmul.f32 %v1150, %v925
    %v1204 = vmul.f32 %v1150, %v928
    %v1205 = vmul.f32 %v1150, %v933
    %v1206 = vmul.f32 %v1154, %v936
    %v1207 = vmul.f32 %v1154, %v941
    %v1208 = vmul.f32 %v1154, %v944
    %v1209 = vmul.f32 %v1154, %v949
    %v1210 = vmul.f32 %v1154, %v952
    %v1211 = vmul.f32 %v1154, %v957
    %v1212 = vmul.f32 %v1154, %v960
    %v1213 = vmul.f32 %v1158, %v965
    %v1214 = vmul.f32 %v1158, %v968
    %v1215 = vmul.f32 %v1158, %v973
    %v1216 = vmul.f32 %v1158, %v976
    %v1217 = vmul.f32 %v1158, %v981
    %v1218 = vmul.f32 %v1158, %v984
    %v1219 = vmul.f32 %v1158, %v989
    %v1220 = vmul.f32 %v1162, %v992
    %v1221 = vmul.f32 %v1162, %v997
    %v1222 = vmul.f32 %v1162, %v1000
    %v1223 = vmul.f32 %v1162, %v1005
    %v1224 = vmul.f32 %v1162, %v1008
    %v1225 = vmul.f32 %v1162, %v1013
    %v1226 = vmul.f32 %v1162, %v1016
    %v1227 = vpack.c.bf16 %v1172, %v1171
    %v1228 = vpack.c.bf16 %v1174, %v1173
    %v1229 = vpack.c.bf16 %v1176, %v1175
    %v1230 = vpack.c.bf16 %v1178, %v1177
    %v1231 = vpack.c.bf16 %v1180, %v1179
    %v1232 = vpack.c.bf16 %v1182, %v1181
    %v1233 = vpack.c.bf16 %v1184, %v1183
    %v1234 = vpack.c.bf16 %v1186, %v1185
    %v1235 = vpack.c.bf16 %v1188, %v1187
    %v1236 = vpack.c.bf16 %v1190, %v1189
    %v1237 = vpack.c.bf16 %v1192, %v1191
    %v1238 = vpack.c.bf16 %v1194, %v1193
    %v1239 = vpack.c.bf16 %v1196, %v1195
    %v1240 = vpack.c.bf16 %v1198, %v1197
    %v1241 = vpack.c.bf16 %v1200, %v1199
    %v1242 = vpack.c.bf16 %v1202, %v1201
    %v1243 = vpack.c.bf16 %v1204, %v1203
    %v1244 = vpack.c.bf16 %v1206, %v1205
    %v1245 = vpack.c.bf16 %v1208, %v1207
    %v1246 = vpack.c.bf16 %v1210, %v1209
    %v1247 = vpack.c.bf16 %v1212, %v1211
    %v1248 = vpack.c.bf16 %v1214, %v1213
    %v1249 = vpack.c.bf16 %v1216, %v1215
    %v1250 = vpack.c.bf16 %v1218, %v1217
    %v1251 = vpack.c.bf16 %v1220, %v1219
    %v1252 = vpack.c.bf16 %v1222, %v1221
    %v1253 = vpack.c.bf16 %v1224, %v1223
    %v1254 = vpack.c.bf16 %v1226, %v1225
    %v1256 = vsel %vm235, %v1227, 0
    %v1259 = vsel %vm235, %v1228, 0
    %v1262 = vsel %vm235, %v1229, 0
    %v1265 = vsel %vm235, %v1230, 0
    %v1268 = vsel %vm235, %v1231, 0
    %v1271 = vsel %vm235, %v1232, 0
    %v1274 = vsel %vm235, %v1233, 0
    %v1277 = vsel %vm235, %v1234, 0
    %v1280 = vsel %vm235, %v1235, 0
    %v1283 = vsel %vm235, %v1236, 0
    %v1286 = vsel %vm235, %v1237, 0
    %v1289 = vsel %vm235, %v1238, 0
    %v1292 = vsel %vm235, %v1239, 0
    %v1295 = vsel %vm235, %v1240, 0
    %v1298 = vsel %vm235, %v1241, 0
    %v1301 = vsel %vm235, %v1242, 0
    %v1304 = vsel %vm235, %v1243, 0
    %v1307 = vsel %vm235, %v1244, 0
    %v1310 = vsel %vm235, %v1245, 0
    %v1313 = vsel %vm235, %v1246, 0
    %v1316 = vsel %vm235, %v1247, 0
    %v1319 = vsel %vm235, %v1248, 0
    %v1322 = vsel %vm235, %v1249, 0
    %v1325 = vsel %vm235, %v1250, 0
    %v1328 = vsel %vm235, %v1251, 0
    %v1331 = vsel %vm235, %v1252, 0
    %v1334 = vsel %vm235, %v1253, 0
    %v1337 = vsel %vm235, %v1254, 0
    %1339 = vmatprep.subr.bf16.mxu0 0
    %1340 = vmatpush1.bf16.msra.mxu0 %v1034
    %1341 = vmatprep.subr.bf16.mxu0 0
    %1342 = vmatpush1.bf16.msra.mxu0 %v1035
    %1343 = vmatprep.subr.bf16.mxu0 0
    %1344 = vmatpush1.bf16.msra.mxu0 0
    %1345 = vmatprep.subr.bf16.mxu0 0
    %1346 = vmatpush1.bf16.msra.mxu0 0
    %1347 = vmatprep.subr.bf16.mxu0 0
    %1348 = vmatpush1.bf16.msra.mxu0 0
    %1349 = vmatprep.subr.bf16.mxu0 0
    %1350 = vmatpush1.bf16.msra.mxu0 0
    %1351 = vmatprep.subr.bf16.mxu0 0
    %1352 = vmatpush1.bf16.msra.mxu0 0
    %1353 = vmatprep.subr.bf16.mxu0 0
    %1354 = vmatpush1.bf16.msra.mxu0 0
    %1355 = vmatprep.subr.bf16.mxu0 0
    %1356 = vmatpush1.bf16.msra.mxu0 0
    %1357 = vmatprep.subr.bf16.mxu0 0
    %1358 = vmatpush1.bf16.msra.mxu0 0
    %1359 = vmatprep.subr.bf16.mxu0 0
    %1360 = vmatpush1.bf16.msra.mxu0 0
    %1361 = vmatprep.subr.bf16.mxu0 0
    %1362 = vmatpush1.bf16.msra.mxu0 0
    %1363 = vmatprep.subr.bf16.mxu0 0
    %1364 = vmatpush1.bf16.msra.mxu0 0
    %1365 = vmatprep.subr.bf16.mxu0 0
    %1366 = vmatpush1.bf16.msra.mxu0 0
    %1367 = vmatprep.subr.bf16.mxu0 0
    %1368 = vmatpush1.bf16.msra.mxu0 0
    %1369 = vmatprep.subr.bf16.mxu0 0
    %1370 = vmatpush1.bf16.msra.mxu0 0
    %1371 = vmatprep.mubr.bf16.mxu0 0
    %1372 = vmatmul.mubr.bf16.gmra.mrb[0].mxu0 %v1256
    %v1373 = vpop.f32.mrb[0].mxu0
    %v1374 = vadd.f32 0.0, %v1373
    %v1375 = vpop.f32.mrb[0].mxu0
    %v1376 = vpop.f32.mrb[0].mxu0
    %v1377 = vadd.f32 0.0, %v1376
    %v1378 = vpop.f32.mrb[0].mxu0
    %1379 = vmatprep.mubr.bf16.mxu0 0
    %1380 = vmatmul.mubr.bf16.gmra.mrb[0].mxu0 %v1259
    %v1381 = vpop.f32.mrb[0].mxu0
    %v1382 = vadd.f32 0.0, %v1381
    %v1383 = vpop.f32.mrb[0].mxu0
    %v1384 = vpop.f32.mrb[0].mxu0
    %v1385 = vadd.f32 0.0, %v1384
    %v1386 = vpop.f32.mrb[0].mxu0
    %1387 = vmatprep.mubr.bf16.mxu0 0
    %1388 = vmatmul.mubr.bf16.gmra.mrb[0].mxu0 %v1262
    %v1389 = vpop.f32.mrb[0].mxu0
    %v1390 = vadd.f32 0.0, %v1389
    %v1391 = vpop.f32.mrb[0].mxu0
    %v1392 = vpop.f32.mrb[0].mxu0
    %v1393 = vadd.f32 0.0, %v1392
    %v1394 = vpop.f32.mrb[0].mxu0
    %1395 = vmatprep.mubr.bf16.mxu0 0
    %1396 = vmatmul.mubr.bf16.gmra.mrb[0].mxu0 %v1265
    %v1397 = vpop.f32.mrb[0].mxu0
    %v1398 = vadd.f32 0.0, %v1397
    %v1399 = vpop.f32.mrb[0].mxu0
    %v1400 = vpop.f32.mrb[0].mxu0
    %v1401 = vadd.f32 0.0, %v1400
    %v1402 = vpop.f32.mrb[0].mxu0
    %1403 = vmatprep.mubr.bf16.mxu0 0
    %1404 = vmatmul.mubr.bf16.gmra.mrb[0].mxu0 %v1268
    %v1405 = vpop.f32.mrb[0].mxu0
    %v1406 = vadd.f32 0.0, %v1405
    %v1407 = vpop.f32.mrb[0].mxu0
    %v1408 = vpop.f32.mrb[0].mxu0
    %v1409 = vadd.f32 0.0, %v1408
    %v1410 = vpop.f32.mrb[0].mxu0
    %1411 = vmatprep.mubr.bf16.mxu0 0
    %1412 = vmatmul.mubr.bf16.gmra.mrb[0].mxu0 %v1271
    %v1413 = vpop.f32.mrb[0].mxu0
    %v1414 = vadd.f32 0.0, %v1413
    %v1415 = vpop.f32.mrb[0].mxu0
    %v1416 = vpop.f32.mrb[0].mxu0
    %v1417 = vadd.f32 0.0, %v1416
    %v1418 = vpop.f32.mrb[0].mxu0
    %1419 = vmatprep.mubr.bf16.mxu0 0
    %1420 = vmatmul.mubr.bf16.gmra.mrb[0].mxu0 %v1274
    %v1421 = vpop.f32.mrb[0].mxu0
    %v1422 = vadd.f32 0.0, %v1421
    %v1423 = vpop.f32.mrb[0].mxu0
    %v1424 = vpop.f32.mrb[0].mxu0
    %v1425 = vadd.f32 0.0, %v1424
    %v1426 = vpop.f32.mrb[0].mxu0
    %1427 = vmatprep.mubr.bf16.mxu0 0
    %1428 = vmatmul.mubr.bf16.gmra.mrb[0].mxu0 %v1277
    %v1429 = vpop.f32.mrb[0].mxu0
    %v1430 = vadd.f32 0.0, %v1429
    %v1431 = vpop.f32.mrb[0].mxu0
    %v1432 = vpop.f32.mrb[0].mxu0
    %v1433 = vadd.f32 0.0, %v1432
    %v1434 = vpop.f32.mrb[0].mxu0
    %1435 = vmatprep.mubr.bf16.mxu0 0
    %1436 = vmatmul.mubr.bf16.gmra.mrb[0].mxu0 %v1280
    %v1437 = vpop.f32.mrb[0].mxu0
    %v1438 = vadd.f32 0.0, %v1437
    %v1439 = vpop.f32.mrb[0].mxu0
    %v1440 = vpop.f32.mrb[0].mxu0
    %v1441 = vadd.f32 0.0, %v1440
    %v1442 = vpop.f32.mrb[0].mxu0
    %1443 = vmatprep.mubr.bf16.mxu0 0
    %1444 = vmatmul.mubr.bf16.gmra.mrb[0].mxu0 %v1283
    %v1445 = vpop.f32.mrb[0].mxu0
    %v1446 = vadd.f32 0.0, %v1445
    %v1447 = vpop.f32.mrb[0].mxu0
    %v1448 = vpop.f32.mrb[0].mxu0
    %v1449 = vadd.f32 0.0, %v1448
    %v1450 = vpop.f32.mrb[0].mxu0
    %1451 = vmatprep.mubr.bf16.mxu0 0
    %1452 = vmatmul.mubr.bf16.gmra.mrb[0].mxu0 %v1286
    %v1453 = vpop.f32.mrb[0].mxu0
    %v1454 = vadd.f32 0.0, %v1453
    %v1455 = vpop.f32.mrb[0].mxu0
    %v1456 = vpop.f32.mrb[0].mxu0
    %v1457 = vadd.f32 0.0, %v1456
    %v1458 = vpop.f32.mrb[0].mxu0
    %1459 = vmatprep.mubr.bf16.mxu0 0
    %1460 = vmatmul.mubr.bf16.gmra.mrb[0].mxu0 %v1289
    %v1461 = vpop.f32.mrb[0].mxu0
    %v1462 = vadd.f32 0.0, %v1461
    %v1463 = vpop.f32.mrb[0].mxu0
    %v1464 = vpop.f32.mrb[0].mxu0
    %v1465 = vadd.f32 0.0, %v1464
    %v1466 = vpop.f32.mrb[0].mxu0
    %1467 = vmatprep.mubr.bf16.mxu0 0
    %1468 = vmatmul.mubr.bf16.gmra.mrb[0].mxu0 %v1292
    %v1469 = vpop.f32.mrb[0].mxu0
    %v1470 = vadd.f32 0.0, %v1469
    %v1471 = vpop.f32.mrb[0].mxu0
    %v1472 = vpop.f32.mrb[0].mxu0
    %v1473 = vadd.f32 0.0, %v1472
    %v1474 = vpop.f32.mrb[0].mxu0
    %1475 = vmatprep.mubr.bf16.mxu0 0
    %1476 = vmatmul.mubr.bf16.gmra.mrb[0].mxu0 %v1295
    %v1477 = vpop.f32.mrb[0].mxu0
    %v1478 = vadd.f32 0.0, %v1477
    %v1479 = vpop.f32.mrb[0].mxu0
    %v1480 = vpop.f32.mrb[0].mxu0
    %v1481 = vadd.f32 0.0, %v1480
    %v1482 = vpop.f32.mrb[0].mxu0
    %1483 = vmatprep.mubr.bf16.mxu0 0
    %1484 = vmatmul.mubr.bf16.gmra.mrb[0].mxu0 %v1298
    %v1485 = vpop.f32.mrb[0].mxu0
    %v1486 = vadd.f32 0.0, %v1485
    %v1487 = vpop.f32.mrb[0].mxu0
    %v1488 = vpop.f32.mrb[0].mxu0
    %v1489 = vadd.f32 0.0, %v1488
    %v1490 = vpop.f32.mrb[0].mxu0
    %1491 = vmatprep.mubr.bf16.mxu0 0
    %1492 = vmatmul.mubr.bf16.gmra.mrb[0].mxu0 %v1301
    %v1493 = vpop.f32.mrb[0].mxu0
    %v1494 = vadd.f32 0.0, %v1493
    %v1495 = vpop.f32.mrb[0].mxu0
    %v1496 = vpop.f32.mrb[0].mxu0
    %v1497 = vadd.f32 0.0, %v1496
    %v1498 = vpop.f32.mrb[0].mxu0
    %1499 = vmatprep.mubr.bf16.mxu0 0
    %1500 = vmatmul.mubr.bf16.gmra.mrb[0].mxu0 %v1304
    %v1501 = vpop.f32.mrb[0].mxu0
    %v1502 = vadd.f32 0.0, %v1501
    %v1503 = vpop.f32.mrb[0].mxu0
    %v1504 = vpop.f32.mrb[0].mxu0
    %v1505 = vadd.f32 0.0, %v1504
    %v1506 = vpop.f32.mrb[0].mxu0
    %1507 = vmatprep.mubr.bf16.mxu0 0
    %1508 = vmatmul.mubr.bf16.gmra.mrb[0].mxu0 %v1307
    %v1509 = vpop.f32.mrb[0].mxu0
    %v1510 = vadd.f32 0.0, %v1509
    %v1511 = vpop.f32.mrb[0].mxu0
    %v1512 = vpop.f32.mrb[0].mxu0
    %v1513 = vadd.f32 0.0, %v1512
    %v1514 = vpop.f32.mrb[0].mxu0
    %1515 = vmatprep.mubr.bf16.mxu0 0
    %1516 = vmatmul.mubr.bf16.gmra.mrb[0].mxu0 %v1310
    %v1517 = vpop.f32.mrb[0].mxu0
    %v1518 = vadd.f32 0.0, %v1517
    %v1519 = vpop.f32.mrb[0].mxu0
    %v1520 = vpop.f32.mrb[0].mxu0
    %v1521 = vadd.f32 0.0, %v1520
    %v1522 = vpop.f32.mrb[0].mxu0
    %1523 = vmatprep.mubr.bf16.mxu0 0
    %1524 = vmatmul.mubr.bf16.gmra.mrb[0].mxu0 %v1313
    %v1525 = vpop.f32.mrb[0].mxu0
    %v1526 = vadd.f32 0.0, %v1525
    %v1527 = vpop.f32.mrb[0].mxu0
    %v1528 = vpop.f32.mrb[0].mxu0
    %v1529 = vadd.f32 0.0, %v1528
    %v1530 = vpop.f32.mrb[0].mxu0
    %1531 = vmatprep.mubr.bf16.mxu0 0
    %1532 = vmatmul.mubr.bf16.gmra.mrb[0].mxu0 %v1316
    %v1533 = vpop.f32.mrb[0].mxu0
    %v1534 = vadd.f32 0.0, %v1533
    %v1535 = vpop.f32.mrb[0].mxu0
    %v1536 = vpop.f32.mrb[0].mxu0
    %v1537 = vadd.f32 0.0, %v1536
    %v1538 = vpop.f32.mrb[0].mxu0
    %1539 = vmatprep.mubr.bf16.mxu0 0
    %1540 = vmatmul.mubr.bf16.gmra.mrb[0].mxu0 %v1319
    %v1541 = vpop.f32.mrb[0].mxu0
    %v1542 = vadd.f32 0.0, %v1541
    %v1543 = vpop.f32.mrb[0].mxu0
    %v1544 = vpop.f32.mrb[0].mxu0
    %v1545 = vadd.f32 0.0, %v1544
    %v1546 = vpop.f32.mrb[0].mxu0
    %1547 = vmatprep.mubr.bf16.mxu0 0
    %1548 = vmatmul.mubr.bf16.gmra.mrb[0].mxu0 %v1322
    %v1549 = vpop.f32.mrb[0].mxu0
    %v1550 = vadd.f32 0.0, %v1549
    %v1551 = vpop.f32.mrb[0].mxu0
    %v1552 = vpop.f32.mrb[0].mxu0
    %v1553 = vadd.f32 0.0, %v1552
    %v1554 = vpop.f32.mrb[0].mxu0
    %1555 = vmatprep.mubr.bf16.mxu0 0
    %1556 = vmatmul.mubr.bf16.gmra.mrb[0].mxu0 %v1325
    %v1557 = vpop.f32.mrb[0].mxu0
    %v1558 = vadd.f32 0.0, %v1557
    %v1559 = vpop.f32.mrb[0].mxu0
    %v1560 = vpop.f32.mrb[0].mxu0
    %v1561 = vadd.f32 0.0, %v1560
    %v1562 = vpop.f32.mrb[0].mxu0
    %1563 = vmatprep.mubr.bf16.mxu0 0
    %1564 = vmatmul.mubr.bf16.gmra.mrb[0].mxu0 %v1328
    %v1565 = vpop.f32.mrb[0].mxu0
    %v1566 = vadd.f32 0.0, %v1565
    %v1567 = vpop.f32.mrb[0].mxu0
    %v1568 = vpop.f32.mrb[0].mxu0
    %v1569 = vadd.f32 0.0, %v1568
    %v1570 = vpop.f32.mrb[0].mxu0
    %1571 = vmatprep.mubr.bf16.mxu0 0
    %1572 = vmatmul.mubr.bf16.gmra.mrb[0].mxu0 %v1331
    %v1573 = vpop.f32.mrb[0].mxu0
    %v1574 = vadd.f32 0.0, %v1573
    %v1575 = vpop.f32.mrb[0].mxu0
    %v1576 = vpop.f32.mrb[0].mxu0
    %v1577 = vadd.f32 0.0, %v1576
    %v1578 = vpop.f32.mrb[0].mxu0
    %1579 = vmatprep.mubr.bf16.mxu0 0
    %1580 = vmatmul.mubr.bf16.gmra.mrb[0].mxu0 %v1334
    %v1581 = vpop.f32.mrb[0].mxu0
    %v1582 = vadd.f32 0.0, %v1581
    %v1583 = vpop.f32.mrb[0].mxu0
    %v1584 = vpop.f32.mrb[0].mxu0
    %v1585 = vadd.f32 0.0, %v1584
    %v1586 = vpop.f32.mrb[0].mxu0
    %1587 = vmatprep.mubr.bf16.mxu0 0
    %1588 = vmatmul.mubr.bf16.gmra.mrb[0].mxu0 %v1337
    %v1589 = vpop.f32.mrb[0].mxu0
    %v1590 = vadd.f32 0.0, %v1589
    %v1591 = vpop.f32.mrb[0].mxu0
    %v1592 = vpop.f32.mrb[0].mxu0
    %v1593 = vadd.f32 0.0, %v1592
    %v1594 = vpop.f32.mrb[0].mxu0
    %1595 = vdwg.mxu0
    %v1596 = vlaneseq
    %v1597 = vshrl.u32 %v1596, 7
    %v1598 = vadd.s32 %v1597, 8
    %v1599 = vadd.s32 %v1597, 16
    %v1600 = vadd.s32 %v1597, 24
    %v1601 = vadd.s32 %v1597, 32
    %v1602 = vadd.s32 %v1597, 40
    %v1603 = vadd.s32 %v1597, 48
    %vm1604 = vcmp.lt.s32.totalorder %v1597, 49
    %vm1605 = vcmp.lt.s32.totalorder %v1598, 49
    %vm1606 = vcmp.lt.s32.totalorder %v1599, 49
    %vm1607 = vcmp.lt.s32.totalorder %v1600, 49
    %vm1608 = vcmp.lt.s32.totalorder %v1601, 49
    %vm1609 = vcmp.lt.s32.totalorder %v1602, 49
    %vm1610 = vcmp.lt.s32.totalorder %v1603, 49
    %v1611 = vsel %vm1604, 1, 0
    %v1612 = vsel %vm1605, 1, 0
    %v1613 = vsel %vm1606, 1, 0
    %v1614 = vsel %vm1607, 1, 0
    %v1615 = vsel %vm1608, 1, 0
    %v1616 = vsel %vm1609, 1, 0
    %v1617 = vsel %vm1610, 1, 0
    %vm1618 = vcmp.eq.s32.totalorder %v1611, 1
    %vm1619 = vcmp.eq.s32.totalorder %v1612, 1
    %vm1620 = vcmp.eq.s32.totalorder %v1613, 1
    %vm1621 = vcmp.eq.s32.totalorder %v1614, 1
    %vm1622 = vcmp.eq.s32.totalorder %v1615, 1
    %vm1623 = vcmp.eq.s32.totalorder %v1616, 1
    %vm1624 = vcmp.eq.s32.totalorder %v1617, 1
    %v1625 = vsel %vm1618, %v1374, -1e+30
    %v1626 = vsel %vm1619, %v1377, -1e+30
    %v1627 = vsel %vm1620, %v1382, -1e+30
    %v1628 = vsel %vm1621, %v1385, -1e+30
    %v1629 = vsel %vm1622, %v1390, -1e+30
    %v1630 = vsel %vm1623, %v1393, -1e+30
    %v1631 = vsel %vm1624, %v1398, -1e+30
    %v1632 = vsel %vm1618, %v1401, -1e+30
    %v1633 = vsel %vm1619, %v1406, -1e+30
    %v1634 = vsel %vm1620, %v1409, -1e+30
    %v1635 = vsel %vm1621, %v1414, -1e+30
    %v1636 = vsel %vm1622, %v1417, -1e+30
    %v1637 = vsel %vm1623, %v1422, -1e+30
    %v1638 = vsel %vm1624, %v1425, -1e+30
    %v1639 = vsel %vm1618, %v1430, -1e+30
    %v1640 = vsel %vm1619, %v1433, -1e+30
    %v1641 = vsel %vm1620, %v1438, -1e+30
    %v1642 = vsel %vm1621, %v1441, -1e+30
    %v1643 = vsel %vm1622, %v1446, -1e+30
    %v1644 = vsel %vm1623, %v1449, -1e+30
    %v1645 = vsel %vm1624, %v1454, -1e+30
    %v1646 = vsel %vm1618, %v1457, -1e+30
    %v1647 = vsel %vm1619, %v1462, -1e+30
    %v1648 = vsel %vm1620, %v1465, -1e+30
    %v1649 = vsel %vm1621, %v1470, -1e+30
    %v1650 = vsel %vm1622, %v1473, -1e+30
    %v1651 = vsel %vm1623, %v1478, -1e+30
    %v1652 = vsel %vm1624, %v1481, -1e+30
    %v1653 = vsel %vm1618, %v1486, -1e+30
    %v1654 = vsel %vm1619, %v1489, -1e+30
    %v1655 = vsel %vm1620, %v1494, -1e+30
    %v1656 = vsel %vm1621, %v1497, -1e+30
    %v1657 = vsel %vm1622, %v1502, -1e+30
    %v1658 = vsel %vm1623, %v1505, -1e+30
    %v1659 = vsel %vm1624, %v1510, -1e+30
    %v1660 = vsel %vm1618, %v1513, -1e+30
    %v1661 = vsel %vm1619, %v1518, -1e+30
    %v1662 = vsel %vm1620, %v1521, -1e+30
    %v1663 = vsel %vm1621, %v1526, -1e+30
    %v1664 = vsel %vm1622, %v1529, -1e+30
    %v1665 = vsel %vm1623, %v1534, -1e+30
    %v1666 = vsel %vm1624, %v1537, -1e+30
    %v1667 = vsel %vm1618, %v1542, -1e+30
    %v1668 = vsel %vm1619, %v1545, -1e+30
    %v1669 = vsel %vm1620, %v1550, -1e+30
    %v1670 = vsel %vm1621, %v1553, -1e+30
    %v1671 = vsel %vm1622, %v1558, -1e+30
    %v1672 = vsel %vm1623, %v1561, -1e+30
    %v1673 = vsel %vm1624, %v1566, -1e+30
    %v1674 = vsel %vm1618, %v1569, -1e+30
    %v1675 = vsel %vm1619, %v1574, -1e+30
    %v1676 = vsel %vm1620, %v1577, -1e+30
    %v1677 = vsel %vm1621, %v1582, -1e+30
    %v1678 = vsel %vm1622, %v1585, -1e+30
    %v1679 = vsel %vm1623, %v1590, -1e+30
    %v1680 = vsel %vm1624, %v1593, -1e+30
    %vm1681 = vcmask 31744
    %v1682 = vsel %vm1681, %v1625, -inf
    %v1683 = vsel %vm1681, %v1626, -inf
    %v1684 = vmax.f32 %v1682, %v1683
    %v1685 = vsel %vm1681, %v1627, -inf
    %v1686 = vmax.f32 %v1684, %v1685
    %v1687 = vsel %vm1681, %v1628, -inf
    %v1688 = vmax.f32 %v1686, %v1687
    %v1689 = vsel %vm1681, %v1629, -inf
    %v1690 = vmax.f32 %v1688, %v1689
    %v1691 = vsel %vm1681, %v1630, -inf
    %v1692 = vmax.f32 %v1690, %v1691
    %v1693 = vsel %vm1681, %v1631, -inf
    %v1694 = vmax.f32 %v1692, %v1693
    %v1695 = vrot.slane %v1694, 4
    %v1696 = vmax.f32 %v1694, %v1695
    %v1697 = vrot.slane %v1696, 2
    %v1698 = vmax.f32 %v1696, %v1697
    %v1699 = vrot.slane %v1698, 1
    %v1700 = vmax.f32 %v1698, %v1699
    %v1701 = vsel %vm1681, %v1632, -inf
    %v1702 = vsel %vm1681, %v1633, -inf
    %v1703 = vmax.f32 %v1701, %v1702
    %v1704 = vsel %vm1681, %v1634, -inf
    %v1705 = vmax.f32 %v1703, %v1704
    %v1706 = vsel %vm1681, %v1635, -inf
    %v1707 = vmax.f32 %v1705, %v1706
    %v1708 = vsel %vm1681, %v1636, -inf
    %v1709 = vmax.f32 %v1707, %v1708
    %v1710 = vsel %vm1681, %v1637, -inf
    %v1711 = vmax.f32 %v1709, %v1710
    %v1712 = vsel %vm1681, %v1638, -inf
    %v1713 = vmax.f32 %v1711, %v1712
    %v1714 = vrot.slane %v1713, 4
    %v1715 = vmax.f32 %v1713, %v1714
    %v1716 = vrot.slane %v1715, 2
    %v1717 = vmax.f32 %v1715, %v1716
    %v1718 = vrot.slane %v1717, 1
    %v1719 = vmax.f32 %v1717, %v1718
    %v1720 = vsel %vm1681, %v1639, -inf
    %v1721 = vsel %vm1681, %v1640, -inf
    %v1722 = vmax.f32 %v1720, %v1721
    %v1723 = vsel %vm1681, %v1641, -inf
    %v1724 = vmax.f32 %v1722, %v1723
    %v1725 = vsel %vm1681, %v1642, -inf
    %v1726 = vmax.f32 %v1724, %v1725
    %v1727 = vsel %vm1681, %v1643, -inf
    %v1728 = vmax.f32 %v1726, %v1727
    %v1729 = vsel %vm1681, %v1644, -inf
    %v1730 = vmax.f32 %v1728, %v1729
    %v1731 = vsel %vm1681, %v1645, -inf
    %v1732 = vmax.f32 %v1730, %v1731
    %v1733 = vrot.slane %v1732, 4
    %v1734 = vmax.f32 %v1732, %v1733
    %v1735 = vrot.slane %v1734, 2
    %v1736 = vmax.f32 %v1734, %v1735
    %v1737 = vrot.slane %v1736, 1
    %v1738 = vmax.f32 %v1736, %v1737
    %v1739 = vsel %vm1681, %v1646, -inf
    %v1740 = vsel %vm1681, %v1647, -inf
    %v1741 = vmax.f32 %v1739, %v1740
    %v1742 = vsel %vm1681, %v1648, -inf
    %v1743 = vmax.f32 %v1741, %v1742
    %v1744 = vsel %vm1681, %v1649, -inf
    %v1745 = vmax.f32 %v1743, %v1744
    %v1746 = vsel %vm1681, %v1650, -inf
    %v1747 = vmax.f32 %v1745, %v1746
    %v1748 = vsel %vm1681, %v1651, -inf
    %v1749 = vmax.f32 %v1747, %v1748
    %v1750 = vsel %vm1681, %v1652, -inf
    %v1751 = vmax.f32 %v1749, %v1750
    %v1752 = vrot.slane %v1751, 4
    %v1753 = vmax.f32 %v1751, %v1752
    %v1754 = vrot.slane %v1753, 2
    %v1755 = vmax.f32 %v1753, %v1754
    %v1756 = vrot.slane %v1755, 1
    %v1757 = vmax.f32 %v1755, %v1756
    %v1758 = vsel %vm1681, %v1653, -inf
    %v1759 = vsel %vm1681, %v1654, -inf
    %v1760 = vmax.f32 %v1758, %v1759
    %v1761 = vsel %vm1681, %v1655, -inf
    %v1762 = vmax.f32 %v1760, %v1761
    %v1763 = vsel %vm1681, %v1656, -inf
    %v1764 = vmax.f32 %v1762, %v1763
    %v1765 = vsel %vm1681, %v1657, -inf
    %v1766 = vmax.f32 %v1764, %v1765
    %v1767 = vsel %vm1681, %v1658, -inf
    %v1768 = vmax.f32 %v1766, %v1767
    %v1769 = vsel %vm1681, %v1659, -inf
    %v1770 = vmax.f32 %v1768, %v1769
    %v1771 = vrot.slane %v1770, 4
    %v1772 = vmax.f32 %v1770, %v1771
    %v1773 = vrot.slane %v1772, 2
    %v1774 = vmax.f32 %v1772, %v1773
    %v1775 = vrot.slane %v1774, 1
    %v1776 = vmax.f32 %v1774, %v1775
    %v1777 = vsel %vm1681, %v1660, -inf
    %v1778 = vsel %vm1681, %v1661, -inf
    %v1779 = vmax.f32 %v1777, %v1778
    %v1780 = vsel %vm1681, %v1662, -inf
    %v1781 = vmax.f32 %v1779, %v1780
    %v1782 = vsel %vm1681, %v1663, -inf
    %v1783 = vmax.f32 %v1781, %v1782
    %v1784 = vsel %vm1681, %v1664, -inf
    %v1785 = vmax.f32 %v1783, %v1784
    %v1786 = vsel %vm1681, %v1665, -inf
    %v1787 = vmax.f32 %v1785, %v1786
    %v1788 = vsel %vm1681, %v1666, -inf
    %v1789 = vmax.f32 %v1787, %v1788
    %v1790 = vrot.slane %v1789, 4
    %v1791 = vmax.f32 %v1789, %v1790
    %v1792 = vrot.slane %v1791, 2
    %v1793 = vmax.f32 %v1791, %v1792
    %v1794 = vrot.slane %v1793, 1
    %v1795 = vmax.f32 %v1793, %v1794
    %v1796 = vsel %vm1681, %v1667, -inf
    %v1797 = vsel %vm1681, %v1668, -inf
    %v1798 = vmax.f32 %v1796, %v1797
    %v1799 = vsel %vm1681, %v1669, -inf
    %v1800 = vmax.f32 %v1798, %v1799
    %v1801 = vsel %vm1681, %v1670, -inf
    %v1802 = vmax.f32 %v1800, %v1801
    %v1803 = vsel %vm1681, %v1671, -inf
    %v1804 = vmax.f32 %v1802, %v1803
    %v1805 = vsel %vm1681, %v1672, -inf
    %v1806 = vmax.f32 %v1804, %v1805
    %v1807 = vsel %vm1681, %v1673, -inf
    %v1808 = vmax.f32 %v1806, %v1807
    %v1809 = vrot.slane %v1808, 4
    %v1810 = vmax.f32 %v1808, %v1809
    %v1811 = vrot.slane %v1810, 2
    %v1812 = vmax.f32 %v1810, %v1811
    %v1813 = vrot.slane %v1812, 1
    %v1814 = vmax.f32 %v1812, %v1813
    %v1815 = vsel %vm1681, %v1674, -inf
    %v1816 = vsel %vm1681, %v1675, -inf
    %v1817 = vmax.f32 %v1815, %v1816
    %v1818 = vsel %vm1681, %v1676, -inf
    %v1819 = vmax.f32 %v1817, %v1818
    %v1820 = vsel %vm1681, %v1677, -inf
    %v1821 = vmax.f32 %v1819, %v1820
    %v1822 = vsel %vm1681, %v1678, -inf
    %v1823 = vmax.f32 %v1821, %v1822
    %v1824 = vsel %vm1681, %v1679, -inf
    %v1825 = vmax.f32 %v1823, %v1824
    %v1826 = vsel %vm1681, %v1680, -inf
    %v1827 = vmax.f32 %v1825, %v1826
    %v1828 = vrot.slane %v1827, 4
    %v1829 = vmax.f32 %v1827, %v1828
    %v1830 = vrot.slane %v1829, 2
    %v1831 = vmax.f32 %v1829, %v1830
    %v1832 = vrot.slane %v1831, 1
    %v1833 = vmax.f32 %v1831, %v1832
    %v1842 = vsel %vm538, %v1719, %v1700
    %v1843 = vsel %vm541, %v1738, %v1842
    %v1844 = vsel %vm544, %v1757, %v1843
    %v1845 = vsel %vm547, %v1776, %v1844
    %v1846 = vsel %vm550, %v1795, %v1845
    %v1847 = vsel %vm553, %v1814, %v1846
    %v1848 = vsel %vm556, %v1833, %v1847
    %v1850 = vmax.f32 %v1076, %v1848
    %v1851 = vsub.f32 %v1076, %v1850
    %v1852 = vmul.f32 %v1851, 1.442695
    %v1853 = vpow.pop %v1852
    %v1855 = vcombine.high %v1850, %v1850
    %v1857 = vunpack.c.l.s4 1966171168
    %v1858 = vunpack.c.0.s8 %v1857
    %v1859 = vlaneseq
    %v1860 = vshrl.u32 %v1859, 7
    %v1861 = vsub.s32 %v1858, %v1860
    %v1862 = vrot.slane %v1850, %v1861
    %v1864 = vunpack.c.l.s4 1966171168
    %v1865 = vunpack.c.0.s8 %v1864
    %v1866 = vlaneseq
    %v1867 = vshrl.u32 %v1866, 7
    %v1868 = vsub.s32 %v1865, %v1867
    %v1869 = vrot.slane %v1855, %v1868
    %v1870 = vcombine.high %v1862, %v1862
    %v1871 = vcombine.high %v1869, %v1869
    %v1873 = vunpack.c.l.s4 1966171168
    %v1874 = vunpack.c.0.s8 %v1873
    %v1875 = vlaneseq
    %v1876 = vshrl.u32 %v1875, 7
    %v1877 = vsub.s32 %v1874, %v1876
    %v1878 = vrot.slane %v1862, %v1877
    %v1880 = vunpack.c.l.s4 1966171168
    %v1881 = vunpack.c.0.s8 %v1880
    %v1882 = vlaneseq
    %v1883 = vshrl.u32 %v1882, 7
    %v1884 = vsub.s32 %v1881, %v1883
    %v1885 = vrot.slane %v1869, %v1884
    %v1887 = vunpack.c.l.s4 1966171168
    %v1888 = vunpack.c.0.s8 %v1887
    %v1889 = vlaneseq
    %v1890 = vshrl.u32 %v1889, 7
    %v1891 = vsub.s32 %v1888, %v1890
    %v1892 = vrot.slane %v1870, %v1891
    %v1894 = vunpack.c.l.s4 1966171168
    %v1895 = vunpack.c.0.s8 %v1894
    %v1896 = vlaneseq
    %v1897 = vshrl.u32 %v1896, 7
    %v1898 = vsub.s32 %v1895, %v1897
    %v1899 = vrot.slane %v1871, %v1898
    %v1900 = vcombine.high %v1878, %v1878
    %v1901 = vcombine.high %v1885, %v1885
    %v1902 = vcombine.high %v1892, %v1892
    %v1903 = vcombine.high %v1899, %v1899
    %v1904 = vlaneseq
    %v1905 = vshrl.u32 %v1904, 7
    %v1906 = vsub.s32 0, %v1905
    %v1907 = vrot.slane %v1878, %v1906
    %v1908 = vlaneseq
    %v1909 = vshrl.u32 %v1908, 7
    %v1910 = vsub.s32 0, %v1909
    %v1911 = vrot.slane %v1892, %v1910
    %v1912 = vlaneseq
    %v1913 = vshrl.u32 %v1912, 7
    %v1914 = vsub.s32 0, %v1913
    %v1915 = vrot.slane %v1900, %v1914
    %v1916 = vlaneseq
    %v1917 = vshrl.u32 %v1916, 7
    %v1918 = vsub.s32 0, %v1917
    %v1919 = vrot.slane %v1902, %v1918
    %v1920 = vlaneseq
    %v1921 = vshrl.u32 %v1920, 7
    %v1922 = vsub.s32 0, %v1921
    %v1923 = vrot.slane %v1885, %v1922
    %v1924 = vlaneseq
    %v1925 = vshrl.u32 %v1924, 7
    %v1926 = vsub.s32 0, %v1925
    %v1927 = vrot.slane %v1899, %v1926
    %v1928 = vlaneseq
    %v1929 = vshrl.u32 %v1928, 7
    %v1930 = vsub.s32 0, %v1929
    %v1931 = vrot.slane %v1901, %v1930
    %v1932 = vlaneseq
    %v1933 = vshrl.u32 %v1932, 7
    %v1934 = vsub.s32 0, %v1933
    %v1935 = vrot.slane %v1903, %v1934
    %v1944 = vsub.f32 %v1625, %v1907
    %v1945 = vsub.f32 %v1626, %v1907
    %v1946 = vsub.f32 %v1627, %v1907
    %v1947 = vsub.f32 %v1628, %v1907
    %v1948 = vsub.f32 %v1629, %v1907
    %v1949 = vsub.f32 %v1630, %v1907
    %v1950 = vsub.f32 %v1631, %v1907
    %v1951 = vsub.f32 %v1632, %v1911
    %v1952 = vsub.f32 %v1633, %v1911
    %v1953 = vsub.f32 %v1634, %v1911
    %v1954 = vsub.f32 %v1635, %v1911
    %v1955 = vsub.f32 %v1636, %v1911
    %v1956 = vsub.f32 %v1637, %v1911
    %v1957 = vsub.f32 %v1638, %v1911
    %v1958 = vsub.f32 %v1639, %v1915
    %v1959 = vsub.f32 %v1640, %v1915
    %v1960 = vsub.f32 %v1641, %v1915
    %v1961 = vsub.f32 %v1642, %v1915
    %v1962 = vsub.f32 %v1643, %v1915
    %v1963 = vsub.f32 %v1644, %v1915
    %v1964 = vsub.f32 %v1645, %v1915
    %v1965 = vsub.f32 %v1646, %v1919
    %v1966 = vsub.f32 %v1647, %v1919
    %v1967 = vsub.f32 %v1648, %v1919
    %v1968 = vsub.f32 %v1649, %v1919
    %v1969 = vsub.f32 %v1650, %v1919
    %v1970 = vsub.f32 %v1651, %v1919
    %v1971 = vsub.f32 %v1652, %v1919
    %v1972 = vsub.f32 %v1653, %v1923
    %v1973 = vsub.f32 %v1654, %v1923
    %v1974 = vsub.f32 %v1655, %v1923
    %v1975 = vsub.f32 %v1656, %v1923
    %v1976 = vsub.f32 %v1657, %v1923
    %v1977 = vsub.f32 %v1658, %v1923
    %v1978 = vsub.f32 %v1659, %v1923
    %v1979 = vsub.f32 %v1660, %v1927
    %v1980 = vsub.f32 %v1661, %v1927
    %v1981 = vsub.f32 %v1662, %v1927
    %v1982 = vsub.f32 %v1663, %v1927
    %v1983 = vsub.f32 %v1664, %v1927
    %v1984 = vsub.f32 %v1665, %v1927
    %v1985 = vsub.f32 %v1666, %v1927
    %v1986 = vsub.f32 %v1667, %v1931
    %v1987 = vsub.f32 %v1668, %v1931
    %v1988 = vsub.f32 %v1669, %v1931
    %v1989 = vsub.f32 %v1670, %v1931
    %v1990 = vsub.f32 %v1671, %v1931
    %v1991 = vsub.f32 %v1672, %v1931
    %v1992 = vsub.f32 %v1673, %v1931
    %v1993 = vsub.f32 %v1674, %v1935
    %v1994 = vsub.f32 %v1675, %v1935
    %v1995 = vsub.f32 %v1676, %v1935
    %v1996 = vsub.f32 %v1677, %v1935
    %v1997 = vsub.f32 %v1678, %v1935
    %v1998 = vsub.f32 %v1679, %v1935
    %v1999 = vsub.f32 %v1680, %v1935
    %v2000 = vmul.f32 %v1944, 1.442695
    %v2001 = vpow.pop %v2000
    %v2002 = vmul.f32 %v1945, 1.442695
    %v2003 = vpow.pop %v2002
    %v2004 = vmul.f32 %v1946, 1.442695
    %v2005 = vpow.pop %v2004
    %v2006 = vmul.f32 %v1947, 1.442695
    %v2007 = vpow.pop %v2006
    %v2008 = vmul.f32 %v1948, 1.442695
    %v2009 = vpow.pop %v2008
    %v2010 = vmul.f32 %v1949, 1.442695
    %v2011 = vpow.pop %v2010
    %v2012 = vmul.f32 %v1950, 1.442695
    %v2013 = vpow.pop %v2012
    %v2014 = vmul.f32 %v1951, 1.442695
    %v2015 = vpow.pop %v2014
    %v2016 = vmul.f32 %v1952, 1.442695
    %v2017 = vpow.pop %v2016
    %v2018 = vmul.f32 %v1953, 1.442695
    %v2019 = vpow.pop %v2018
    %v2020 = vmul.f32 %v1954, 1.442695
    %v2021 = vpow.pop %v2020
    %v2022 = vmul.f32 %v1955, 1.442695
    %v2023 = vpow.pop %v2022
    %v2024 = vmul.f32 %v1956, 1.442695
    %v2025 = vpow.pop %v2024
    %v2026 = vmul.f32 %v1957, 1.442695
    %v2027 = vpow.pop %v2026
    %v2028 = vmul.f32 %v1958, 1.442695
    %v2029 = vpow.pop %v2028
    %v2030 = vmul.f32 %v1959, 1.442695
    %v2031 = vpow.pop %v2030
    %v2032 = vmul.f32 %v1960, 1.442695
    %v2033 = vpow.pop %v2032
    %v2034 = vmul.f32 %v1961, 1.442695
    %v2035 = vpow.pop %v2034
    %v2036 = vmul.f32 %v1962, 1.442695
    %v2037 = vpow.pop %v2036
    %v2038 = vmul.f32 %v1963, 1.442695
    %v2039 = vpow.pop %v2038
    %v2040 = vmul.f32 %v1964, 1.442695
    %v2041 = vpow.pop %v2040
    %v2042 = vmul.f32 %v1965, 1.442695
    %v2043 = vpow.pop %v2042
    %v2044 = vmul.f32 %v1966, 1.442695
    %v2045 = vpow.pop %v2044
    %v2046 = vmul.f32 %v1967, 1.442695
    %v2047 = vpow.pop %v2046
    %v2048 = vmul.f32 %v1968, 1.442695
    %v2049 = vpow.pop %v2048
    %v2050 = vmul.f32 %v1969, 1.442695
    %v2051 = vpow.pop %v2050
    %v2052 = vmul.f32 %v1970, 1.442695
    %v2053 = vpow.pop %v2052
    %v2054 = vmul.f32 %v1971, 1.442695
    %v2055 = vpow.pop %v2054
    %v2056 = vmul.f32 %v1972, 1.442695
    %v2057 = vpow.pop %v2056
    %v2058 = vmul.f32 %v1973, 1.442695
    %v2059 = vpow.pop %v2058
    %v2060 = vmul.f32 %v1974, 1.442695
    %v2061 = vpow.pop %v2060
    %v2062 = vmul.f32 %v1975, 1.442695
    %v2063 = vpow.pop %v2062
    %v2064 = vmul.f32 %v1976, 1.442695
    %v2065 = vpow.pop %v2064
    %v2066 = vmul.f32 %v1977, 1.442695
    %v2067 = vpow.pop %v2066
    %v2068 = vmul.f32 %v1978, 1.442695
    %v2069 = vpow.pop %v2068
    %v2070 = vmul.f32 %v1979, 1.442695
    %v2071 = vpow.pop %v2070
    %v2072 = vmul.f32 %v1980, 1.442695
    %v2073 = vpow.pop %v2072
    %v2074 = vmul.f32 %v1981, 1.442695
    %v2075 = vpow.pop %v2074
    %v2076 = vmul.f32 %v1982, 1.442695
    %v2077 = vpow.pop %v2076
    %v2078 = vmul.f32 %v1983, 1.442695
    %v2079 = vpow.pop %v2078
    %v2080 = vmul.f32 %v1984, 1.442695
    %v2081 = vpow.pop %v2080
    %v2082 = vmul.f32 %v1985, 1.442695
    %v2083 = vpow.pop %v2082
    %v2084 = vmul.f32 %v1986, 1.442695
    %v2085 = vpow.pop %v2084
    %v2086 = vmul.f32 %v1987, 1.442695
    %v2087 = vpow.pop %v2086
    %v2088 = vmul.f32 %v1988, 1.442695
    %v2089 = vpow.pop %v2088
    %v2090 = vmul.f32 %v1989, 1.442695
    %v2091 = vpow.pop %v2090
    %v2092 = vmul.f32 %v1990, 1.442695
    %v2093 = vpow.pop %v2092
    %v2094 = vmul.f32 %v1991, 1.442695
    %v2095 = vpow.pop %v2094
    %v2096 = vmul.f32 %v1992, 1.442695
    %v2097 = vpow.pop %v2096
    %v2098 = vmul.f32 %v1993, 1.442695
    %v2099 = vpow.pop %v2098
    %v2100 = vmul.f32 %v1994, 1.442695
    %v2101 = vpow.pop %v2100
    %v2102 = vmul.f32 %v1995, 1.442695
    %v2103 = vpow.pop %v2102
    %v2104 = vmul.f32 %v1996, 1.442695
    %v2105 = vpow.pop %v2104
    %v2106 = vmul.f32 %v1997, 1.442695
    %v2107 = vpow.pop %v2106
    %v2108 = vmul.f32 %v1998, 1.442695
    %v2109 = vpow.pop %v2108
    %v2110 = vmul.f32 %v1999, 1.442695
    %v2111 = vpow.pop %v2110
    %v2112 = vsel %vm1681, %v2001, 0.0
    %v2113 = vsel %vm1681, %v2003, 0.0
    %v2114 = vadd.f32 %v2112, %v2113
    %v2115 = vsel %vm1681, %v2005, 0.0
    %v2116 = vadd.f32 %v2114, %v2115
    %v2117 = vsel %vm1681, %v2007, 0.0
    %v2118 = vadd.f32 %v2116, %v2117
    %v2119 = vsel %vm1681, %v2009, 0.0
    %v2120 = vadd.f32 %v2118, %v2119
    %v2121 = vsel %vm1681, %v2011, 0.0
    %v2122 = vadd.f32 %v2120, %v2121
    %v2123 = vsel %vm1681, %v2013, 0.0
    %v2124 = vadd.f32 %v2122, %v2123
    %v2125 = vrot.slane %v2124, 4
    %v2126 = vadd.f32 %v2124, %v2125
    %v2127 = vrot.slane %v2126, 2
    %v2128 = vadd.f32 %v2126, %v2127
    %v2129 = vrot.slane %v2128, 1
    %v2130 = vadd.f32 %v2128, %v2129
    %v2131 = vsel %vm1681, %v2015, 0.0
    %v2132 = vsel %vm1681, %v2017, 0.0
    %v2133 = vadd.f32 %v2131, %v2132
    %v2134 = vsel %vm1681, %v2019, 0.0
    %v2135 = vadd.f32 %v2133, %v2134
    %v2136 = vsel %vm1681, %v2021, 0.0
    %v2137 = vadd.f32 %v2135, %v2136
    %v2138 = vsel %vm1681, %v2023, 0.0
    %v2139 = vadd.f32 %v2137, %v2138
    %v2140 = vsel %vm1681, %v2025, 0.0
    %v2141 = vadd.f32 %v2139, %v2140
    %v2142 = vsel %vm1681, %v2027, 0.0
    %v2143 = vadd.f32 %v2141, %v2142
    %v2144 = vrot.slane %v2143, 4
    %v2145 = vadd.f32 %v2143, %v2144
    %v2146 = vrot.slane %v2145, 2
    %v2147 = vadd.f32 %v2145, %v2146
    %v2148 = vrot.slane %v2147, 1
    %v2149 = vadd.f32 %v2147, %v2148
    %v2150 = vsel %vm1681, %v2029, 0.0
    %v2151 = vsel %vm1681, %v2031, 0.0
    %v2152 = vadd.f32 %v2150, %v2151
    %v2153 = vsel %vm1681, %v2033, 0.0
    %v2154 = vadd.f32 %v2152, %v2153
    %v2155 = vsel %vm1681, %v2035, 0.0
    %v2156 = vadd.f32 %v2154, %v2155
    %v2157 = vsel %vm1681, %v2037, 0.0
    %v2158 = vadd.f32 %v2156, %v2157
    %v2159 = vsel %vm1681, %v2039, 0.0
    %v2160 = vadd.f32 %v2158, %v2159
    %v2161 = vsel %vm1681, %v2041, 0.0
    %v2162 = vadd.f32 %v2160, %v2161
    %v2163 = vrot.slane %v2162, 4
    %v2164 = vadd.f32 %v2162, %v2163
    %v2165 = vrot.slane %v2164, 2
    %v2166 = vadd.f32 %v2164, %v2165
    %v2167 = vrot.slane %v2166, 1
    %v2168 = vadd.f32 %v2166, %v2167
    %v2169 = vsel %vm1681, %v2043, 0.0
    %v2170 = vsel %vm1681, %v2045, 0.0
    %v2171 = vadd.f32 %v2169, %v2170
    %v2172 = vsel %vm1681, %v2047, 0.0
    %v2173 = vadd.f32 %v2171, %v2172
    %v2174 = vsel %vm1681, %v2049, 0.0
    %v2175 = vadd.f32 %v2173, %v2174
    %v2176 = vsel %vm1681, %v2051, 0.0
    %v2177 = vadd.f32 %v2175, %v2176
    %v2178 = vsel %vm1681, %v2053, 0.0
    %v2179 = vadd.f32 %v2177, %v2178
    %v2180 = vsel %vm1681, %v2055, 0.0
    %v2181 = vadd.f32 %v2179, %v2180
    %v2182 = vrot.slane %v2181, 4
    %v2183 = vadd.f32 %v2181, %v2182
    %v2184 = vrot.slane %v2183, 2
    %v2185 = vadd.f32 %v2183, %v2184
    %v2186 = vrot.slane %v2185, 1
    %v2187 = vadd.f32 %v2185, %v2186
    %v2188 = vsel %vm1681, %v2057, 0.0
    %v2189 = vsel %vm1681, %v2059, 0.0
    %v2190 = vadd.f32 %v2188, %v2189
    %v2191 = vsel %vm1681, %v2061, 0.0
    %v2192 = vadd.f32 %v2190, %v2191
    %v2193 = vsel %vm1681, %v2063, 0.0
    %v2194 = vadd.f32 %v2192, %v2193
    %v2195 = vsel %vm1681, %v2065, 0.0
    %v2196 = vadd.f32 %v2194, %v2195
    %v2197 = vsel %vm1681, %v2067, 0.0
    %v2198 = vadd.f32 %v2196, %v2197
    %v2199 = vsel %vm1681, %v2069, 0.0
    %v2200 = vadd.f32 %v2198, %v2199
    %v2201 = vrot.slane %v2200, 4
    %v2202 = vadd.f32 %v2200, %v2201
    %v2203 = vrot.slane %v2202, 2
    %v2204 = vadd.f32 %v2202, %v2203
    %v2205 = vrot.slane %v2204, 1
    %v2206 = vadd.f32 %v2204, %v2205
    %v2207 = vsel %vm1681, %v2071, 0.0
    %v2208 = vsel %vm1681, %v2073, 0.0
    %v2209 = vadd.f32 %v2207, %v2208
    %v2210 = vsel %vm1681, %v2075, 0.0
    %v2211 = vadd.f32 %v2209, %v2210
    %v2212 = vsel %vm1681, %v2077, 0.0
    %v2213 = vadd.f32 %v2211, %v2212
    %v2214 = vsel %vm1681, %v2079, 0.0
    %v2215 = vadd.f32 %v2213, %v2214
    %v2216 = vsel %vm1681, %v2081, 0.0
    %v2217 = vadd.f32 %v2215, %v2216
    %v2218 = vsel %vm1681, %v2083, 0.0
    %v2219 = vadd.f32 %v2217, %v2218
    %v2220 = vrot.slane %v2219, 4
    %v2221 = vadd.f32 %v2219, %v2220
    %v2222 = vrot.slane %v2221, 2
    %v2223 = vadd.f32 %v2221, %v2222
    %v2224 = vrot.slane %v2223, 1
    %v2225 = vadd.f32 %v2223, %v2224
    %v2226 = vsel %vm1681, %v2085, 0.0
    %v2227 = vsel %vm1681, %v2087, 0.0
    %v2228 = vadd.f32 %v2226, %v2227
    %v2229 = vsel %vm1681, %v2089, 0.0
    %v2230 = vadd.f32 %v2228, %v2229
    %v2231 = vsel %vm1681, %v2091, 0.0
    %v2232 = vadd.f32 %v2230, %v2231
    %v2233 = vsel %vm1681, %v2093, 0.0
    %v2234 = vadd.f32 %v2232, %v2233
    %v2235 = vsel %vm1681, %v2095, 0.0
    %v2236 = vadd.f32 %v2234, %v2235
    %v2237 = vsel %vm1681, %v2097, 0.0
    %v2238 = vadd.f32 %v2236, %v2237
    %v2239 = vrot.slane %v2238, 4
    %v2240 = vadd.f32 %v2238, %v2239
    %v2241 = vrot.slane %v2240, 2
    %v2242 = vadd.f32 %v2240, %v2241
    %v2243 = vrot.slane %v2242, 1
    %v2244 = vadd.f32 %v2242, %v2243
    %v2245 = vsel %vm1681, %v2099, 0.0
    %v2246 = vsel %vm1681, %v2101, 0.0
    %v2247 = vadd.f32 %v2245, %v2246
    %v2248 = vsel %vm1681, %v2103, 0.0
    %v2249 = vadd.f32 %v2247, %v2248
    %v2250 = vsel %vm1681, %v2105, 0.0
    %v2251 = vadd.f32 %v2249, %v2250
    %v2252 = vsel %vm1681, %v2107, 0.0
    %v2253 = vadd.f32 %v2251, %v2252
    %v2254 = vsel %vm1681, %v2109, 0.0
    %v2255 = vadd.f32 %v2253, %v2254
    %v2256 = vsel %vm1681, %v2111, 0.0
    %v2257 = vadd.f32 %v2255, %v2256
    %v2258 = vrot.slane %v2257, 4
    %v2259 = vadd.f32 %v2257, %v2258
    %v2260 = vrot.slane %v2259, 2
    %v2261 = vadd.f32 %v2259, %v2260
    %v2262 = vrot.slane %v2261, 1
    %v2263 = vadd.f32 %v2261, %v2262
    %v2272 = vsel %vm538, %v2149, %v2130
    %v2273 = vsel %vm541, %v2168, %v2272
    %v2274 = vsel %vm544, %v2187, %v2273
    %v2275 = vsel %vm547, %v2206, %v2274
    %v2276 = vsel %vm550, %v2225, %v2275
    %v2277 = vsel %vm553, %v2244, %v2276
    %v2278 = vsel %vm556, %v2263, %v2277
    %v2280 = vadd.f32 %v1853, %v2278
    %v2281 = vrcp.pop %v2280
    %v2282 = vmul.f32 %v1853, %v2281
    %v2284 = vcombine.high %v2281, %v2281
    %v2286 = vunpack.c.l.s4 1966171168
    %v2287 = vunpack.c.0.s8 %v2286
    %v2288 = vlaneseq
    %v2289 = vshrl.u32 %v2288, 7
    %v2290 = vsub.s32 %v2287, %v2289
    %v2291 = vrot.slane %v2281, %v2290
    %v2293 = vunpack.c.l.s4 1966171168
    %v2294 = vunpack.c.0.s8 %v2293
    %v2295 = vlaneseq
    %v2296 = vshrl.u32 %v2295, 7
    %v2297 = vsub.s32 %v2294, %v2296
    %v2298 = vrot.slane %v2284, %v2297
    %v2299 = vcombine.high %v2291, %v2291
    %v2300 = vcombine.high %v2298, %v2298
    %v2302 = vunpack.c.l.s4 1966171168
    %v2303 = vunpack.c.0.s8 %v2302
    %v2304 = vlaneseq
    %v2305 = vshrl.u32 %v2304, 7
    %v2306 = vsub.s32 %v2303, %v2305
    %v2307 = vrot.slane %v2291, %v2306
    %v2309 = vunpack.c.l.s4 1966171168
    %v2310 = vunpack.c.0.s8 %v2309
    %v2311 = vlaneseq
    %v2312 = vshrl.u32 %v2311, 7
    %v2313 = vsub.s32 %v2310, %v2312
    %v2314 = vrot.slane %v2298, %v2313
    %v2316 = vunpack.c.l.s4 1966171168
    %v2317 = vunpack.c.0.s8 %v2316
    %v2318 = vlaneseq
    %v2319 = vshrl.u32 %v2318, 7
    %v2320 = vsub.s32 %v2317, %v2319
    %v2321 = vrot.slane %v2299, %v2320
    %v2323 = vunpack.c.l.s4 1966171168
    %v2324 = vunpack.c.0.s8 %v2323
    %v2325 = vlaneseq
    %v2326 = vshrl.u32 %v2325, 7
    %v2327 = vsub.s32 %v2324, %v2326
    %v2328 = vrot.slane %v2300, %v2327
    %v2329 = vcombine.high %v2307, %v2307
    %v2330 = vcombine.high %v2314, %v2314
    %v2331 = vcombine.high %v2321, %v2321
    %v2332 = vcombine.high %v2328, %v2328
    %v2333 = vlaneseq
    %v2334 = vshrl.u32 %v2333, 7
    %v2335 = vsub.s32 0, %v2334
    %v2336 = vrot.slane %v2307, %v2335
    %v2337 = vlaneseq
    %v2338 = vshrl.u32 %v2337, 7
    %v2339 = vsub.s32 0, %v2338
    %v2340 = vrot.slane %v2321, %v2339
    %v2341 = vlaneseq
    %v2342 = vshrl.u32 %v2341, 7
    %v2343 = vsub.s32 0, %v2342
    %v2344 = vrot.slane %v2329, %v2343
    %v2345 = vlaneseq
    %v2346 = vshrl.u32 %v2345, 7
    %v2347 = vsub.s32 0, %v2346
    %v2348 = vrot.slane %v2331, %v2347
    %v2349 = vlaneseq
    %v2350 = vshrl.u32 %v2349, 7
    %v2351 = vsub.s32 0, %v2350
    %v2352 = vrot.slane %v2314, %v2351
    %v2353 = vlaneseq
    %v2354 = vshrl.u32 %v2353, 7
    %v2355 = vsub.s32 0, %v2354
    %v2356 = vrot.slane %v2328, %v2355
    %v2357 = vlaneseq
    %v2358 = vshrl.u32 %v2357, 7
    %v2359 = vsub.s32 0, %v2358
    %v2360 = vrot.slane %v2330, %v2359
    %v2361 = vlaneseq
    %v2362 = vshrl.u32 %v2361, 7
    %v2363 = vsub.s32 0, %v2362
    %v2364 = vrot.slane %v2332, %v2363
    %v2373 = vmul.f32 %v2001, %v2336
    %v2374 = vmul.f32 %v2003, %v2336
    %v2375 = vmul.f32 %v2005, %v2336
    %v2376 = vmul.f32 %v2007, %v2336
    %v2377 = vmul.f32 %v2009, %v2336
    %v2378 = vmul.f32 %v2011, %v2336
    %v2379 = vmul.f32 %v2013, %v2336
    %v2380 = vmul.f32 %v2015, %v2340
    %v2381 = vmul.f32 %v2017, %v2340
    %v2382 = vmul.f32 %v2019, %v2340
    %v2383 = vmul.f32 %v2021, %v2340
    %v2384 = vmul.f32 %v2023, %v2340
    %v2385 = vmul.f32 %v2025, %v2340
    %v2386 = vmul.f32 %v2027, %v2340
    %v2387 = vmul.f32 %v2029, %v2344
    %v2388 = vmul.f32 %v2031, %v2344
    %v2389 = vmul.f32 %v2033, %v2344
    %v2390 = vmul.f32 %v2035, %v2344
    %v2391 = vmul.f32 %v2037, %v2344
    %v2392 = vmul.f32 %v2039, %v2344
    %v2393 = vmul.f32 %v2041, %v2344
    %v2394 = vmul.f32 %v2043, %v2348
    %v2395 = vmul.f32 %v2045, %v2348
    %v2396 = vmul.f32 %v2047, %v2348
    %v2397 = vmul.f32 %v2049, %v2348
    %v2398 = vmul.f32 %v2051, %v2348
    %v2399 = vmul.f32 %v2053, %v2348
    %v2400 = vmul.f32 %v2055, %v2348
    %v2401 = vmul.f32 %v2057, %v2352
    %v2402 = vmul.f32 %v2059, %v2352
    %v2403 = vmul.f32 %v2061, %v2352
    %v2404 = vmul.f32 %v2063, %v2352
    %v2405 = vmul.f32 %v2065, %v2352
    %v2406 = vmul.f32 %v2067, %v2352
    %v2407 = vmul.f32 %v2069, %v2352
    %v2408 = vmul.f32 %v2071, %v2356
    %v2409 = vmul.f32 %v2073, %v2356
    %v2410 = vmul.f32 %v2075, %v2356
    %v2411 = vmul.f32 %v2077, %v2356
    %v2412 = vmul.f32 %v2079, %v2356
    %v2413 = vmul.f32 %v2081, %v2356
    %v2414 = vmul.f32 %v2083, %v2356
    %v2415 = vmul.f32 %v2085, %v2360
    %v2416 = vmul.f32 %v2087, %v2360
    %v2417 = vmul.f32 %v2089, %v2360
    %v2418 = vmul.f32 %v2091, %v2360
    %v2419 = vmul.f32 %v2093, %v2360
    %v2420 = vmul.f32 %v2095, %v2360
    %v2421 = vmul.f32 %v2097, %v2360
    %v2422 = vmul.f32 %v2099, %v2364
    %v2423 = vmul.f32 %v2101, %v2364
    %v2424 = vmul.f32 %v2103, %v2364
    %v2425 = vmul.f32 %v2105, %v2364
    %v2426 = vmul.f32 %v2107, %v2364
    %v2427 = vmul.f32 %v2109, %v2364
    %v2428 = vmul.f32 %v2111, %v2364
    %v2429 = vpack.c.bf16 %v2282, %v2282
    %v2431 = vsel %vm1681, %v2429, 0
    %vm2433 = vcmask 1041408
    %v2435 = vsel %vm2433, %v1023, 0
    %2437 = vmatprep.subr.bf16.mxu0 0
    %2438 = vmatpush1.bf16.msra.mxu0 %v2435
    %2439 = vmatprep.subr.bf16.mxu0 0
    %2440 = vmatpush1.bf16.msra.mxu0 0
    %2441 = vmatprep.subr.bf16.mxu0 0
    %2442 = vmatpush1.bf16.msra.mxu0 0
    %2443 = vmatprep.subr.bf16.mxu0 0
    %2444 = vmatpush1.bf16.msra.mxu0 0
    %2445 = vmatprep.subr.bf16.mxu0 0
    %2446 = vmatpush1.bf16.msra.mxu0 0
    %2447 = vmatprep.subr.bf16.mxu0 0
    %2448 = vmatpush1.bf16.msra.mxu0 0
    %2449 = vmatprep.subr.bf16.mxu0 0
    %2450 = vmatpush1.bf16.msra.mxu0 0
    %2451 = vmatprep.subr.bf16.mxu0 0
    %2452 = vmatpush1.bf16.msra.mxu0 0
    %2453 = vmatprep.subr.bf16.mxu0 0
    %2454 = vmatpush1.bf16.msra.mxu0 0
    %2455 = vmatprep.subr.bf16.mxu0 0
    %2456 = vmatpush1.bf16.msra.mxu0 0
    %2457 = vmatprep.subr.bf16.mxu0 0
    %2458 = vmatpush1.bf16.msra.mxu0 0
    %2459 = vmatprep.subr.bf16.mxu0 0
    %2460 = vmatpush1.bf16.msra.mxu0 0
    %2461 = vmatprep.subr.bf16.mxu0 0
    %2462 = vmatpush1.bf16.msra.mxu0 0
    %2463 = vmatprep.subr.bf16.mxu0 0
    %2464 = vmatpush1.bf16.msra.mxu0 0
    %2465 = vmatprep.subr.bf16.mxu0 0
    %2466 = vmatpush1.bf16.msra.mxu0 0
    %2467 = vmatprep.subr.bf16.mxu0 0
    %2468 = vmatpush1.bf16.msra.mxu0 0
    %2469 = vmatprep.mubr.bf16.mxu0 0
    %2470 = vmatmul.mubr.bf16.gmra.mrb[0].mxu0 %v2431
    %v2471 = vpop.f32.mrb[0].mxu0
    %v2472 = vadd.f32 0.0, %v2471
    %v2473 = vpop.f32.mrb[0].mxu0
    %v2474 = vpop.f32.mrb[0].mxu0
    %v2475 = vpop.f32.mrb[0].mxu0
    %2476 = vdwg.mxu0
    %v2477 = vpack.c.bf16 %v2374, %v2373
    %v2478 = vpack.c.bf16 %v2376, %v2375
    %v2479 = vpack.c.bf16 %v2378, %v2377
    %v2480 = vpack.c.bf16 %v2380, %v2379
    %v2481 = vpack.c.bf16 %v2382, %v2381
    %v2482 = vpack.c.bf16 %v2384, %v2383
    %v2483 = vpack.c.bf16 %v2386, %v2385
    %v2484 = vpack.c.bf16 %v2388, %v2387
    %v2485 = vpack.c.bf16 %v2390, %v2389
    %v2486 = vpack.c.bf16 %v2392, %v2391
    %v2487 = vpack.c.bf16 %v2394, %v2393
    %v2488 = vpack.c.bf16 %v2396, %v2395
    %v2489 = vpack.c.bf16 %v2398, %v2397
    %v2490 = vpack.c.bf16 %v2400, %v2399
    %v2491 = vpack.c.bf16 %v2402, %v2401
    %v2492 = vpack.c.bf16 %v2404, %v2403
    %v2493 = vpack.c.bf16 %v2406, %v2405
    %v2494 = vpack.c.bf16 %v2408, %v2407
    %v2495 = vpack.c.bf16 %v2410, %v2409
    %v2496 = vpack.c.bf16 %v2412, %v2411
    %v2497 = vpack.c.bf16 %v2414, %v2413
    %v2498 = vpack.c.bf16 %v2416, %v2415
    %v2499 = vpack.c.bf16 %v2418, %v2417
    %v2500 = vpack.c.bf16 %v2420, %v2419
    %v2501 = vpack.c.bf16 %v2422, %v2421
    %v2502 = vpack.c.bf16 %v2424, %v2423
    %v2503 = vpack.c.bf16 %v2426, %v2425
    %v2504 = vpack.c.bf16 %v2428, %v2427
    %v2506 = vsel %vm1681, %v2477, 0
    %v2509 = vsel %vm1681, %v2478, 0
    %v2512 = vsel %vm1681, %v2479, 0
    %v2515 = vsel %vm1681, %v2480, 0
    %v2518 = vsel %vm1681, %v2481, 0
    %v2521 = vsel %vm1681, %v2482, 0
    %v2524 = vsel %vm1681, %v2483, 0
    %v2527 = vsel %vm1681, %v2484, 0
    %v2530 = vsel %vm1681, %v2485, 0
    %v2533 = vsel %vm1681, %v2486, 0
    %v2536 = vsel %vm1681, %v2487, 0
    %v2539 = vsel %vm1681, %v2488, 0
    %v2542 = vsel %vm1681, %v2489, 0
    %v2545 = vsel %vm1681, %v2490, 0
    %v2548 = vsel %vm1681, %v2491, 0
    %v2551 = vsel %vm1681, %v2492, 0
    %v2554 = vsel %vm1681, %v2493, 0
    %v2557 = vsel %vm1681, %v2494, 0
    %v2560 = vsel %vm1681, %v2495, 0
    %v2563 = vsel %vm1681, %v2496, 0
    %v2566 = vsel %vm1681, %v2497, 0
    %v2569 = vsel %vm1681, %v2498, 0
    %v2572 = vsel %vm1681, %v2499, 0
    %v2575 = vsel %vm1681, %v2500, 0
    %v2578 = vsel %vm1681, %v2501, 0
    %v2581 = vsel %vm1681, %v2502, 0
    %v2584 = vsel %vm1681, %v2503, 0
    %v2587 = vsel %vm1681, %v2504, 0
    %2589 = vmatprep.subr.bf16.mxu0 0
    %2590 = vmatpush1.bf16.msra.mxu0 %v2435
    %2591 = vmatprep.subr.bf16.mxu0 0
    %2592 = vmatpush1.bf16.msra.mxu0 0
    %2593 = vmatprep.subr.bf16.mxu0 0
    %2594 = vmatpush1.bf16.msra.mxu0 0
    %2595 = vmatprep.subr.bf16.mxu0 0
    %2596 = vmatpush1.bf16.msra.mxu0 0
    %2597 = vmatprep.subr.bf16.mxu0 0
    %2598 = vmatpush1.bf16.msra.mxu0 0
    %2599 = vmatprep.subr.bf16.mxu0 0
    %2600 = vmatpush1.bf16.msra.mxu0 0
    %2601 = vmatprep.subr.bf16.mxu0 0
    %2602 = vmatpush1.bf16.msra.mxu0 0
    %2603 = vmatprep.subr.bf16.mxu0 0
    %2604 = vmatpush1.bf16.msra.mxu0 0
    %2605 = vmatprep.subr.bf16.mxu0 0
    %2606 = vmatpush1.bf16.msra.mxu0 0
    %2607 = vmatprep.subr.bf16.mxu0 0
    %2608 = vmatpush1.bf16.msra.mxu0 0
    %2609 = vmatprep.subr.bf16.mxu0 0
    %2610 = vmatpush1.bf16.msra.mxu0 0
    %2611 = vmatprep.subr.bf16.mxu0 0
    %2612 = vmatpush1.bf16.msra.mxu0 0
    %2613 = vmatprep.subr.bf16.mxu0 0
    %2614 = vmatpush1.bf16.msra.mxu0 0
    %2615 = vmatprep.subr.bf16.mxu0 0
    %2616 = vmatpush1.bf16.msra.mxu0 0
    %2617 = vmatprep.subr.bf16.mxu0 0
    %2618 = vmatpush1.bf16.msra.mxu0 0
    %2619 = vmatprep.subr.bf16.mxu0 0
    %2620 = vmatpush1.bf16.msra.mxu0 0
    %2621 = vmatprep.mubr.bf16.mxu0 0
    %2622 = vmatmul.mubr.bf16.gmra.mrb[0].mxu0 %v2506
    %v2623 = vpop.f32.mrb[0].mxu0
    %v2624 = vadd.f32 0.0, %v2623
    %v2625 = vpop.f32.mrb[0].mxu0
    %v2626 = vpop.f32.mrb[0].mxu0
    %v2627 = vadd.f32 0.0, %v2626
    %v2628 = vpop.f32.mrb[0].mxu0
    %2629 = vmatprep.mubr.bf16.mxu0 0
    %2630 = vmatmul.mubr.bf16.gmra.mrb[0].mxu0 %v2509
    %v2631 = vpop.f32.mrb[0].mxu0
    %v2632 = vadd.f32 0.0, %v2631
    %v2633 = vpop.f32.mrb[0].mxu0
    %v2634 = vpop.f32.mrb[0].mxu0
    %v2635 = vadd.f32 0.0, %v2634
    %v2636 = vpop.f32.mrb[0].mxu0
    %2637 = vmatprep.mubr.bf16.mxu0 0
    %2638 = vmatmul.mubr.bf16.gmra.mrb[0].mxu0 %v2512
    %v2639 = vpop.f32.mrb[0].mxu0
    %v2640 = vadd.f32 0.0, %v2639
    %v2641 = vpop.f32.mrb[0].mxu0
    %v2642 = vpop.f32.mrb[0].mxu0
    %v2643 = vadd.f32 0.0, %v2642
    %v2644 = vpop.f32.mrb[0].mxu0
    %2645 = vmatprep.mubr.bf16.mxu0 0
    %2646 = vmatmul.mubr.bf16.gmra.mrb[0].mxu0 %v2515
    %v2647 = vpop.f32.mrb[0].mxu0
    %v2648 = vadd.f32 0.0, %v2647
    %v2649 = vpop.f32.mrb[0].mxu0
    %v2650 = vpop.f32.mrb[0].mxu0
    %v2651 = vadd.f32 0.0, %v2650
    %v2652 = vpop.f32.mrb[0].mxu0
    %2653 = vmatprep.mubr.bf16.mxu0 0
    %2654 = vmatmul.mubr.bf16.gmra.mrb[0].mxu0 %v2518
    %v2655 = vpop.f32.mrb[0].mxu0
    %v2656 = vadd.f32 0.0, %v2655
    %v2657 = vpop.f32.mrb[0].mxu0
    %v2658 = vpop.f32.mrb[0].mxu0
    %v2659 = vadd.f32 0.0, %v2658
    %v2660 = vpop.f32.mrb[0].mxu0
    %2661 = vmatprep.mubr.bf16.mxu0 0
    %2662 = vmatmul.mubr.bf16.gmra.mrb[0].mxu0 %v2521
    %v2663 = vpop.f32.mrb[0].mxu0
    %v2664 = vadd.f32 0.0, %v2663
    %v2665 = vpop.f32.mrb[0].mxu0
    %v2666 = vpop.f32.mrb[0].mxu0
    %v2667 = vadd.f32 0.0, %v2666
    %v2668 = vpop.f32.mrb[0].mxu0
    %2669 = vmatprep.mubr.bf16.mxu0 0
    %2670 = vmatmul.mubr.bf16.gmra.mrb[0].mxu0 %v2524
    %v2671 = vpop.f32.mrb[0].mxu0
    %v2672 = vadd.f32 0.0, %v2671
    %v2673 = vpop.f32.mrb[0].mxu0
    %v2674 = vpop.f32.mrb[0].mxu0
    %v2675 = vadd.f32 0.0, %v2674
    %v2676 = vpop.f32.mrb[0].mxu0
    %2677 = vmatprep.mubr.bf16.mxu0 0
    %2678 = vmatmul.mubr.bf16.gmra.mrb[0].mxu0 %v2527
    %v2679 = vpop.f32.mrb[0].mxu0
    %v2680 = vadd.f32 0.0, %v2679
    %v2681 = vpop.f32.mrb[0].mxu0
    %v2682 = vpop.f32.mrb[0].mxu0
    %v2683 = vadd.f32 0.0, %v2682
    %v2684 = vpop.f32.mrb[0].mxu0
    %2685 = vmatprep.mubr.bf16.mxu0 0
    %2686 = vmatmul.mubr.bf16.gmra.mrb[0].mxu0 %v2530
    %v2687 = vpop.f32.mrb[0].mxu0
    %v2688 = vadd.f32 0.0, %v2687
    %v2689 = vpop.f32.mrb[0].mxu0
    %v2690 = vpop.f32.mrb[0].mxu0
    %v2691 = vadd.f32 0.0, %v2690
    %v2692 = vpop.f32.mrb[0].mxu0
    %2693 = vmatprep.mubr.bf16.mxu0 0
    %2694 = vmatmul.mubr.bf16.gmra.mrb[0].mxu0 %v2533
    %v2695 = vpop.f32.mrb[0].mxu0
    %v2696 = vadd.f32 0.0, %v2695
    %v2697 = vpop.f32.mrb[0].mxu0
    %v2698 = vpop.f32.mrb[0].mxu0
    %v2699 = vadd.f32 0.0, %v2698
    %v2700 = vpop.f32.mrb[0].mxu0
    %2701 = vmatprep.mubr.bf16.mxu0 0
    %2702 = vmatmul.mubr.bf16.gmra.mrb[0].mxu0 %v2536
    %v2703 = vpop.f32.mrb[0].mxu0
    %v2704 = vadd.f32 0.0, %v2703
    %v2705 = vpop.f32.mrb[0].mxu0
    %v2706 = vpop.f32.mrb[0].mxu0
    %v2707 = vadd.f32 0.0, %v2706
    %v2708 = vpop.f32.mrb[0].mxu0
    %2709 = vmatprep.mubr.bf16.mxu0 0
    %2710 = vmatmul.mubr.bf16.gmra.mrb[0].mxu0 %v2539
    %v2711 = vpop.f32.mrb[0].mxu0
    %v2712 = vadd.f32 0.0, %v2711
    %v2713 = vpop.f32.mrb[0].mxu0
    %v2714 = vpop.f32.mrb[0].mxu0
    %v2715 = vadd.f32 0.0, %v2714
    %v2716 = vpop.f32.mrb[0].mxu0
    %2717 = vmatprep.mubr.bf16.mxu0 0
    %2718 = vmatmul.mubr.bf16.gmra.mrb[0].mxu0 %v2542
    %v2719 = vpop.f32.mrb[0].mxu0
    %v2720 = vadd.f32 0.0, %v2719
    %v2721 = vpop.f32.mrb[0].mxu0
    %v2722 = vpop.f32.mrb[0].mxu0
    %v2723 = vadd.f32 0.0, %v2722
    %v2724 = vpop.f32.mrb[0].mxu0
    %2725 = vmatprep.mubr.bf16.mxu0 0
    %2726 = vmatmul.mubr.bf16.gmra.mrb[0].mxu0 %v2545
    %v2727 = vpop.f32.mrb[0].mxu0
    %v2728 = vadd.f32 0.0, %v2727
    %v2729 = vpop.f32.mrb[0].mxu0
    %v2730 = vpop.f32.mrb[0].mxu0
    %v2731 = vadd.f32 0.0, %v2730
    %v2732 = vpop.f32.mrb[0].mxu0
    %2733 = vmatprep.mubr.bf16.mxu0 0
    %2734 = vmatmul.mubr.bf16.gmra.mrb[0].mxu0 %v2548
    %v2735 = vpop.f32.mrb[0].mxu0
    %v2736 = vadd.f32 0.0, %v2735
    %v2737 = vpop.f32.mrb[0].mxu0
    %v2738 = vpop.f32.mrb[0].mxu0
    %v2739 = vadd.f32 0.0, %v2738
    %v2740 = vpop.f32.mrb[0].mxu0
    %2741 = vmatprep.mubr.bf16.mxu0 0
    %2742 = vmatmul.mubr.bf16.gmra.mrb[0].mxu0 %v2551
    %v2743 = vpop.f32.mrb[0].mxu0
    %v2744 = vadd.f32 0.0, %v2743
    %v2745 = vpop.f32.mrb[0].mxu0
    %v2746 = vpop.f32.mrb[0].mxu0
    %v2747 = vadd.f32 0.0, %v2746
    %v2748 = vpop.f32.mrb[0].mxu0
    %2749 = vmatprep.mubr.bf16.mxu0 0
    %2750 = vmatmul.mubr.bf16.gmra.mrb[0].mxu0 %v2554
    %v2751 = vpop.f32.mrb[0].mxu0
    %v2752 = vadd.f32 0.0, %v2751
    %v2753 = vpop.f32.mrb[0].mxu0
    %v2754 = vpop.f32.mrb[0].mxu0
    %v2755 = vadd.f32 0.0, %v2754
    %v2756 = vpop.f32.mrb[0].mxu0
    %2757 = vmatprep.mubr.bf16.mxu0 0
    %2758 = vmatmul.mubr.bf16.gmra.mrb[0].mxu0 %v2557
    %v2759 = vpop.f32.mrb[0].mxu0
    %v2760 = vadd.f32 0.0, %v2759
    %v2761 = vpop.f32.mrb[0].mxu0
    %v2762 = vpop.f32.mrb[0].mxu0
    %v2763 = vadd.f32 0.0, %v2762
    %v2764 = vpop.f32.mrb[0].mxu0
    %2765 = vmatprep.mubr.bf16.mxu0 0
    %2766 = vmatmul.mubr.bf16.gmra.mrb[0].mxu0 %v2560
    %v2767 = vpop.f32.mrb[0].mxu0
    %v2768 = vadd.f32 0.0, %v2767
    %v2769 = vpop.f32.mrb[0].mxu0
    %v2770 = vpop.f32.mrb[0].mxu0
    %v2771 = vadd.f32 0.0, %v2770
    %v2772 = vpop.f32.mrb[0].mxu0
    %2773 = vmatprep.mubr.bf16.mxu0 0
    %2774 = vmatmul.mubr.bf16.gmra.mrb[0].mxu0 %v2563
    %v2775 = vpop.f32.mrb[0].mxu0
    %v2776 = vadd.f32 0.0, %v2775
    %v2777 = vpop.f32.mrb[0].mxu0
    %v2778 = vpop.f32.mrb[0].mxu0
    %v2779 = vadd.f32 0.0, %v2778
    %v2780 = vpop.f32.mrb[0].mxu0
    %2781 = vmatprep.mubr.bf16.mxu0 0
    %2782 = vmatmul.mubr.bf16.gmra.mrb[0].mxu0 %v2566
    %v2783 = vpop.f32.mrb[0].mxu0
    %v2784 = vadd.f32 0.0, %v2783
    %v2785 = vpop.f32.mrb[0].mxu0
    %v2786 = vpop.f32.mrb[0].mxu0
    %v2787 = vadd.f32 0.0, %v2786
    %v2788 = vpop.f32.mrb[0].mxu0
    %2789 = vmatprep.mubr.bf16.mxu0 0
    %2790 = vmatmul.mubr.bf16.gmra.mrb[0].mxu0 %v2569
    %v2791 = vpop.f32.mrb[0].mxu0
    %v2792 = vadd.f32 0.0, %v2791
    %v2793 = vpop.f32.mrb[0].mxu0
    %v2794 = vpop.f32.mrb[0].mxu0
    %v2795 = vadd.f32 0.0, %v2794
    %v2796 = vpop.f32.mrb[0].mxu0
    %2797 = vmatprep.mubr.bf16.mxu0 0
    %2798 = vmatmul.mubr.bf16.gmra.mrb[0].mxu0 %v2572
    %v2799 = vpop.f32.mrb[0].mxu0
    %v2800 = vadd.f32 0.0, %v2799
    %v2801 = vpop.f32.mrb[0].mxu0
    %v2802 = vpop.f32.mrb[0].mxu0
    %v2803 = vadd.f32 0.0, %v2802
    %v2804 = vpop.f32.mrb[0].mxu0
    %2805 = vmatprep.mubr.bf16.mxu0 0
    %2806 = vmatmul.mubr.bf16.gmra.mrb[0].mxu0 %v2575
    %v2807 = vpop.f32.mrb[0].mxu0
    %v2808 = vadd.f32 0.0, %v2807
    %v2809 = vpop.f32.mrb[0].mxu0
    %v2810 = vpop.f32.mrb[0].mxu0
    %v2811 = vadd.f32 0.0, %v2810
    %v2812 = vpop.f32.mrb[0].mxu0
    %2813 = vmatprep.mubr.bf16.mxu0 0
    %2814 = vmatmul.mubr.bf16.gmra.mrb[0].mxu0 %v2578
    %v2815 = vpop.f32.mrb[0].mxu0
    %v2816 = vadd.f32 0.0, %v2815
    %v2817 = vpop.f32.mrb[0].mxu0
    %v2818 = vpop.f32.mrb[0].mxu0
    %v2819 = vadd.f32 0.0, %v2818
    %v2820 = vpop.f32.mrb[0].mxu0
    %2821 = vmatprep.mubr.bf16.mxu0 0
    %2822 = vmatmul.mubr.bf16.gmra.mrb[0].mxu0 %v2581
    %v2823 = vpop.f32.mrb[0].mxu0
    %v2824 = vadd.f32 0.0, %v2823
    %v2825 = vpop.f32.mrb[0].mxu0
    %v2826 = vpop.f32.mrb[0].mxu0
    %v2827 = vadd.f32 0.0, %v2826
    %v2828 = vpop.f32.mrb[0].mxu0
    %2829 = vmatprep.mubr.bf16.mxu0 0
    %2830 = vmatmul.mubr.bf16.gmra.mrb[0].mxu0 %v2584
    %v2831 = vpop.f32.mrb[0].mxu0
    %v2832 = vadd.f32 0.0, %v2831
    %v2833 = vpop.f32.mrb[0].mxu0
    %v2834 = vpop.f32.mrb[0].mxu0
    %v2835 = vadd.f32 0.0, %v2834
    %v2836 = vpop.f32.mrb[0].mxu0
    %2837 = vmatprep.mubr.bf16.mxu0 0
    %2838 = vmatmul.mubr.bf16.gmra.mrb[0].mxu0 %v2587
    %v2839 = vpop.f32.mrb[0].mxu0
    %v2840 = vadd.f32 0.0, %v2839
    %v2841 = vpop.f32.mrb[0].mxu0
    %v2842 = vpop.f32.mrb[0].mxu0
    %v2843 = vadd.f32 0.0, %v2842
    %v2844 = vpop.f32.mrb[0].mxu0
    %2845 = vdwg.mxu0
    %2847 = vrot.lane.b32.xlu0 %v673, 96
    %v2848 = vpop.permute.xlu0 %2847
    %v2850 = vmul.f32 %v2472, %v2848
    %2907 = vrot.lane.b32.xlu0 %v797, 96
    %v2908 = vpop.permute.xlu0 %2907
    %2909 = vrot.lane.b32.xlu0 %v800, 96
    %v2910 = vpop.permute.xlu0 %2909
    %2911 = vrot.lane.b32.xlu0 %v805, 96
    %v2912 = vpop.permute.xlu0 %2911
    %2913 = vrot.lane.b32.xlu0 %v808, 96
    %v2914 = vpop.permute.xlu0 %2913
    %2915 = vrot.lane.b32.xlu0 %v813, 96
    %v2916 = vpop.permute.xlu0 %2915
    %2917 = vrot.lane.b32.xlu0 %v816, 96
    %v2918 = vpop.permute.xlu0 %2917
    %2919 = vrot.lane.b32.xlu0 %v821, 96
    %v2920 = vpop.permute.xlu0 %2919
    %2921 = vrot.lane.b32.xlu0 %v824, 96
    %v2922 = vpop.permute.xlu0 %2921
    %2923 = vrot.lane.b32.xlu0 %v829, 96
    %v2924 = vpop.permute.xlu0 %2923
    %2925 = vrot.lane.b32.xlu0 %v832, 96
    %v2926 = vpop.permute.xlu0 %2925
    %2927 = vrot.lane.b32.xlu0 %v837, 96
    %v2928 = vpop.permute.xlu0 %2927
    %2929 = vrot.lane.b32.xlu0 %v840, 96
    %v2930 = vpop.permute.xlu0 %2929
    %2931 = vrot.lane.b32.xlu0 %v845, 96
    %v2932 = vpop.permute.xlu0 %2931
    %2933 = vrot.lane.b32.xlu0 %v848, 96
    %v2934 = vpop.permute.xlu0 %2933
    %2935 = vrot.lane.b32.xlu0 %v853, 96
    %v2936 = vpop.permute.xlu0 %2935
    %2937 = vrot.lane.b32.xlu0 %v856, 96
    %v2938 = vpop.permute.xlu0 %2937
    %2939 = vrot.lane.b32.xlu0 %v861, 96
    %v2940 = vpop.permute.xlu0 %2939
    %2941 = vrot.lane.b32.xlu0 %v864, 96
    %v2942 = vpop.permute.xlu0 %2941
    %2943 = vrot.lane.b32.xlu0 %v869, 96
    %v2944 = vpop.permute.xlu0 %2943
    %2945 = vrot.lane.b32.xlu0 %v872, 96
    %v2946 = vpop.permute.xlu0 %2945
    %2947 = vrot.lane.b32.xlu0 %v877, 96
    %v2948 = vpop.permute.xlu0 %2947
    %2949 = vrot.lane.b32.xlu0 %v880, 96
    %v2950 = vpop.permute.xlu0 %2949
    %2951 = vrot.lane.b32.xlu0 %v885, 96
    %v2952 = vpop.permute.xlu0 %2951
    %2953 = vrot.lane.b32.xlu0 %v888, 96
    %v2954 = vpop.permute.xlu0 %2953
    %2955 = vrot.lane.b32.xlu0 %v893, 96
    %v2956 = vpop.permute.xlu0 %2955
    %2957 = vrot.lane.b32.xlu0 %v896, 96
    %v2958 = vpop.permute.xlu0 %2957
    %2959 = vrot.lane.b32.xlu0 %v901, 96
    %v2960 = vpop.permute.xlu0 %2959
    %2961 = vrot.lane.b32.xlu0 %v904, 96
    %v2962 = vpop.permute.xlu0 %2961
    %2963 = vrot.lane.b32.xlu0 %v909, 96
    %v2964 = vpop.permute.xlu0 %2963
    %2965 = vrot.lane.b32.xlu0 %v912, 96
    %v2966 = vpop.permute.xlu0 %2965
    %2967 = vrot.lane.b32.xlu0 %v917, 96
    %v2968 = vpop.permute.xlu0 %2967
    %2969 = vrot.lane.b32.xlu0 %v920, 96
    %v2970 = vpop.permute.xlu0 %2969
    %2971 = vrot.lane.b32.xlu0 %v925, 96
    %v2972 = vpop.permute.xlu0 %2971
    %2973 = vrot.lane.b32.xlu0 %v928, 96
    %v2974 = vpop.permute.xlu0 %2973
    %2975 = vrot.lane.b32.xlu0 %v933, 96
    %v2976 = vpop.permute.xlu0 %2975
    %2977 = vrot.lane.b32.xlu0 %v936, 96
    %v2978 = vpop.permute.xlu0 %2977
    %2979 = vrot.lane.b32.xlu0 %v941, 96
    %v2980 = vpop.permute.xlu0 %2979
    %2981 = vrot.lane.b32.xlu0 %v944, 96
    %v2982 = vpop.permute.xlu0 %2981
    %2983 = vrot.lane.b32.xlu0 %v949, 96
    %v2984 = vpop.permute.xlu0 %2983
    %2985 = vrot.lane.b32.xlu0 %v952, 96
    %v2986 = vpop.permute.xlu0 %2985
    %2987 = vrot.lane.b32.xlu0 %v957, 96
    %v2988 = vpop.permute.xlu0 %2987
    %2989 = vrot.lane.b32.xlu0 %v960, 96
    %v2990 = vpop.permute.xlu0 %2989
    %2991 = vrot.lane.b32.xlu0 %v965, 96
    %v2992 = vpop.permute.xlu0 %2991
    %2993 = vrot.lane.b32.xlu0 %v968, 96
    %v2994 = vpop.permute.xlu0 %2993
    %2995 = vrot.lane.b32.xlu0 %v973, 96
    %v2996 = vpop.permute.xlu0 %2995
    %2997 = vrot.lane.b32.xlu0 %v976, 96
    %v2998 = vpop.permute.xlu0 %2997
    %2999 = vrot.lane.b32.xlu0 %v981, 96
    %v3000 = vpop.permute.xlu0 %2999
    %3001 = vrot.lane.b32.xlu0 %v984, 96
    %v3002 = vpop.permute.xlu0 %3001
    %3003 = vrot.lane.b32.xlu0 %v989, 96
    %v3004 = vpop.permute.xlu0 %3003
    %3005 = vrot.lane.b32.xlu0 %v992, 96
    %v3006 = vpop.permute.xlu0 %3005
    %3007 = vrot.lane.b32.xlu0 %v997, 96
    %v3008 = vpop.permute.xlu0 %3007
    %3009 = vrot.lane.b32.xlu0 %v1000, 96
    %v3010 = vpop.permute.xlu0 %3009
    %3011 = vrot.lane.b32.xlu0 %v1005, 96
    %v3012 = vpop.permute.xlu0 %3011
    %3013 = vrot.lane.b32.xlu0 %v1008, 96
    %v3014 = vpop.permute.xlu0 %3013
    %3015 = vrot.lane.b32.xlu0 %v1013, 96
    %v3016 = vpop.permute.xlu0 %3015
    %3017 = vrot.lane.b32.xlu0 %v1016, 96
    %v3018 = vpop.permute.xlu0 %3017
    %v3075 = vmul.f32 %v2624, %v2908
    %v3076 = vmul.f32 %v2627, %v2910
    %v3077 = vmul.f32 %v2632, %v2912
    %v3078 = vmul.f32 %v2635, %v2914
    %v3079 = vmul.f32 %v2640, %v2916
    %v3080 = vmul.f32 %v2643, %v2918
    %v3081 = vmul.f32 %v2648, %v2920
    %v3082 = vmul.f32 %v2651, %v2922
    %v3083 = vmul.f32 %v2656, %v2924
    %v3084 = vmul.f32 %v2659, %v2926
    %v3085 = vmul.f32 %v2664, %v2928
    %v3086 = vmul.f32 %v2667, %v2930
    %v3087 = vmul.f32 %v2672, %v2932
    %v3088 = vmul.f32 %v2675, %v2934
    %v3089 = vmul.f32 %v2680, %v2936
    %v3090 = vmul.f32 %v2683, %v2938
    %v3091 = vmul.f32 %v2688, %v2940
    %v3092 = vmul.f32 %v2691, %v2942
    %v3093 = vmul.f32 %v2696, %v2944
    %v3094 = vmul.f32 %v2699, %v2946
    %v3095 = vmul.f32 %v2704, %v2948
    %v3096 = vmul.f32 %v2707, %v2950
    %v3097 = vmul.f32 %v2712, %v2952
    %v3098 = vmul.f32 %v2715, %v2954
    %v3099 = vmul.f32 %v2720, %v2956
    %v3100 = vmul.f32 %v2723, %v2958
    %v3101 = vmul.f32 %v2728, %v2960
    %v3102 = vmul.f32 %v2731, %v2962
    %v3103 = vmul.f32 %v2736, %v2964
    %v3104 = vmul.f32 %v2739, %v2966
    %v3105 = vmul.f32 %v2744, %v2968
    %v3106 = vmul.f32 %v2747, %v2970
    %v3107 = vmul.f32 %v2752, %v2972
    %v3108 = vmul.f32 %v2755, %v2974
    %v3109 = vmul.f32 %v2760, %v2976
    %v3110 = vmul.f32 %v2763, %v2978
    %v3111 = vmul.f32 %v2768, %v2980
    %v3112 = vmul.f32 %v2771, %v2982
    %v3113 = vmul.f32 %v2776, %v2984
    %v3114 = vmul.f32 %v2779, %v2986
    %v3115 = vmul.f32 %v2784, %v2988
    %v3116 = vmul.f32 %v2787, %v2990
    %v3117 = vmul.f32 %v2792, %v2992
    %v3118 = vmul.f32 %v2795, %v2994
    %v3119 = vmul.f32 %v2800, %v2996
    %v3120 = vmul.f32 %v2803, %v2998
    %v3121 = vmul.f32 %v2808, %v3000
    %v3122 = vmul.f32 %v2811, %v3002
    %v3123 = vmul.f32 %v2816, %v3004
    %v3124 = vmul.f32 %v2819, %v3006
    %v3125 = vmul.f32 %v2824, %v3008
    %v3126 = vmul.f32 %v2827, %v3010
    %v3127 = vmul.f32 %v2832, %v3012
    %v3128 = vmul.f32 %v2835, %v3014
    %v3129 = vmul.f32 %v2840, %v3016
    %v3130 = vmul.f32 %v2843, %v3018
    %v3131 = vsel %vm235, %v3075, 0.0
    %v3132 = vsel %vm235, %v3076, 0.0
    %v3133 = vadd.f32 %v3131, %v3132
    %v3134 = vsel %vm235, %v3077, 0.0
    %v3135 = vadd.f32 %v3133, %v3134
    %v3136 = vsel %vm235, %v3078, 0.0
    %v3137 = vadd.f32 %v3135, %v3136
    %v3138 = vsel %vm235, %v3079, 0.0
    %v3139 = vadd.f32 %v3137, %v3138
    %v3140 = vsel %vm235, %v3080, 0.0
    %v3141 = vadd.f32 %v3139, %v3140
    %v3142 = vsel %vm235, %v3081, 0.0
    %v3143 = vadd.f32 %v3141, %v3142
    %v3144 = vrot.slane %v3143, 4
    %v3145 = vadd.f32 %v3143, %v3144
    %v3146 = vrot.slane %v3145, 2
    %v3147 = vadd.f32 %v3145, %v3146
    %v3148 = vrot.slane %v3147, 1
    %v3149 = vadd.f32 %v3147, %v3148
    %v3150 = vsel %vm235, %v3082, 0.0
    %v3151 = vsel %vm235, %v3083, 0.0
    %v3152 = vadd.f32 %v3150, %v3151
    %v3153 = vsel %vm235, %v3084, 0.0
    %v3154 = vadd.f32 %v3152, %v3153
    %v3155 = vsel %vm235, %v3085, 0.0
    %v3156 = vadd.f32 %v3154, %v3155
    %v3157 = vsel %vm235, %v3086, 0.0
    %v3158 = vadd.f32 %v3156, %v3157
    %v3159 = vsel %vm235, %v3087, 0.0
    %v3160 = vadd.f32 %v3158, %v3159
    %v3161 = vsel %vm235, %v3088, 0.0
    %v3162 = vadd.f32 %v3160, %v3161
    %v3163 = vrot.slane %v3162, 4
    %v3164 = vadd.f32 %v3162, %v3163
    %v3165 = vrot.slane %v3164, 2
    %v3166 = vadd.f32 %v3164, %v3165
    %v3167 = vrot.slane %v3166, 1
    %v3168 = vadd.f32 %v3166, %v3167
    %v3169 = vsel %vm235, %v3089, 0.0
    %v3170 = vsel %vm235, %v3090, 0.0
    %v3171 = vadd.f32 %v3169, %v3170
    %v3172 = vsel %vm235, %v3091, 0.0
    %v3173 = vadd.f32 %v3171, %v3172
    %v3174 = vsel %vm235, %v3092, 0.0
    %v3175 = vadd.f32 %v3173, %v3174
    %v3176 = vsel %vm235, %v3093, 0.0
    %v3177 = vadd.f32 %v3175, %v3176
    %v3178 = vsel %vm235, %v3094, 0.0
    %v3179 = vadd.f32 %v3177, %v3178
    %v3180 = vsel %vm235, %v3095, 0.0
    %v3181 = vadd.f32 %v3179, %v3180
    %v3182 = vrot.slane %v3181, 4
    %v3183 = vadd.f32 %v3181, %v3182
    %v3184 = vrot.slane %v3183, 2
    %v3185 = vadd.f32 %v3183, %v3184
    %v3186 = vrot.slane %v3185, 1
    %v3187 = vadd.f32 %v3185, %v3186
    %v3188 = vsel %vm235, %v3096, 0.0
    %v3189 = vsel %vm235, %v3097, 0.0
    %v3190 = vadd.f32 %v3188, %v3189
    %v3191 = vsel %vm235, %v3098, 0.0
    %v3192 = vadd.f32 %v3190, %v3191
    %v3193 = vsel %vm235, %v3099, 0.0
    %v3194 = vadd.f32 %v3192, %v3193
    %v3195 = vsel %vm235, %v3100, 0.0
    %v3196 = vadd.f32 %v3194, %v3195
    %v3197 = vsel %vm235, %v3101, 0.0
    %v3198 = vadd.f32 %v3196, %v3197
    %v3199 = vsel %vm235, %v3102, 0.0
    %v3200 = vadd.f32 %v3198, %v3199
    %v3201 = vrot.slane %v3200, 4
    %v3202 = vadd.f32 %v3200, %v3201
    %v3203 = vrot.slane %v3202, 2
    %v3204 = vadd.f32 %v3202, %v3203
    %v3205 = vrot.slane %v3204, 1
    %v3206 = vadd.f32 %v3204, %v3205
    %v3207 = vsel %vm235, %v3103, 0.0
    %v3208 = vsel %vm235, %v3104, 0.0
    %v3209 = vadd.f32 %v3207, %v3208
    %v3210 = vsel %vm235, %v3105, 0.0
    %v3211 = vadd.f32 %v3209, %v3210
    %v3212 = vsel %vm235, %v3106, 0.0
    %v3213 = vadd.f32 %v3211, %v3212
    %v3214 = vsel %vm235, %v3107, 0.0
    %v3215 = vadd.f32 %v3213, %v3214
    %v3216 = vsel %vm235, %v3108, 0.0
    %v3217 = vadd.f32 %v3215, %v3216
    %v3218 = vsel %vm235, %v3109, 0.0
    %v3219 = vadd.f32 %v3217, %v3218
    %v3220 = vrot.slane %v3219, 4
    %v3221 = vadd.f32 %v3219, %v3220
    %v3222 = vrot.slane %v3221, 2
    %v3223 = vadd.f32 %v3221, %v3222
    %v3224 = vrot.slane %v3223, 1
    %v3225 = vadd.f32 %v3223, %v3224
    %v3226 = vsel %vm235, %v3110, 0.0
    %v3227 = vsel %vm235, %v3111, 0.0
    %v3228 = vadd.f32 %v3226, %v3227
    %v3229 = vsel %vm235, %v3112, 0.0
    %v3230 = vadd.f32 %v3228, %v3229
    %v3231 = vsel %vm235, %v3113, 0.0
    %v3232 = vadd.f32 %v3230, %v3231
    %v3233 = vsel %vm235, %v3114, 0.0
    %v3234 = vadd.f32 %v3232, %v3233
    %v3235 = vsel %vm235, %v3115, 0.0
    %v3236 = vadd.f32 %v3234, %v3235
    %v3237 = vsel %vm235, %v3116, 0.0
    %v3238 = vadd.f32 %v3236, %v3237
    %v3239 = vrot.slane %v3238, 4
    %v3240 = vadd.f32 %v3238, %v3239
    %v3241 = vrot.slane %v3240, 2
    %v3242 = vadd.f32 %v3240, %v3241
    %v3243 = vrot.slane %v3242, 1
    %v3244 = vadd.f32 %v3242, %v3243
    %v3245 = vsel %vm235, %v3117, 0.0
    %v3246 = vsel %vm235, %v3118, 0.0
    %v3247 = vadd.f32 %v3245, %v3246
    %v3248 = vsel %vm235, %v3119, 0.0
    %v3249 = vadd.f32 %v3247, %v3248
    %v3250 = vsel %vm235, %v3120, 0.0
    %v3251 = vadd.f32 %v3249, %v3250
    %v3252 = vsel %vm235, %v3121, 0.0
    %v3253 = vadd.f32 %v3251, %v3252
    %v3254 = vsel %vm235, %v3122, 0.0
    %v3255 = vadd.f32 %v3253, %v3254
    %v3256 = vsel %vm235, %v3123, 0.0
    %v3257 = vadd.f32 %v3255, %v3256
    %v3258 = vrot.slane %v3257, 4
    %v3259 = vadd.f32 %v3257, %v3258
    %v3260 = vrot.slane %v3259, 2
    %v3261 = vadd.f32 %v3259, %v3260
    %v3262 = vrot.slane %v3261, 1
    %v3263 = vadd.f32 %v3261, %v3262
    %v3264 = vsel %vm235, %v3124, 0.0
    %v3265 = vsel %vm235, %v3125, 0.0
    %v3266 = vadd.f32 %v3264, %v3265
    %v3267 = vsel %vm235, %v3126, 0.0
    %v3268 = vadd.f32 %v3266, %v3267
    %v3269 = vsel %vm235, %v3127, 0.0
    %v3270 = vadd.f32 %v3268, %v3269
    %v3271 = vsel %vm235, %v3128, 0.0
    %v3272 = vadd.f32 %v3270, %v3271
    %v3273 = vsel %vm235, %v3129, 0.0
    %v3274 = vadd.f32 %v3272, %v3273
    %v3275 = vsel %vm235, %v3130, 0.0
    %v3276 = vadd.f32 %v3274, %v3275
    %v3277 = vrot.slane %v3276, 4
    %v3278 = vadd.f32 %v3276, %v3277
    %v3279 = vrot.slane %v3278, 2
    %v3280 = vadd.f32 %v3278, %v3279
    %v3281 = vrot.slane %v3280, 1
    %v3282 = vadd.f32 %v3280, %v3281
    %v3291 = vsel %vm538, %v3168, %v3149
    %v3292 = vsel %vm541, %v3187, %v3291
    %v3293 = vsel %vm544, %v3206, %v3292
    %v3294 = vsel %vm547, %v3225, %v3293
    %v3295 = vsel %vm550, %v3244, %v3294
    %v3296 = vsel %vm553, %v3263, %v3295
    %v3297 = vsel %vm556, %v3282, %v3296
    %v3299 = vadd.f32 %v2850, %v3297
    %v3300 = vpack.c.bf16 %v3299, %v3299
    %v3301 = vld [vmem:[#allocation14] sm:$0xf]
    %v3302 = vld [vmem:[#allocation14 + $0x4] sm:$0xf]
    %v3303 = vld [vmem:[#allocation14 + $0x8] sm:$0xf]
    %v3304 = vld [vmem:[#allocation14 + $0xc] sm:$0xf]
    %v3305 = vld [vmem:[#allocation16] sm:$0x1]
    %v3307 = vlaneseq
    %v3308 = vshrl.u32 %v3307, 7
    %v3309 = vsub.s32 0, %v3308
    %v3310 = vrot.slane %v3305, %v3309
    %v3316 = vunpack.c.l.b16 %v3301
    %v3317 = vunpack.c.l.b16 %v3302
    %v3318 = vunpack.c.l.b16 %v3303
    %v3319 = vunpack.c.l.b16 %v3304
    %v3320 = vpack.c.b16 %v3317, %v3316
    %v3321 = vpack.c.b16 %v3319, %v3318
    %v3325 = vsel %vm235, %v3300, 0
    %3327 = vmatprep.subr.bf16.mxu0 0
    %3328 = vmatpush1.bf16.msra.mxu0 %v3320
    %3329 = vmatprep.subr.bf16.mxu0 0
    %3330 = vmatpush1.bf16.msra.mxu0 %v3321
    %3331 = vmatprep.subr.bf16.mxu0 0
    %3332 = vmatpush1.bf16.msra.mxu0 0
    %3333 = vmatprep.subr.bf16.mxu0 0
    %3334 = vmatpush1.bf16.msra.mxu0 0
    %3335 = vmatprep.subr.bf16.mxu0 0
    %3336 = vmatpush1.bf16.msra.mxu0 0
    %3337 = vmatprep.subr.bf16.mxu0 0
    %3338 = vmatpush1.bf16.msra.mxu0 0
    %3339 = vmatprep.subr.bf16.mxu0 0
    %3340 = vmatpush1.bf16.msra.mxu0 0
    %3341 = vmatprep.subr.bf16.mxu0 0
    %3342 = vmatpush1.bf16.msra.mxu0 0
    %3343 = vmatprep.subr.bf16.mxu0 0
    %3344 = vmatpush1.bf16.msra.mxu0 0
    %3345 = vmatprep.subr.bf16.mxu0 0
    %3346 = vmatpush1.bf16.msra.mxu0 0
    %3347 = vmatprep.subr.bf16.mxu0 0
    %3348 = vmatpush1.bf16.msra.mxu0 0
    %3349 = vmatprep.subr.bf16.mxu0 0
    %3350 = vmatpush1.bf16.msra.mxu0 0
    %3351 = vmatprep.subr.bf16.mxu0 0
    %3352 = vmatpush1.bf16.msra.mxu0 0
    %3353 = vmatprep.subr.bf16.mxu0 0
    %3354 = vmatpush1.bf16.msra.mxu0 0
    %3355 = vmatprep.subr.bf16.mxu0 0
    %3356 = vmatpush1.bf16.msra.mxu0 0
    %3357 = vmatprep.subr.bf16.mxu0 0
    %3358 = vmatpush1.bf16.msra.mxu0 0
    %3359 = vmatprep.mubr.bf16.mxu0 0
    %3360 = vmatmul.mubr.bf16.gmra.mrb[0].mxu0 %v3325
    %v3361 = vpop.f32.mrb[0].mxu0
    %v3362 = vadd.f32 %v3310, %v3361
    %v3363 = vpop.f32.mrb[0].mxu0
    %v3364 = vpop.f32.mrb[0].mxu0
    %v3365 = vpop.f32.mrb[0].mxu0
    %3366 = vdwg.mxu0
    %3367 = vst [vmem:[#allocation20] sm:$0xff] %v3362
    // Predicated region
    $region90: #{tpu_custom_call.1} parent=1 // pred_check
      _
    $region91: #{tpu_custom_call.1} parent=1 // pred_check_branch
      %3369 = sbr.rel (0) target = $region93
    $region92: #{tpu_custom_call.1} parent=1 // pred_region
      %s3371 = ssub.s32 128, 128
      %3372 = vsyncadd [#allocation4], %s3371
      %s3374 = sshll.u32 [#allocation20], 4
      %s3375 = int_to_ptr.vmem [resolvable:$true] %s3374
      %3377 = dma.vmem_to_hbm [thread:$0]  %s3375, 128, %s11, [#allocation4]
    $region93: #{tpu_custom_call.1} parent=1 // pred_fallthru
      _
    // Predicated region
    $region94: #{tpu_custom_call.1} parent=1 // pred_check
      _
    $region95: #{tpu_custom_call.1} parent=1 // pred_check_branch
      %3379 = sbr.rel (0) target = $region97
    $region96: #{tpu_custom_call.1} parent=1 // pred_region
      %3380 = dma.done [#allocation4], 128
    $region97: #{tpu_custom_call.1} parent=1 // pred_fallthru
      _
    %3381 = vsyncpa [#allocation3], 1
    %3382 = vsyncpa [#allocation6], 1
    %3383 = vsyncpa [#allocation9], 1
    %3384 = vsyncpa [#allocation12], 1
    %3385 = vsyncpa [#allocation15], 1
    %3386 = vsyncpa [#allocation18], 1
    %3387 = vsyncpa [#allocation4], 1

// kernel: tpu_custom_call.1
$region0: #{tpu_custom_call.1}
  #allocation0 [shape = 'u32[]', space=smem, size = 0x4, offset = 0x4, fixed_abs, tag = 'smem constant byte address 0x4 - core index']
  #allocation1 [shape = 'u32[144,128]{1,0:T(1,128)}', space=vmem, size = 0x12000, scoped, tag = 'internal scratch']
  %s0 = inlined_call_operand.hbm [shape: f32[8,56,32], index: 0, kind: input, shape index: {}]
  %s1 = inlined_call_operand.hbm [shape: f32[1,32], index: 1, kind: input, shape index: {}]
  %s2 = inlined_call_operand.hbm [shape: f32[56,32], index: 2, kind: input, shape index: {}]
  %s3 = inlined_call_operand.hbm [shape: bf16[32,32], index: 3, kind: input, shape index: {}]
  %s4 = inlined_call_operand.hbm [shape: f32[1,32], index: 4, kind: input, shape index: {}]
  %s5 = inlined_call_operand.hbm [shape: bf16[32,64], index: 5, kind: input, shape index: {}]
  %s6 = inlined_call_operand.hbm [shape: f32[1,64], index: 6, kind: input, shape index: {}]
  %s7 = inlined_call_operand.hbm [shape: bf16[32,128], index: 7, kind: input, shape index: {}]
  %s8 = inlined_call_operand.hbm [shape: f32[1,128], index: 8, kind: input, shape index: {}]
  %s9 = inlined_call_operand.hbm [shape: bf16[32,4], index: 9, kind: input, shape index: {}]
  %s10 = inlined_call_operand.hbm [shape: bf16[4,32], index: 10, kind: input, shape index: {}]
  %s11 = inlined_call_operand.hbm [shape: f32[8,128], index: 11, kind: output, shape index: {}]
  %s12 = sld [smem:[#allocation0]]
  $region98: #{tpu_custom_call.1} parent=0
    _
  %s14 = ssub.s32 1, %s12
  %s15 = scalar_select 0, %s14, %s12
  $region1: #{tpu_custom_call.1} parent=0
    #allocation2 [shape = 'u8[229376]{0}', space=vmem, size = 0x38000, scoped, tag = 'input window, operand 0, single buffered']
    #allocation3 [shape = 's32[1]{0}', space=sflag, size = 0x4, scoped, tag = 'scoped memory for tpu_custom_call.1']
    #allocation4 [shape = 's32[1]{0}', space=sflag, size = 0x4, scoped, tag = 'scoped memory for tpu_custom_call.1']
    #allocation5 [shape = 'u8[512]{0}', space=vmem, size = 0x400, scoped, tag = 'input window, operand 1, single buffered']
    #allocation6 [shape = 's32[1]{0}', space=sflag, size = 0x4, scoped, tag = 'scoped memory for tpu_custom_call.1']
    #allocation7 [shape = 'u8[28672]{0}', space=vmem, size = 0x7000, scoped, tag = 'input window, operand 2, single buffered']
    #allocation8 [shape = 'u8[8192]{0}', space=vmem, size = 0x2000, scoped, tag = 'input window, operand 3, single buffered']
    #allocation9 [shape = 's32[1]{0}', space=sflag, size = 0x4, scoped, tag = 'scoped memory for tpu_custom_call.1']
    #allocation10 [shape = 'u8[512]{0}', space=vmem, size = 0x400, scoped, tag = 'input window, operand 4, single buffered']
    #allocation11 [shape = 'u8[8192]{0}', space=vmem, size = 0x2000, scoped, tag = 'input window, operand 5, single buffered']
    #allocation12 [shape = 's32[1]{0}', space=sflag, size = 0x4, scoped, tag = 'scoped memory for tpu_custom_call.1']
    #allocation13 [shape = 'u8[512]{0}', space=vmem, size = 0x400, scoped, tag = 'input window, operand 6, single buffered']
    #allocation14 [shape = 'u8[8192]{0}', space=vmem, size = 0x2000, scoped, tag = 'input window, operand 7, single buffered']
    #allocation15 [shape = 's32[1]{0}', space=sflag, size = 0x4, scoped, tag = 'scoped memory for tpu_custom_call.1']
    #allocation16 [shape = 'u8[512]{0}', space=vmem, size = 0x400, scoped, tag = 'input window, operand 8, single buffered']
    #allocation17 [shape = 'u8[8192]{0}', space=vmem, size = 0x2000, scoped, tag = 'input window, operand 9, single buffered']
    #allocation18 [shape = 's32[1]{0}', space=sflag, size = 0x4, scoped, tag = 'scoped memory for tpu_custom_call.1']
    #allocation19 [shape = 'u8[1024]{0}', space=vmem, size = 0x400, scoped, tag = 'input window, operand 10, single buffered']
    #allocation20 [shape = 'u8[4096]{0}', space=vmem, size = 0x1000, scoped, tag = 'output window, operand 0, single buffered']
    %16 = vsyncpa [#allocation3], 0
    %17 = vsyncpa [#allocation6], 0
    %18 = vsyncpa [#allocation9], 0
    %19 = vsyncpa [#allocation12], 0
    %20 = vsyncpa [#allocation15], 0
    %21 = vsyncpa [#allocation18], 0
    %22 = vsyncpa [#allocation4], 0
    // Predicated region
    $region2: #{tpu_custom_call.1} parent=1 // pred_check
      _
    $region3: #{tpu_custom_call.1} parent=1 // pred_check_branch
      %24 = sbr.rel (0) target = $region5
    $region4: #{tpu_custom_call.1} parent=1 // pred_region
      %s26 = ssub.s32 7168, 7168
      %27 = vsyncadd [#allocation3], %s26
      %s28 = sshll.u32 [#allocation2], 4
      %s29 = int_to_ptr.vmem [resolvable:$true] %s28
      %34 = dma.hbm_to_vmem [thread:$0]  %s0, 7168, %s29, [#allocation3], 128, 128, 8
    $region5: #{tpu_custom_call.1} parent=1 // pred_fallthru
      _
    // Predicated region
    $region6: #{tpu_custom_call.1} parent=1 // pred_check
      _
    $region7: #{tpu_custom_call.1} parent=1 // pred_check_branch
      %36 = sbr.rel (0) target = $region9
    $region8: #{tpu_custom_call.1} parent=1 // pred_region
      %s38 = ssub.s32 16, 16
      %39 = vsyncadd [#allocation6], %s38
      %s41 = sshll.u32 [#allocation5], 4
      %s42 = int_to_ptr.vmem [resolvable:$true] %s41
      %44 = dma.hbm_to_vmem [thread:$0]  %s1, 16, %s42, [#allocation6]
    $region9: #{tpu_custom_call.1} parent=1 // pred_fallthru
      _
    // Predicated region
    $region10: #{tpu_custom_call.1} parent=1 // pred_check
      _
    $region11: #{tpu_custom_call.1} parent=1 // pred_check_branch
      %46 = sbr.rel (0) target = $region13
    $region12: #{tpu_custom_call.1} parent=1 // pred_region
      %s48 = ssub.s32 896, 896
      %49 = vsyncadd [#allocation6], %s48
      %s50 = sshll.u32 [#allocation7], 4
      %s51 = int_to_ptr.vmem [resolvable:$true] %s50
      %56 = dma.hbm_to_vmem [thread:$0]  %s2, 896, %s51, [#allocation6], 128, 128, 8
    $region13: #{tpu_custom_call.1} parent=1 // pred_fallthru
      _
    // Predicated region
    $region14: #{tpu_custom_call.1} parent=1 // pred_check
      _
    $region15: #{tpu_custom_call.1} parent=1 // pred_check_branch
      %58 = sbr.rel (0) target = $region17
    $region16: #{tpu_custom_call.1} parent=1 // pred_region
      %s60 = ssub.s32 256, 256
      %61 = vsyncadd [#allocation9], %s60
      %s62 = sshll.u32 [#allocation8], 4
      %s63 = int_to_ptr.vmem [resolvable:$true] %s62
      %68 = dma.hbm_to_vmem [thread:$0]  %s3, 256, %s63, [#allocation9], 64, 64, 4
    $region17: #{tpu_custom_call.1} parent=1 // pred_fallthru
      _
    // Predicated region
    $region18: #{tpu_custom_call.1} parent=1 // pred_check
      _
    $region19: #{tpu_custom_call.1} parent=1 // pred_check_branch
      %70 = sbr.rel (0) target = $region21
    $region20: #{tpu_custom_call.1} parent=1 // pred_region
      %s72 = ssub.s32 16, 16
      %73 = vsyncadd [#allocation9], %s72
      %s75 = sshll.u32 [#allocation10], 4
      %s76 = int_to_ptr.vmem [resolvable:$true] %s75
      %78 = dma.hbm_to_vmem [thread:$0]  %s4, 16, %s76, [#allocation9]
    $region21: #{tpu_custom_call.1} parent=1 // pred_fallthru
      _
    // Predicated region
    $region22: #{tpu_custom_call.1} parent=1 // pred_check
      _
    $region23: #{tpu_custom_call.1} parent=1 // pred_check_branch
      %80 = sbr.rel (0) target = $region25
    $region24: #{tpu_custom_call.1} parent=1 // pred_region
      %s82 = ssub.s32 256, 256
      %83 = vsyncadd [#allocation12], %s82
      %s84 = sshll.u32 [#allocation11], 4
      %s85 = int_to_ptr.vmem [resolvable:$true] %s84
      %90 = dma.hbm_to_vmem [thread:$0]  %s5, 256, %s85, [#allocation12], 64, 64, 4
    $region25: #{tpu_custom_call.1} parent=1 // pred_fallthru
      _
    // Predicated region
    $region26: #{tpu_custom_call.1} parent=1 // pred_check
      _
    $region27: #{tpu_custom_call.1} parent=1 // pred_check_branch
      %92 = sbr.rel (0) target = $region29
    $region28: #{tpu_custom_call.1} parent=1 // pred_region
      %s94 = ssub.s32 16, 16
      %95 = vsyncadd [#allocation12], %s94
      %s97 = sshll.u32 [#allocation13], 4
      %s98 = int_to_ptr.vmem [resolvable:$true] %s97
      %100 = dma.hbm_to_vmem [thread:$0]  %s6, 16, %s98, [#allocation12]
    $region29: #{tpu_custom_call.1} parent=1 // pred_fallthru
      _
    // Predicated region
    $region30: #{tpu_custom_call.1} parent=1 // pred_check
      _
    $region31: #{tpu_custom_call.1} parent=1 // pred_check_branch
      %102 = sbr.rel (0) target = $region33
    $region32: #{tpu_custom_call.1} parent=1 // pred_region
      %s104 = ssub.s32 256, 256
      %105 = vsyncadd [#allocation15], %s104
      %s106 = sshll.u32 [#allocation14], 4
      %s107 = int_to_ptr.vmem [resolvable:$true] %s106
      %112 = dma.hbm_to_vmem [thread:$0]  %s7, 256, %s107, [#allocation15], 64, 64, 4
    $region33: #{tpu_custom_call.1} parent=1 // pred_fallthru
      _
    // Predicated region
    $region34: #{tpu_custom_call.1} parent=1 // pred_check
      _
    $region35: #{tpu_custom_call.1} parent=1 // pred_check_branch
      %114 = sbr.rel (0) target = $region37
    $region36: #{tpu_custom_call.1} parent=1 // pred_region
      %s116 = ssub.s32 16, 16
      %117 = vsyncadd [#allocation15], %s116
      %s119 = sshll.u32 [#allocation16], 4
      %s120 = int_to_ptr.vmem [resolvable:$true] %s119
      %122 = dma.hbm_to_vmem [thread:$0]  %s8, 16, %s120, [#allocation15]
    $region37: #{tpu_custom_call.1} parent=1 // pred_fallthru
      _
    // Predicated region
    $region38: #{tpu_custom_call.1} parent=1 // pred_check
      _
    $region39: #{tpu_custom_call.1} parent=1 // pred_check_branch
      %124 = sbr.rel (0) target = $region41
    $region40: #{tpu_custom_call.1} parent=1 // pred_region
      %s126 = ssub.s32 256, 256
      %127 = vsyncadd [#allocation18], %s126
      %s128 = sshll.u32 [#allocation17], 4
      %s129 = int_to_ptr.vmem [resolvable:$true] %s128
      %134 = dma.hbm_to_vmem [thread:$0]  %s9, 256, %s129, [#allocation18], 64, 64, 4
    $region41: #{tpu_custom_call.1} parent=1 // pred_fallthru
      _
    // Predicated region
    $region42: #{tpu_custom_call.1} parent=1 // pred_check
      _
    $region43: #{tpu_custom_call.1} parent=1 // pred_check_branch
      %136 = sbr.rel (0) target = $region45
    $region44: #{tpu_custom_call.1} parent=1 // pred_region
      %s138 = ssub.s32 32, 32
      %139 = vsyncadd [#allocation18], %s138
      %s141 = sshll.u32 [#allocation19], 4
      %s142 = int_to_ptr.vmem [resolvable:$true] %s141
      %144 = dma.hbm_to_vmem [thread:$0]  %s10, 32, %s142, [#allocation18]
    $region45: #{tpu_custom_call.1} parent=1 // pred_fallthru
      _
    // Predicated region
    $region46: #{tpu_custom_call.1} parent=1 // pred_check
      _
    $region47: #{tpu_custom_call.1} parent=1 // pred_check_branch
      %146 = sbr.rel (0) target = $region49
    $region48: #{tpu_custom_call.1} parent=1 // pred_region
      %147 = dma.done [#allocation3], 7168
    $region49: #{tpu_custom_call.1} parent=1 // pred_fallthru
      _
    // Predicated region
    $region50: #{tpu_custom_call.1} parent=1 // pred_check
      _
    $region51: #{tpu_custom_call.1} parent=1 // pred_check_branch
      %149 = sbr.rel (0) target = $region53
    $region52: #{tpu_custom_call.1} parent=1 // pred_region
      %150 = dma.done [#allocation6], 16
    $region53: #{tpu_custom_call.1} parent=1 // pred_fallthru
      _
    // Predicated region
    $region54: #{tpu_custom_call.1} parent=1 // pred_check
      _
    $region55: #{tpu_custom_call.1} parent=1 // pred_check_branch
      %152 = sbr.rel (0) target = $region57
    $region56: #{tpu_custom_call.1} parent=1 // pred_region
      %153 = dma.done [#allocation6], 896
    $region57: #{tpu_custom_call.1} parent=1 // pred_fallthru
      _
    // Predicated region
    $region58: #{tpu_custom_call.1} parent=1 // pred_check
      _
    $region59: #{tpu_custom_call.1} parent=1 // pred_check_branch
      %155 = sbr.rel (0) target = $region61
    $region60: #{tpu_custom_call.1} parent=1 // pred_region
      %156 = dma.done [#allocation9], 256
    $region61: #{tpu_custom_call.1} parent=1 // pred_fallthru
      _
    // Predicated region
    $region62: #{tpu_custom_call.1} parent=1 // pred_check
      _
    $region63: #{tpu_custom_call.1} parent=1 // pred_check_branch
      %158 = sbr.rel (0) target = $region65
    $region64: #{tpu_custom_call.1} parent=1 // pred_region
      %159 = dma.done [#allocation9], 16
    $region65: #{tpu_custom_call.1} parent=1 // pred_fallthru
      _
    // Predicated region
    $region66: #{tpu_custom_call.1} parent=1 // pred_check
      _
    $region67: #{tpu_custom_call.1} parent=1 // pred_check_branch
      %161 = sbr.rel (0) target = $region69
    $region68: #{tpu_custom_call.1} parent=1 // pred_region
      %162 = dma.done [#allocation12], 256
    $region69: #{tpu_custom_call.1} parent=1 // pred_fallthru
      _
    // Predicated region
    $region70: #{tpu_custom_call.1} parent=1 // pred_check
      _
    $region71: #{tpu_custom_call.1} parent=1 // pred_check_branch
      %164 = sbr.rel (0) target = $region73
    $region72: #{tpu_custom_call.1} parent=1 // pred_region
      %165 = dma.done [#allocation12], 16
    $region73: #{tpu_custom_call.1} parent=1 // pred_fallthru
      _
    // Predicated region
    $region74: #{tpu_custom_call.1} parent=1 // pred_check
      _
    $region75: #{tpu_custom_call.1} parent=1 // pred_check_branch
      %167 = sbr.rel (0) target = $region77
    $region76: #{tpu_custom_call.1} parent=1 // pred_region
      %168 = dma.done [#allocation15], 256
    $region77: #{tpu_custom_call.1} parent=1 // pred_fallthru
      _
    // Predicated region
    $region78: #{tpu_custom_call.1} parent=1 // pred_check
      _
    $region79: #{tpu_custom_call.1} parent=1 // pred_check_branch
      %170 = sbr.rel (0) target = $region81
    $region80: #{tpu_custom_call.1} parent=1 // pred_region
      %171 = dma.done [#allocation15], 16
    $region81: #{tpu_custom_call.1} parent=1 // pred_fallthru
      _
    // Predicated region
    $region82: #{tpu_custom_call.1} parent=1 // pred_check
      _
    $region83: #{tpu_custom_call.1} parent=1 // pred_check_branch
      %173 = sbr.rel (0) target = $region85
    $region84: #{tpu_custom_call.1} parent=1 // pred_region
      %174 = dma.done [#allocation18], 256
    $region85: #{tpu_custom_call.1} parent=1 // pred_fallthru
      _
    // Predicated region
    $region86: #{tpu_custom_call.1} parent=1 // pred_check
      _
    $region87: #{tpu_custom_call.1} parent=1 // pred_check_branch
      %176 = sbr.rel (0) target = $region89
    $region88: #{tpu_custom_call.1} parent=1 // pred_region
      %177 = dma.done [#allocation18], 32
    $region89: #{tpu_custom_call.1} parent=1 // pred_fallthru
      _
    %v179 = vld [vmem:[#allocation2] sm:$0xff]
    %v180 = vld [vmem:[#allocation2 + $0x8] sm:$0xff]
    %v181 = vld [vmem:[#allocation2 + $0x10] sm:$0xff]
    %v182 = vld [vmem:[#allocation2 + $0x18] sm:$0xff]
    %v183 = vld [vmem:[#allocation2 + $0x20] sm:$0xff]
    %v184 = vld [vmem:[#allocation2 + $0x28] sm:$0xff]
    %v185 = vld [vmem:[#allocation2 + $0x30] sm:$0xff]
    %v186 = vld [vmem:[#allocation2 + $0x38] sm:$0xff]
    %v187 = vld [vmem:[#allocation2 + $0x40] sm:$0xff]
    %v188 = vld [vmem:[#allocation2 + $0x48] sm:$0xff]
    %v189 = vld [vmem:[#allocation2 + $0x50] sm:$0xff]
    %v190 = vld [vmem:[#allocation2 + $0x58] sm:$0xff]
    %v191 = vld [vmem:[#allocation2 + $0x60] sm:$0xff]
    %v192 = vld [vmem:[#allocation2 + $0x68] sm:$0xff]
    %v193 = vld [vmem:[#allocation2 + $0x70] sm:$0xff]
    %v194 = vld [vmem:[#allocation2 + $0x78] sm:$0xff]
    %v195 = vld [vmem:[#allocation2 + $0x80] sm:$0xff]
    %v196 = vld [vmem:[#allocation2 + $0x88] sm:$0xff]
    %v197 = vld [vmem:[#allocation2 + $0x90] sm:$0xff]
    %v198 = vld [vmem:[#allocation2 + $0x98] sm:$0xff]
    %v199 = vld [vmem:[#allocation2 + $0xa0] sm:$0xff]
    %v200 = vld [vmem:[#allocation2 + $0xa8] sm:$0xff]
    %v201 = vld [vmem:[#allocation2 + $0xb0] sm:$0xff]
    %v202 = vld [vmem:[#allocation2 + $0xb8] sm:$0xff]
    %v203 = vld [vmem:[#allocation2 + $0xc0] sm:$0xff]
    %v204 = vld [vmem:[#allocation2 + $0xc8] sm:$0xff]
    %v205 = vld [vmem:[#allocation2 + $0xd0] sm:$0xff]
    %v206 = vld [vmem:[#allocation2 + $0xd8] sm:$0xff]
    %v207 = vld [vmem:[#allocation2 + $0xe0] sm:$0xff]
    %v208 = vld [vmem:[#allocation2 + $0xe8] sm:$0xff]
    %v209 = vld [vmem:[#allocation2 + $0xf0] sm:$0xff]
    %v210 = vld [vmem:[#allocation2 + $0xf8] sm:$0xff]
    %v211 = vld [vmem:[#allocation2 + $0x100] sm:$0xff]
    %v212 = vld [vmem:[#allocation2 + $0x108] sm:$0xff]
    %v213 = vld [vmem:[#allocation2 + $0x110] sm:$0xff]
    %v214 = vld [vmem:[#allocation2 + $0x118] sm:$0xff]
    %v215 = vld [vmem:[#allocation2 + $0x120] sm:$0xff]
    %v216 = vld [vmem:[#allocation2 + $0x128] sm:$0xff]
    %v217 = vld [vmem:[#allocation2 + $0x130] sm:$0xff]
    %v218 = vld [vmem:[#allocation2 + $0x138] sm:$0xff]
    %v219 = vld [vmem:[#allocation2 + $0x140] sm:$0xff]
    %v220 = vld [vmem:[#allocation2 + $0x148] sm:$0xff]
    %v221 = vld [vmem:[#allocation2 + $0x150] sm:$0xff]
    %v222 = vld [vmem:[#allocation2 + $0x158] sm:$0xff]
    %v223 = vld [vmem:[#allocation2 + $0x160] sm:$0xff]
    %v224 = vld [vmem:[#allocation2 + $0x168] sm:$0xff]
    %v225 = vld [vmem:[#allocation2 + $0x170] sm:$0xff]
    %v226 = vld [vmem:[#allocation2 + $0x178] sm:$0xff]
    %v227 = vld [vmem:[#allocation2 + $0x180] sm:$0xff]
    %v228 = vld [vmem:[#allocation2 + $0x188] sm:$0xff]
    %v229 = vld [vmem:[#allocation2 + $0x190] sm:$0xff]
    %v230 = vld [vmem:[#allocation2 + $0x198] sm:$0xff]
    %v231 = vld [vmem:[#allocation2 + $0x1a0] sm:$0xff]
    %v232 = vld [vmem:[#allocation2 + $0x1a8] sm:$0xff]
    %v233 = vld [vmem:[#allocation2 + $0x1b0] sm:$0xff]
    %v234 = vld [vmem:[#allocation2 + $0x1b8] sm:$0xff]
    %vm235 = vcmask 261120
    %v236 = vsel %vm235, %v179, 0.0
    %v237 = vsel %vm235, %v180, 0.0
    %v238 = vadd.f32 %v236, %v237
    %v239 = vsel %vm235, %v181, 0.0
    %v240 = vadd.f32 %v238, %v239
    %v241 = vsel %vm235, %v182, 0.0
    %v242 = vadd.f32 %v240, %v241
    %v243 = vsel %vm235, %v183, 0.0
    %v244 = vadd.f32 %v242, %v243
    %v245 = vsel %vm235, %v184, 0.0
    %v246 = vadd.f32 %v244, %v245
    %v247 = vsel %vm235, %v185, 0.0
    %v248 = vadd.f32 %v246, %v247
    %v249 = vrot.slane %v248, 4
    %v250 = vadd.f32 %v248, %v249
    %v251 = vrot.slane %v250, 2
    %v252 = vadd.f32 %v250, %v251
    %v253 = vrot.slane %v252, 1
    %v254 = vadd.f32 %v252, %v253
    %v255 = vsel %vm235, %v186, 0.0
    %v256 = vsel %vm235, %v187, 0.0
    %v257 = vadd.f32 %v255, %v256
    %v258 = vsel %vm235, %v188, 0.0
    %v259 = vadd.f32 %v257, %v258
    %v260 = vsel %vm235, %v189, 0.0
    %v261 = vadd.f32 %v259, %v260
    %v262 = vsel %vm235, %v190, 0.0
    %v263 = vadd.f32 %v261, %v262
    %v264 = vsel %vm235, %v191, 0.0
    %v265 = vadd.f32 %v263, %v264
    %v266 = vsel %vm235, %v192, 0.0
    %v267 = vadd.f32 %v265, %v266
    %v268 = vrot.slane %v267, 4
    %v269 = vadd.f32 %v267, %v268
    %v270 = vrot.slane %v269, 2
    %v271 = vadd.f32 %v269, %v270
    %v272 = vrot.slane %v271, 1
    %v273 = vadd.f32 %v271, %v272
    %v274 = vsel %vm235, %v193, 0.0
    %v275 = vsel %vm235, %v194, 0.0
    %v276 = vadd.f32 %v274, %v275
    %v277 = vsel %vm235, %v195, 0.0
    %v278 = vadd.f32 %v276, %v277
    %v279 = vsel %vm235, %v196, 0.0
    %v280 = vadd.f32 %v278, %v279
    %v281 = vsel %vm235, %v197, 0.0
    %v282 = vadd.f32 %v280, %v281
    %v283 = vsel %vm235, %v198, 0.0
    %v284 = vadd.f32 %v282, %v283
    %v285 = vsel %vm235, %v199, 0.0
    %v286 = vadd.f32 %v284, %v285
    %v287 = vrot.slane %v286, 4
    %v288 = vadd.f32 %v286, %v287
    %v289 = vrot.slane %v288, 2
    %v290 = vadd.f32 %v288, %v289
    %v291 = vrot.slane %v290, 1
    %v292 = vadd.f32 %v290, %v291
    %v293 = vsel %vm235, %v200, 0.0
    %v294 = vsel %vm235, %v201, 0.0
    %v295 = vadd.f32 %v293, %v294
    %v296 = vsel %vm235, %v202, 0.0
    %v297 = vadd.f32 %v295, %v296
    %v298 = vsel %vm235, %v203, 0.0
    %v299 = vadd.f32 %v297, %v298
    %v300 = vsel %vm235, %v204, 0.0
    %v301 = vadd.f32 %v299, %v300
    %v302 = vsel %vm235, %v205, 0.0
    %v303 = vadd.f32 %v301, %v302
    %v304 = vsel %vm235, %v206, 0.0
    %v305 = vadd.f32 %v303, %v304
    %v306 = vrot.slane %v305, 4
    %v307 = vadd.f32 %v305, %v306
    %v308 = vrot.slane %v307, 2
    %v309 = vadd.f32 %v307, %v308
    %v310 = vrot.slane %v309, 1
    %v311 = vadd.f32 %v309, %v310
    %v312 = vsel %vm235, %v207, 0.0
    %v313 = vsel %vm235, %v208, 0.0
    %v314 = vadd.f32 %v312, %v313
    %v315 = vsel %vm235, %v209, 0.0
    %v316 = vadd.f32 %v314, %v315
    %v317 = vsel %vm235, %v210, 0.0
    %v318 = vadd.f32 %v316, %v317
    %v319 = vsel %vm235, %v211, 0.0
    %v320 = vadd.f32 %v318, %v319
    %v321 = vsel %vm235, %v212, 0.0
    %v322 = vadd.f32 %v320, %v321
    %v323 = vsel %vm235, %v213, 0.0
    %v324 = vadd.f32 %v322, %v323
    %v325 = vrot.slane %v324, 4
    %v326 = vadd.f32 %v324, %v325
    %v327 = vrot.slane %v326, 2
    %v328 = vadd.f32 %v326, %v327
    %v329 = vrot.slane %v328, 1
    %v330 = vadd.f32 %v328, %v329
    %v331 = vsel %vm235, %v214, 0.0
    %v332 = vsel %vm235, %v215, 0.0
    %v333 = vadd.f32 %v331, %v332
    %v334 = vsel %vm235, %v216, 0.0
    %v335 = vadd.f32 %v333, %v334
    %v336 = vsel %vm235, %v217, 0.0
    %v337 = vadd.f32 %v335, %v336
    %v338 = vsel %vm235, %v218, 0.0
    %v339 = vadd.f32 %v337, %v338
    %v340 = vsel %vm235, %v219, 0.0
    %v341 = vadd.f32 %v339, %v340
    %v342 = vsel %vm235, %v220, 0.0
    %v343 = vadd.f32 %v341, %v342
    %v344 = vrot.slane %v343, 4
    %v345 = vadd.f32 %v343, %v344
    %v346 = vrot.slane %v345, 2
    %v347 = vadd.f32 %v345, %v346
    %v348 = vrot.slane %v347, 1
    %v349 = vadd.f32 %v347, %v348
    %v350 = vsel %vm235, %v221, 0.0
    %v351 = vsel %vm235, %v222, 0.0
    %v352 = vadd.f32 %v350, %v351
    %v353 = vsel %vm235, %v223, 0.0
    %v354 = vadd.f32 %v352, %v353
    %v355 = vsel %vm235, %v224, 0.0
    %v356 = vadd.f32 %v354, %v355
    %v357 = vsel %vm235, %v225, 0.0
    %v358 = vadd.f32 %v356, %v357
    %v359 = vsel %vm235, %v226, 0.0
    %v360 = vadd.f32 %v358, %v359
    %v361 = vsel %vm235, %v227, 0.0
    %v362 = vadd.f32 %v360, %v361
    %v363 = vrot.slane %v362, 4
    %v364 = vadd.f32 %v362, %v363
    %v365 = vrot.slane %v364, 2
    %v366 = vadd.f32 %v364, %v365
    %v367 = vrot.slane %v366, 1
    %v368 = vadd.f32 %v366, %v367
    %v369 = vsel %vm235, %v228, 0.0
    %v370 = vsel %vm235, %v229, 0.0
    %v371 = vadd.f32 %v369, %v370
    %v372 = vsel %vm235, %v230, 0.0
    %v373 = vadd.f32 %v371, %v372
    %v374 = vsel %vm235, %v231, 0.0
    %v375 = vadd.f32 %v373, %v374
    %v376 = vsel %vm235, %v232, 0.0
    %v377 = vadd.f32 %v375, %v376
    %v378 = vsel %vm235, %v233, 0.0
    %v379 = vadd.f32 %v377, %v378
    %v380 = vsel %vm235, %v234, 0.0
    %v381 = vadd.f32 %v379, %v380
    %v382 = vrot.slane %v381, 4
    %v383 = vadd.f32 %v381, %v382
    %v384 = vrot.slane %v383, 2
    %v385 = vadd.f32 %v383, %v384
    %v386 = vrot.slane %v385, 1
    %v387 = vadd.f32 %v385, %v386
    %v388 = vmul.f32 %v254, 0.020408163
    %v389 = vmul.f32 %v273, 0.020408163
    %v390 = vmul.f32 %v292, 0.020408163
    %v391 = vmul.f32 %v311, 0.020408163
    %v392 = vmul.f32 %v330, 0.020408163
    %v393 = vmul.f32 %v349, 0.020408163
    %v394 = vmul.f32 %v368, 0.020408163
    %v395 = vmul.f32 %v387, 0.020408163
    %v396 = vld [vmem:[#allocation5] sm:$0x1]
    %v398 = vlaneseq
    %v399 = vshrl.u32 %v398, 7
    %v400 = vsub.s32 0, %v399
    %v401 = vrot.slane %v396, %v400
    %v403 = vadd.f32 %v388, %v401
    %v404 = vadd.f32 %v389, %v401
    %v405 = vadd.f32 %v390, %v401
    %v406 = vadd.f32 %v391, %v401
    %v407 = vadd.f32 %v392, %v401
    %v408 = vadd.f32 %v393, %v401
    %v409 = vadd.f32 %v394, %v401
    %v410 = vadd.f32 %v395, %v401
    %v411 = vpack.c.bf16 %v403, %v403
    %v412 = vpack.c.bf16 %v404, %v404
    %v413 = vpack.c.bf16 %v405, %v405
    %v414 = vpack.c.bf16 %v406, %v406
    %v415 = vpack.c.bf16 %v407, %v407
    %v416 = vpack.c.bf16 %v408, %v408
    %v417 = vpack.c.bf16 %v409, %v409
    %v418 = vpack.c.bf16 %v410, %v410
    %v419 = vld [vmem:[#allocation7] sm:$0xff]
    %v420 = vld [vmem:[#allocation7 + $0x8] sm:$0xff]
    %v421 = vld [vmem:[#allocation7 + $0x10] sm:$0xff]
    %v422 = vld [vmem:[#allocation7 + $0x18] sm:$0xff]
    %v423 = vld [vmem:[#allocation7 + $0x20] sm:$0xff]
    %v424 = vld [vmem:[#allocation7 + $0x28] sm:$0xff]
    %v425 = vld [vmem:[#allocation7 + $0x30] sm:$0xff]
    %v426 = vadd.f32 %v179, %v419
    %v427 = vadd.f32 %v180, %v420
    %v428 = vadd.f32 %v181, %v421
    %v429 = vadd.f32 %v182, %v422
    %v430 = vadd.f32 %v183, %v423
    %v431 = vadd.f32 %v184, %v424
    %v432 = vadd.f32 %v185, %v425
    %v433 = vadd.f32 %v186, %v419
    %v434 = vadd.f32 %v187, %v420
    %v435 = vadd.f32 %v188, %v421
    %v436 = vadd.f32 %v189, %v422
    %v437 = vadd.f32 %v190, %v423
    %v438 = vadd.f32 %v191, %v424
    %v439 = vadd.f32 %v192, %v425
    %v440 = vadd.f32 %v193, %v419
    %v441 = vadd.f32 %v194, %v420
    %v442 = vadd.f32 %v195, %v421
    %v443 = vadd.f32 %v196, %v422
    %v444 = vadd.f32 %v197, %v423
    %v445 = vadd.f32 %v198, %v424
    %v446 = vadd.f32 %v199, %v425
    %v447 = vadd.f32 %v200, %v419
    %v448 = vadd.f32 %v201, %v420
    %v449 = vadd.f32 %v202, %v421
    %v450 = vadd.f32 %v203, %v422
    %v451 = vadd.f32 %v204, %v423
    %v452 = vadd.f32 %v205, %v424
    %v453 = vadd.f32 %v206, %v425
    %v454 = vadd.f32 %v207, %v419
    %v455 = vadd.f32 %v208, %v420
    %v456 = vadd.f32 %v209, %v421
    %v457 = vadd.f32 %v210, %v422
    %v458 = vadd.f32 %v211, %v423
    %v459 = vadd.f32 %v212, %v424
    %v460 = vadd.f32 %v213, %v425
    %v461 = vadd.f32 %v214, %v419
    %v462 = vadd.f32 %v215, %v420
    %v463 = vadd.f32 %v216, %v421
    %v464 = vadd.f32 %v217, %v422
    %v465 = vadd.f32 %v218, %v423
    %v466 = vadd.f32 %v219, %v424
    %v467 = vadd.f32 %v220, %v425
    %v468 = vadd.f32 %v221, %v419
    %v469 = vadd.f32 %v222, %v420
    %v470 = vadd.f32 %v223, %v421
    %v471 = vadd.f32 %v224, %v422
    %v472 = vadd.f32 %v225, %v423
    %v473 = vadd.f32 %v226, %v424
    %v474 = vadd.f32 %v227, %v425
    %v475 = vadd.f32 %v228, %v419
    %v476 = vadd.f32 %v229, %v420
    %v477 = vadd.f32 %v230, %v421
    %v478 = vadd.f32 %v231, %v422
    %v479 = vadd.f32 %v232, %v423
    %v480 = vadd.f32 %v233, %v424
    %v481 = vadd.f32 %v234, %v425
    %v482 = vpack.c.bf16 %v427, %v426
    %v483 = vpack.c.bf16 %v429, %v428
    %v484 = vpack.c.bf16 %v431, %v430
    %v485 = vpack.c.bf16 %v433, %v432
    %v486 = vpack.c.bf16 %v435, %v434
    %v487 = vpack.c.bf16 %v437, %v436
    %v488 = vpack.c.bf16 %v439, %v438
    %v489 = vpack.c.bf16 %v441, %v440
    %v490 = vpack.c.bf16 %v443, %v442
    %v491 = vpack.c.bf16 %v445, %v444
    %v492 = vpack.c.bf16 %v447, %v446
    %v493 = vpack.c.bf16 %v449, %v448
    %v494 = vpack.c.bf16 %v451, %v450
    %v495 = vpack.c.bf16 %v453, %v452
    %v496 = vpack.c.bf16 %v455, %v454
    %v497 = vpack.c.bf16 %v457, %v456
    %v498 = vpack.c.bf16 %v459, %v458
    %v499 = vpack.c.bf16 %v461, %v460
    %v500 = vpack.c.bf16 %v463, %v462
    %v501 = vpack.c.bf16 %v465, %v464
    %v502 = vpack.c.bf16 %v467, %v466
    %v503 = vpack.c.bf16 %v469, %v468
    %v504 = vpack.c.bf16 %v471, %v470
    %v505 = vpack.c.bf16 %v473, %v472
    %v506 = vpack.c.bf16 %v475, %v474
    %v507 = vpack.c.bf16 %v477, %v476
    %v508 = vpack.c.bf16 %v479, %v478
    %v509 = vpack.c.bf16 %v481, %v480
    %v510 = vld [vmem:[#allocation8] sm:$0xf]
    %v511 = vld [vmem:[#allocation8 + $0x4] sm:$0xf]
    %v512 = vld [vmem:[#allocation8 + $0x8] sm:$0xf]
    %v513 = vld [vmem:[#allocation8 + $0xc] sm:$0xf]
    %v514 = vld [vmem:[#allocation10] sm:$0x1]
    %v516 = vlaneseq
    %v517 = vshrl.u32 %v516, 7
    %v518 = vsub.s32 0, %v517
    %v519 = vrot.slane %v514, %v518
    %v529 = vunpack.c.l.b16 %v411
    %v530 = vunpack.c.l.b16 %v412
    %v531 = vunpack.c.l.b16 %v413
    %v532 = vunpack.c.l.b16 %v414
    %v533 = vunpack.c.l.b16 %v415
    %v534 = vunpack.c.l.b16 %v416
    %v535 = vunpack.c.l.b16 %v417
    %v536 = vunpack.c.l.b16 %v418
    %v537 = vrot.slane %v530, 7
    %vm538 = vcmask 1041409
    %v539 = vsel %vm538, %v537, %v529
    %v540 = vrot.slane %v531, 6
    %vm541 = vcmask 1042434
    %v542 = vsel %vm541, %v540, %v539
    %v543 = vrot.slane %v532, 5
    %vm544 = vcmask 1043459
    %v545 = vsel %vm544, %v543, %v542
    %v546 = vrot.slane %v533, 4
    %vm547 = vcmask 1044484
    %v548 = vsel %vm547, %v546, %v545
    %v549 = vrot.slane %v534, 3
    %vm550 = vcmask 1045509
    %v551 = vsel %vm550, %v549, %v548
    %v552 = vrot.slane %v535, 2
    %vm553 = vcmask 1046534
    %v554 = vsel %vm553, %v552, %v551
    %v555 = vrot.slane %v536, 1
    %vm556 = vcmask 1047559
    %v557 = vsel %vm556, %v555, %v554
    %v558 = vpack.c.b16 %v557, %v557
    %v563 = vunpack.c.l.b16 %v510
    %v564 = vunpack.c.l.b16 %v511
    %v565 = vunpack.c.l.b16 %v512
    %v566 = vunpack.c.l.b16 %v513
    %v567 = vpack.c.b16 %v564, %v563
    %v568 = vpack.c.b16 %v566, %v565
    %v572 = vsel %vm235, %v558, 0
    %574 = vmatprep.subr.bf16.mxu0 0
    %575 = vmatpush1.bf16.msra.mxu0 %v567
    %576 = vmatprep.subr.bf16.mxu0 0
    %577 = vmatpush1.bf16.msra.mxu0 %v568
    %578 = vmatprep.subr.bf16.mxu0 0
    %579 = vmatpush1.bf16.msra.mxu0 0
    %580 = vmatprep.subr.bf16.mxu0 0
    %581 = vmatpush1.bf16.msra.mxu0 0
    %582 = vmatprep.subr.bf16.mxu0 0
    %583 = vmatpush1.bf16.msra.mxu0 0
    %584 = vmatprep.subr.bf16.mxu0 0
    %585 = vmatpush1.bf16.msra.mxu0 0
    %586 = vmatprep.subr.bf16.mxu0 0
    %587 = vmatpush1.bf16.msra.mxu0 0
    %588 = vmatprep.subr.bf16.mxu0 0
    %589 = vmatpush1.bf16.msra.mxu0 0
    %590 = vmatprep.subr.bf16.mxu0 0
    %591 = vmatpush1.bf16.msra.mxu0 0
    %592 = vmatprep.subr.bf16.mxu0 0
    %593 = vmatpush1.bf16.msra.mxu0 0
    %594 = vmatprep.subr.bf16.mxu0 0
    %595 = vmatpush1.bf16.msra.mxu0 0
    %596 = vmatprep.subr.bf16.mxu0 0
    %597 = vmatpush1.bf16.msra.mxu0 0
    %598 = vmatprep.subr.bf16.mxu0 0
    %599 = vmatpush1.bf16.msra.mxu0 0
    %600 = vmatprep.subr.bf16.mxu0 0
    %601 = vmatpush1.bf16.msra.mxu0 0
    %602 = vmatprep.subr.bf16.mxu0 0
    %603 = vmatpush1.bf16.msra.mxu0 0
    %604 = vmatprep.subr.bf16.mxu0 0
    %605 = vmatpush1.bf16.msra.mxu0 0
    %606 = vmatprep.mubr.bf16.mxu0 0
    %607 = vmatmul.mubr.bf16.gmra.mrb[0].mxu0 %v572
    %v608 = vpop.f32.mrb[0].mxu0
    %v609 = vadd.f32 %v519, %v608
    %v610 = vpop.f32.mrb[0].mxu0
    %v611 = vpop.f32.mrb[0].mxu0
    %v612 = vpop.f32.mrb[0].mxu0
    %613 = vdwg.mxu0
    %v614 = vmul.f32 %v609, 0.35355338
    %v615 = vld [vmem:[#allocation11] sm:$0xf]
    %v616 = vld [vmem:[#allocation11 + $0x4] sm:$0xf]
    %v617 = vld [vmem:[#allocation11 + $0x8] sm:$0xf]
    %v618 = vld [vmem:[#allocation11 + $0xc] sm:$0xf]
    %v619 = vld [vmem:[#allocation13] sm:$0x1]
    %v621 = vlaneseq
    %v622 = vshrl.u32 %v621, 7
    %v623 = vsub.s32 0, %v622
    %v624 = vrot.slane %v619, %v623
    %v630 = vunpack.c.l.b16 %v615
    %v631 = vunpack.c.l.b16 %v616
    %v632 = vunpack.c.l.b16 %v617
    %v633 = vunpack.c.l.b16 %v618
    %v634 = vpack.c.b16 %v631, %v630
    %v635 = vpack.c.b16 %v633, %v632
    %638 = vmatprep.subr.bf16.mxu0 0
    %639 = vmatpush1.bf16.msra.mxu0 %v634
    %640 = vmatprep.subr.bf16.mxu0 0
    %641 = vmatpush1.bf16.msra.mxu0 %v635
    %642 = vmatprep.subr.bf16.mxu0 0
    %643 = vmatpush1.bf16.msra.mxu0 0
    %644 = vmatprep.subr.bf16.mxu0 0
    %645 = vmatpush1.bf16.msra.mxu0 0
    %646 = vmatprep.subr.bf16.mxu0 0
    %647 = vmatpush1.bf16.msra.mxu0 0
    %648 = vmatprep.subr.bf16.mxu0 0
    %649 = vmatpush1.bf16.msra.mxu0 0
    %650 = vmatprep.subr.bf16.mxu0 0
    %651 = vmatpush1.bf16.msra.mxu0 0
    %652 = vmatprep.subr.bf16.mxu0 0
    %653 = vmatpush1.bf16.msra.mxu0 0
    %654 = vmatprep.subr.bf16.mxu0 0
    %655 = vmatpush1.bf16.msra.mxu0 0
    %656 = vmatprep.subr.bf16.mxu0 0
    %657 = vmatpush1.bf16.msra.mxu0 0
    %658 = vmatprep.subr.bf16.mxu0 0
    %659 = vmatpush1.bf16.msra.mxu0 0
    %660 = vmatprep.subr.bf16.mxu0 0
    %661 = vmatpush1.bf16.msra.mxu0 0
    %662 = vmatprep.subr.bf16.mxu0 0
    %663 = vmatpush1.bf16.msra.mxu0 0
    %664 = vmatprep.subr.bf16.mxu0 0
    %665 = vmatpush1.bf16.msra.mxu0 0
    %666 = vmatprep.subr.bf16.mxu0 0
    %667 = vmatpush1.bf16.msra.mxu0 0
    %668 = vmatprep.subr.bf16.mxu0 0
    %669 = vmatpush1.bf16.msra.mxu0 0
    %670 = vmatprep.mubr.bf16.mxu0 0
    %671 = vmatmul.mubr.bf16.gmra.mrb[0].mxu0 %v572
    %v672 = vpop.f32.mrb[0].mxu0
    %v673 = vadd.f32 %v624, %v672
    %v674 = vpop.f32.mrb[0].mxu0
    %v675 = vpop.f32.mrb[0].mxu0
    %v676 = vpop.f32.mrb[0].mxu0
    %677 = vdwg.mxu0
    %v679 = vsel %vm235, %v482, 0
    %v682 = vsel %vm235, %v483, 0
    %v685 = vsel %vm235, %v484, 0
    %v688 = vsel %vm235, %v485, 0
    %v691 = vsel %vm235, %v486, 0
    %v694 = vsel %vm235, %v487, 0
    %v697 = vsel %vm235, %v488, 0
    %v700 = vsel %vm235, %v489, 0
    %v703 = vsel %vm235, %v490, 0
    %v706 = vsel %vm235, %v491, 0
    %v709 = vsel %vm235, %v492, 0
    %v712 = vsel %vm235, %v493, 0
    %v715 = vsel %vm235, %v494, 0
    %v718 = vsel %vm235, %v495, 0
    %v721 = vsel %vm235, %v496, 0
    %v724 = vsel %vm235, %v497, 0
    %v727 = vsel %vm235, %v498, 0
    %v730 = vsel %vm235, %v499, 0
    %v733 = vsel %vm235, %v500, 0
    %v736 = vsel %vm235, %v501, 0
    %v739 = vsel %vm235, %v502, 0
    %v742 = vsel %vm235, %v503, 0
    %v745 = vsel %vm235, %v504, 0
    %v748 = vsel %vm235, %v505, 0
    %v751 = vsel %vm235, %v506, 0
    %v754 = vsel %vm235, %v507, 0
    %v757 = vsel %vm235, %v508, 0
    %v760 = vsel %vm235, %v509, 0
    %762 = vmatprep.subr.bf16.mxu0 0
    %763 = vmatpush1.bf16.msra.mxu0 %v634
    %764 = vmatprep.subr.bf16.mxu0 0
    %765 = vmatpush1.bf16.msra.mxu0 %v635
    %766 = vmatprep.subr.bf16.mxu0 0
    %767 = vmatpush1.bf16.msra.mxu0 0
    %768 = vmatprep.subr.bf16.mxu0 0
    %769 = vmatpush1.bf16.msra.mxu0 0
    %770 = vmatprep.subr.bf16.mxu0 0
    %771 = vmatpush1.bf16.msra.mxu0 0
    %772 = vmatprep.subr.bf16.mxu0 0
    %773 = vmatpush1.bf16.msra.mxu0 0
    %774 = vmatprep.subr.bf16.mxu0 0
    %775 = vmatpush1.bf16.msra.mxu0 0
    %776 = vmatprep.subr.bf16.mxu0 0
    %777 = vmatpush1.bf16.msra.mxu0 0
    %778 = vmatprep.subr.bf16.mxu0 0
    %779 = vmatpush1.bf16.msra.mxu0 0
    %780 = vmatprep.subr.bf16.mxu0 0
    %781 = vmatpush1.bf16.msra.mxu0 0
    %782 = vmatprep.subr.bf16.mxu0 0
    %783 = vmatpush1.bf16.msra.mxu0 0
    %784 = vmatprep.subr.bf16.mxu0 0
    %785 = vmatpush1.bf16.msra.mxu0 0
    %786 = vmatprep.subr.bf16.mxu0 0
    %787 = vmatpush1.bf16.msra.mxu0 0
    %788 = vmatprep.subr.bf16.mxu0 0
    %789 = vmatpush1.bf16.msra.mxu0 0
    %790 = vmatprep.subr.bf16.mxu0 0
    %791 = vmatpush1.bf16.msra.mxu0 0
    %792 = vmatprep.subr.bf16.mxu0 0
    %793 = vmatpush1.bf16.msra.mxu0 0
    %794 = vmatprep.mubr.bf16.mxu0 0
    %795 = vmatmul.mubr.bf16.gmra.mrb[0].mxu0 %v679
    %v796 = vpop.f32.mrb[0].mxu0
    %v797 = vadd.f32 %v624, %v796
    %v798 = vpop.f32.mrb[0].mxu0
    %v799 = vpop.f32.mrb[0].mxu0
    %v800 = vadd.f32 %v624, %v799
    %v801 = vpop.f32.mrb[0].mxu0
    %802 = vmatprep.mubr.bf16.mxu0 0
    %803 = vmatmul.mubr.bf16.gmra.mrb[0].mxu0 %v682
    %v804 = vpop.f32.mrb[0].mxu0
    %v805 = vadd.f32 %v624, %v804
    %v806 = vpop.f32.mrb[0].mxu0
    %v807 = vpop.f32.mrb[0].mxu0
    %v808 = vadd.f32 %v624, %v807
    %v809 = vpop.f32.mrb[0].mxu0
    %810 = vmatprep.mubr.bf16.mxu0 0
    %811 = vmatmul.mubr.bf16.gmra.mrb[0].mxu0 %v685
    %v812 = vpop.f32.mrb[0].mxu0
    %v813 = vadd.f32 %v624, %v812
    %v814 = vpop.f32.mrb[0].mxu0
    %v815 = vpop.f32.mrb[0].mxu0
    %v816 = vadd.f32 %v624, %v815
    %v817 = vpop.f32.mrb[0].mxu0
    %818 = vmatprep.mubr.bf16.mxu0 0
    %819 = vmatmul.mubr.bf16.gmra.mrb[0].mxu0 %v688
    %v820 = vpop.f32.mrb[0].mxu0
    %v821 = vadd.f32 %v624, %v820
    %v822 = vpop.f32.mrb[0].mxu0
    %v823 = vpop.f32.mrb[0].mxu0
    %v824 = vadd.f32 %v624, %v823
    %v825 = vpop.f32.mrb[0].mxu0
    %826 = vmatprep.mubr.bf16.mxu0 0
    %827 = vmatmul.mubr.bf16.gmra.mrb[0].mxu0 %v691
    %v828 = vpop.f32.mrb[0].mxu0
    %v829 = vadd.f32 %v624, %v828
    %v830 = vpop.f32.mrb[0].mxu0
    %v831 = vpop.f32.mrb[0].mxu0
    %v832 = vadd.f32 %v624, %v831
    %v833 = vpop.f32.mrb[0].mxu0
    %834 = vmatprep.mubr.bf16.mxu0 0
    %835 = vmatmul.mubr.bf16.gmra.mrb[0].mxu0 %v694
    %v836 = vpop.f32.mrb[0].mxu0
    %v837 = vadd.f32 %v624, %v836
    %v838 = vpop.f32.mrb[0].mxu0
    %v839 = vpop.f32.mrb[0].mxu0
    %v840 = vadd.f32 %v624, %v839
    %v841 = vpop.f32.mrb[0].mxu0
    %842 = vmatprep.mubr.bf16.mxu0 0
    %843 = vmatmul.mubr.bf16.gmra.mrb[0].mxu0 %v697
    %v844 = vpop.f32.mrb[0].mxu0
    %v845 = vadd.f32 %v624, %v844
    %v846 = vpop.f32.mrb[0].mxu0
    %v847 = vpop.f32.mrb[0].mxu0
    %v848 = vadd.f32 %v624, %v847
    %v849 = vpop.f32.mrb[0].mxu0
    %850 = vmatprep.mubr.bf16.mxu0 0
    %851 = vmatmul.mubr.bf16.gmra.mrb[0].mxu0 %v700
    %v852 = vpop.f32.mrb[0].mxu0
    %v853 = vadd.f32 %v624, %v852
    %v854 = vpop.f32.mrb[0].mxu0
    %v855 = vpop.f32.mrb[0].mxu0
    %v856 = vadd.f32 %v624, %v855
    %v857 = vpop.f32.mrb[0].mxu0
    %858 = vmatprep.mubr.bf16.mxu0 0
    %859 = vmatmul.mubr.bf16.gmra.mrb[0].mxu0 %v703
    %v860 = vpop.f32.mrb[0].mxu0
    %v861 = vadd.f32 %v624, %v860
    %v862 = vpop.f32.mrb[0].mxu0
    %v863 = vpop.f32.mrb[0].mxu0
    %v864 = vadd.f32 %v624, %v863
    %v865 = vpop.f32.mrb[0].mxu0
    %866 = vmatprep.mubr.bf16.mxu0 0
    %867 = vmatmul.mubr.bf16.gmra.mrb[0].mxu0 %v706
    %v868 = vpop.f32.mrb[0].mxu0
    %v869 = vadd.f32 %v624, %v868
    %v870 = vpop.f32.mrb[0].mxu0
    %v871 = vpop.f32.mrb[0].mxu0
    %v872 = vadd.f32 %v624, %v871
    %v873 = vpop.f32.mrb[0].mxu0
    %874 = vmatprep.mubr.bf16.mxu0 0
    %875 = vmatmul.mubr.bf16.gmra.mrb[0].mxu0 %v709
    %v876 = vpop.f32.mrb[0].mxu0
    %v877 = vadd.f32 %v624, %v876
    %v878 = vpop.f32.mrb[0].mxu0
    %v879 = vpop.f32.mrb[0].mxu0
    %v880 = vadd.f32 %v624, %v879
    %v881 = vpop.f32.mrb[0].mxu0
    %882 = vmatprep.mubr.bf16.mxu0 0
    %883 = vmatmul.mubr.bf16.gmra.mrb[0].mxu0 %v712
    %v884 = vpop.f32.mrb[0].mxu0
    %v885 = vadd.f32 %v624, %v884
    %v886 = vpop.f32.mrb[0].mxu0
    %v887 = vpop.f32.mrb[0].mxu0
    %v888 = vadd.f32 %v624, %v887
    %v889 = vpop.f32.mrb[0].mxu0
    %890 = vmatprep.mubr.bf16.mxu0 0
    %891 = vmatmul.mubr.bf16.gmra.mrb[0].mxu0 %v715
    %v892 = vpop.f32.mrb[0].mxu0
    %v893 = vadd.f32 %v624, %v892
    %v894 = vpop.f32.mrb[0].mxu0
    %v895 = vpop.f32.mrb[0].mxu0
    %v896 = vadd.f32 %v624, %v895
    %v897 = vpop.f32.mrb[0].mxu0
    %898 = vmatprep.mubr.bf16.mxu0 0
    %899 = vmatmul.mubr.bf16.gmra.mrb[0].mxu0 %v718
    %v900 = vpop.f32.mrb[0].mxu0
    %v901 = vadd.f32 %v624, %v900
    %v902 = vpop.f32.mrb[0].mxu0
    %v903 = vpop.f32.mrb[0].mxu0
    %v904 = vadd.f32 %v624, %v903
    %v905 = vpop.f32.mrb[0].mxu0
    %906 = vmatprep.mubr.bf16.mxu0 0
    %907 = vmatmul.mubr.bf16.gmra.mrb[0].mxu0 %v721
    %v908 = vpop.f32.mrb[0].mxu0
    %v909 = vadd.f32 %v624, %v908
    %v910 = vpop.f32.mrb[0].mxu0
    %v911 = vpop.f32.mrb[0].mxu0
    %v912 = vadd.f32 %v624, %v911
    %v913 = vpop.f32.mrb[0].mxu0
    %914 = vmatprep.mubr.bf16.mxu0 0
    %915 = vmatmul.mubr.bf16.gmra.mrb[0].mxu0 %v724
    %v916 = vpop.f32.mrb[0].mxu0
    %v917 = vadd.f32 %v624, %v916
    %v918 = vpop.f32.mrb[0].mxu0
    %v919 = vpop.f32.mrb[0].mxu0
    %v920 = vadd.f32 %v624, %v919
    %v921 = vpop.f32.mrb[0].mxu0
    %922 = vmatprep.mubr.bf16.mxu0 0
    %923 = vmatmul.mubr.bf16.gmra.mrb[0].mxu0 %v727
    %v924 = vpop.f32.mrb[0].mxu0
    %v925 = vadd.f32 %v624, %v924
    %v926 = vpop.f32.mrb[0].mxu0
    %v927 = vpop.f32.mrb[0].mxu0
    %v928 = vadd.f32 %v624, %v927
    %v929 = vpop.f32.mrb[0].mxu0
    %930 = vmatprep.mubr.bf16.mxu0 0
    %931 = vmatmul.mubr.bf16.gmra.mrb[0].mxu0 %v730
    %v932 = vpop.f32.mrb[0].mxu0
    %v933 = vadd.f32 %v624, %v932
    %v934 = vpop.f32.mrb[0].mxu0
    %v935 = vpop.f32.mrb[0].mxu0
    %v936 = vadd.f32 %v624, %v935
    %v937 = vpop.f32.mrb[0].mxu0
    %938 = vmatprep.mubr.bf16.mxu0 0
    %939 = vmatmul.mubr.bf16.gmra.mrb[0].mxu0 %v733
    %v940 = vpop.f32.mrb[0].mxu0
    %v941 = vadd.f32 %v624, %v940
    %v942 = vpop.f32.mrb[0].mxu0
    %v943 = vpop.f32.mrb[0].mxu0
    %v944 = vadd.f32 %v624, %v943
    %v945 = vpop.f32.mrb[0].mxu0
    %946 = vmatprep.mubr.bf16.mxu0 0
    %947 = vmatmul.mubr.bf16.gmra.mrb[0].mxu0 %v736
    %v948 = vpop.f32.mrb[0].mxu0
    %v949 = vadd.f32 %v624, %v948
    %v950 = vpop.f32.mrb[0].mxu0
    %v951 = vpop.f32.mrb[0].mxu0
    %v952 = vadd.f32 %v624, %v951
    %v953 = vpop.f32.mrb[0].mxu0
    %954 = vmatprep.mubr.bf16.mxu0 0
    %955 = vmatmul.mubr.bf16.gmra.mrb[0].mxu0 %v739
    %v956 = vpop.f32.mrb[0].mxu0
    %v957 = vadd.f32 %v624, %v956
    %v958 = vpop.f32.mrb[0].mxu0
    %v959 = vpop.f32.mrb[0].mxu0
    %v960 = vadd.f32 %v624, %v959
    %v961 = vpop.f32.mrb[0].mxu0
    %962 = vmatprep.mubr.bf16.mxu0 0
    %963 = vmatmul.mubr.bf16.gmra.mrb[0].mxu0 %v742
    %v964 = vpop.f32.mrb[0].mxu0
    %v965 = vadd.f32 %v624, %v964
    %v966 = vpop.f32.mrb[0].mxu0
    %v967 = vpop.f32.mrb[0].mxu0
    %v968 = vadd.f32 %v624, %v967
    %v969 = vpop.f32.mrb[0].mxu0
    %970 = vmatprep.mubr.bf16.mxu0 0
    %971 = vmatmul.mubr.bf16.gmra.mrb[0].mxu0 %v745
    %v972 = vpop.f32.mrb[0].mxu0
    %v973 = vadd.f32 %v624, %v972
    %v974 = vpop.f32.mrb[0].mxu0
    %v975 = vpop.f32.mrb[0].mxu0
    %v976 = vadd.f32 %v624, %v975
    %v977 = vpop.f32.mrb[0].mxu0
    %978 = vmatprep.mubr.bf16.mxu0 0
    %979 = vmatmul.mubr.bf16.gmra.mrb[0].mxu0 %v748
    %v980 = vpop.f32.mrb[0].mxu0
    %v981 = vadd.f32 %v624, %v980
    %v982 = vpop.f32.mrb[0].mxu0
    %v983 = vpop.f32.mrb[0].mxu0
    %v984 = vadd.f32 %v624, %v983
    %v985 = vpop.f32.mrb[0].mxu0
    %986 = vmatprep.mubr.bf16.mxu0 0
    %987 = vmatmul.mubr.bf16.gmra.mrb[0].mxu0 %v751
    %v988 = vpop.f32.mrb[0].mxu0
    %v989 = vadd.f32 %v624, %v988
    %v990 = vpop.f32.mrb[0].mxu0
    %v991 = vpop.f32.mrb[0].mxu0
    %v992 = vadd.f32 %v624, %v991
    %v993 = vpop.f32.mrb[0].mxu0
    %994 = vmatprep.mubr.bf16.mxu0 0
    %995 = vmatmul.mubr.bf16.gmra.mrb[0].mxu0 %v754
    %v996 = vpop.f32.mrb[0].mxu0
    %v997 = vadd.f32 %v624, %v996
    %v998 = vpop.f32.mrb[0].mxu0
    %v999 = vpop.f32.mrb[0].mxu0
    %v1000 = vadd.f32 %v624, %v999
    %v1001 = vpop.f32.mrb[0].mxu0
    %1002 = vmatprep.mubr.bf16.mxu0 0
    %1003 = vmatmul.mubr.bf16.gmra.mrb[0].mxu0 %v757
    %v1004 = vpop.f32.mrb[0].mxu0
    %v1005 = vadd.f32 %v624, %v1004
    %v1006 = vpop.f32.mrb[0].mxu0
    %v1007 = vpop.f32.mrb[0].mxu0
    %v1008 = vadd.f32 %v624, %v1007
    %v1009 = vpop.f32.mrb[0].mxu0
    %1010 = vmatprep.mubr.bf16.mxu0 0
    %1011 = vmatmul.mubr.bf16.gmra.mrb[0].mxu0 %v760
    %v1012 = vpop.f32.mrb[0].mxu0
    %v1013 = vadd.f32 %v624, %v1012
    %v1014 = vpop.f32.mrb[0].mxu0
    %v1015 = vpop.f32.mrb[0].mxu0
    %v1016 = vadd.f32 %v624, %v1015
    %v1017 = vpop.f32.mrb[0].mxu0
    %1018 = vdwg.mxu0
    %v1019 = vld [vmem:[#allocation17] sm:$0xf]
    %v1020 = vld [vmem:[#allocation17 + $0x4] sm:$0xf]
    %v1021 = vld [vmem:[#allocation17 + $0x8] sm:$0xf]
    %v1022 = vld [vmem:[#allocation17 + $0xc] sm:$0xf]
    %v1023 = vld [vmem:[#allocation19] sm:$0x3]
    %v1024 = vmul.f32 %v614, %v673
    %v1025 = vpack.c.bf16 %v1024, %v1024
    %v1030 = vunpack.c.l.b16 %v1019
    %v1031 = vunpack.c.l.b16 %v1020
    %v1032 = vunpack.c.l.b16 %v1021
    %v1033 = vunpack.c.l.b16 %v1022
    %v1034 = vpack.c.b16 %v1031, %v1030
    %v1035 = vpack.c.b16 %v1033, %v1032
    %v1039 = vsel %vm235, %v1025, 0
    %1041 = vmatprep.subr.bf16.mxu0 0
    %1042 = vmatpush1.bf16.msra.mxu0 %v1034
    %1043 = vmatprep.subr.bf16.mxu0 0
    %1044 = vmatpush1.bf16.msra.mxu0 %v1035
    %1045 = vmatprep.subr.bf16.mxu0 0
    %1046 = vmatpush1.bf16.msra.mxu0 0
    %1047 = vmatprep.subr.bf16.mxu0 0
    %1048 = vmatpush1.bf16.msra.mxu0 0
    %1049 = vmatprep.subr.bf16.mxu0 0
    %1050 = vmatpush1.bf16.msra.mxu0 0
    %1051 = vmatprep.subr.bf16.mxu0 0
    %1052 = vmatpush1.bf16.msra.mxu0 0
    %1053 = vmatprep.subr.bf16.mxu0 0
    %1054 = vmatpush1.bf16.msra.mxu0 0
    %1055 = vmatprep.subr.bf16.mxu0 0
    %1056 = vmatpush1.bf16.msra.mxu0 0
    %1057 = vmatprep.subr.bf16.mxu0 0
    %1058 = vmatpush1.bf16.msra.mxu0 0
    %1059 = vmatprep.subr.bf16.mxu0 0
    %1060 = vmatpush1.bf16.msra.mxu0 0
    %1061 = vmatprep.subr.bf16.mxu0 0
    %1062 = vmatpush1.bf16.msra.mxu0 0
    %1063 = vmatprep.subr.bf16.mxu0 0
    %1064 = vmatpush1.bf16.msra.mxu0 0
    %1065 = vmatprep.subr.bf16.mxu0 0
    %1066 = vmatpush1.bf16.msra.mxu0 0
    %1067 = vmatprep.subr.bf16.mxu0 0
    %1068 = vmatpush1.bf16.msra.mxu0 0
    %1069 = vmatprep.subr.bf16.mxu0 0
    %1070 = vmatpush1.bf16.msra.mxu0 0
    %1071 = vmatprep.subr.bf16.mxu0 0
    %1072 = vmatpush1.bf16.msra.mxu0 0
    %1073 = vmatprep.mubr.bf16.mxu0 0
    %1074 = vmatmul.mubr.bf16.gmra.mrb[0].mxu0 %v1039
    %v1075 = vpop.f32.mrb[0].mxu0
    %v1076 = vadd.f32 0.0, %v1075
    %v1077 = vpop.f32.mrb[0].mxu0
    %v1078 = vpop.f32.mrb[0].mxu0
    %v1079 = vpop.f32.mrb[0].mxu0
    %1080 = vdwg.mxu0
    %v1082 = vcombine.high %v614, %v614
    %v1084 = vunpack.c.l.s4 1966171168
    %v1085 = vunpack.c.0.s8 %v1084
    %v1086 = vlaneseq
    %v1087 = vshrl.u32 %v1086, 7
    %v1088 = vsub.s32 %v1085, %v1087
    %v1089 = vrot.slane %v614, %v1088
    %v1091 = vunpack.c.l.s4 1966171168
    %v1092 = vunpack.c.0.s8 %v1091
    %v1093 = vlaneseq
    %v1094 = vshrl.u32 %v1093, 7
    %v1095 = vsub.s32 %v1092, %v1094
    %v1096 = vrot.slane %v1082, %v1095
    %v1097 = vcombine.high %v1089, %v1089
    %v1098 = vcombine.high %v1096, %v1096
    %v1100 = vunpack.c.l.s4 1966171168
    %v1101 = vunpack.c.0.s8 %v1100
    %v1102 = vlaneseq
    %v1103 = vshrl.u32 %v1102, 7
    %v1104 = vsub.s32 %v1101, %v1103
    %v1105 = vrot.slane %v1089, %v1104
    %v1107 = vunpack.c.l.s4 1966171168
    %v1108 = vunpack.c.0.s8 %v1107
    %v1109 = vlaneseq
    %v1110 = vshrl.u32 %v1109, 7
    %v1111 = vsub.s32 %v1108, %v1110
    %v1112 = vrot.slane %v1096, %v1111
    %v1114 = vunpack.c.l.s4 1966171168
    %v1115 = vunpack.c.0.s8 %v1114
    %v1116 = vlaneseq
    %v1117 = vshrl.u32 %v1116, 7
    %v1118 = vsub.s32 %v1115, %v1117
    %v1119 = vrot.slane %v1097, %v1118
    %v1121 = vunpack.c.l.s4 1966171168
    %v1122 = vunpack.c.0.s8 %v1121
    %v1123 = vlaneseq
    %v1124 = vshrl.u32 %v1123, 7
    %v1125 = vsub.s32 %v1122, %v1124
    %v1126 = vrot.slane %v1098, %v1125
    %v1127 = vcombine.high %v1105, %v1105
    %v1128 = vcombine.high %v1112, %v1112
    %v1129 = vcombine.high %v1119, %v1119
    %v1130 = vcombine.high %v1126, %v1126
    %v1131 = vlaneseq
    %v1132 = vshrl.u32 %v1131, 7
    %v1133 = vsub.s32 0, %v1132
    %v1134 = vrot.slane %v1105, %v1133
    %v1135 = vlaneseq
    %v1136 = vshrl.u32 %v1135, 7
    %v1137 = vsub.s32 0, %v1136
    %v1138 = vrot.slane %v1119, %v1137
    %v1139 = vlaneseq
    %v1140 = vshrl.u32 %v1139, 7
    %v1141 = vsub.s32 0, %v1140
    %v1142 = vrot.slane %v1127, %v1141
    %v1143 = vlaneseq
    %v1144 = vshrl.u32 %v1143, 7
    %v1145 = vsub.s32 0, %v1144
    %v1146 = vrot.slane %v1129, %v1145
    %v1147 = vlaneseq
    %v1148 = vshrl.u32 %v1147, 7
    %v1149 = vsub.s32 0, %v1148
    %v1150 = vrot.slane %v1112, %v1149
    %v1151 = vlaneseq
    %v1152 = vshrl.u32 %v1151, 7
    %v1153 = vsub.s32 0, %v1152
    %v1154 = vrot.slane %v1126, %v1153
    %v1155 = vlaneseq
    %v1156 = vshrl.u32 %v1155, 7
    %v1157 = vsub.s32 0, %v1156
    %v1158 = vrot.slane %v1128, %v1157
    %v1159 = vlaneseq
    %v1160 = vshrl.u32 %v1159, 7
    %v1161 = vsub.s32 0, %v1160
    %v1162 = vrot.slane %v1130, %v1161
    %v1171 = vmul.f32 %v1134, %v797
    %v1172 = vmul.f32 %v1134, %v800
    %v1173 = vmul.f32 %v1134, %v805
    %v1174 = vmul.f32 %v1134, %v808
    %v1175 = vmul.f32 %v1134, %v813
    %v1176 = vmul.f32 %v1134, %v816
    %v1177 = vmul.f32 %v1134, %v821
    %v1178 = vmul.f32 %v1138, %v824
    %v1179 = vmul.f32 %v1138, %v829
    %v1180 = vmul.f32 %v1138, %v832
    %v1181 = vmul.f32 %v1138, %v837
    %v1182 = vmul.f32 %v1138, %v840
    %v1183 = vmul.f32 %v1138, %v845
    %v1184 = vmul.f32 %v1138, %v848
    %v1185 = vmul.f32 %v1142, %v853
    %v1186 = vmul.f32 %v1142, %v856
    %v1187 = vmul.f32 %v1142, %v861
    %v1188 = vmul.f32 %v1142, %v864
    %v1189 = vmul.f32 %v1142, %v869
    %v1190 = vmul.f32 %v1142, %v872
    %v1191 = vmul.f32 %v1142, %v877
    %v1192 = vmul.f32 %v1146, %v880
    %v1193 = vmul.f32 %v1146, %v885
    %v1194 = vmul.f32 %v1146, %v888
    %v1195 = vmul.f32 %v1146, %v893
    %v1196 = vmul.f32 %v1146, %v896
    %v1197 = vmul.f32 %v1146, %v901
    %v1198 = vmul.f32 %v1146, %v904
    %v1199 = vmul.f32 %v1150, %v909
    %v1200 = vmul.f32 %v1150, %v912
    %v1201 = vmul.f32 %v1150, %v917
    %v1202 = vmul.f32 %v1150, %v920
    %v1203 = vmul.f32 %v1150, %v925
    %v1204 = vmul.f32 %v1150, %v928
    %v1205 = vmul.f32 %v1150, %v933
    %v1206 = vmul.f32 %v1154, %v936
    %v1207 = vmul.f32 %v1154, %v941
    %v1208 = vmul.f32 %v1154, %v944
    %v1209 = vmul.f32 %v1154, %v949
    %v1210 = vmul.f32 %v1154, %v952
    %v1211 = vmul.f32 %v1154, %v957
    %v1212 = vmul.f32 %v1154, %v960
    %v1213 = vmul.f32 %v1158, %v965
    %v1214 = vmul.f32 %v1158, %v968
    %v1215 = vmul.f32 %v1158, %v973
    %v1216 = vmul.f32 %v1158, %v976
    %v1217 = vmul.f32 %v1158, %v981
    %v1218 = vmul.f32 %v1158, %v984
    %v1219 = vmul.f32 %v1158, %v989
    %v1220 = vmul.f32 %v1162, %v992
    %v1221 = vmul.f32 %v1162, %v997
    %v1222 = vmul.f32 %v1162, %v1000
    %v1223 = vmul.f32 %v1162, %v1005
    %v1224 = vmul.f32 %v1162, %v1008
    %v1225 = vmul.f32 %v1162, %v1013
    %v1226 = vmul.f32 %v1162, %v1016
    %v1227 = vpack.c.bf16 %v1172, %v1171
    %v1228 = vpack.c.bf16 %v1174, %v1173
    %v1229 = vpack.c.bf16 %v1176, %v1175
    %v1230 = vpack.c.bf16 %v1178, %v1177
    %v1231 = vpack.c.bf16 %v1180, %v1179
    %v1232 = vpack.c.bf16 %v1182, %v1181
    %v1233 = vpack.c.bf16 %v1184, %v1183
    %v1234 = vpack.c.bf16 %v1186, %v1185
    %v1235 = vpack.c.bf16 %v1188, %v1187
    %v1236 = vpack.c.bf16 %v1190, %v1189
    %v1237 = vpack.c.bf16 %v1192, %v1191
    %v1238 = vpack.c.bf16 %v1194, %v1193
    %v1239 = vpack.c.bf16 %v1196, %v1195
    %v1240 = vpack.c.bf16 %v1198, %v1197
    %v1241 = vpack.c.bf16 %v1200, %v1199
    %v1242 = vpack.c.bf16 %v1202, %v1201
    %v1243 = vpack.c.bf16 %v1204, %v1203
    %v1244 = vpack.c.bf16 %v1206, %v1205
    %v1245 = vpack.c.bf16 %v1208, %v1207
    %v1246 = vpack.c.bf16 %v1210, %v1209
    %v1247 = vpack.c.bf16 %v1212, %v1211
    %v1248 = vpack.c.bf16 %v1214, %v1213
    %v1249 = vpack.c.bf16 %v1216, %v1215
    %v1250 = vpack.c.bf16 %v1218, %v1217
    %v1251 = vpack.c.bf16 %v1220, %v1219
    %v1252 = vpack.c.bf16 %v1222, %v1221
    %v1253 = vpack.c.bf16 %v1224, %v1223
    %v1254 = vpack.c.bf16 %v1226, %v1225
    %v1256 = vsel %vm235, %v1227, 0
    %v1259 = vsel %vm235, %v1228, 0
    %v1262 = vsel %vm235, %v1229, 0
    %v1265 = vsel %vm235, %v1230, 0
    %v1268 = vsel %vm235, %v1231, 0
    %v1271 = vsel %vm235, %v1232, 0
    %v1274 = vsel %vm235, %v1233, 0
    %v1277 = vsel %vm235, %v1234, 0
    %v1280 = vsel %vm235, %v1235, 0
    %v1283 = vsel %vm235, %v1236, 0
    %v1286 = vsel %vm235, %v1237, 0
    %v1289 = vsel %vm235, %v1238, 0
    %v1292 = vsel %vm235, %v1239, 0
    %v1295 = vsel %vm235, %v1240, 0
    %v1298 = vsel %vm235, %v1241, 0
    %v1301 = vsel %vm235, %v1242, 0
    %v1304 = vsel %vm235, %v1243, 0
    %v1307 = vsel %vm235, %v1244, 0
    %v1310 = vsel %vm235, %v1245, 0
    %v1313 = vsel %vm235, %v1246, 0
    %v1316 = vsel %vm235, %v1247, 0
    %v1319 = vsel %vm235, %v1248, 0
    %v1322 = vsel %vm235, %v1249, 0
    %v1325 = vsel %vm235, %v1250, 0
    %v1328 = vsel %vm235, %v1251, 0
    %v1331 = vsel %vm235, %v1252, 0
    %v1334 = vsel %vm235, %v1253, 0
    %v1337 = vsel %vm235, %v1254, 0
    %1339 = vmatprep.subr.bf16.mxu0 0
    %1340 = vmatpush1.bf16.msra.mxu0 %v1034
    %1341 = vmatprep.subr.bf16.mxu0 0
    %1342 = vmatpush1.bf16.msra.mxu0 %v1035
    %1343 = vmatprep.subr.bf16.mxu0 0
    %1344 = vmatpush1.bf16.msra.mxu0 0
    %1345 = vmatprep.subr.bf16.mxu0 0
    %1346 = vmatpush1.bf16.msra.mxu0 0
    %1347 = vmatprep.subr.bf16.mxu0 0
    %1348 = vmatpush1.bf16.msra.mxu0 0
    %1349 = vmatprep.subr.bf16.mxu0 0
    %1350 = vmatpush1.bf16.msra.mxu0 0
    %1351 = vmatprep.subr.bf16.mxu0 0
    %1352 = vmatpush1.bf16.msra.mxu0 0
    %1353 = vmatprep.subr.bf16.mxu0 0
    %1354 = vmatpush1.bf16.msra.mxu0 0
    %1355 = vmatprep.subr.bf16.mxu0 0
    %1356 = vmatpush1.bf16.msra.mxu0 0
    %1357 = vmatprep.subr.bf16.mxu0 0
    %1358 = vmatpush1.bf16.msra.mxu0 0
    %1359 = vmatprep.subr.bf16.mxu0 0
    %1360 = vmatpush1.bf16.msra.mxu0 0
    %1361 = vmatprep.subr.bf16.mxu0 0
    %1362 = vmatpush1.bf16.msra.mxu0 0
    %1363 = vmatprep.subr.bf16.mxu0 0
    %1364 = vmatpush1.bf16.msra.mxu0 0
    %1365 = vmatprep.subr.bf16.mxu0 0
    %1366 = vmatpush1.bf16.msra.mxu0 0
    %1367 = vmatprep.subr.bf16.mxu0 0
    %1368 = vmatpush1.bf16.msra.mxu0 0
    %1369 = vmatprep.subr.bf16.mxu0 0
    %1370 = vmatpush1.bf16.msra.mxu0 0
    %1371 = vmatprep.mubr.bf16.mxu0 0
    %1372 = vmatmul.mubr.bf16.gmra.mrb[0].mxu0 %v1256
    %v1373 = vpop.f32.mrb[0].mxu0
    %v1374 = vadd.f32 0.0, %v1373
    %v1375 = vpop.f32.mrb[0].mxu0
    %v1376 = vpop.f32.mrb[0].mxu0
    %v1377 = vadd.f32 0.0, %v1376
    %v1378 = vpop.f32.mrb[0].mxu0
    %1379 = vmatprep.mubr.bf16.mxu0 0
    %1380 = vmatmul.mubr.bf16.gmra.mrb[0].mxu0 %v1259
    %v1381 = vpop.f32.mrb[0].mxu0
    %v1382 = vadd.f32 0.0, %v1381
    %v1383 = vpop.f32.mrb[0].mxu0
    %v1384 = vpop.f32.mrb[0].mxu0
    %v1385 = vadd.f32 0.0, %v1384
    %v1386 = vpop.f32.mrb[0].mxu0
    %1387 = vmatprep.mubr.bf16.mxu0 0
    %1388 = vmatmul.mubr.bf16.gmra.mrb[0].mxu0 %v1262
    %v1389 = vpop.f32.mrb[0].mxu0
    %v1390 = vadd.f32 0.0, %v1389
    %v1391 = vpop.f32.mrb[0].mxu0
    %v1392 = vpop.f32.mrb[0].mxu0
    %v1393 = vadd.f32 0.0, %v1392
    %v1394 = vpop.f32.mrb[0].mxu0
    %1395 = vmatprep.mubr.bf16.mxu0 0
    %1396 = vmatmul.mubr.bf16.gmra.mrb[0].mxu0 %v1265
    %v1397 = vpop.f32.mrb[0].mxu0
    %v1398 = vadd.f32 0.0, %v1397
    %v1399 = vpop.f32.mrb[0].mxu0
    %v1400 = vpop.f32.mrb[0].mxu0
    %v1401 = vadd.f32 0.0, %v1400
    %v1402 = vpop.f32.mrb[0].mxu0
    %1403 = vmatprep.mubr.bf16.mxu0 0
    %1404 = vmatmul.mubr.bf16.gmra.mrb[0].mxu0 %v1268
    %v1405 = vpop.f32.mrb[0].mxu0
    %v1406 = vadd.f32 0.0, %v1405
    %v1407 = vpop.f32.mrb[0].mxu0
    %v1408 = vpop.f32.mrb[0].mxu0
    %v1409 = vadd.f32 0.0, %v1408
    %v1410 = vpop.f32.mrb[0].mxu0
    %1411 = vmatprep.mubr.bf16.mxu0 0
    %1412 = vmatmul.mubr.bf16.gmra.mrb[0].mxu0 %v1271
    %v1413 = vpop.f32.mrb[0].mxu0
    %v1414 = vadd.f32 0.0, %v1413
    %v1415 = vpop.f32.mrb[0].mxu0
    %v1416 = vpop.f32.mrb[0].mxu0
    %v1417 = vadd.f32 0.0, %v1416
    %v1418 = vpop.f32.mrb[0].mxu0
    %1419 = vmatprep.mubr.bf16.mxu0 0
    %1420 = vmatmul.mubr.bf16.gmra.mrb[0].mxu0 %v1274
    %v1421 = vpop.f32.mrb[0].mxu0
    %v1422 = vadd.f32 0.0, %v1421
    %v1423 = vpop.f32.mrb[0].mxu0
    %v1424 = vpop.f32.mrb[0].mxu0
    %v1425 = vadd.f32 0.0, %v1424
    %v1426 = vpop.f32.mrb[0].mxu0
    %1427 = vmatprep.mubr.bf16.mxu0 0
    %1428 = vmatmul.mubr.bf16.gmra.mrb[0].mxu0 %v1277
    %v1429 = vpop.f32.mrb[0].mxu0
    %v1430 = vadd.f32 0.0, %v1429
    %v1431 = vpop.f32.mrb[0].mxu0
    %v1432 = vpop.f32.mrb[0].mxu0
    %v1433 = vadd.f32 0.0, %v1432
    %v1434 = vpop.f32.mrb[0].mxu0
    %1435 = vmatprep.mubr.bf16.mxu0 0
    %1436 = vmatmul.mubr.bf16.gmra.mrb[0].mxu0 %v1280
    %v1437 = vpop.f32.mrb[0].mxu0
    %v1438 = vadd.f32 0.0, %v1437
    %v1439 = vpop.f32.mrb[0].mxu0
    %v1440 = vpop.f32.mrb[0].mxu0
    %v1441 = vadd.f32 0.0, %v1440
    %v1442 = vpop.f32.mrb[0].mxu0
    %1443 = vmatprep.mubr.bf16.mxu0 0
    %1444 = vmatmul.mubr.bf16.gmra.mrb[0].mxu0 %v1283
    %v1445 = vpop.f32.mrb[0].mxu0
    %v1446 = vadd.f32 0.0, %v1445
    %v1447 = vpop.f32.mrb[0].mxu0
    %v1448 = vpop.f32.mrb[0].mxu0
    %v1449 = vadd.f32 0.0, %v1448
    %v1450 = vpop.f32.mrb[0].mxu0
    %1451 = vmatprep.mubr.bf16.mxu0 0
    %1452 = vmatmul.mubr.bf16.gmra.mrb[0].mxu0 %v1286
    %v1453 = vpop.f32.mrb[0].mxu0
    %v1454 = vadd.f32 0.0, %v1453
    %v1455 = vpop.f32.mrb[0].mxu0
    %v1456 = vpop.f32.mrb[0].mxu0
    %v1457 = vadd.f32 0.0, %v1456
    %v1458 = vpop.f32.mrb[0].mxu0
    %1459 = vmatprep.mubr.bf16.mxu0 0
    %1460 = vmatmul.mubr.bf16.gmra.mrb[0].mxu0 %v1289
    %v1461 = vpop.f32.mrb[0].mxu0
    %v1462 = vadd.f32 0.0, %v1461
    %v1463 = vpop.f32.mrb[0].mxu0
    %v1464 = vpop.f32.mrb[0].mxu0
    %v1465 = vadd.f32 0.0, %v1464
    %v1466 = vpop.f32.mrb[0].mxu0
    %1467 = vmatprep.mubr.bf16.mxu0 0
    %1468 = vmatmul.mubr.bf16.gmra.mrb[0].mxu0 %v1292
    %v1469 = vpop.f32.mrb[0].mxu0
    %v1470 = vadd.f32 0.0, %v1469
    %v1471 = vpop.f32.mrb[0].mxu0
    %v1472 = vpop.f32.mrb[0].mxu0
    %v1473 = vadd.f32 0.0, %v1472
    %v1474 = vpop.f32.mrb[0].mxu0
    %1475 = vmatprep.mubr.bf16.mxu0 0
    %1476 = vmatmul.mubr.bf16.gmra.mrb[0].mxu0 %v1295
    %v1477 = vpop.f32.mrb[0].mxu0
    %v1478 = vadd.f32 0.0, %v1477
    %v1479 = vpop.f32.mrb[0].mxu0
    %v1480 = vpop.f32.mrb[0].mxu0
    %v1481 = vadd.f32 0.0, %v1480
    %v1482 = vpop.f32.mrb[0].mxu0
    %1483 = vmatprep.mubr.bf16.mxu0 0
    %1484 = vmatmul.mubr.bf16.gmra.mrb[0].mxu0 %v1298
    %v1485 = vpop.f32.mrb[0].mxu0
    %v1486 = vadd.f32 0.0, %v1485
    %v1487 = vpop.f32.mrb[0].mxu0
    %v1488 = vpop.f32.mrb[0].mxu0
    %v1489 = vadd.f32 0.0, %v1488
    %v1490 = vpop.f32.mrb[0].mxu0
    %1491 = vmatprep.mubr.bf16.mxu0 0
    %1492 = vmatmul.mubr.bf16.gmra.mrb[0].mxu0 %v1301
    %v1493 = vpop.f32.mrb[0].mxu0
    %v1494 = vadd.f32 0.0, %v1493
    %v1495 = vpop.f32.mrb[0].mxu0
    %v1496 = vpop.f32.mrb[0].mxu0
    %v1497 = vadd.f32 0.0, %v1496
    %v1498 = vpop.f32.mrb[0].mxu0
    %1499 = vmatprep.mubr.bf16.mxu0 0
    %1500 = vmatmul.mubr.bf16.gmra.mrb[0].mxu0 %v1304
    %v1501 = vpop.f32.mrb[0].mxu0
    %v1502 = vadd.f32 0.0, %v1501
    %v1503 = vpop.f32.mrb[0].mxu0
    %v1504 = vpop.f32.mrb[0].mxu0
    %v1505 = vadd.f32 0.0, %v1504
    %v1506 = vpop.f32.mrb[0].mxu0
    %1507 = vmatprep.mubr.bf16.mxu0 0
    %1508 = vmatmul.mubr.bf16.gmra.mrb[0].mxu0 %v1307
    %v1509 = vpop.f32.mrb[0].mxu0
    %v1510 = vadd.f32 0.0, %v1509
    %v1511 = vpop.f32.mrb[0].mxu0
    %v1512 = vpop.f32.mrb[0].mxu0
    %v1513 = vadd.f32 0.0, %v1512
    %v1514 = vpop.f32.mrb[0].mxu0
    %1515 = vmatprep.mubr.bf16.mxu0 0
    %1516 = vmatmul.mubr.bf16.gmra.mrb[0].mxu0 %v1310
    %v1517 = vpop.f32.mrb[0].mxu0
    %v1518 = vadd.f32 0.0, %v1517
    %v1519 = vpop.f32.mrb[0].mxu0
    %v1520 = vpop.f32.mrb[0].mxu0
    %v1521 = vadd.f32 0.0, %v1520
    %v1522 = vpop.f32.mrb[0].mxu0
    %1523 = vmatprep.mubr.bf16.mxu0 0
    %1524 = vmatmul.mubr.bf16.gmra.mrb[0].mxu0 %v1313
    %v1525 = vpop.f32.mrb[0].mxu0
    %v1526 = vadd.f32 0.0, %v1525
    %v1527 = vpop.f32.mrb[0].mxu0
    %v1528 = vpop.f32.mrb[0].mxu0
    %v1529 = vadd.f32 0.0, %v1528
    %v1530 = vpop.f32.mrb[0].mxu0
    %1531 = vmatprep.mubr.bf16.mxu0 0
    %1532 = vmatmul.mubr.bf16.gmra.mrb[0].mxu0 %v1316
    %v1533 = vpop.f32.mrb[0].mxu0
    %v1534 = vadd.f32 0.0, %v1533
    %v1535 = vpop.f32.mrb[0].mxu0
    %v1536 = vpop.f32.mrb[0].mxu0
    %v1537 = vadd.f32 0.0, %v1536
    %v1538 = vpop.f32.mrb[0].mxu0
    %1539 = vmatprep.mubr.bf16.mxu0 0
    %1540 = vmatmul.mubr.bf16.gmra.mrb[0].mxu0 %v1319
    %v1541 = vpop.f32.mrb[0].mxu0
    %v1542 = vadd.f32 0.0, %v1541
    %v1543 = vpop.f32.mrb[0].mxu0
    %v1544 = vpop.f32.mrb[0].mxu0
    %v1545 = vadd.f32 0.0, %v1544
    %v1546 = vpop.f32.mrb[0].mxu0
    %1547 = vmatprep.mubr.bf16.mxu0 0
    %1548 = vmatmul.mubr.bf16.gmra.mrb[0].mxu0 %v1322
    %v1549 = vpop.f32.mrb[0].mxu0
    %v1550 = vadd.f32 0.0, %v1549
    %v1551 = vpop.f32.mrb[0].mxu0
    %v1552 = vpop.f32.mrb[0].mxu0
    %v1553 = vadd.f32 0.0, %v1552
    %v1554 = vpop.f32.mrb[0].mxu0
    %1555 = vmatprep.mubr.bf16.mxu0 0
    %1556 = vmatmul.mubr.bf16.gmra.mrb[0].mxu0 %v1325
    %v1557 = vpop.f32.mrb[0].mxu0
    %v1558 = vadd.f32 0.0, %v1557
    %v1559 = vpop.f32.mrb[0].mxu0
    %v1560 = vpop.f32.mrb[0].mxu0
    %v1561 = vadd.f32 0.0, %v1560
    %v1562 = vpop.f32.mrb[0].mxu0
    %1563 = vmatprep.mubr.bf16.mxu0 0
    %1564 = vmatmul.mubr.bf16.gmra.mrb[0].mxu0 %v1328
    %v1565 = vpop.f32.mrb[0].mxu0
    %v1566 = vadd.f32 0.0, %v1565
    %v1567 = vpop.f32.mrb[0].mxu0
    %v1568 = vpop.f32.mrb[0].mxu0
    %v1569 = vadd.f32 0.0, %v1568
    %v1570 = vpop.f32.mrb[0].mxu0
    %1571 = vmatprep.mubr.bf16.mxu0 0
    %1572 = vmatmul.mubr.bf16.gmra.mrb[0].mxu0 %v1331
    %v1573 = vpop.f32.mrb[0].mxu0
    %v1574 = vadd.f32 0.0, %v1573
    %v1575 = vpop.f32.mrb[0].mxu0
    %v1576 = vpop.f32.mrb[0].mxu0
    %v1577 = vadd.f32 0.0, %v1576
    %v1578 = vpop.f32.mrb[0].mxu0
    %1579 = vmatprep.mubr.bf16.mxu0 0
    %1580 = vmatmul.mubr.bf16.gmra.mrb[0].mxu0 %v1334
    %v1581 = vpop.f32.mrb[0].mxu0
    %v1582 = vadd.f32 0.0, %v1581
    %v1583 = vpop.f32.mrb[0].mxu0
    %v1584 = vpop.f32.mrb[0].mxu0
    %v1585 = vadd.f32 0.0, %v1584
    %v1586 = vpop.f32.mrb[0].mxu0
    %1587 = vmatprep.mubr.bf16.mxu0 0
    %1588 = vmatmul.mubr.bf16.gmra.mrb[0].mxu0 %v1337
    %v1589 = vpop.f32.mrb[0].mxu0
    %v1590 = vadd.f32 0.0, %v1589
    %v1591 = vpop.f32.mrb[0].mxu0
    %v1592 = vpop.f32.mrb[0].mxu0
    %v1593 = vadd.f32 0.0, %v1592
    %v1594 = vpop.f32.mrb[0].mxu0
    %1595 = vdwg.mxu0
    %v1596 = vlaneseq
    %v1597 = vshrl.u32 %v1596, 7
    %v1598 = vadd.s32 %v1597, 8
    %v1599 = vadd.s32 %v1597, 16
    %v1600 = vadd.s32 %v1597, 24
    %v1601 = vadd.s32 %v1597, 32
    %v1602 = vadd.s32 %v1597, 40
    %v1603 = vadd.s32 %v1597, 48
    %vm1604 = vcmp.lt.s32.totalorder %v1597, 49
    %vm1605 = vcmp.lt.s32.totalorder %v1598, 49
    %vm1606 = vcmp.lt.s32.totalorder %v1599, 49
    %vm1607 = vcmp.lt.s32.totalorder %v1600, 49
    %vm1608 = vcmp.lt.s32.totalorder %v1601, 49
    %vm1609 = vcmp.lt.s32.totalorder %v1602, 49
    %vm1610 = vcmp.lt.s32.totalorder %v1603, 49
    %v1611 = vsel %vm1604, 1, 0
    %v1612 = vsel %vm1605, 1, 0
    %v1613 = vsel %vm1606, 1, 0
    %v1614 = vsel %vm1607, 1, 0
    %v1615 = vsel %vm1608, 1, 0
    %v1616 = vsel %vm1609, 1, 0
    %v1617 = vsel %vm1610, 1, 0
    %vm1618 = vcmp.eq.s32.totalorder %v1611, 1
    %vm1619 = vcmp.eq.s32.totalorder %v1612, 1
    %vm1620 = vcmp.eq.s32.totalorder %v1613, 1
    %vm1621 = vcmp.eq.s32.totalorder %v1614, 1
    %vm1622 = vcmp.eq.s32.totalorder %v1615, 1
    %vm1623 = vcmp.eq.s32.totalorder %v1616, 1
    %vm1624 = vcmp.eq.s32.totalorder %v1617, 1
    %v1625 = vsel %vm1618, %v1374, -1e+30
    %v1626 = vsel %vm1619, %v1377, -1e+30
    %v1627 = vsel %vm1620, %v1382, -1e+30
    %v1628 = vsel %vm1621, %v1385, -1e+30
    %v1629 = vsel %vm1622, %v1390, -1e+30
    %v1630 = vsel %vm1623, %v1393, -1e+30
    %v1631 = vsel %vm1624, %v1398, -1e+30
    %v1632 = vsel %vm1618, %v1401, -1e+30
    %v1633 = vsel %vm1619, %v1406, -1e+30
    %v1634 = vsel %vm1620, %v1409, -1e+30
    %v1635 = vsel %vm1621, %v1414, -1e+30
    %v1636 = vsel %vm1622, %v1417, -1e+30
    %v1637 = vsel %vm1623, %v1422, -1e+30
    %v1638 = vsel %vm1624, %v1425, -1e+30
    %v1639 = vsel %vm1618, %v1430, -1e+30
    %v1640 = vsel %vm1619, %v1433, -1e+30
    %v1641 = vsel %vm1620, %v1438, -1e+30
    %v1642 = vsel %vm1621, %v1441, -1e+30
    %v1643 = vsel %vm1622, %v1446, -1e+30
    %v1644 = vsel %vm1623, %v1449, -1e+30
    %v1645 = vsel %vm1624, %v1454, -1e+30
    %v1646 = vsel %vm1618, %v1457, -1e+30
    %v1647 = vsel %vm1619, %v1462, -1e+30
    %v1648 = vsel %vm1620, %v1465, -1e+30
    %v1649 = vsel %vm1621, %v1470, -1e+30
    %v1650 = vsel %vm1622, %v1473, -1e+30
    %v1651 = vsel %vm1623, %v1478, -1e+30
    %v1652 = vsel %vm1624, %v1481, -1e+30
    %v1653 = vsel %vm1618, %v1486, -1e+30
    %v1654 = vsel %vm1619, %v1489, -1e+30
    %v1655 = vsel %vm1620, %v1494, -1e+30
    %v1656 = vsel %vm1621, %v1497, -1e+30
    %v1657 = vsel %vm1622, %v1502, -1e+30
    %v1658 = vsel %vm1623, %v1505, -1e+30
    %v1659 = vsel %vm1624, %v1510, -1e+30
    %v1660 = vsel %vm1618, %v1513, -1e+30
    %v1661 = vsel %vm1619, %v1518, -1e+30
    %v1662 = vsel %vm1620, %v1521, -1e+30
    %v1663 = vsel %vm1621, %v1526, -1e+30
    %v1664 = vsel %vm1622, %v1529, -1e+30
    %v1665 = vsel %vm1623, %v1534, -1e+30
    %v1666 = vsel %vm1624, %v1537, -1e+30
    %v1667 = vsel %vm1618, %v1542, -1e+30
    %v1668 = vsel %vm1619, %v1545, -1e+30
    %v1669 = vsel %vm1620, %v1550, -1e+30
    %v1670 = vsel %vm1621, %v1553, -1e+30
    %v1671 = vsel %vm1622, %v1558, -1e+30
    %v1672 = vsel %vm1623, %v1561, -1e+30
    %v1673 = vsel %vm1624, %v1566, -1e+30
    %v1674 = vsel %vm1618, %v1569, -1e+30
    %v1675 = vsel %vm1619, %v1574, -1e+30
    %v1676 = vsel %vm1620, %v1577, -1e+30
    %v1677 = vsel %vm1621, %v1582, -1e+30
    %v1678 = vsel %vm1622, %v1585, -1e+30
    %v1679 = vsel %vm1623, %v1590, -1e+30
    %v1680 = vsel %vm1624, %v1593, -1e+30
    %vm1681 = vcmask 31744
    %v1682 = vsel %vm1681, %v1625, -inf
    %v1683 = vsel %vm1681, %v1626, -inf
    %v1684 = vmax.f32 %v1682, %v1683
    %v1685 = vsel %vm1681, %v1627, -inf
    %v1686 = vmax.f32 %v1684, %v1685
    %v1687 = vsel %vm1681, %v1628, -inf
    %v1688 = vmax.f32 %v1686, %v1687
    %v1689 = vsel %vm1681, %v1629, -inf
    %v1690 = vmax.f32 %v1688, %v1689
    %v1691 = vsel %vm1681, %v1630, -inf
    %v1692 = vmax.f32 %v1690, %v1691
    %v1693 = vsel %vm1681, %v1631, -inf
    %v1694 = vmax.f32 %v1692, %v1693
    %v1695 = vrot.slane %v1694, 4
    %v1696 = vmax.f32 %v1694, %v1695
    %v1697 = vrot.slane %v1696, 2
    %v1698 = vmax.f32 %v1696, %v1697
    %v1699 = vrot.slane %v1698, 1
    %v1700 = vmax.f32 %v1698, %v1699
    %v1701 = vsel %vm1681, %v1632, -inf
    %v1702 = vsel %vm1681, %v1633, -inf
    %v1703 = vmax.f32 %v1701, %v1702
    %v1704 = vsel %vm1681, %v1634, -inf
    %v1705 = vmax.f32 %v1703, %v1704
    %v1706 = vsel %vm1681, %v1635, -inf
    %v1707 = vmax.f32 %v1705, %v1706
    %v1708 = vsel %vm1681, %v1636, -inf
    %v1709 = vmax.f32 %v1707, %v1708
    %v1710 = vsel %vm1681, %v1637, -inf
    %v1711 = vmax.f32 %v1709, %v1710
    %v1712 = vsel %vm1681, %v1638, -inf
    %v1713 = vmax.f32 %v1711, %v1712
    %v1714 = vrot.slane %v1713, 4
    %v1715 = vmax.f32 %v1713, %v1714
    %v1716 = vrot.slane %v1715, 2
    %v1717 = vmax.f32 %v1715, %v1716
    %v1718 = vrot.slane %v1717, 1
    %v1719 = vmax.f32 %v1717, %v1718
    %v1720 = vsel %vm1681, %v1639, -inf
    %v1721 = vsel %vm1681, %v1640, -inf
    %v1722 = vmax.f32 %v1720, %v1721
    %v1723 = vsel %vm1681, %v1641, -inf
    %v1724 = vmax.f32 %v1722, %v1723
    %v1725 = vsel %vm1681, %v1642, -inf
    %v1726 = vmax.f32 %v1724, %v1725
    %v1727 = vsel %vm1681, %v1643, -inf
    %v1728 = vmax.f32 %v1726, %v1727
    %v1729 = vsel %vm1681, %v1644, -inf
    %v1730 = vmax.f32 %v1728, %v1729
    %v1731 = vsel %vm1681, %v1645, -inf
    %v1732 = vmax.f32 %v1730, %v1731
    %v1733 = vrot.slane %v1732, 4
    %v1734 = vmax.f32 %v1732, %v1733
    %v1735 = vrot.slane %v1734, 2
    %v1736 = vmax.f32 %v1734, %v1735
    %v1737 = vrot.slane %v1736, 1
    %v1738 = vmax.f32 %v1736, %v1737
    %v1739 = vsel %vm1681, %v1646, -inf
    %v1740 = vsel %vm1681, %v1647, -inf
    %v1741 = vmax.f32 %v1739, %v1740
    %v1742 = vsel %vm1681, %v1648, -inf
    %v1743 = vmax.f32 %v1741, %v1742
    %v1744 = vsel %vm1681, %v1649, -inf
    %v1745 = vmax.f32 %v1743, %v1744
    %v1746 = vsel %vm1681, %v1650, -inf
    %v1747 = vmax.f32 %v1745, %v1746
    %v1748 = vsel %vm1681, %v1651, -inf
    %v1749 = vmax.f32 %v1747, %v1748
    %v1750 = vsel %vm1681, %v1652, -inf
    %v1751 = vmax.f32 %v1749, %v1750
    %v1752 = vrot.slane %v1751, 4
    %v1753 = vmax.f32 %v1751, %v1752
    %v1754 = vrot.slane %v1753, 2
    %v1755 = vmax.f32 %v1753, %v1754
    %v1756 = vrot.slane %v1755, 1
    %v1757 = vmax.f32 %v1755, %v1756
    %v1758 = vsel %vm1681, %v1653, -inf
    %v1759 = vsel %vm1681, %v1654, -inf
    %v1760 = vmax.f32 %v1758, %v1759
    %v1761 = vsel %vm1681, %v1655, -inf
    %v1762 = vmax.f32 %v1760, %v1761
    %v1763 = vsel %vm1681, %v1656, -inf
    %v1764 = vmax.f32 %v1762, %v1763
    %v1765 = vsel %vm1681, %v1657, -inf
    %v1766 = vmax.f32 %v1764, %v1765
    %v1767 = vsel %vm1681, %v1658, -inf
    %v1768 = vmax.f32 %v1766, %v1767
    %v1769 = vsel %vm1681, %v1659, -inf
    %v1770 = vmax.f32 %v1768, %v1769
    %v1771 = vrot.slane %v1770, 4
    %v1772 = vmax.f32 %v1770, %v1771
    %v1773 = vrot.slane %v1772, 2
    %v1774 = vmax.f32 %v1772, %v1773
    %v1775 = vrot.slane %v1774, 1
    %v1776 = vmax.f32 %v1774, %v1775
    %v1777 = vsel %vm1681, %v1660, -inf
    %v1778 = vsel %vm1681, %v1661, -inf
    %v1779 = vmax.f32 %v1777, %v1778
    %v1780 = vsel %vm1681, %v1662, -inf
    %v1781 = vmax.f32 %v1779, %v1780
    %v1782 = vsel %vm1681, %v1663, -inf
    %v1783 = vmax.f32 %v1781, %v1782
    %v1784 = vsel %vm1681, %v1664, -inf
    %v1785 = vmax.f32 %v1783, %v1784
    %v1786 = vsel %vm1681, %v1665, -inf
    %v1787 = vmax.f32 %v1785, %v1786
    %v1788 = vsel %vm1681, %v1666, -inf
    %v1789 = vmax.f32 %v1787, %v1788
    %v1790 = vrot.slane %v1789, 4
    %v1791 = vmax.f32 %v1789, %v1790
    %v1792 = vrot.slane %v1791, 2
    %v1793 = vmax.f32 %v1791, %v1792
    %v1794 = vrot.slane %v1793, 1
    %v1795 = vmax.f32 %v1793, %v1794
    %v1796 = vsel %vm1681, %v1667, -inf
    %v1797 = vsel %vm1681, %v1668, -inf
    %v1798 = vmax.f32 %v1796, %v1797
    %v1799 = vsel %vm1681, %v1669, -inf
    %v1800 = vmax.f32 %v1798, %v1799
    %v1801 = vsel %vm1681, %v1670, -inf
    %v1802 = vmax.f32 %v1800, %v1801
    %v1803 = vsel %vm1681, %v1671, -inf
    %v1804 = vmax.f32 %v1802, %v1803
    %v1805 = vsel %vm1681, %v1672, -inf
    %v1806 = vmax.f32 %v1804, %v1805
    %v1807 = vsel %vm1681, %v1673, -inf
    %v1808 = vmax.f32 %v1806, %v1807
    %v1809 = vrot.slane %v1808, 4
    %v1810 = vmax.f32 %v1808, %v1809
    %v1811 = vrot.slane %v1810, 2
    %v1812 = vmax.f32 %v1810, %v1811
    %v1813 = vrot.slane %v1812, 1
    %v1814 = vmax.f32 %v1812, %v1813
    %v1815 = vsel %vm1681, %v1674, -inf
    %v1816 = vsel %vm1681, %v1675, -inf
    %v1817 = vmax.f32 %v1815, %v1816
    %v1818 = vsel %vm1681, %v1676, -inf
    %v1819 = vmax.f32 %v1817, %v1818
    %v1820 = vsel %vm1681, %v1677, -inf
    %v1821 = vmax.f32 %v1819, %v1820
    %v1822 = vsel %vm1681, %v1678, -inf
    %v1823 = vmax.f32 %v1821, %v1822
    %v1824 = vsel %vm1681, %v1679, -inf
    %v1825 = vmax.f32 %v1823, %v1824
    %v1826 = vsel %vm1681, %v1680, -inf
    %v1827 = vmax.f32 %v1825, %v1826
    %v1828 = vrot.slane %v1827, 4
    %v1829 = vmax.f32 %v1827, %v1828
    %v1830 = vrot.slane %v1829, 2
    %v1831 = vmax.f32 %v1829, %v1830
    %v1832 = vrot.slane %v1831, 1
    %v1833 = vmax.f32 %v1831, %v1832
    %v1842 = vsel %vm538, %v1719, %v1700
    %v1843 = vsel %vm541, %v1738, %v1842
    %v1844 = vsel %vm544, %v1757, %v1843
    %v1845 = vsel %vm547, %v1776, %v1844
    %v1846 = vsel %vm550, %v1795, %v1845
    %v1847 = vsel %vm553, %v1814, %v1846
    %v1848 = vsel %vm556, %v1833, %v1847
    %v1850 = vmax.f32 %v1076, %v1848
    %v1851 = vsub.f32 %v1076, %v1850
    %v1852 = vmul.f32 %v1851, 1.442695
    %v1853 = vpow.pop %v1852
    %v1855 = vcombine.high %v1850, %v1850
    %v1857 = vunpack.c.l.s4 1966171168
    %v1858 = vunpack.c.0.s8 %v1857
    %v1859 = vlaneseq
    %v1860 = vshrl.u32 %v1859, 7
    %v1861 = vsub.s32 %v1858, %v1860
    %v1862 = vrot.slane %v1850, %v1861
    %v1864 = vunpack.c.l.s4 1966171168
    %v1865 = vunpack.c.0.s8 %v1864
    %v1866 = vlaneseq
    %v1867 = vshrl.u32 %v1866, 7
    %v1868 = vsub.s32 %v1865, %v1867
    %v1869 = vrot.slane %v1855, %v1868
    %v1870 = vcombine.high %v1862, %v1862
    %v1871 = vcombine.high %v1869, %v1869
    %v1873 = vunpack.c.l.s4 1966171168
    %v1874 = vunpack.c.0.s8 %v1873
    %v1875 = vlaneseq
    %v1876 = vshrl.u32 %v1875, 7
    %v1877 = vsub.s32 %v1874, %v1876
    %v1878 = vrot.slane %v1862, %v1877
    %v1880 = vunpack.c.l.s4 1966171168
    %v1881 = vunpack.c.0.s8 %v1880
    %v1882 = vlaneseq
    %v1883 = vshrl.u32 %v1882, 7
    %v1884 = vsub.s32 %v1881, %v1883
    %v1885 = vrot.slane %v1869, %v1884
    %v1887 = vunpack.c.l.s4 1966171168
    %v1888 = vunpack.c.0.s8 %v1887
    %v1889 = vlaneseq
    %v1890 = vshrl.u32 %v1889, 7
    %v1891 = vsub.s32 %v1888, %v1890
    %v1892 = vrot.slane %v1870, %v1891
    %v1894 = vunpack.c.l.s4 1966171168
    %v1895 = vunpack.c.0.s8 %v1894
    %v1896 = vlaneseq
    %v1897 = vshrl.u32 %v1896, 7
    %v1898 = vsub.s32 %v1895, %v1897
    %v1899 = vrot.slane %v1871, %v1898
    %v1900 = vcombine.high %v1878, %v1878
    %v1901 = vcombine.high %v1885, %v1885
    %v1902 = vcombine.high %v1892, %v1892
    %v1903 = vcombine.high %v1899, %v1899
    %v1904 = vlaneseq
    %v1905 = vshrl.u32 %v1904, 7
    %v1906 = vsub.s32 0, %v1905
    %v1907 = vrot.slane %v1878, %v1906
    %v1908 = vlaneseq
    %v1909 = vshrl.u32 %v1908, 7
    %v1910 = vsub.s32 0, %v1909
    %v1911 = vrot.slane %v1892, %v1910
    %v1912 = vlaneseq
    %v1913 = vshrl.u32 %v1912, 7
    %v1914 = vsub.s32 0, %v1913
    %v1915 = vrot.slane %v1900, %v1914
    %v1916 = vlaneseq
    %v1917 = vshrl.u32 %v1916, 7
    %v1918 = vsub.s32 0, %v1917
    %v1919 = vrot.slane %v1902, %v1918
    %v1920 = vlaneseq
    %v1921 = vshrl.u32 %v1920, 7
    %v1922 = vsub.s32 0, %v1921
    %v1923 = vrot.slane %v1885, %v1922
    %v1924 = vlaneseq
    %v1925 = vshrl.u32 %v1924, 7
    %v1926 = vsub.s32 0, %v1925
    %v1927 = vrot.slane %v1899, %v1926
    %v1928 = vlaneseq
    %v1929 = vshrl.u32 %v1928, 7
    %v1930 = vsub.s32 0, %v1929
    %v1931 = vrot.slane %v1901, %v1930
    %v1932 = vlaneseq
    %v1933 = vshrl.u32 %v1932, 7
    %v1934 = vsub.s32 0, %v1933
    %v1935 = vrot.slane %v1903, %v1934
    %v1944 = vsub.f32 %v1625, %v1907
    %v1945 = vsub.f32 %v1626, %v1907
    %v1946 = vsub.f32 %v1627, %v1907
    %v1947 = vsub.f32 %v1628, %v1907
    %v1948 = vsub.f32 %v1629, %v1907
    %v1949 = vsub.f32 %v1630, %v1907
    %v1950 = vsub.f32 %v1631, %v1907
    %v1951 = vsub.f32 %v1632, %v1911
    %v1952 = vsub.f32 %v1633, %v1911
    %v1953 = vsub.f32 %v1634, %v1911
    %v1954 = vsub.f32 %v1635, %v1911
    %v1955 = vsub.f32 %v1636, %v1911
    %v1956 = vsub.f32 %v1637, %v1911
    %v1957 = vsub.f32 %v1638, %v1911
    %v1958 = vsub.f32 %v1639, %v1915
    %v1959 = vsub.f32 %v1640, %v1915
    %v1960 = vsub.f32 %v1641, %v1915
    %v1961 = vsub.f32 %v1642, %v1915
    %v1962 = vsub.f32 %v1643, %v1915
    %v1963 = vsub.f32 %v1644, %v1915
    %v1964 = vsub.f32 %v1645, %v1915
    %v1965 = vsub.f32 %v1646, %v1919
    %v1966 = vsub.f32 %v1647, %v1919
    %v1967 = vsub.f32 %v1648, %v1919
    %v1968 = vsub.f32 %v1649, %v1919
    %v1969 = vsub.f32 %v1650, %v1919
    %v1970 = vsub.f32 %v1651, %v1919
    %v1971 = vsub.f32 %v1652, %v1919
    %v1972 = vsub.f32 %v1653, %v1923
    %v1973 = vsub.f32 %v1654, %v1923
    %v1974 = vsub.f32 %v1655, %v1923
    %v1975 = vsub.f32 %v1656, %v1923
    %v1976 = vsub.f32 %v1657, %v1923
    %v1977 = vsub.f32 %v1658, %v1923
    %v1978 = vsub.f32 %v1659, %v1923
    %v1979 = vsub.f32 %v1660, %v1927
    %v1980 = vsub.f32 %v1661, %v1927
    %v1981 = vsub.f32 %v1662, %v1927
    %v1982 = vsub.f32 %v1663, %v1927
    %v1983 = vsub.f32 %v1664, %v1927
    %v1984 = vsub.f32 %v1665, %v1927
    %v1985 = vsub.f32 %v1666, %v1927
    %v1986 = vsub.f32 %v1667, %v1931
    %v1987 = vsub.f32 %v1668, %v1931
    %v1988 = vsub.f32 %v1669, %v1931
    %v1989 = vsub.f32 %v1670, %v1931
    %v1990 = vsub.f32 %v1671, %v1931
    %v1991 = vsub.f32 %v1672, %v1931
    %v1992 = vsub.f32 %v1673, %v1931
    %v1993 = vsub.f32 %v1674, %v1935
    %v1994 = vsub.f32 %v1675, %v1935
    %v1995 = vsub.f32 %v1676, %v1935
    %v1996 = vsub.f32 %v1677, %v1935
    %v1997 = vsub.f32 %v1678, %v1935
    %v1998 = vsub.f32 %v1679, %v1935
    %v1999 = vsub.f32 %v1680, %v1935
    %v2000 = vmul.f32 %v1944, 1.442695
    %v2001 = vpow.pop %v2000
    %v2002 = vmul.f32 %v1945, 1.442695
    %v2003 = vpow.pop %v2002
    %v2004 = vmul.f32 %v1946, 1.442695
    %v2005 = vpow.pop %v2004
    %v2006 = vmul.f32 %v1947, 1.442695
    %v2007 = vpow.pop %v2006
    %v2008 = vmul.f32 %v1948, 1.442695
    %v2009 = vpow.pop %v2008
    %v2010 = vmul.f32 %v1949, 1.442695
    %v2011 = vpow.pop %v2010
    %v2012 = vmul.f32 %v1950, 1.442695
    %v2013 = vpow.pop %v2012
    %v2014 = vmul.f32 %v1951, 1.442695
    %v2015 = vpow.pop %v2014
    %v2016 = vmul.f32 %v1952, 1.442695
    %v2017 = vpow.pop %v2016
    %v2018 = vmul.f32 %v1953, 1.442695
    %v2019 = vpow.pop %v2018
    %v2020 = vmul.f32 %v1954, 1.442695
    %v2021 = vpow.pop %v2020
    %v2022 = vmul.f32 %v1955, 1.442695
    %v2023 = vpow.pop %v2022
    %v2024 = vmul.f32 %v1956, 1.442695
    %v2025 = vpow.pop %v2024
    %v2026 = vmul.f32 %v1957, 1.442695
    %v2027 = vpow.pop %v2026
    %v2028 = vmul.f32 %v1958, 1.442695
    %v2029 = vpow.pop %v2028
    %v2030 = vmul.f32 %v1959, 1.442695
    %v2031 = vpow.pop %v2030
    %v2032 = vmul.f32 %v1960, 1.442695
    %v2033 = vpow.pop %v2032
    %v2034 = vmul.f32 %v1961, 1.442695
    %v2035 = vpow.pop %v2034
    %v2036 = vmul.f32 %v1962, 1.442695
    %v2037 = vpow.pop %v2036
    %v2038 = vmul.f32 %v1963, 1.442695
    %v2039 = vpow.pop %v2038
    %v2040 = vmul.f32 %v1964, 1.442695
    %v2041 = vpow.pop %v2040
    %v2042 = vmul.f32 %v1965, 1.442695
    %v2043 = vpow.pop %v2042
    %v2044 = vmul.f32 %v1966, 1.442695
    %v2045 = vpow.pop %v2044
    %v2046 = vmul.f32 %v1967, 1.442695
    %v2047 = vpow.pop %v2046
    %v2048 = vmul.f32 %v1968, 1.442695
    %v2049 = vpow.pop %v2048
    %v2050 = vmul.f32 %v1969, 1.442695
    %v2051 = vpow.pop %v2050
    %v2052 = vmul.f32 %v1970, 1.442695
    %v2053 = vpow.pop %v2052
    %v2054 = vmul.f32 %v1971, 1.442695
    %v2055 = vpow.pop %v2054
    %v2056 = vmul.f32 %v1972, 1.442695
    %v2057 = vpow.pop %v2056
    %v2058 = vmul.f32 %v1973, 1.442695
    %v2059 = vpow.pop %v2058
    %v2060 = vmul.f32 %v1974, 1.442695
    %v2061 = vpow.pop %v2060
    %v2062 = vmul.f32 %v1975, 1.442695
    %v2063 = vpow.pop %v2062
    %v2064 = vmul.f32 %v1976, 1.442695
    %v2065 = vpow.pop %v2064
    %v2066 = vmul.f32 %v1977, 1.442695
    %v2067 = vpow.pop %v2066
    %v2068 = vmul.f32 %v1978, 1.442695
    %v2069 = vpow.pop %v2068
    %v2070 = vmul.f32 %v1979, 1.442695
    %v2071 = vpow.pop %v2070
    %v2072 = vmul.f32 %v1980, 1.442695
    %v2073 = vpow.pop %v2072
    %v2074 = vmul.f32 %v1981, 1.442695
    %v2075 = vpow.pop %v2074
    %v2076 = vmul.f32 %v1982, 1.442695
    %v2077 = vpow.pop %v2076
    %v2078 = vmul.f32 %v1983, 1.442695
    %v2079 = vpow.pop %v2078
    %v2080 = vmul.f32 %v1984, 1.442695
    %v2081 = vpow.pop %v2080
    %v2082 = vmul.f32 %v1985, 1.442695
    %v2083 = vpow.pop %v2082
    %v2084 = vmul.f32 %v1986, 1.442695
    %v2085 = vpow.pop %v2084
    %v2086 = vmul.f32 %v1987, 1.442695
    %v2087 = vpow.pop %v2086
    %v2088 = vmul.f32 %v1988, 1.442695
    %v2089 = vpow.pop %v2088
    %v2090 = vmul.f32 %v1989, 1.442695
    %v2091 = vpow.pop %v2090
    %v2092 = vmul.f32 %v1990, 1.442695
    %v2093 = vpow.pop %v2092
    %v2094 = vmul.f32 %v1991, 1.442695
    %v2095 = vpow.pop %v2094
    %v2096 = vmul.f32 %v1992, 1.442695
    %v2097 = vpow.pop %v2096
    %v2098 = vmul.f32 %v1993, 1.442695
    %v2099 = vpow.pop %v2098
    %v2100 = vmul.f32 %v1994, 1.442695
    %v2101 = vpow.pop %v2100
    %v2102 = vmul.f32 %v1995, 1.442695
    %v2103 = vpow.pop %v2102
    %v2104 = vmul.f32 %v1996, 1.442695
    %v2105 = vpow.pop %v2104
    %v2106 = vmul.f32 %v1997, 1.442695
    %v2107 = vpow.pop %v2106
    %v2108 = vmul.f32 %v1998, 1.442695
    %v2109 = vpow.pop %v2108
    %v2110 = vmul.f32 %v1999, 1.442695
    %v2111 = vpow.pop %v2110
    %v2112 = vsel %vm1681, %v2001, 0.0
    %v2113 = vsel %vm1681, %v2003, 0.0
    %v2114 = vadd.f32 %v2112, %v2113
    %v2115 = vsel %vm1681, %v2005, 0.0
    %v2116 = vadd.f32 %v2114, %v2115
    %v2117 = vsel %vm1681, %v2007, 0.0
    %v2118 = vadd.f32 %v2116, %v2117
    %v2119 = vsel %vm1681, %v2009, 0.0
    %v2120 = vadd.f32 %v2118, %v2119
    %v2121 = vsel %vm1681, %v2011, 0.0
    %v2122 = vadd.f32 %v2120, %v2121
    %v2123 = vsel %vm1681, %v2013, 0.0
    %v2124 = vadd.f32 %v2122, %v2123
    %v2125 = vrot.slane %v2124, 4
    %v2126 = vadd.f32 %v2124, %v2125
    %v2127 = vrot.slane %v2126, 2
    %v2128 = vadd.f32 %v2126, %v2127
    %v2129 = vrot.slane %v2128, 1
    %v2130 = vadd.f32 %v2128, %v2129
    %v2131 = vsel %vm1681, %v2015, 0.0
    %v2132 = vsel %vm1681, %v2017, 0.0
    %v2133 = vadd.f32 %v2131, %v2132
    %v2134 = vsel %vm1681, %v2019, 0.0
    %v2135 = vadd.f32 %v2133, %v2134
    %v2136 = vsel %vm1681, %v2021, 0.0
    %v2137 = vadd.f32 %v2135, %v2136
    %v2138 = vsel %vm1681, %v2023, 0.0
    %v2139 = vadd.f32 %v2137, %v2138
    %v2140 = vsel %vm1681, %v2025, 0.0
    %v2141 = vadd.f32 %v2139, %v2140
    %v2142 = vsel %vm1681, %v2027, 0.0
    %v2143 = vadd.f32 %v2141, %v2142
    %v2144 = vrot.slane %v2143, 4
    %v2145 = vadd.f32 %v2143, %v2144
    %v2146 = vrot.slane %v2145, 2
    %v2147 = vadd.f32 %v2145, %v2146
    %v2148 = vrot.slane %v2147, 1
    %v2149 = vadd.f32 %v2147, %v2148
    %v2150 = vsel %vm1681, %v2029, 0.0
    %v2151 = vsel %vm1681, %v2031, 0.0
    %v2152 = vadd.f32 %v2150, %v2151
    %v2153 = vsel %vm1681, %v2033, 0.0
    %v2154 = vadd.f32 %v2152, %v2153
    %v2155 = vsel %vm1681, %v2035, 0.0
    %v2156 = vadd.f32 %v2154, %v2155
    %v2157 = vsel %vm1681, %v2037, 0.0
    %v2158 = vadd.f32 %v2156, %v2157
    %v2159 = vsel %vm1681, %v2039, 0.0
    %v2160 = vadd.f32 %v2158, %v2159
    %v2161 = vsel %vm1681, %v2041, 0.0
    %v2162 = vadd.f32 %v2160, %v2161
    %v2163 = vrot.slane %v2162, 4
    %v2164 = vadd.f32 %v2162, %v2163
    %v2165 = vrot.slane %v2164, 2
    %v2166 = vadd.f32 %v2164, %v2165
    %v2167 = vrot.slane %v2166, 1
    %v2168 = vadd.f32 %v2166, %v2167
    %v2169 = vsel %vm1681, %v2043, 0.0
    %v2170 = vsel %vm1681, %v2045, 0.0
    %v2171 = vadd.f32 %v2169, %v2170
    %v2172 = vsel %vm1681, %v2047, 0.0
    %v2173 = vadd.f32 %v2171, %v2172
    %v2174 = vsel %vm1681, %v2049, 0.0
    %v2175 = vadd.f32 %v2173, %v2174
    %v2176 = vsel %vm1681, %v2051, 0.0
    %v2177 = vadd.f32 %v2175, %v2176
    %v2178 = vsel %vm1681, %v2053, 0.0
    %v2179 = vadd.f32 %v2177, %v2178
    %v2180 = vsel %vm1681, %v2055, 0.0
    %v2181 = vadd.f32 %v2179, %v2180
    %v2182 = vrot.slane %v2181, 4
    %v2183 = vadd.f32 %v2181, %v2182
    %v2184 = vrot.slane %v2183, 2
    %v2185 = vadd.f32 %v2183, %v2184
    %v2186 = vrot.slane %v2185, 1
    %v2187 = vadd.f32 %v2185, %v2186
    %v2188 = vsel %vm1681, %v2057, 0.0
    %v2189 = vsel %vm1681, %v2059, 0.0
    %v2190 = vadd.f32 %v2188, %v2189
    %v2191 = vsel %vm1681, %v2061, 0.0
    %v2192 = vadd.f32 %v2190, %v2191
    %v2193 = vsel %vm1681, %v2063, 0.0
    %v2194 = vadd.f32 %v2192, %v2193
    %v2195 = vsel %vm1681, %v2065, 0.0
    %v2196 = vadd.f32 %v2194, %v2195
    %v2197 = vsel %vm1681, %v2067, 0.0
    %v2198 = vadd.f32 %v2196, %v2197
    %v2199 = vsel %vm1681, %v2069, 0.0
    %v2200 = vadd.f32 %v2198, %v2199
    %v2201 = vrot.slane %v2200, 4
    %v2202 = vadd.f32 %v2200, %v2201
    %v2203 = vrot.slane %v2202, 2
    %v2204 = vadd.f32 %v2202, %v2203
    %v2205 = vrot.slane %v2204, 1
    %v2206 = vadd.f32 %v2204, %v2205
    %v2207 = vsel %vm1681, %v2071, 0.0
    %v2208 = vsel %vm1681, %v2073, 0.0
    %v2209 = vadd.f32 %v2207, %v2208
    %v2210 = vsel %vm1681, %v2075, 0.0
    %v2211 = vadd.f32 %v2209, %v2210
    %v2212 = vsel %vm1681, %v2077, 0.0
    %v2213 = vadd.f32 %v2211, %v2212
    %v2214 = vsel %vm1681, %v2079, 0.0
    %v2215 = vadd.f32 %v2213, %v2214
    %v2216 = vsel %vm1681, %v2081, 0.0
    %v2217 = vadd.f32 %v2215, %v2216
    %v2218 = vsel %vm1681, %v2083, 0.0
    %v2219 = vadd.f32 %v2217, %v2218
    %v2220 = vrot.slane %v2219, 4
    %v2221 = vadd.f32 %v2219, %v2220
    %v2222 = vrot.slane %v2221, 2
    %v2223 = vadd.f32 %v2221, %v2222
    %v2224 = vrot.slane %v2223, 1
    %v2225 = vadd.f32 %v2223, %v2224
    %v2226 = vsel %vm1681, %v2085, 0.0
    %v2227 = vsel %vm1681, %v2087, 0.0
    %v2228 = vadd.f32 %v2226, %v2227
    %v2229 = vsel %vm1681, %v2089, 0.0
    %v2230 = vadd.f32 %v2228, %v2229
    %v2231 = vsel %vm1681, %v2091, 0.0
    %v2232 = vadd.f32 %v2230, %v2231
    %v2233 = vsel %vm1681, %v2093, 0.0
    %v2234 = vadd.f32 %v2232, %v2233
    %v2235 = vsel %vm1681, %v2095, 0.0
    %v2236 = vadd.f32 %v2234, %v2235
    %v2237 = vsel %vm1681, %v2097, 0.0
    %v2238 = vadd.f32 %v2236, %v2237
    %v2239 = vrot.slane %v2238, 4
    %v2240 = vadd.f32 %v2238, %v2239
    %v2241 = vrot.slane %v2240, 2
    %v2242 = vadd.f32 %v2240, %v2241
    %v2243 = vrot.slane %v2242, 1
    %v2244 = vadd.f32 %v2242, %v2243
    %v2245 = vsel %vm1681, %v2099, 0.0
    %v2246 = vsel %vm1681, %v2101, 0.0
    %v2247 = vadd.f32 %v2245, %v2246
    %v2248 = vsel %vm1681, %v2103, 0.0
    %v2249 = vadd.f32 %v2247, %v2248
    %v2250 = vsel %vm1681, %v2105, 0.0
    %v2251 = vadd.f32 %v2249, %v2250
    %v2252 = vsel %vm1681, %v2107, 0.0
    %v2253 = vadd.f32 %v2251, %v2252
    %v2254 = vsel %vm1681, %v2109, 0.0
    %v2255 = vadd.f32 %v2253, %v2254
    %v2256 = vsel %vm1681, %v2111, 0.0
    %v2257 = vadd.f32 %v2255, %v2256
    %v2258 = vrot.slane %v2257, 4
    %v2259 = vadd.f32 %v2257, %v2258
    %v2260 = vrot.slane %v2259, 2
    %v2261 = vadd.f32 %v2259, %v2260
    %v2262 = vrot.slane %v2261, 1
    %v2263 = vadd.f32 %v2261, %v2262
    %v2272 = vsel %vm538, %v2149, %v2130
    %v2273 = vsel %vm541, %v2168, %v2272
    %v2274 = vsel %vm544, %v2187, %v2273
    %v2275 = vsel %vm547, %v2206, %v2274
    %v2276 = vsel %vm550, %v2225, %v2275
    %v2277 = vsel %vm553, %v2244, %v2276
    %v2278 = vsel %vm556, %v2263, %v2277
    %v2280 = vadd.f32 %v1853, %v2278
    %v2281 = vrcp.pop %v2280
    %v2282 = vmul.f32 %v1853, %v2281
    %v2284 = vcombine.high %v2281, %v2281
    %v2286 = vunpack.c.l.s4 1966171168
    %v2287 = vunpack.c.0.s8 %v2286
    %v2288 = vlaneseq
    %v2289 = vshrl.u32 %v2288, 7
    %v2290 = vsub.s32 %v2287, %v2289
    %v2291 = vrot.slane %v2281, %v2290
    %v2293 = vunpack.c.l.s4 1966171168
    %v2294 = vunpack.c.0.s8 %v2293
    %v2295 = vlaneseq
    %v2296 = vshrl.u32 %v2295, 7
    %v2297 = vsub.s32 %v2294, %v2296
    %v2298 = vrot.slane %v2284, %v2297
    %v2299 = vcombine.high %v2291, %v2291
    %v2300 = vcombine.high %v2298, %v2298
    %v2302 = vunpack.c.l.s4 1966171168
    %v2303 = vunpack.c.0.s8 %v2302
    %v2304 = vlaneseq
    %v2305 = vshrl.u32 %v2304, 7
    %v2306 = vsub.s32 %v2303, %v2305
    %v2307 = vrot.slane %v2291, %v2306
    %v2309 = vunpack.c.l.s4 1966171168
    %v2310 = vunpack.c.0.s8 %v2309
    %v2311 = vlaneseq
    %v2312 = vshrl.u32 %v2311, 7
    %v2313 = vsub.s32 %v2310, %v2312
    %v2314 = vrot.slane %v2298, %v2313
    %v2316 = vunpack.c.l.s4 1966171168
    %v2317 = vunpack.c.0.s8 %v2316
    %v2318 = vlaneseq
    %v2319 = vshrl.u32 %v2318, 7
    %v2320 = vsub.s32 %v2317, %v2319
    %v2321 = vrot.slane %v2299, %v2320
    %v2323 = vunpack.c.l.s4 1966171168
    %v2324 = vunpack.c.0.s8 %v2323
    %v2325 = vlaneseq
    %v2326 = vshrl.u32 %v2325, 7
    %v2327 = vsub.s32 %v2324, %v2326
    %v2328 = vrot.slane %v2300, %v2327
    %v2329 = vcombine.high %v2307, %v2307
    %v2330 = vcombine.high %v2314, %v2314
    %v2331 = vcombine.high %v2321, %v2321
    %v2332 = vcombine.high %v2328, %v2328
    %v2333 = vlaneseq
    %v2334 = vshrl.u32 %v2333, 7
    %v2335 = vsub.s32 0, %v2334
    %v2336 = vrot.slane %v2307, %v2335
    %v2337 = vlaneseq
    %v2338 = vshrl.u32 %v2337, 7
    %v2339 = vsub.s32 0, %v2338
    %v2340 = vrot.slane %v2321, %v2339
    %v2341 = vlaneseq
    %v2342 = vshrl.u32 %v2341, 7
    %v2343 = vsub.s32 0, %v2342
    %v2344 = vrot.slane %v2329, %v2343
    %v2345 = vlaneseq
    %v2346 = vshrl.u32 %v2345, 7
    %v2347 = vsub.s32 0, %v2346
    %v2348 = vrot.slane %v2331, %v2347
    %v2349 = vlaneseq
    %v2350 = vshrl.u32 %v2349, 7
    %v2351 = vsub.s32 0, %v2350
    %v2352 = vrot.slane %v2314, %v2351
    %v2353 = vlaneseq
    %v2354 = vshrl.u32 %v2353, 7
    %v2355 = vsub.s32 0, %v2354
    %v2356 = vrot.slane %v2328, %v2355
    %v2357 = vlaneseq
    %v2358 = vshrl.u32 %v2357, 7
    %v2359 = vsub.s32 0, %v2358
    %v2360 = vrot.slane %v2330, %v2359
    %v2361 = vlaneseq
    %v2362 = vshrl.u32 %v2361, 7
    %v2363 = vsub.s32 0, %v2362
    %v2364 = vrot.slane %v2332, %v2363
    %v2373 = vmul.f32 %v2001, %v2336
    %v2374 = vmul.f32 %v2003, %v2336
    %v2375 = vmul.f32 %v2005, %v2336
    %v2376 = vmul.f32 %v2007, %v2336
    %v2377 = vmul.f32 %v2009, %v2336
    %v2378 = vmul.f32 %v2011, %v2336
    %v2379 = vmul.f32 %v2013, %v2336
    %v2380 = vmul.f32 %v2015, %v2340
    %v2381 = vmul.f32 %v2017, %v2340
    %v2382 = vmul.f32 %v2019, %v2340
    %v2383 = vmul.f32 %v2021, %v2340
    %v2384 = vmul.f32 %v2023, %v2340
    %v2385 = vmul.f32 %v2025, %v2340
    %v2386 = vmul.f32 %v2027, %v2340
    %v2387 = vmul.f32 %v2029, %v2344
    %v2388 = vmul.f32 %v2031, %v2344
    %v2389 = vmul.f32 %v2033, %v2344
    %v2390 = vmul.f32 %v2035, %v2344
    %v2391 = vmul.f32 %v2037, %v2344
    %v2392 = vmul.f32 %v2039, %v2344
    %v2393 = vmul.f32 %v2041, %v2344
    %v2394 = vmul.f32 %v2043, %v2348
    %v2395 = vmul.f32 %v2045, %v2348
    %v2396 = vmul.f32 %v2047, %v2348
    %v2397 = vmul.f32 %v2049, %v2348
    %v2398 = vmul.f32 %v2051, %v2348
    %v2399 = vmul.f32 %v2053, %v2348
    %v2400 = vmul.f32 %v2055, %v2348
    %v2401 = vmul.f32 %v2057, %v2352
    %v2402 = vmul.f32 %v2059, %v2352
    %v2403 = vmul.f32 %v2061, %v2352
    %v2404 = vmul.f32 %v2063, %v2352
    %v2405 = vmul.f32 %v2065, %v2352
    %v2406 = vmul.f32 %v2067, %v2352
    %v2407 = vmul.f32 %v2069, %v2352
    %v2408 = vmul.f32 %v2071, %v2356
    %v2409 = vmul.f32 %v2073, %v2356
    %v2410 = vmul.f32 %v2075, %v2356
    %v2411 = vmul.f32 %v2077, %v2356
    %v2412 = vmul.f32 %v2079, %v2356
    %v2413 = vmul.f32 %v2081, %v2356
    %v2414 = vmul.f32 %v2083, %v2356
    %v2415 = vmul.f32 %v2085, %v2360
    %v2416 = vmul.f32 %v2087, %v2360
    %v2417 = vmul.f32 %v2089, %v2360
    %v2418 = vmul.f32 %v2091, %v2360
    %v2419 = vmul.f32 %v2093, %v2360
    %v2420 = vmul.f32 %v2095, %v2360
    %v2421 = vmul.f32 %v2097, %v2360
    %v2422 = vmul.f32 %v2099, %v2364
    %v2423 = vmul.f32 %v2101, %v2364
    %v2424 = vmul.f32 %v2103, %v2364
    %v2425 = vmul.f32 %v2105, %v2364
    %v2426 = vmul.f32 %v2107, %v2364
    %v2427 = vmul.f32 %v2109, %v2364
    %v2428 = vmul.f32 %v2111, %v2364
    %v2429 = vpack.c.bf16 %v2282, %v2282
    %v2431 = vsel %vm1681, %v2429, 0
    %vm2433 = vcmask 1041408
    %v2435 = vsel %vm2433, %v1023, 0
    %2437 = vmatprep.subr.bf16.mxu0 0
    %2438 = vmatpush1.bf16.msra.mxu0 %v2435
    %2439 = vmatprep.subr.bf16.mxu0 0
    %2440 = vmatpush1.bf16.msra.mxu0 0
    %2441 = vmatprep.subr.bf16.mxu0 0
    %2442 = vmatpush1.bf16.msra.mxu0 0
    %2443 = vmatprep.subr.bf16.mxu0 0
    %2444 = vmatpush1.bf16.msra.mxu0 0
    %2445 = vmatprep.subr.bf16.mxu0 0
    %2446 = vmatpush1.bf16.msra.mxu0 0
    %2447 = vmatprep.subr.bf16.mxu0 0
    %2448 = vmatpush1.bf16.msra.mxu0 0
    %2449 = vmatprep.subr.bf16.mxu0 0
    %2450 = vmatpush1.bf16.msra.mxu0 0
    %2451 = vmatprep.subr.bf16.mxu0 0
    %2452 = vmatpush1.bf16.msra.mxu0 0
    %2453 = vmatprep.subr.bf16.mxu0 0
    %2454 = vmatpush1.bf16.msra.mxu0 0
    %2455 = vmatprep.subr.bf16.mxu0 0
    %2456 = vmatpush1.bf16.msra.mxu0 0
    %2457 = vmatprep.subr.bf16.mxu0 0
    %2458 = vmatpush1.bf16.msra.mxu0 0
    %2459 = vmatprep.subr.bf16.mxu0 0
    %2460 = vmatpush1.bf16.msra.mxu0 0
    %2461 = vmatprep.subr.bf16.mxu0 0
    %2462 = vmatpush1.bf16.msra.mxu0 0
    %2463 = vmatprep.subr.bf16.mxu0 0
    %2464 = vmatpush1.bf16.msra.mxu0 0
    %2465 = vmatprep.subr.bf16.mxu0 0
    %2466 = vmatpush1.bf16.msra.mxu0 0
    %2467 = vmatprep.subr.bf16.mxu0 0
    %2468 = vmatpush1.bf16.msra.mxu0 0
    %2469 = vmatprep.mubr.bf16.mxu0 0
    %2470 = vmatmul.mubr.bf16.gmra.mrb[0].mxu0 %v2431
    %v2471 = vpop.f32.mrb[0].mxu0
    %v2472 = vadd.f32 0.0, %v2471
    %v2473 = vpop.f32.mrb[0].mxu0
    %v2474 = vpop.f32.mrb[0].mxu0
    %v2475 = vpop.f32.mrb[0].mxu0
    %2476 = vdwg.mxu0
    %v2477 = vpack.c.bf16 %v2374, %v2373
    %v2478 = vpack.c.bf16 %v2376, %v2375
    %v2479 = vpack.c.bf16 %v2378, %v2377
    %v2480 = vpack.c.bf16 %v2380, %v2379
    %v2481 = vpack.c.bf16 %v2382, %v2381
    %v2482 = vpack.c.bf16 %v2384, %v2383
    %v2483 = vpack.c.bf16 %v2386, %v2385
    %v2484 = vpack.c.bf16 %v2388, %v2387
    %v2485 = vpack.c.bf16 %v2390, %v2389
    %v2486 = vpack.c.bf16 %v2392, %v2391
    %v2487 = vpack.c.bf16 %v2394, %v2393
    %v2488 = vpack.c.bf16 %v2396, %v2395
    %v2489 = vpack.c.bf16 %v2398, %v2397
    %v2490 = vpack.c.bf16 %v2400, %v2399
    %v2491 = vpack.c.bf16 %v2402, %v2401
    %v2492 = vpack.c.bf16 %v2404, %v2403
    %v2493 = vpack.c.bf16 %v2406, %v2405
    %v2494 = vpack.c.bf16 %v2408, %v2407
    %v2495 = vpack.c.bf16 %v2410, %v2409
    %v2496 = vpack.c.bf16 %v2412, %v2411
    %v2497 = vpack.c.bf16 %v2414, %v2413
    %v2498 = vpack.c.bf16 %v2416, %v2415
    %v2499 = vpack.c.bf16 %v2418, %v2417
    %v2500 = vpack.c.bf16 %v2420, %v2419
    %v2501 = vpack.c.bf16 %v2422, %v2421
    %v2502 = vpack.c.bf16 %v2424, %v2423
    %v2503 = vpack.c.bf16 %v2426, %v2425
    %v2504 = vpack.c.bf16 %v2428, %v2427
    %v2506 = vsel %vm1681, %v2477, 0
    %v2509 = vsel %vm1681, %v2478, 0
    %v2512 = vsel %vm1681, %v2479, 0
    %v2515 = vsel %vm1681, %v2480, 0
    %v2518 = vsel %vm1681, %v2481, 0
    %v2521 = vsel %vm1681, %v2482, 0
    %v2524 = vsel %vm1681, %v2483, 0
    %v2527 = vsel %vm1681, %v2484, 0
    %v2530 = vsel %vm1681, %v2485, 0
    %v2533 = vsel %vm1681, %v2486, 0
    %v2536 = vsel %vm1681, %v2487, 0
    %v2539 = vsel %vm1681, %v2488, 0
    %v2542 = vsel %vm1681, %v2489, 0
    %v2545 = vsel %vm1681, %v2490, 0
    %v2548 = vsel %vm1681, %v2491, 0
    %v2551 = vsel %vm1681, %v2492, 0
    %v2554 = vsel %vm1681, %v2493, 0
    %v2557 = vsel %vm1681, %v2494, 0
    %v2560 = vsel %vm1681, %v2495, 0
    %v2563 = vsel %vm1681, %v2496, 0
    %v2566 = vsel %vm1681, %v2497, 0
    %v2569 = vsel %vm1681, %v2498, 0
    %v2572 = vsel %vm1681, %v2499, 0
    %v2575 = vsel %vm1681, %v2500, 0
    %v2578 = vsel %vm1681, %v2501, 0
    %v2581 = vsel %vm1681, %v2502, 0
    %v2584 = vsel %vm1681, %v2503, 0
    %v2587 = vsel %vm1681, %v2504, 0
    %2589 = vmatprep.subr.bf16.mxu0 0
    %2590 = vmatpush1.bf16.msra.mxu0 %v2435
    %2591 = vmatprep.subr.bf16.mxu0 0
    %2592 = vmatpush1.bf16.msra.mxu0 0
    %2593 = vmatprep.subr.bf16.mxu0 0
    %2594 = vmatpush1.bf16.msra.mxu0 0
    %2595 = vmatprep.subr.bf16.mxu0 0
    %2596 = vmatpush1.bf16.msra.mxu0 0
    %2597 = vmatprep.subr.bf16.mxu0 0
    %2598 = vmatpush1.bf16.msra.mxu0 0
    %2599 = vmatprep.subr.bf16.mxu0 0
    %2600 = vmatpush1.bf16.msra.mxu0 0
    %2601 = vmatprep.subr.bf16.mxu0 0
    %2602 = vmatpush1.bf16.msra.mxu0 0
    %2603 = vmatprep.subr.bf16.mxu0 0
    %2604 = vmatpush1.bf16.msra.mxu0 0
    %2605 = vmatprep.subr.bf16.mxu0 0
    %2606 = vmatpush1.bf16.msra.mxu0 0
    %2607 = vmatprep.subr.bf16.mxu0 0
    %2608 = vmatpush1.bf16.msra.mxu0 0
    %2609 = vmatprep.subr.bf16.mxu0 0
    %2610 = vmatpush1.bf16.msra.mxu0 0
    %2611 = vmatprep.subr.bf16.mxu0 0
    %2612 = vmatpush1.bf16.msra.mxu0 0
    %2613 = vmatprep.subr.bf16.mxu0 0
    %2614 = vmatpush1.bf16.msra.mxu0 0
    %2615 = vmatprep.subr.bf16.mxu0 0
    %2616 = vmatpush1.bf16.msra.mxu0 0
    %2617 = vmatprep.subr.bf16.mxu0 0
    %2618 = vmatpush1.bf16.msra.mxu0 0
    %2619 = vmatprep.subr.bf16.mxu0 0
    %2620 = vmatpush1.bf16.msra.mxu0 0
    %2621 = vmatprep.mubr.bf16.mxu0 0
    %2622 = vmatmul.mubr.bf16.gmra.mrb[0].mxu0 %v2506
    %v2623 = vpop.f32.mrb[0].mxu0
    %v2624 = vadd.f32 0.0, %v2623
    %v2625 = vpop.f32.mrb[0].mxu0
    %v2626 = vpop.f32.mrb[0].mxu0
    %v2627 = vadd.f32 0.0, %v2626
    %v2628 = vpop.f32.mrb[0].mxu0
    %2629 = vmatprep.mubr.bf16.mxu0 0
    %2630 = vmatmul.mubr.bf16.gmra.mrb[0].mxu0 %v2509
    %v2631 = vpop.f32.mrb[0].mxu0
    %v2632 = vadd.f32 0.0, %v2631
    %v2633 = vpop.f32.mrb[0].mxu0
    %v2634 = vpop.f32.mrb[0].mxu0
    %v2635 = vadd.f32 0.0, %v2634
    %v2636 = vpop.f32.mrb[0].mxu0
    %2637 = vmatprep.mubr.bf16.mxu0 0
    %2638 = vmatmul.mubr.bf16.gmra.mrb[0].mxu0 %v2512
    %v2639 = vpop.f32.mrb[0].mxu0
    %v2640 = vadd.f32 0.0, %v2639
    %v2641 = vpop.f32.mrb[0].mxu0
    %v2642 = vpop.f32.mrb[0].mxu0
    %v2643 = vadd.f32 0.0, %v2642
    %v2644 = vpop.f32.mrb[0].mxu0
    %2645 = vmatprep.mubr.bf16.mxu0 0
    %2646 = vmatmul.mubr.bf16.gmra.mrb[0].mxu0 %v2515
    %v2647 = vpop.f32.mrb[0].mxu0
    %v2648 = vadd.f32 0.0, %v2647
    %v2649 = vpop.f32.mrb[0].mxu0
    %v2650 = vpop.f32.mrb[0].mxu0
    %v2651 = vadd.f32 0.0, %v2650
    %v2652 = vpop.f32.mrb[0].mxu0
    %2653 = vmatprep.mubr.bf16.mxu0 0
    %2654 = vmatmul.mubr.bf16.gmra.mrb[0].mxu0 %v2518
    %v2655 = vpop.f32.mrb[0].mxu0
    %v2656 = vadd.f32 0.0, %v2655
    %v2657 = vpop.f32.mrb[0].mxu0
    %v2658 = vpop.f32.mrb[0].mxu0
    %v2659 = vadd.f32 0.0, %v2658
    %v2660 = vpop.f32.mrb[0].mxu0
    %2661 = vmatprep.mubr.bf16.mxu0 0
    %2662 = vmatmul.mubr.bf16.gmra.mrb[0].mxu0 %v2521
    %v2663 = vpop.f32.mrb[0].mxu0
    %v2664 = vadd.f32 0.0, %v2663
    %v2665 = vpop.f32.mrb[0].mxu0
    %v2666 = vpop.f32.mrb[0].mxu0
    %v2667 = vadd.f32 0.0, %v2666
    %v2668 = vpop.f32.mrb[0].mxu0
    %2669 = vmatprep.mubr.bf16.mxu0 0
    %2670 = vmatmul.mubr.bf16.gmra.mrb[0].mxu0 %v2524
    %v2671 = vpop.f32.mrb[0].mxu0
    %v2672 = vadd.f32 0.0, %v2671
    %v2673 = vpop.f32.mrb[0].mxu0
    %v2674 = vpop.f32.mrb[0].mxu0
    %v2675 = vadd.f32 0.0, %v2674
    %v2676 = vpop.f32.mrb[0].mxu0
    %2677 = vmatprep.mubr.bf16.mxu0 0
    %2678 = vmatmul.mubr.bf16.gmra.mrb[0].mxu0 %v2527
    %v2679 = vpop.f32.mrb[0].mxu0
    %v2680 = vadd.f32 0.0, %v2679
    %v2681 = vpop.f32.mrb[0].mxu0
    %v2682 = vpop.f32.mrb[0].mxu0
    %v2683 = vadd.f32 0.0, %v2682
    %v2684 = vpop.f32.mrb[0].mxu0
    %2685 = vmatprep.mubr.bf16.mxu0 0
    %2686 = vmatmul.mubr.bf16.gmra.mrb[0].mxu0 %v2530
    %v2687 = vpop.f32.mrb[0].mxu0
    %v2688 = vadd.f32 0.0, %v2687
    %v2689 = vpop.f32.mrb[0].mxu0
    %v2690 = vpop.f32.mrb[0].mxu0
    %v2691 = vadd.f32 0.0, %v2690
    %v2692 = vpop.f32.mrb[0].mxu0
    %2693 = vmatprep.mubr.bf16.mxu0 0
    %2694 = vmatmul.mubr.bf16.gmra.mrb[0].mxu0 %v2533
    %v2695 = vpop.f32.mrb[0].mxu0
    %v2696 = vadd.f32 0.0, %v2695
    %v2697 = vpop.f32.mrb[0].mxu0
    %v2698 = vpop.f32.mrb[0].mxu0
    %v2699 = vadd.f32 0.0, %v2698
    %v2700 = vpop.f32.mrb[0].mxu0
    %2701 = vmatprep.mubr.bf16.mxu0 0
    %2702 = vmatmul.mubr.bf16.gmra.mrb[0].mxu0 %v2536
    %v2703 = vpop.f32.mrb[0].mxu0
    %v2704 = vadd.f32 0.0, %v2703
    %v2705 = vpop.f32.mrb[0].mxu0
    %v2706 = vpop.f32.mrb[0].mxu0
    %v2707 = vadd.f32 0.0, %v2706
    %v2708 = vpop.f32.mrb[0].mxu0
    %2709 = vmatprep.mubr.bf16.mxu0 0
    %2710 = vmatmul.mubr.bf16.gmra.mrb[0].mxu0 %v2539
    %v2711 = vpop.f32.mrb[0].mxu0
    %v2712 = vadd.f32 0.0, %v2711
    %v2713 = vpop.f32.mrb[0].mxu0
    %v2714 = vpop.f32.mrb[0].mxu0
    %v2715 = vadd.f32 0.0, %v2714
    %v2716 = vpop.f32.mrb[0].mxu0
    %2717 = vmatprep.mubr.bf16.mxu0 0
    %2718 = vmatmul.mubr.bf16.gmra.mrb[0].mxu0 %v2542
    %v2719 = vpop.f32.mrb[0].mxu0
    %v2720 = vadd.f32 0.0, %v2719
    %v2721 = vpop.f32.mrb[0].mxu0
    %v2722 = vpop.f32.mrb[0].mxu0
    %v2723 = vadd.f32 0.0, %v2722
    %v2724 = vpop.f32.mrb[0].mxu0
    %2725 = vmatprep.mubr.bf16.mxu0 0
    %2726 = vmatmul.mubr.bf16.gmra.mrb[0].mxu0 %v2545
    %v2727 = vpop.f32.mrb[0].mxu0
    %v2728 = vadd.f32 0.0, %v2727
    %v2729 = vpop.f32.mrb[0].mxu0
    %v2730 = vpop.f32.mrb[0].mxu0
    %v2731 = vadd.f32 0.0, %v2730
    %v2732 = vpop.f32.mrb[0].mxu0
    %2733 = vmatprep.mubr.bf16.mxu0 0
    %2734 = vmatmul.mubr.bf16.gmra.mrb[0].mxu0 %v2548
    %v2735 = vpop.f32.mrb[0].mxu0
    %v2736 = vadd.f32 0.0, %v2735
    %v2737 = vpop.f32.mrb[0].mxu0
    %v2738 = vpop.f32.mrb[0].mxu0
    %v2739 = vadd.f32 0.0, %v2738
    %v2740 = vpop.f32.mrb[0].mxu0
    %2741 = vmatprep.mubr.bf16.mxu0 0
    %2742 = vmatmul.mubr.bf16.gmra.mrb[0].mxu0 %v2551
    %v2743 = vpop.f32.mrb[0].mxu0
    %v2744 = vadd.f32 0.0, %v2743
    %v2745 = vpop.f32.mrb[0].mxu0
    %v2746 = vpop.f32.mrb[0].mxu0
    %v2747 = vadd.f32 0.0, %v2746
    %v2748 = vpop.f32.mrb[0].mxu0
    %2749 = vmatprep.mubr.bf16.mxu0 0
    %2750 = vmatmul.mubr.bf16.gmra.mrb[0].mxu0 %v2554
    %v2751 = vpop.f32.mrb[0].mxu0
    %v2752 = vadd.f32 0.0, %v2751
    %v2753 = vpop.f32.mrb[0].mxu0
    %v2754 = vpop.f32.mrb[0].mxu0
    %v2755 = vadd.f32 0.0, %v2754
    %v2756 = vpop.f32.mrb[0].mxu0
    %2757 = vmatprep.mubr.bf16.mxu0 0
    %2758 = vmatmul.mubr.bf16.gmra.mrb[0].mxu0 %v2557
    %v2759 = vpop.f32.mrb[0].mxu0
    %v2760 = vadd.f32 0.0, %v2759
    %v2761 = vpop.f32.mrb[0].mxu0
    %v2762 = vpop.f32.mrb[0].mxu0
    %v2763 = vadd.f32 0.0, %v2762
    %v2764 = vpop.f32.mrb[0].mxu0
    %2765 = vmatprep.mubr.bf16.mxu0 0
    %2766 = vmatmul.mubr.bf16.gmra.mrb[0].mxu0 %v2560
    %v2767 = vpop.f32.mrb[0].mxu0
    %v2768 = vadd.f32 0.0, %v2767
    %v2769 = vpop.f32.mrb[0].mxu0
    %v2770 = vpop.f32.mrb[0].mxu0
    %v2771 = vadd.f32 0.0, %v2770
    %v2772 = vpop.f32.mrb[0].mxu0
    %2773 = vmatprep.mubr.bf16.mxu0 0
    %2774 = vmatmul.mubr.bf16.gmra.mrb[0].mxu0 %v2563
    %v2775 = vpop.f32.mrb[0].mxu0
    %v2776 = vadd.f32 0.0, %v2775
    %v2777 = vpop.f32.mrb[0].mxu0
    %v2778 = vpop.f32.mrb[0].mxu0
    %v2779 = vadd.f32 0.0, %v2778
    %v2780 = vpop.f32.mrb[0].mxu0
    %2781 = vmatprep.mubr.bf16.mxu0 0
    %2782 = vmatmul.mubr.bf16.gmra.mrb[0].mxu0 %v2566
    %v2783 = vpop.f32.mrb[0].mxu0
    %v2784 = vadd.f32 0.0, %v2783
    %v2785 = vpop.f32.mrb[0].mxu0
    %v2786 = vpop.f32.mrb[0].mxu0
    %v2787 = vadd.f32 0.0, %v2786
    %v2788 = vpop.f32.mrb[0].mxu0
    %2789 = vmatprep.mubr.bf16.mxu0 0
    %2790 = vmatmul.mubr.bf16.gmra.mrb[0].mxu0 %v2569
    %v2791 = vpop.f32.mrb[0].mxu0
    %v2792 = vadd.f32 0.0, %v2791
    %v2793 = vpop.f32.mrb[0].mxu0
    %v2794 = vpop.f32.mrb[0].mxu0
    %v2795 = vadd.f32 0.0, %v2794
    %v2796 = vpop.f32.mrb[0].mxu0
    %2797 = vmatprep.mubr.bf16.mxu0 0
    %2798 = vmatmul.mubr.bf16.gmra.mrb[0].mxu0 %v2572
    %v2799 = vpop.f32.mrb[0].mxu0
    %v2800 = vadd.f32 0.0, %v2799
    %v2801 = vpop.f32.mrb[0].mxu0
    %v2802 = vpop.f32.mrb[0].mxu0
    %v2803 = vadd.f32 0.0, %v2802
    %v2804 = vpop.f32.mrb[0].mxu0
    %2805 = vmatprep.mubr.bf16.mxu0 0
    %2806 = vmatmul.mubr.bf16.gmra.mrb[0].mxu0 %v2575
    %v2807 = vpop.f32.mrb[0].mxu0
    %v2808 = vadd.f32 0.0, %v2807
    %v2809 = vpop.f32.mrb[0].mxu0
    %v2810 = vpop.f32.mrb[0].mxu0
    %v2811 = vadd.f32 0.0, %v2810
    %v2812 = vpop.f32.mrb[0].mxu0
    %2813 = vmatprep.mubr.bf16.mxu0 0
    %2814 = vmatmul.mubr.bf16.gmra.mrb[0].mxu0 %v2578
    %v2815 = vpop.f32.mrb[0].mxu0
    %v2816 = vadd.f32 0.0, %v2815
    %v2817 = vpop.f32.mrb[0].mxu0
    %v2818 = vpop.f32.mrb[0].mxu0
    %v2819 = vadd.f32 0.0, %v2818
    %v2820 = vpop.f32.mrb[0].mxu0
    %2821 = vmatprep.mubr.bf16.mxu0 0
    %2822 = vmatmul.mubr.bf16.gmra.mrb[0].mxu0 %v2581
    %v2823 = vpop.f32.mrb[0].mxu0
    %v2824 = vadd.f32 0.0, %v2823
    %v2825 = vpop.f32.mrb[0].mxu0
    %v2826 = vpop.f32.mrb[0].mxu0
    %v2827 = vadd.f32 0.0, %v2826
    %v2828 = vpop.f32.mrb[0].mxu0
    %2829 = vmatprep.mubr.bf16.mxu0 0
    %2830 = vmatmul.mubr.bf16.gmra.mrb[0].mxu0 %v2584
    %v2831 = vpop.f32.mrb[0].mxu0
    %v2832 = vadd.f32 0.0, %v2831
    %v2833 = vpop.f32.mrb[0].mxu0
    %v2834 = vpop.f32.mrb[0].mxu0
    %v2835 = vadd.f32 0.0, %v2834
    %v2836 = vpop.f32.mrb[0].mxu0
    %2837 = vmatprep.mubr.bf16.mxu0 0
    %2838 = vmatmul.mubr.bf16.gmra.mrb[0].mxu0 %v2587
    %v2839 = vpop.f32.mrb[0].mxu0
    %v2840 = vadd.f32 0.0, %v2839
    %v2841 = vpop.f32.mrb[0].mxu0
    %v2842 = vpop.f32.mrb[0].mxu0
    %v2843 = vadd.f32 0.0, %v2842
    %v2844 = vpop.f32.mrb[0].mxu0
    %2845 = vdwg.mxu0
    %2847 = vrot.lane.b32.xlu0 %v673, 96
    %v2848 = vpop.permute.xlu0 %2847
    %v2850 = vmul.f32 %v2472, %v2848
    %2907 = vrot.lane.b32.xlu0 %v797, 96
    %v2908 = vpop.permute.xlu0 %2907
    %2909 = vrot.lane.b32.xlu0 %v800, 96
    %v2910 = vpop.permute.xlu0 %2909
    %2911 = vrot.lane.b32.xlu0 %v805, 96
    %v2912 = vpop.permute.xlu0 %2911
    %2913 = vrot.lane.b32.xlu0 %v808, 96
    %v2914 = vpop.permute.xlu0 %2913
    %2915 = vrot.lane.b32.xlu0 %v813, 96
    %v2916 = vpop.permute.xlu0 %2915
    %2917 = vrot.lane.b32.xlu0 %v816, 96
    %v2918 = vpop.permute.xlu0 %2917
    %2919 = vrot.lane.b32.xlu0 %v821, 96
    %v2920 = vpop.permute.xlu0 %2919
    %2921 = vrot.lane.b32.xlu0 %v824, 96
    %v2922 = vpop.permute.xlu0 %2921
    %2923 = vrot.lane.b32.xlu0 %v829, 96
    %v2924 = vpop.permute.xlu0 %2923
    %2925 = vrot.lane.b32.xlu0 %v832, 96
    %v2926 = vpop.permute.xlu0 %2925
    %2927 = vrot.lane.b32.xlu0 %v837, 96
    %v2928 = vpop.permute.xlu0 %2927
    %2929 = vrot.lane.b32.xlu0 %v840, 96
    %v2930 = vpop.permute.xlu0 %2929
    %2931 = vrot.lane.b32.xlu0 %v845, 96
    %v2932 = vpop.permute.xlu0 %2931
    %2933 = vrot.lane.b32.xlu0 %v848, 96
    %v2934 = vpop.permute.xlu0 %2933
    %2935 = vrot.lane.b32.xlu0 %v853, 96
    %v2936 = vpop.permute.xlu0 %2935
    %2937 = vrot.lane.b32.xlu0 %v856, 96
    %v2938 = vpop.permute.xlu0 %2937
    %2939 = vrot.lane.b32.xlu0 %v861, 96
    %v2940 = vpop.permute.xlu0 %2939
    %2941 = vrot.lane.b32.xlu0 %v864, 96
    %v2942 = vpop.permute.xlu0 %2941
    %2943 = vrot.lane.b32.xlu0 %v869, 96
    %v2944 = vpop.permute.xlu0 %2943
    %2945 = vrot.lane.b32.xlu0 %v872, 96
    %v2946 = vpop.permute.xlu0 %2945
    %2947 = vrot.lane.b32.xlu0 %v877, 96
    %v2948 = vpop.permute.xlu0 %2947
    %2949 = vrot.lane.b32.xlu0 %v880, 96
    %v2950 = vpop.permute.xlu0 %2949
    %2951 = vrot.lane.b32.xlu0 %v885, 96
    %v2952 = vpop.permute.xlu0 %2951
    %2953 = vrot.lane.b32.xlu0 %v888, 96
    %v2954 = vpop.permute.xlu0 %2953
    %2955 = vrot.lane.b32.xlu0 %v893, 96
    %v2956 = vpop.permute.xlu0 %2955
    %2957 = vrot.lane.b32.xlu0 %v896, 96
    %v2958 = vpop.permute.xlu0 %2957
    %2959 = vrot.lane.b32.xlu0 %v901, 96
    %v2960 = vpop.permute.xlu0 %2959
    %2961 = vrot.lane.b32.xlu0 %v904, 96
    %v2962 = vpop.permute.xlu0 %2961
    %2963 = vrot.lane.b32.xlu0 %v909, 96
    %v2964 = vpop.permute.xlu0 %2963
    %2965 = vrot.lane.b32.xlu0 %v912, 96
    %v2966 = vpop.permute.xlu0 %2965
    %2967 = vrot.lane.b32.xlu0 %v917, 96
    %v2968 = vpop.permute.xlu0 %2967
    %2969 = vrot.lane.b32.xlu0 %v920, 96
    %v2970 = vpop.permute.xlu0 %2969
    %2971 = vrot.lane.b32.xlu0 %v925, 96
    %v2972 = vpop.permute.xlu0 %2971
    %2973 = vrot.lane.b32.xlu0 %v928, 96
    %v2974 = vpop.permute.xlu0 %2973
    %2975 = vrot.lane.b32.xlu0 %v933, 96
    %v2976 = vpop.permute.xlu0 %2975
    %2977 = vrot.lane.b32.xlu0 %v936, 96
    %v2978 = vpop.permute.xlu0 %2977
    %2979 = vrot.lane.b32.xlu0 %v941, 96
    %v2980 = vpop.permute.xlu0 %2979
    %2981 = vrot.lane.b32.xlu0 %v944, 96
    %v2982 = vpop.permute.xlu0 %2981
    %2983 = vrot.lane.b32.xlu0 %v949, 96
    %v2984 = vpop.permute.xlu0 %2983
    %2985 = vrot.lane.b32.xlu0 %v952, 96
    %v2986 = vpop.permute.xlu0 %2985
    %2987 = vrot.lane.b32.xlu0 %v957, 96
    %v2988 = vpop.permute.xlu0 %2987
    %2989 = vrot.lane.b32.xlu0 %v960, 96
    %v2990 = vpop.permute.xlu0 %2989
    %2991 = vrot.lane.b32.xlu0 %v965, 96
    %v2992 = vpop.permute.xlu0 %2991
    %2993 = vrot.lane.b32.xlu0 %v968, 96
    %v2994 = vpop.permute.xlu0 %2993
    %2995 = vrot.lane.b32.xlu0 %v973, 96
    %v2996 = vpop.permute.xlu0 %2995
    %2997 = vrot.lane.b32.xlu0 %v976, 96
    %v2998 = vpop.permute.xlu0 %2997
    %2999 = vrot.lane.b32.xlu0 %v981, 96
    %v3000 = vpop.permute.xlu0 %2999
    %3001 = vrot.lane.b32.xlu0 %v984, 96
    %v3002 = vpop.permute.xlu0 %3001
    %3003 = vrot.lane.b32.xlu0 %v989, 96
    %v3004 = vpop.permute.xlu0 %3003
    %3005 = vrot.lane.b32.xlu0 %v992, 96
    %v3006 = vpop.permute.xlu0 %3005
    %3007 = vrot.lane.b32.xlu0 %v997, 96
    %v3008 = vpop.permute.xlu0 %3007
    %3009 = vrot.lane.b32.xlu0 %v1000, 96
    %v3010 = vpop.permute.xlu0 %3009
    %3011 = vrot.lane.b32.xlu0 %v1005, 96
    %v3012 = vpop.permute.xlu0 %3011
    %3013 = vrot.lane.b32.xlu0 %v1008, 96
    %v3014 = vpop.permute.xlu0 %3013
    %3015 = vrot.lane.b32.xlu0 %v1013, 96
    %v3016 = vpop.permute.xlu0 %3015
    %3017 = vrot.lane.b32.xlu0 %v1016, 96
    %v3018 = vpop.permute.xlu0 %3017
    %v3075 = vmul.f32 %v2624, %v2908
    %v3076 = vmul.f32 %v2627, %v2910
    %v3077 = vmul.f32 %v2632, %v2912
    %v3078 = vmul.f32 %v2635, %v2914
    %v3079 = vmul.f32 %v2640, %v2916
    %v3080 = vmul.f32 %v2643, %v2918
    %v3081 = vmul.f32 %v2648, %v2920
    %v3082 = vmul.f32 %v2651, %v2922
    %v3083 = vmul.f32 %v2656, %v2924
    %v3084 = vmul.f32 %v2659, %v2926
    %v3085 = vmul.f32 %v2664, %v2928
    %v3086 = vmul.f32 %v2667, %v2930
    %v3087 = vmul.f32 %v2672, %v2932
    %v3088 = vmul.f32 %v2675, %v2934
    %v3089 = vmul.f32 %v2680, %v2936
    %v3090 = vmul.f32 %v2683, %v2938
    %v3091 = vmul.f32 %v2688, %v2940
    %v3092 = vmul.f32 %v2691, %v2942
    %v3093 = vmul.f32 %v2696, %v2944
    %v3094 = vmul.f32 %v2699, %v2946
    %v3095 = vmul.f32 %v2704, %v2948
    %v3096 = vmul.f32 %v2707, %v2950
    %v3097 = vmul.f32 %v2712, %v2952
    %v3098 = vmul.f32 %v2715, %v2954
    %v3099 = vmul.f32 %v2720, %v2956
    %v3100 = vmul.f32 %v2723, %v2958
    %v3101 = vmul.f32 %v2728, %v2960
    %v3102 = vmul.f32 %v2731, %v2962
    %v3103 = vmul.f32 %v2736, %v2964
    %v3104 = vmul.f32 %v2739, %v2966
    %v3105 = vmul.f32 %v2744, %v2968
    %v3106 = vmul.f32 %v2747, %v2970
    %v3107 = vmul.f32 %v2752, %v2972
    %v3108 = vmul.f32 %v2755, %v2974
    %v3109 = vmul.f32 %v2760, %v2976
    %v3110 = vmul.f32 %v2763, %v2978
    %v3111 = vmul.f32 %v2768, %v2980
    %v3112 = vmul.f32 %v2771, %v2982
    %v3113 = vmul.f32 %v2776, %v2984
    %v3114 = vmul.f32 %v2779, %v2986
    %v3115 = vmul.f32 %v2784, %v2988
    %v3116 = vmul.f32 %v2787, %v2990
    %v3117 = vmul.f32 %v2792, %v2992
    %v3118 = vmul.f32 %v2795, %v2994
    %v3119 = vmul.f32 %v2800, %v2996
    %v3120 = vmul.f32 %v2803, %v2998
    %v3121 = vmul.f32 %v2808, %v3000
    %v3122 = vmul.f32 %v2811, %v3002
    %v3123 = vmul.f32 %v2816, %v3004
    %v3124 = vmul.f32 %v2819, %v3006
    %v3125 = vmul.f32 %v2824, %v3008
    %v3126 = vmul.f32 %v2827, %v3010
    %v3127 = vmul.f32 %v2832, %v3012
    %v3128 = vmul.f32 %v2835, %v3014
    %v3129 = vmul.f32 %v2840, %v3016
    %v3130 = vmul.f32 %v2843, %v3018
    %v3131 = vsel %vm235, %v3075, 0.0
    %v3132 = vsel %vm235, %v3076, 0.0
    %v3133 = vadd.f32 %v3131, %v3132
    %v3134 = vsel %vm235, %v3077, 0.0
    %v3135 = vadd.f32 %v3133, %v3134
    %v3136 = vsel %vm235, %v3078, 0.0
    %v3137 = vadd.f32 %v3135, %v3136
    %v3138 = vsel %vm235, %v3079, 0.0
    %v3139 = vadd.f32 %v3137, %v3138
    %v3140 = vsel %vm235, %v3080, 0.0
    %v3141 = vadd.f32 %v3139, %v3140
    %v3142 = vsel %vm235, %v3081, 0.0
    %v3143 = vadd.f32 %v3141, %v3142
    %v3144 = vrot.slane %v3143, 4
    %v3145 = vadd.f32 %v3143, %v3144
    %v3146 = vrot.slane %v3145, 2
    %v3147 = vadd.f32 %v3145, %v3146
    %v3148 = vrot.slane %v3147, 1
    %v3149 = vadd.f32 %v3147, %v3148
    %v3150 = vsel %vm235, %v3082, 0.0
    %v3151 = vsel %vm235, %v3083, 0.0
    %v3152 = vadd.f32 %v3150, %v3151
    %v3153 = vsel %vm235, %v3084, 0.0
    %v3154 = vadd.f32 %v3152, %v3153
    %v3155 = vsel %vm235, %v3085, 0.0
    %v3156 = vadd.f32 %v3154, %v3155
    %v3157 = vsel %vm235, %v3086, 0.0
    %v3158 = vadd.f32 %v3156, %v3157
    %v3159 = vsel %vm235, %v3087, 0.0
    %v3160 = vadd.f32 %v3158, %v3159
    %v3161 = vsel %vm235, %v3088, 0.0
    %v3162 = vadd.f32 %v3160, %v3161
    %v3163 = vrot.slane %v3162, 4
    %v3164 = vadd.f32 %v3162, %v3163
    %v3165 = vrot.slane %v3164, 2
    %v3166 = vadd.f32 %v3164, %v3165
    %v3167 = vrot.slane %v3166, 1
    %v3168 = vadd.f32 %v3166, %v3167
    %v3169 = vsel %vm235, %v3089, 0.0
    %v3170 = vsel %vm235, %v3090, 0.0
    %v3171 = vadd.f32 %v3169, %v3170
    %v3172 = vsel %vm235, %v3091, 0.0
    %v3173 = vadd.f32 %v3171, %v3172
    %v3174 = vsel %vm235, %v3092, 0.0
    %v3175 = vadd.f32 %v3173, %v3174
    %v3176 = vsel %vm235, %v3093, 0.0
    %v3177 = vadd.f32 %v3175, %v3176
    %v3178 = vsel %vm235, %v3094, 0.0
    %v3179 = vadd.f32 %v3177, %v3178
    %v3180 = vsel %vm235, %v3095, 0.0
    %v3181 = vadd.f32 %v3179, %v3180
    %v3182 = vrot.slane %v3181, 4
    %v3183 = vadd.f32 %v3181, %v3182
    %v3184 = vrot.slane %v3183, 2
    %v3185 = vadd.f32 %v3183, %v3184
    %v3186 = vrot.slane %v3185, 1
    %v3187 = vadd.f32 %v3185, %v3186
    %v3188 = vsel %vm235, %v3096, 0.0
    %v3189 = vsel %vm235, %v3097, 0.0
    %v3190 = vadd.f32 %v3188, %v3189
    %v3191 = vsel %vm235, %v3098, 0.0
    %v3192 = vadd.f32 %v3190, %v3191
    %v3193 = vsel %vm235, %v3099, 0.0
    %v3194 = vadd.f32 %v3192, %v3193
    %v3195 = vsel %vm235, %v3100, 0.0
    %v3196 = vadd.f32 %v3194, %v3195
    %v3197 = vsel %vm235, %v3101, 0.0
    %v3198 = vadd.f32 %v3196, %v3197
    %v3199 = vsel %vm235, %v3102, 0.0
    %v3200 = vadd.f32 %v3198, %v3199
    %v3201 = vrot.slane %v3200, 4
    %v3202 = vadd.f32 %v3200, %v3201
    %v3203 = vrot.slane %v3202, 2
    %v3204 = vadd.f32 %v3202, %v3203
    %v3205 = vrot.slane %v3204, 1
    %v3206 = vadd.f32 %v3204, %v3205
    %v3207 = vsel %vm235, %v3103, 0.0
    %v3208 = vsel %vm235, %v3104, 0.0
    %v3209 = vadd.f32 %v3207, %v3208
    %v3210 = vsel %vm235, %v3105, 0.0
    %v3211 = vadd.f32 %v3209, %v3210
    %v3212 = vsel %vm235, %v3106, 0.0
    %v3213 = vadd.f32 %v3211, %v3212
    %v3214 = vsel %vm235, %v3107, 0.0
    %v3215 = vadd.f32 %v3213, %v3214
    %v3216 = vsel %vm235, %v3108, 0.0
    %v3217 = vadd.f32 %v3215, %v3216
    %v3218 = vsel %vm235, %v3109, 0.0
    %v3219 = vadd.f32 %v3217, %v3218
    %v3220 = vrot.slane %v3219, 4
    %v3221 = vadd.f32 %v3219, %v3220
    %v3222 = vrot.slane %v3221, 2
    %v3223 = vadd.f32 %v3221, %v3222
    %v3224 = vrot.slane %v3223, 1
    %v3225 = vadd.f32 %v3223, %v3224
    %v3226 = vsel %vm235, %v3110, 0.0
    %v3227 = vsel %vm235, %v3111, 0.0
    %v3228 = vadd.f32 %v3226, %v3227
    %v3229 = vsel %vm235, %v3112, 0.0
    %v3230 = vadd.f32 %v3228, %v3229
    %v3231 = vsel %vm235, %v3113, 0.0
    %v3232 = vadd.f32 %v3230, %v3231
    %v3233 = vsel %vm235, %v3114, 0.0
    %v3234 = vadd.f32 %v3232, %v3233
    %v3235 = vsel %vm235, %v3115, 0.0
    %v3236 = vadd.f32 %v3234, %v3235
    %v3237 = vsel %vm235, %v3116, 0.0
    %v3238 = vadd.f32 %v3236, %v3237
    %v3239 = vrot.slane %v3238, 4
    %v3240 = vadd.f32 %v3238, %v3239
    %v3241 = vrot.slane %v3240, 2
    %v3242 = vadd.f32 %v3240, %v3241
    %v3243 = vrot.slane %v3242, 1
    %v3244 = vadd.f32 %v3242, %v3243
    %v3245 = vsel %vm235, %v3117, 0.0
    %v3246 = vsel %vm235, %v3118, 0.0
    %v3247 = vadd.f32 %v3245, %v3246
    %v3248 = vsel %vm235, %v3119, 0.0
    %v3249 = vadd.f32 %v3247, %v3248
    %v3250 = vsel %vm235, %v3120, 0.0
    %v3251 = vadd.f32 %v3249, %v3250
    %v3252 = vsel %vm235, %v3121, 0.0
    %v3253 = vadd.f32 %v3251, %v3252
    %v3254 = vsel %vm235, %v3122, 0.0
    %v3255 = vadd.f32 %v3253, %v3254
    %v3256 = vsel %vm235, %v3123, 0.0
    %v3257 = vadd.f32 %v3255, %v3256
    %v3258 = vrot.slane %v3257, 4
    %v3259 = vadd.f32 %v3257, %v3258
    %v3260 = vrot.slane %v3259, 2
    %v3261 = vadd.f32 %v3259, %v3260
    %v3262 = vrot.slane %v3261, 1
    %v3263 = vadd.f32 %v3261, %v3262
    %v3264 = vsel %vm235, %v3124, 0.0
    %v3265 = vsel %vm235, %v3125, 0.0
    %v3266 = vadd.f32 %v3264, %v3265
    %v3267 = vsel %vm235, %v3126, 0.0
    %v3268 = vadd.f32 %v3266, %v3267
    %v3269 = vsel %vm235, %v3127, 0.0
    %v3270 = vadd.f32 %v3268, %v3269
    %v3271 = vsel %vm235, %v3128, 0.0
    %v3272 = vadd.f32 %v3270, %v3271
    %v3273 = vsel %vm235, %v3129, 0.0
    %v3274 = vadd.f32 %v3272, %v3273
    %v3275 = vsel %vm235, %v3130, 0.0
    %v3276 = vadd.f32 %v3274, %v3275
    %v3277 = vrot.slane %v3276, 4
    %v3278 = vadd.f32 %v3276, %v3277
    %v3279 = vrot.slane %v3278, 2
    %v3280 = vadd.f32 %v3278, %v3279
    %v3281 = vrot.slane %v3280, 1
    %v3282 = vadd.f32 %v3280, %v3281
    %v3291 = vsel %vm538, %v3168, %v3149
    %v3292 = vsel %vm541, %v3187, %v3291
    %v3293 = vsel %vm544, %v3206, %v3292
    %v3294 = vsel %vm547, %v3225, %v3293
    %v3295 = vsel %vm550, %v3244, %v3294
    %v3296 = vsel %vm553, %v3263, %v3295
    %v3297 = vsel %vm556, %v3282, %v3296
    %v3299 = vadd.f32 %v2850, %v3297
    %v3300 = vpack.c.bf16 %v3299, %v3299
    %v3301 = vld [vmem:[#allocation14] sm:$0xf]
    %v3302 = vld [vmem:[#allocation14 + $0x4] sm:$0xf]
    %v3303 = vld [vmem:[#allocation14 + $0x8] sm:$0xf]
    %v3304 = vld [vmem:[#allocation14 + $0xc] sm:$0xf]
    %v3305 = vld [vmem:[#allocation16] sm:$0x1]
    %v3307 = vlaneseq
    %v3308 = vshrl.u32 %v3307, 7
    %v3309 = vsub.s32 0, %v3308
    %v3310 = vrot.slane %v3305, %v3309
    %v3316 = vunpack.c.l.b16 %v3301
    %v3317 = vunpack.c.l.b16 %v3302
    %v3318 = vunpack.c.l.b16 %v3303
    %v3319 = vunpack.c.l.b16 %v3304
    %v3320 = vpack.c.b16 %v3317, %v3316
    %v3321 = vpack.c.b16 %v3319, %v3318
    %v3325 = vsel %vm235, %v3300, 0
    %3327 = vmatprep.subr.bf16.mxu0 0
    %3328 = vmatpush1.bf16.msra.mxu0 %v3320
    %3329 = vmatprep.subr.bf16.mxu0 0
    %3330 = vmatpush1.bf16.msra.mxu0 %v3321
    %3331 = vmatprep.subr.bf16.mxu0 0
    %3332 = vmatpush1.bf16.msra.mxu0 0
    %3333 = vmatprep.subr.bf16.mxu0 0
    %3334 = vmatpush1.bf16.msra.mxu0 0
    %3335 = vmatprep.subr.bf16.mxu0 0
    %3336 = vmatpush1.bf16.msra.mxu0 0
    %3337 = vmatprep.subr.bf16.mxu0 0
    %3338 = vmatpush1.bf16.msra.mxu0 0
    %3339 = vmatprep.subr.bf16.mxu0 0
    %3340 = vmatpush1.bf16.msra.mxu0 0
    %3341 = vmatprep.subr.bf16.mxu0 0
    %3342 = vmatpush1.bf16.msra.mxu0 0
    %3343 = vmatprep.subr.bf16.mxu0 0
    %3344 = vmatpush1.bf16.msra.mxu0 0
    %3345 = vmatprep.subr.bf16.mxu0 0
    %3346 = vmatpush1.bf16.msra.mxu0 0
    %3347 = vmatprep.subr.bf16.mxu0 0
    %3348 = vmatpush1.bf16.msra.mxu0 0
    %3349 = vmatprep.subr.bf16.mxu0 0
    %3350 = vmatpush1.bf16.msra.mxu0 0
    %3351 = vmatprep.subr.bf16.mxu0 0
    %3352 = vmatpush1.bf16.msra.mxu0 0
    %3353 = vmatprep.subr.bf16.mxu0 0
    %3354 = vmatpush1.bf16.msra.mxu0 0
    %3355 = vmatprep.subr.bf16.mxu0 0
    %3356 = vmatpush1.bf16.msra.mxu0 0
    %3357 = vmatprep.subr.bf16.mxu0 0
    %3358 = vmatpush1.bf16.msra.mxu0 0
    %3359 = vmatprep.mubr.bf16.mxu0 0
    %3360 = vmatmul.mubr.bf16.gmra.mrb[0].mxu0 %v3325
    %v3361 = vpop.f32.mrb[0].mxu0
    %v3362 = vadd.f32 %v3310, %v3361
    %v3363 = vpop.f32.mrb[0].mxu0
    %v3364 = vpop.f32.mrb[0].mxu0
    %v3365 = vpop.f32.mrb[0].mxu0
    %3366 = vdwg.mxu0
    %3367 = vst [vmem:[#allocation20] sm:$0xff] %v3362
    // Predicated region
    $region90: #{tpu_custom_call.1} parent=1 // pred_check
      _
    $region91: #{tpu_custom_call.1} parent=1 // pred_check_branch
      %3369 = sbr.rel (0) target = $region93
    $region92: #{tpu_custom_call.1} parent=1 // pred_region
      %s3371 = ssub.s32 128, 128
      %3372 = vsyncadd [#allocation4], %s3371
      %s3374 = sshll.u32 [#allocation20], 4
      %s3375 = int_to_ptr.vmem [resolvable:$true] %s3374
      %3377 = dma.vmem_to_hbm [thread:$0]  %s3375, 128, %s11, [#allocation4]
    $region93: #{tpu_custom_call.1} parent=1 // pred_fallthru
      _
    // Predicated region
    $region94: #{tpu_custom_call.1} parent=1 // pred_check
      _
    $region95: #{tpu_custom_call.1} parent=1 // pred_check_branch
      %3379 = sbr.rel (0) target = $region97
    $region96: #{tpu_custom_call.1} parent=1 // pred_region
      %3380 = dma.done [#allocation4], 128
    $region97: #{tpu_custom_call.1} parent=1 // pred_fallthru
      _
    %3381 = vsyncpa [#allocation3], 1
    %3382 = vsyncpa [#allocation6], 1
    %3383 = vsyncpa [#allocation9], 1
    %3384 = vsyncpa [#allocation12], 1
    %3385 = vsyncpa [#allocation15], 1
    %3386 = vsyncpa [#allocation18], 1
    %3387 = vsyncpa [#allocation4], 1

</llo_original>
